<compile_context>
chip_gen: v5e
topology: v5e:2x2
jax: 0.10.0
libtpu: 0.0.40
codegen_flags: <defaults>
</compile_context>

<pallas_src>
import jax
import jax.numpy as jnp
from jax.experimental import pallas as pl
from jax.experimental.pallas import tpu as pltpu


LANE = 128


def _round_up(x, m):
    return (x + m - 1) // m * m


def _vmem_capacity_bytes():
    try:
        info = pltpu.get_tpu_info()
        for attr in ("vmem_capacity_bytes", "vmem_size_bytes", "vmem_bytes"):
            v = getattr(info, attr, None)
            if v:
                return int(v)
    except Exception:
        pass
    return 64 * 1024 * 1024                     # conservative (v7x-sized) fallback


_VMEM_CAP = _vmem_capacity_bytes()
# Scoped VMEM limit handed to Mosaic, and the budget used for tile sizing.
VMEM_LIMIT_BYTES = max(32 * 1024 * 1024,
                       min(int(_VMEM_CAP * 3 // 4), _VMEM_CAP - (8 << 20)))
VMEM_TILE_BUDGET = max(16 * 1024 * 1024, _VMEM_CAP // 2)


def _pick_t_oh(oh, owp, hp, wpp, cin, coutp, k, y_bytes, budget):
    """Largest divisor of OH whose per-grid-step VMEM footprint fits `budget`."""
    # Invariant operands (padded image is per-n, weights constant) counted 2x.
    fixed = 2 * (hp * wpp * cin * 2) + 2 * (k * k * cin * coutp * 2)
    for d in range(oh, 0, -1):
        if oh % d:
            continue
        rows = d * owp
        per = 2 * rows * coutp * y_bytes        # double-buffered output tile
        per += rows * coutp * 4                 # f32 accumulator
        per += 2 * rows * cin * 4               # window / lhs temporaries
        if fixed + per <= budget:
            return d
    return 1


def _pick_rows2(mp, owp, coutp, budget):
    """Largest multiple of owp that divides mp and fits the pass-2 budget."""
    per_row = 2 * coutp * (2 + 2)               # dbuf * (bf16 in + bf16 out)
    cap = max(owp, budget // max(per_row, 1))
    q = mp // owp
    for d in range(q, 0, -1):
        if q % d == 0 and d * owp <= cap:
            return d * owp
    return owp


# ---------------------------------------------------------------------------
# Pallas kernels
# ---------------------------------------------------------------------------
def _make_conv_kernel(k, t_oh, owp, ow, cin, coutp, use_stats, activation):
    """ConvTranspose (as stride-1 conv on the dilated+padded image) for one
    (image, oh-tile) grid step.  The k*k im2col gather happens in VMEM.
    If use_stats: also accumulate per-channel sum / sum-of-squares for BN."""
    rows = t_oh * owp

    def kernel(xp_ref, w_ref, *out_refs):
        t = pl.program_id(1)
        oh0 = t * t_oh
        acc = jnp.zeros((rows, coutp), jnp.float32)
        for kh in range(k):
            for kw in range(k):
                win = xp_ref[pl.ds(oh0 + kh, t_oh), pl.ds(kw, owp), :]
                lhs = win.reshape(rows, cin)            # owp % 8 == 0 -> trivial
                acc = acc + jnp.dot(lhs, w_ref[kh * k + kw, :, :],
                                    preferred_element_type=jnp.float32)
        if ow != owp:
            # Zero the padded output columns so they contribute nothing to the
            # BN statistics (they are sliced off again in the wrapper).
            col = jax.lax.broadcasted_iota(jnp.int32, (rows, 1), 0) % owp
            acc = jnp.where(col < ow, acc, 0.0)

        if use_stats:
            y_ref, sum_ref, ssq_ref = out_refs
            y_ref[...] = acc.astype(y_ref.dtype)

            @pl.when(t == 0)
            def _():
                sum_ref[...] = jnp.zeros_like(sum_ref)
                ssq_ref[...] = jnp.zeros_like(ssq_ref)

            sum_ref[...] += jnp.sum(acc, axis=0, keepdims=True)
            ssq_ref[...] += jnp.sum(acc * acc, axis=0, keepdims=True)
        else:
            (y_ref,) = out_refs
            if activation == "relu":
                acc = jnp.maximum(acc, 0.0)
            elif activation == "tanh":
                acc = jnp.tanh(acc)
            y_ref[...] = acc.astype(y_ref.dtype)

    return kernel


def _make_scale_act_kernel(activation):
    """y * scale + shift (folded BatchNorm) + activation, tiled over rows."""
    def kernel(y_ref, scale_ref, shift_ref, o_ref):
        y = y_ref[...].astype(jnp.float32) * scale_ref[...] + shift_ref[...]
        if activation == "relu":
            y = jnp.maximum(y, 0.0)
        elif activation == "tanh":
            y = jnp.tanh(y)
        o_ref[...] = y.astype(o_ref.dtype)
    return kernel


# ---------------------------------------------------------------------------
# One Generator layer: ConvTranspose2d(bias=False) [+ BN(batch stats)] + act
# ---------------------------------------------------------------------------
def run_layer(x_nhwc, w_k, gamma_p, beta_p, cout, k, s, p, use_bn, activation,
              is_last):
    N, H, W, cin = x_nhwc.shape
    coutp = w_k.shape[-1]
    OH = (H - 1) * s - 2 * p + k
    OW = (W - 1) * s - 2 * p + k
    owp = _round_up(max(OW, 8), 8)
    extra_w = owp - OW
    pad = k - 1 - p
    assert pad >= 0, "ConvTranspose padding must satisfy p <= k - 1"

    # Dilate (zero-insert for stride) + pad in XLA; everything stays bf16.
    x = x_nhwc.astype(jnp.bfloat16)
    if s > 1:
        hd, wd = (H - 1) * s + 1, (W - 1) * s + 1
        xd = jnp.zeros((N, hd, wd, cin), jnp.bfloat16).at[:, ::s, ::s, :].set(x)
    else:
        xd = x
    xp = jnp.pad(xd, ((0, 0), (pad, pad), (pad, pad + extra_w), (0, 0)))
    HP, WPp = int(xp.shape[1]), int(xp.shape[2])

    y_dtype = jnp.float32 if is_last else jnp.bfloat16
    y_bytes = 4 if is_last else 2
    t_oh = _pick_t_oh(OH, owp, HP, WPp, cin, coutp, k, y_bytes, VMEM_TILE_BUDGET)
    num_t = OH // t_oh
    rows = t_oh * owp
    mp = N * OH * owp

    xp_spec = pl.BlockSpec((None, HP, WPp, cin), lambda n, t: (n, 0, 0, 0))
    w_spec = pl.BlockSpec((k * k, cin, coutp), lambda n, t: (0, 0, 0))
    y_spec = pl.BlockSpec((rows, coutp), lambda n, t: (n * num_t + t, 0))
    stat_spec = pl.BlockSpec((None, 1, coutp), lambda n, t: (n, 0, 0))

    kern = _make_conv_kernel(k, t_oh, owp, OW, cin, coutp, use_bn, activation)

    if use_bn:
        out_shape = (jax.ShapeDtypeStruct((mp, coutp), y_dtype),
                     jax.ShapeDtypeStruct((N, 1, coutp), jnp.float32),
                     jax.ShapeDtypeStruct((N, 1, coutp), jnp.float32))
        out_specs = (y_spec, stat_spec, stat_spec)
        dims = ("parallel", "arbitrary")      # stats accumulate over oh tiles
    else:
        out_shape = jax.ShapeDtypeStruct((mp, coutp), y_dtype)
        out_specs = y_spec
        dims = ("parallel", "parallel")

    res = pl.pallas_call(
        kern,
        out_shape=out_shape,
        grid_spec=pltpu.PrefetchScalarGridSpec(
            num_scalar_prefetch=0, grid=(N, num_t),
            in_specs=[xp_spec, w_spec], out_specs=out_specs),
        compiler_params=pltpu.CompilerParams(
            dimension_semantics=dims, vmem_limit_bytes=VMEM_LIMIT_BYTES),
    )(xp, w_k)

    if use_bn:
        y, psum, pssq = res
        # Combine per-image partials; padded rows/cols contributed exactly 0.
        m_true = float(N * OH * OW)
        csum = jnp.sum(psum, axis=0)                       # (1, coutp)
        cssq = jnp.sum(pssq, axis=0)
        mean = csum / m_true
        var = cssq / m_true - mean * mean                  # biased, training BN
        inv_std = jax.lax.rsqrt(var + 1e-5)
        scale = gamma_p * inv_std
        shift = beta_p - mean * scale

        tm2 = _pick_rows2(mp, owp, coutp, VMEM_TILE_BUDGET)
        row2 = pl.BlockSpec((tm2, coutp), lambda i: (i, 0))
        vec2 = pl.BlockSpec((1, coutp), lambda i: (0, 0))
        y = pl.pallas_call(
            _make_scale_act_kernel(activation),
            out_shape=jax.ShapeDtypeStruct((mp, coutp), jnp.bfloat16),
            grid_spec=pltpu.PrefetchScalarGridSpec(
                num_scalar_prefetch=0, grid=(mp // tm2,),
                in_specs=[row2, vec2, vec2], out_specs=row2),
            input_output_aliases={0: 0},                   # y is dead after this
            compiler_params=pltpu.CompilerParams(
                dimension_semantics=("parallel",),
                vmem_limit_bytes=VMEM_LIMIT_BYTES),
        )(y, scale, shift)
    else:
        y = res

    # Drop width/channel padding; stay NHWC (bf16 except the final layer).
    return y.reshape(N, OH, owp, coutp)[:, :, :OW, :cout]


# ---------------------------------------------------------------------------
# Generator: deterministic init matching the PyTorch module's _init_weights
# (ConvT weight ~ N(0, 0.02), BN gamma ~ N(0, 0.02), BN beta = 0) and forward.
# ---------------------------------------------------------------------------
def init_generator_params(key, channels, kernels, batch_norm):
    params = []
    n_layers = len(channels) - 1
    for i in range(1, len(channels)):
        cin, cout, k = channels[i - 1], channels[i], kernels[i]
        key, wk, gk = jax.random.split(key, 3)
        # ConvTranspose2d weight (Cin, Cout, Kh, Kw), N(0, 0.02), bias=False.
        Wi = 0.02 * jax.random.normal(wk, (cin, cout, k, k), jnp.float32)
        # Equivalent stride-1 conv on the dilated+padded input uses the
        # spatially flipped kernel:  w_k[kh*k+kw, ci, co] = Wi[ci, co, K-1-kh, K-1-kw]
        w_k = jnp.flip(Wi, axis=(2, 3)).transpose(2, 3, 0, 1).reshape(k * k, cin, cout)
        coutp = _round_up(cout, LANE)
        w_k = jnp.pad(w_k, ((0, 0), (0, 0), (0, coutp - cout))).astype(jnp.bfloat16)
        if batch_norm and i < n_layers:
            gamma = 0.02 * jax.random.normal(gk, (cout,), jnp.float32)
        else:
            gamma = jnp.ones((cout,), jnp.float32)
        beta = jnp.zeros((cout,), jnp.float32)
        gamma_p = jnp.pad(gamma, (0, coutp - cout)).reshape(1, coutp)
        beta_p = jnp.pad(beta, (0, coutp - cout)).reshape(1, coutp)
        params.append((w_k, gamma_p, beta_p))
    return params


def generator_forward(x_nchw, params, channels, kernels, strides, paddings,
                      batch_norm):
    n_layers = len(channels) - 1
    x = x_nchw.transpose(0, 2, 3, 1)                 # NCHW -> NHWC once
    for idx, (w_k, gamma_p, beta_p) in enumerate(params):
        i = idx + 1
        is_last = i == n_layers
        use_bn = batch_norm and not is_last
        activation = "tanh" if is_last else "relu"
        x = run_layer(x, w_k, gamma_p, beta_p, channels[i], kernels[i],
                      strides[i], paddings[i], use_bn, activation, is_last)
    return x.astype(jnp.float32).transpose(0, 3, 1, 2)  # NHWC -> NCHW once


if __name__ == "__main__":
    # Small DCGAN-style configuration:
    #   latent (2, 8, 1, 1) -> (2, 16, 4, 4) -> (2, 8, 8, 8) -> (2, 3, 16, 16)
    channels = [8, 16, 8, 3]
    kernels = [0, 4, 4, 4]
    strides = [0, 1, 2, 2]
    paddings = [0, 0, 1, 1]
    batch_norm = True

    key = jax.random.PRNGKey(0)
    key, xk = jax.random.split(key)
    x = jax.random.normal(xk, (2, channels[0], 1, 1), jnp.float32)

    params = init_generator_params(key, channels, kernels, batch_norm)

    fwd = jax.jit(
        lambda x, p: generator_forward(x, p, channels, kernels, strides,
                                       paddings, batch_norm)
    )
    out = jax.block_until_ready(fwd(x, params))

    assert out.shape == (2, 3, 16, 16), out.shape
    assert bool(jnp.all(jnp.isfinite(out)))
    print("KERNEL_OK")
</pallas_src>

<mosaic_0001>
module attributes {stable_mosaic.version = 11 : i64} {
  func.func @kernel(%arg0: i32, %arg1: i32, %arg2: memref<1x7x11x8xbf16, #tpu.memory_space<vmem>>, %arg3: memref<16x8x128xbf16, #tpu.memory_space<vmem>>, %arg4: memref<32x128xbf16, #tpu.memory_space<vmem>>, %arg5: memref<1x1x128xf32, #tpu.memory_space<vmem>>, %arg6: memref<1x1x128xf32, #tpu.memory_space<vmem>>) attributes {dimension_semantics = [#tpu.dimension_semantics<parallel>, #tpu.dimension_semantics<arbitrary>], iteration_bounds = array<i64: 2, 1>, scalar_prefetch = 0 : i64, scratch_operands = 0 : i64, tpu.core_type = #tpu.core_type<tc>, window_params = [{transform_indices = @transform_0, window_bounds = array<i64: 1, 7, 11, 8>}, {pipeline_mode = #tpu.pipeline_mode<synchronous>, transform_indices = @transform_1, window_bounds = array<i64: 16, 8, 128>}, {transform_indices = @transform_2, window_bounds = array<i64: 32, 128>}, {transform_indices = @transform_3, window_bounds = array<i64: 1, 1, 128>}, {transform_indices = @transform_4, window_bounds = array<i64: 1, 1, 128>}]} {
    %c4_i32 = arith.constant 4 : i32
    %0 = arith.muli %arg1, %c4_i32 : i32
    %cst = arith.constant 0.000000e+00 : f32
    %1 = vector.broadcast %cst : f32 to vector<32x128xf32>
    %c0_i32 = arith.constant 0 : i32
    %2 = arith.addi %0, %c0_i32 : i32
    %c0 = arith.constant 0 : index
    %3 = arith.index_cast %2 : i32 to index
    %c0_0 = arith.constant 0 : index
    %c0_1 = arith.constant 0 : index
    %4 = vector.load %arg2[%c0, %3, %c0_0, %c0_1] : memref<1x7x11x8xbf16, #tpu.memory_space<vmem>>, vector<1x4x8x8xbf16>
    %5 = vector.shape_cast %4 : vector<1x4x8x8xbf16> to vector<4x8x8xbf16>
    %6 = vector.shape_cast %5 : vector<4x8x8xbf16> to vector<32x8xbf16>
    %c0_2 = arith.constant 0 : index
    %c0_3 = arith.constant 0 : index
    %c0_4 = arith.constant 0 : index
    %7 = vector.load %arg3[%c0_2, %c0_3, %c0_4] : memref<16x8x128xbf16, #tpu.memory_space<vmem>>, vector<1x8x128xbf16>
    %8 = vector.shape_cast %7 : vector<1x8x128xbf16> to vector<8x128xbf16>
    %cst_5 = arith.constant dense<0.000000e+00> : vector<32x128xf32>
    %9 = tpu.matmul %6, %8, %cst_5 {dimension_numbers = #tpu.dot_dimension_numbers<[1], [0], [0], [1], [0, 0, 1, 1], [], []>} : vector<32x8xbf16>, vector<8x128xbf16>, vector<32x128xf32> -> vector<32x128xf32>
    %10 = arith.addf %1, %9 : vector<32x128xf32>
    %c0_i32_6 = arith.constant 0 : i32
    %11 = arith.addi %0, %c0_i32_6 : i32
    %c0_7 = arith.constant 0 : index
    %12 = arith.index_cast %11 : i32 to index
    %c1 = arith.constant 1 : index
    %c0_8 = arith.constant 0 : index
    %13 = vector.load %arg2[%c0_7, %12, %c1, %c0_8] : memref<1x7x11x8xbf16, #tpu.memory_space<vmem>>, vector<1x4x8x8xbf16>
    %14 = vector.shape_cast %13 : vector<1x4x8x8xbf16> to vector<4x8x8xbf16>
    %15 = vector.shape_cast %14 : vector<4x8x8xbf16> to vector<32x8xbf16>
    %c1_9 = arith.constant 1 : index
    %c0_10 = arith.constant 0 : index
    %c0_11 = arith.constant 0 : index
    %16 = vector.load %arg3[%c1_9, %c0_10, %c0_11] : memref<16x8x128xbf16, #tpu.memory_space<vmem>>, vector<1x8x128xbf16>
    %17 = vector.shape_cast %16 : vector<1x8x128xbf16> to vector<8x128xbf16>
    %cst_12 = arith.constant dense<0.000000e+00> : vector<32x128xf32>
    %18 = tpu.matmul %15, %17, %cst_12 {dimension_numbers = #tpu.dot_dimension_numbers<[1], [0], [0], [1], [0, 0, 1, 1], [], []>} : vector<32x8xbf16>, vector<8x128xbf16>, vector<32x128xf32> -> vector<32x128xf32>
    %19 = arith.addf %10, %18 : vector<32x128xf32>
    %c0_i32_13 = arith.constant 0 : i32
    %20 = arith.addi %0, %c0_i32_13 : i32
    %c0_14 = arith.constant 0 : index
    %21 = arith.index_cast %20 : i32 to index
    %c2 = arith.constant 2 : index
    %c0_15 = arith.constant 0 : index
    %22 = vector.load %arg2[%c0_14, %21, %c2, %c0_15] : memref<1x7x11x8xbf16, #tpu.memory_space<vmem>>, vector<1x4x8x8xbf16>
    %23 = vector.shape_cast %22 : vector<1x4x8x8xbf16> to vector<4x8x8xbf16>
    %24 = vector.shape_cast %23 : vector<4x8x8xbf16> to vector<32x8xbf16>
    %c2_16 = arith.constant 2 : index
    %c0_17 = arith.constant 0 : index
    %c0_18 = arith.constant 0 : index
    %25 = vector.load %arg3[%c2_16, %c0_17, %c0_18] : memref<16x8x128xbf16, #tpu.memory_space<vmem>>, vector<1x8x128xbf16>
    %26 = vector.shape_cast %25 : vector<1x8x128xbf16> to vector<8x128xbf16>
    %cst_19 = arith.constant dense<0.000000e+00> : vector<32x128xf32>
    %27 = tpu.matmul %24, %26, %cst_19 {dimension_numbers = #tpu.dot_dimension_numbers<[1], [0], [0], [1], [0, 0, 1, 1], [], []>} : vector<32x8xbf16>, vector<8x128xbf16>, vector<32x128xf32> -> vector<32x128xf32>
    %28 = arith.addf %19, %27 : vector<32x128xf32>
    %c0_i32_20 = arith.constant 0 : i32
    %29 = arith.addi %0, %c0_i32_20 : i32
    %c0_21 = arith.constant 0 : index
    %30 = arith.index_cast %29 : i32 to index
    %c3 = arith.constant 3 : index
    %c0_22 = arith.constant 0 : index
    %31 = vector.load %arg2[%c0_21, %30, %c3, %c0_22] : memref<1x7x11x8xbf16, #tpu.memory_space<vmem>>, vector<1x4x8x8xbf16>
    %32 = vector.shape_cast %31 : vector<1x4x8x8xbf16> to vector<4x8x8xbf16>
    %33 = vector.shape_cast %32 : vector<4x8x8xbf16> to vector<32x8xbf16>
    %c3_23 = arith.constant 3 : index
    %c0_24 = arith.constant 0 : index
    %c0_25 = arith.constant 0 : index
    %34 = vector.load %arg3[%c3_23, %c0_24, %c0_25] : memref<16x8x128xbf16, #tpu.memory_space<vmem>>, vector<1x8x128xbf16>
    %35 = vector.shape_cast %34 : vector<1x8x128xbf16> to vector<8x128xbf16>
    %cst_26 = arith.constant dense<0.000000e+00> : vector<32x128xf32>
    %36 = tpu.matmul %33, %35, %cst_26 {dimension_numbers = #tpu.dot_dimension_numbers<[1], [0], [0], [1], [0, 0, 1, 1], [], []>} : vector<32x8xbf16>, vector<8x128xbf16>, vector<32x128xf32> -> vector<32x128xf32>
    %37 = arith.addf %28, %36 : vector<32x128xf32>
    %c1_i32 = arith.constant 1 : i32
    %38 = arith.addi %0, %c1_i32 : i32
    %c0_27 = arith.constant 0 : index
    %39 = arith.index_cast %38 : i32 to index
    %c0_28 = arith.constant 0 : index
    %c0_29 = arith.constant 0 : index
    %40 = vector.load %arg2[%c0_27, %39, %c0_28, %c0_29] : memref<1x7x11x8xbf16, #tpu.memory_space<vmem>>, vector<1x4x8x8xbf16>
    %41 = vector.shape_cast %40 : vector<1x4x8x8xbf16> to vector<4x8x8xbf16>
    %42 = vector.shape_cast %41 : vector<4x8x8xbf16> to vector<32x8xbf16>
    %c4 = arith.constant 4 : index
    %c0_30 = arith.constant 0 : index
    %c0_31 = arith.constant 0 : index
    %43 = vector.load %arg3[%c4, %c0_30, %c0_31] : memref<16x8x128xbf16, #tpu.memory_space<vmem>>, vector<1x8x128xbf16>
    %44 = vector.shape_cast %43 : vector<1x8x128xbf16> to vector<8x128xbf16>
    %cst_32 = arith.constant dense<0.000000e+00> : vector<32x128xf32>
    %45 = tpu.matmul %42, %44, %cst_32 {dimension_numbers = #tpu.dot_dimension_numbers<[1], [0], [0], [1], [0, 0, 1, 1], [], []>} : vector<32x8xbf16>, vector<8x128xbf16>, vector<32x128xf32> -> vector<32x128xf32>
    %46 = arith.addf %37, %45 : vector<32x128xf32>
    %c1_i32_33 = arith.constant 1 : i32
    %47 = arith.addi %0, %c1_i32_33 : i32
    %c0_34 = arith.constant 0 : index
    %48 = arith.index_cast %47 : i32 to index
    %c1_35 = arith.constant 1 : index
    %c0_36 = arith.constant 0 : index
    %49 = vector.load %arg2[%c0_34, %48, %c1_35, %c0_36] : memref<1x7x11x8xbf16, #tpu.memory_space<vmem>>, vector<1x4x8x8xbf16>
    %50 = vector.shape_cast %49 : vector<1x4x8x8xbf16> to vector<4x8x8xbf16>
    %51 = vector.shape_cast %50 : vector<4x8x8xbf16> to vector<32x8xbf16>
    %c5 = arith.constant 5 : index
    %c0_37 = arith.constant 0 : index
    %c0_38 = arith.constant 0 : index
    %52 = vector.load %arg3[%c5, %c0_37, %c0_38] : memref<16x8x128xbf16, #tpu.memory_space<vmem>>, vector<1x8x128xbf16>
    %53 = vector.shape_cast %52 : vector<1x8x128xbf16> to vector<8x128xbf16>
    %cst_39 = arith.constant dense<0.000000e+00> : vector<32x128xf32>
    %54 = tpu.matmul %51, %53, %cst_39 {dimension_numbers = #tpu.dot_dimension_numbers<[1], [0], [0], [1], [0, 0, 1, 1], [], []>} : vector<32x8xbf16>, vector<8x128xbf16>, vector<32x128xf32> -> vector<32x128xf32>
    %55 = arith.addf %46, %54 : vector<32x128xf32>
    %c1_i32_40 = arith.constant 1 : i32
    %56 = arith.addi %0, %c1_i32_40 : i32
    %c0_41 = arith.constant 0 : index
    %57 = arith.index_cast %56 : i32 to index
    %c2_42 = arith.constant 2 : index
    %c0_43 = arith.constant 0 : index
    %58 = vector.load %arg2[%c0_41, %57, %c2_42, %c0_43] : memref<1x7x11x8xbf16, #tpu.memory_space<vmem>>, vector<1x4x8x8xbf16>
    %59 = vector.shape_cast %58 : vector<1x4x8x8xbf16> to vector<4x8x8xbf16>
    %60 = vector.shape_cast %59 : vector<4x8x8xbf16> to vector<32x8xbf16>
    %c6 = arith.constant 6 : index
    %c0_44 = arith.constant 0 : index
    %c0_45 = arith.constant 0 : index
    %61 = vector.load %arg3[%c6, %c0_44, %c0_45] : memref<16x8x128xbf16, #tpu.memory_space<vmem>>, vector<1x8x128xbf16>
    %62 = vector.shape_cast %61 : vector<1x8x128xbf16> to vector<8x128xbf16>
    %cst_46 = arith.constant dense<0.000000e+00> : vector<32x128xf32>
    %63 = tpu.matmul %60, %62, %cst_46 {dimension_numbers = #tpu.dot_dimension_numbers<[1], [0], [0], [1], [0, 0, 1, 1], [], []>} : vector<32x8xbf16>, vector<8x128xbf16>, vector<32x128xf32> -> vector<32x128xf32>
    %64 = arith.addf %55, %63 : vector<32x128xf32>
    %c1_i32_47 = arith.constant 1 : i32
    %65 = arith.addi %0, %c1_i32_47 : i32
    %c0_48 = arith.constant 0 : index
    %66 = arith.index_cast %65 : i32 to index
    %c3_49 = arith.constant 3 : index
    %c0_50 = arith.constant 0 : index
    %67 = vector.load %arg2[%c0_48, %66, %c3_49, %c0_50] : memref<1x7x11x8xbf16, #tpu.memory_space<vmem>>, vector<1x4x8x8xbf16>
    %68 = vector.shape_cast %67 : vector<1x4x8x8xbf16> to vector<4x8x8xbf16>
    %69 = vector.shape_cast %68 : vector<4x8x8xbf16> to vector<32x8xbf16>
    %c7 = arith.constant 7 : index
    %c0_51 = arith.constant 0 : index
    %c0_52 = arith.constant 0 : index
    %70 = vector.load %arg3[%c7, %c0_51, %c0_52] : memref<16x8x128xbf16, #tpu.memory_space<vmem>>, vector<1x8x128xbf16>
    %71 = vector.shape_cast %70 : vector<1x8x128xbf16> to vector<8x128xbf16>
    %cst_53 = arith.constant dense<0.000000e+00> : vector<32x128xf32>
    %72 = tpu.matmul %69, %71, %cst_53 {dimension_numbers = #tpu.dot_dimension_numbers<[1], [0], [0], [1], [0, 0, 1, 1], [], []>} : vector<32x8xbf16>, vector<8x128xbf16>, vector<32x128xf32> -> vector<32x128xf32>
    %73 = arith.addf %64, %72 : vector<32x128xf32>
    %c2_i32 = arith.constant 2 : i32
    %74 = arith.addi %0, %c2_i32 : i32
    %c0_54 = arith.constant 0 : index
    %75 = arith.index_cast %74 : i32 to index
    %c0_55 = arith.constant 0 : index
    %c0_56 = arith.constant 0 : index
    %76 = vector.load %arg2[%c0_54, %75, %c0_55, %c0_56] : memref<1x7x11x8xbf16, #tpu.memory_space<vmem>>, vector<1x4x8x8xbf16>
    %77 = vector.shape_cast %76 : vector<1x4x8x8xbf16> to vector<4x8x8xbf16>
    %78 = vector.shape_cast %77 : vector<4x8x8xbf16> to vector<32x8xbf16>
    %c8 = arith.constant 8 : index
    %c0_57 = arith.constant 0 : index
    %c0_58 = arith.constant 0 : index
    %79 = vector.load %arg3[%c8, %c0_57, %c0_58] : memref<16x8x128xbf16, #tpu.memory_space<vmem>>, vector<1x8x128xbf16>
    %80 = vector.shape_cast %79 : vector<1x8x128xbf16> to vector<8x128xbf16>
    %cst_59 = arith.constant dense<0.000000e+00> : vector<32x128xf32>
    %81 = tpu.matmul %78, %80, %cst_59 {dimension_numbers = #tpu.dot_dimension_numbers<[1], [0], [0], [1], [0, 0, 1, 1], [], []>} : vector<32x8xbf16>, vector<8x128xbf16>, vector<32x128xf32> -> vector<32x128xf32>
    %82 = arith.addf %73, %81 : vector<32x128xf32>
    %c2_i32_60 = arith.constant 2 : i32
    %83 = arith.addi %0, %c2_i32_60 : i32
    %c0_61 = arith.constant 0 : index
    %84 = arith.index_cast %83 : i32 to index
    %c1_62 = arith.constant 1 : index
    %c0_63 = arith.constant 0 : index
    %85 = vector.load %arg2[%c0_61, %84, %c1_62, %c0_63] : memref<1x7x11x8xbf16, #tpu.memory_space<vmem>>, vector<1x4x8x8xbf16>
    %86 = vector.shape_cast %85 : vector<1x4x8x8xbf16> to vector<4x8x8xbf16>
    %87 = vector.shape_cast %86 : vector<4x8x8xbf16> to vector<32x8xbf16>
    %c9 = arith.constant 9 : index
    %c0_64 = arith.constant 0 : index
    %c0_65 = arith.constant 0 : index
    %88 = vector.load %arg3[%c9, %c0_64, %c0_65] : memref<16x8x128xbf16, #tpu.memory_space<vmem>>, vector<1x8x128xbf16>
    %89 = vector.shape_cast %88 : vector<1x8x128xbf16> to vector<8x128xbf16>
    %cst_66 = arith.constant dense<0.000000e+00> : vector<32x128xf32>
    %90 = tpu.matmul %87, %89, %cst_66 {dimension_numbers = #tpu.dot_dimension_numbers<[1], [0], [0], [1], [0, 0, 1, 1], [], []>} : vector<32x8xbf16>, vector<8x128xbf16>, vector<32x128xf32> -> vector<32x128xf32>
    %91 = arith.addf %82, %90 : vector<32x128xf32>
    %c2_i32_67 = arith.constant 2 : i32
    %92 = arith.addi %0, %c2_i32_67 : i32
    %c0_68 = arith.constant 0 : index
    %93 = arith.index_cast %92 : i32 to index
    %c2_69 = arith.constant 2 : index
    %c0_70 = arith.constant 0 : index
    %94 = vector.load %arg2[%c0_68, %93, %c2_69, %c0_70] : memref<1x7x11x8xbf16, #tpu.memory_space<vmem>>, vector<1x4x8x8xbf16>
    %95 = vector.shape_cast %94 : vector<1x4x8x8xbf16> to vector<4x8x8xbf16>
    %96 = vector.shape_cast %95 : vector<4x8x8xbf16> to vector<32x8xbf16>
    %c10 = arith.constant 10 : index
    %c0_71 = arith.constant 0 : index
    %c0_72 = arith.constant 0 : index
    %97 = vector.load %arg3[%c10, %c0_71, %c0_72] : memref<16x8x128xbf16, #tpu.memory_space<vmem>>, vector<1x8x128xbf16>
    %98 = vector.shape_cast %97 : vector<1x8x128xbf16> to vector<8x128xbf16>
    %cst_73 = arith.constant dense<0.000000e+00> : vector<32x128xf32>
    %99 = tpu.matmul %96, %98, %cst_73 {dimension_numbers = #tpu.dot_dimension_numbers<[1], [0], [0], [1], [0, 0, 1, 1], [], []>} : vector<32x8xbf16>, vector<8x128xbf16>, vector<32x128xf32> -> vector<32x128xf32>
    %100 = arith.addf %91, %99 : vector<32x128xf32>
    %c2_i32_74 = arith.constant 2 : i32
    %101 = arith.addi %0, %c2_i32_74 : i32
    %c0_75 = arith.constant 0 : index
    %102 = arith.index_cast %101 : i32 to index
    %c3_76 = arith.constant 3 : index
    %c0_77 = arith.constant 0 : index
    %103 = vector.load %arg2[%c0_75, %102, %c3_76, %c0_77] : memref<1x7x11x8xbf16, #tpu.memory_space<vmem>>, vector<1x4x8x8xbf16>
    %104 = vector.shape_cast %103 : vector<1x4x8x8xbf16> to vector<4x8x8xbf16>
    %105 = vector.shape_cast %104 : vector<4x8x8xbf16> to vector<32x8xbf16>
    %c11 = arith.constant 11 : index
    %c0_78 = arith.constant 0 : index
    %c0_79 = arith.constant 0 : index
    %106 = vector.load %arg3[%c11, %c0_78, %c0_79] : memref<16x8x128xbf16, #tpu.memory_space<vmem>>, vector<1x8x128xbf16>
    %107 = vector.shape_cast %106 : vector<1x8x128xbf16> to vector<8x128xbf16>
    %cst_80 = arith.constant dense<0.000000e+00> : vector<32x128xf32>
    %108 = tpu.matmul %105, %107, %cst_80 {dimension_numbers = #tpu.dot_dimension_numbers<[1], [0], [0], [1], [0, 0, 1, 1], [], []>} : vector<32x8xbf16>, vector<8x128xbf16>, vector<32x128xf32> -> vector<32x128xf32>
    %109 = arith.addf %100, %108 : vector<32x128xf32>
    %c3_i32 = arith.constant 3 : i32
    %110 = arith.addi %0, %c3_i32 : i32
    %c0_81 = arith.constant 0 : index
    %111 = arith.index_cast %110 : i32 to index
    %c0_82 = arith.constant 0 : index
    %c0_83 = arith.constant 0 : index
    %112 = vector.load %arg2[%c0_81, %111, %c0_82, %c0_83] : memref<1x7x11x8xbf16, #tpu.memory_space<vmem>>, vector<1x4x8x8xbf16>
    %113 = vector.shape_cast %112 : vector<1x4x8x8xbf16> to vector<4x8x8xbf16>
    %114 = vector.shape_cast %113 : vector<4x8x8xbf16> to vector<32x8xbf16>
    %c12 = arith.constant 12 : index
    %c0_84 = arith.constant 0 : index
    %c0_85 = arith.constant 0 : index
    %115 = vector.load %arg3[%c12, %c0_84, %c0_85] : memref<16x8x128xbf16, #tpu.memory_space<vmem>>, vector<1x8x128xbf16>
    %116 = vector.shape_cast %115 : vector<1x8x128xbf16> to vector<8x128xbf16>
    %cst_86 = arith.constant dense<0.000000e+00> : vector<32x128xf32>
    %117 = tpu.matmul %114, %116, %cst_86 {dimension_numbers = #tpu.dot_dimension_numbers<[1], [0], [0], [1], [0, 0, 1, 1], [], []>} : vector<32x8xbf16>, vector<8x128xbf16>, vector<32x128xf32> -> vector<32x128xf32>
    %118 = arith.addf %109, %117 : vector<32x128xf32>
    %c3_i32_87 = arith.constant 3 : i32
    %119 = arith.addi %0, %c3_i32_87 : i32
    %c0_88 = arith.constant 0 : index
    %120 = arith.index_cast %119 : i32 to index
    %c1_89 = arith.constant 1 : index
    %c0_90 = arith.constant 0 : index
    %121 = vector.load %arg2[%c0_88, %120, %c1_89, %c0_90] : memref<1x7x11x8xbf16, #tpu.memory_space<vmem>>, vector<1x4x8x8xbf16>
    %122 = vector.shape_cast %121 : vector<1x4x8x8xbf16> to vector<4x8x8xbf16>
    %123 = vector.shape_cast %122 : vector<4x8x8xbf16> to vector<32x8xbf16>
    %c13 = arith.constant 13 : index
    %c0_91 = arith.constant 0 : index
    %c0_92 = arith.constant 0 : index
    %124 = vector.load %arg3[%c13, %c0_91, %c0_92] : memref<16x8x128xbf16, #tpu.memory_space<vmem>>, vector<1x8x128xbf16>
    %125 = vector.shape_cast %124 : vector<1x8x128xbf16> to vector<8x128xbf16>
    %cst_93 = arith.constant dense<0.000000e+00> : vector<32x128xf32>
    %126 = tpu.matmul %123, %125, %cst_93 {dimension_numbers = #tpu.dot_dimension_numbers<[1], [0], [0], [1], [0, 0, 1, 1], [], []>} : vector<32x8xbf16>, vector<8x128xbf16>, vector<32x128xf32> -> vector<32x128xf32>
    %127 = arith.addf %118, %126 : vector<32x128xf32>
    %c3_i32_94 = arith.constant 3 : i32
    %128 = arith.addi %0, %c3_i32_94 : i32
    %c0_95 = arith.constant 0 : index
    %129 = arith.index_cast %128 : i32 to index
    %c2_96 = arith.constant 2 : index
    %c0_97 = arith.constant 0 : index
    %130 = vector.load %arg2[%c0_95, %129, %c2_96, %c0_97] : memref<1x7x11x8xbf16, #tpu.memory_space<vmem>>, vector<1x4x8x8xbf16>
    %131 = vector.shape_cast %130 : vector<1x4x8x8xbf16> to vector<4x8x8xbf16>
    %132 = vector.shape_cast %131 : vector<4x8x8xbf16> to vector<32x8xbf16>
    %c14 = arith.constant 14 : index
    %c0_98 = arith.constant 0 : index
    %c0_99 = arith.constant 0 : index
    %133 = vector.load %arg3[%c14, %c0_98, %c0_99] : memref<16x8x128xbf16, #tpu.memory_space<vmem>>, vector<1x8x128xbf16>
    %134 = vector.shape_cast %133 : vector<1x8x128xbf16> to vector<8x128xbf16>
    %cst_100 = arith.constant dense<0.000000e+00> : vector<32x128xf32>
    %135 = tpu.matmul %132, %134, %cst_100 {dimension_numbers = #tpu.dot_dimension_numbers<[1], [0], [0], [1], [0, 0, 1, 1], [], []>} : vector<32x8xbf16>, vector<8x128xbf16>, vector<32x128xf32> -> vector<32x128xf32>
    %136 = arith.addf %127, %135 : vector<32x128xf32>
    %c3_i32_101 = arith.constant 3 : i32
    %137 = arith.addi %0, %c3_i32_101 : i32
    %c0_102 = arith.constant 0 : index
    %138 = arith.index_cast %137 : i32 to index
    %c3_103 = arith.constant 3 : index
    %c0_104 = arith.constant 0 : index
    %139 = vector.load %arg2[%c0_102, %138, %c3_103, %c0_104] : memref<1x7x11x8xbf16, #tpu.memory_space<vmem>>, vector<1x4x8x8xbf16>
    %140 = vector.shape_cast %139 : vector<1x4x8x8xbf16> to vector<4x8x8xbf16>
    %141 = vector.shape_cast %140 : vector<4x8x8xbf16> to vector<32x8xbf16>
    %c15 = arith.constant 15 : index
    %c0_105 = arith.constant 0 : index
    %c0_106 = arith.constant 0 : index
    %142 = vector.load %arg3[%c15, %c0_105, %c0_106] : memref<16x8x128xbf16, #tpu.memory_space<vmem>>, vector<1x8x128xbf16>
    %143 = vector.shape_cast %142 : vector<1x8x128xbf16> to vector<8x128xbf16>
    %cst_107 = arith.constant dense<0.000000e+00> : vector<32x128xf32>
    %144 = tpu.matmul %141, %143, %cst_107 {dimension_numbers = #tpu.dot_dimension_numbers<[1], [0], [0], [1], [0, 0, 1, 1], [], []>} : vector<32x8xbf16>, vector<8x128xbf16>, vector<32x128xf32> -> vector<32x128xf32>
    %145 = arith.addf %136, %144 : vector<32x128xf32>
    %146 = tpu.iota {dimensions = array<i32: 0>} : vector<32x1xi32>
    %c8_i32 = arith.constant 8 : i32
    %c0_i32_108 = arith.constant 0 : i32
    %147 = arith.cmpi eq, %c8_i32, %c0_i32_108 : i32
    %c1_i32_109 = arith.constant 1 : i32
    %148 = arith.select %147, %c1_i32_109, %c8_i32 : i32
    %149 = vector.broadcast %148 : i32 to vector<32x1xi32>
    %150 = arith.remsi %146, %149 : vector<32x1xi32>
    %c0_i32_110 = arith.constant 0 : i32
    %151 = vector.broadcast %c0_i32_110 : i32 to vector<32x1xi32>
    %152 = arith.cmpi ne, %150, %151 : vector<32x1xi32>
    %c0_i32_111 = arith.constant 0 : i32
    %153 = vector.broadcast %c0_i32_111 : i32 to vector<32x1xi32>
    %154 = arith.cmpi slt, %150, %153 : vector<32x1xi32>
    %c0_i32_112 = arith.constant 0 : i32
    %155 = arith.cmpi slt, %148, %c0_i32_112 : i32
    %156 = vector.broadcast %155 : i1 to vector<32x1xi1>
    %157 = vector.broadcast %156 : vector<32x1xi1> to vector<32x1xi1>
    %158 = arith.xori %154, %157 : vector<32x1xi1>
    %159 = arith.andi %158, %152 : vector<32x1xi1>
    %160 = vector.broadcast %148 : i32 to vector<32x1xi32>
    %161 = arith.addi %150, %160 : vector<32x1xi32>
    %162 = arith.select %159, %161, %150 : vector<32x1xi1>, vector<32x1xi32>
    %c4_i32_113 = arith.constant 4 : i32
    %163 = vector.broadcast %c4_i32_113 : i32 to vector<32x1xi32>
    %164 = arith.cmpi slt, %162, %163 : vector<32x1xi32>
    %cst_114 = arith.constant 0.000000e+00 : f32
    %165 = vector.shape_cast %164 : vector<32x1xi1> to vector<32x1xi1>
    %166 = vector.broadcast %165 : vector<32x1xi1> to vector<32x128xi1>
    %167 = vector.broadcast %cst_114 : f32 to vector<32x128xf32>
    %168 = arith.select %166, %145, %167 : vector<32x128xi1>, vector<32x128xf32>
    %169 = arith.truncf %168 : vector<32x128xf32> to vector<32x128xbf16>
    %c0_115 = arith.constant 0 : index
    %c0_116 = arith.constant 0 : index
    %170 = vector.load %arg4[%c0_115, %c0_116] : memref<32x128xbf16, #tpu.memory_space<vmem>>, vector<32x128xbf16>
    tpu.vector_store %arg4[%c0_115, %c0_116], %169 {strides = array<i32>} : memref<32x128xbf16, #tpu.memory_space<vmem>>, vector<32x128xbf16>,
    %c0_i32_117 = arith.constant 0 : i32
    %171 = arith.cmpi eq, %arg1, %c0_i32_117 : i32
    %172 = arith.extui %171 : i1 to i32
    %c0_i32_118 = arith.constant 0 : i32
    %173 = arith.cmpi ne, %172, %c0_i32_118 : i32
    scf.if %173 {
      %cst_133 = arith.constant 0.000000e+00 : f32
      %191 = vector.broadcast %cst_133 : f32 to vector<1x128xf32>
      %c0_134 = arith.constant 0 : index
      %c0_135 = arith.constant 0 : index
      %c0_136 = arith.constant 0 : index
      %192 = vector.load %arg5[%c0_134, %c0_135, %c0_136] : memref<1x1x128xf32, #tpu.memory_space<vmem>>, vector<1x1x128xf32>
      %193 = vector.shape_cast %192 : vector<1x1x128xf32> to vector<1x128xf32>
      %194 = vector.shape_cast %191 : vector<1x128xf32> to vector<1x1x128xf32>
      tpu.vector_store %arg5[%c0_134, %c0_135, %c0_136], %194 {strides = array<i32>} : memref<1x1x128xf32, #tpu.memory_space<vmem>>, vector<1x1x128xf32>,
      %cst_137 = arith.constant 0.000000e+00 : f32
      %195 = vector.broadcast %cst_137 : f32 to vector<1x128xf32>
      %c0_138 = arith.constant 0 : index
      %c0_139 = arith.constant 0 : index
      %c0_140 = arith.constant 0 : index
      %196 = vector.load %arg6[%c0_138, %c0_139, %c0_140] : memref<1x1x128xf32, #tpu.memory_space<vmem>>, vector<1x1x128xf32>
      %197 = vector.shape_cast %196 : vector<1x1x128xf32> to vector<1x128xf32>
      %198 = vector.shape_cast %195 : vector<1x128xf32> to vector<1x1x128xf32>
      tpu.vector_store %arg6[%c0_138, %c0_139, %c0_140], %198 {strides = array<i32>} : memref<1x1x128xf32, #tpu.memory_space<vmem>>, vector<1x1x128xf32>,
    } else {
    }
    %c0_119 = arith.constant 0 : index
    %c0_120 = arith.constant 0 : index
    %c0_121 = arith.constant 0 : index
    %174 = vector.load %arg5[%c0_119, %c0_120, %c0_121] : memref<1x1x128xf32, #tpu.memory_space<vmem>>, vector<1x1x128xf32>
    %175 = vector.shape_cast %174 : vector<1x1x128xf32> to vector<1x128xf32>
    %cst_122 = arith.constant dense<0.000000e+00> : vector<128xf32>
    %176 = vector.multi_reduction <add>, %168, %cst_122 [0] : vector<32x128xf32> to vector<128xf32>
    %177 = vector.shape_cast %176 : vector<128xf32> to vector<1x128xf32>
    %178 = arith.addf %175, %177 : vector<1x128xf32>
    %c0_123 = arith.constant 0 : index
    %c0_124 = arith.constant 0 : index
    %c0_125 = arith.constant 0 : index
    %179 = vector.load %arg5[%c0_123, %c0_124, %c0_125] : memref<1x1x128xf32, #tpu.memory_space<vmem>>, vector<1x1x128xf32>
    %180 = vector.shape_cast %179 : vector<1x1x128xf32> to vector<1x128xf32>
    %181 = vector.shape_cast %178 : vector<1x128xf32> to vector<1x1x128xf32>
    tpu.vector_store %arg5[%c0_123, %c0_124, %c0_125], %181 {strides = array<i32>} : memref<1x1x128xf32, #tpu.memory_space<vmem>>, vector<1x1x128xf32>,
    %c0_126 = arith.constant 0 : index
    %c0_127 = arith.constant 0 : index
    %c0_128 = arith.constant 0 : index
    %182 = vector.load %arg6[%c0_126, %c0_127, %c0_128] : memref<1x1x128xf32, #tpu.memory_space<vmem>>, vector<1x1x128xf32>
    %183 = vector.shape_cast %182 : vector<1x1x128xf32> to vector<1x128xf32>
    %184 = arith.mulf %168, %168 : vector<32x128xf32>
    %cst_129 = arith.constant dense<0.000000e+00> : vector<128xf32>
    %185 = vector.multi_reduction <add>, %184, %cst_129 [0] : vector<32x128xf32> to vector<128xf32>
    %186 = vector.shape_cast %185 : vector<128xf32> to vector<1x128xf32>
    %187 = arith.addf %183, %186 : vector<1x128xf32>
    %c0_130 = arith.constant 0 : index
    %c0_131 = arith.constant 0 : index
    %c0_132 = arith.constant 0 : index
    %188 = vector.load %arg6[%c0_130, %c0_131, %c0_132] : memref<1x1x128xf32, #tpu.memory_space<vmem>>, vector<1x1x128xf32>
    %189 = vector.shape_cast %188 : vector<1x1x128xf32> to vector<1x128xf32>
    %190 = vector.shape_cast %187 : vector<1x128xf32> to vector<1x1x128xf32>
    tpu.vector_store %arg6[%c0_130, %c0_131, %c0_132], %190 {strides = array<i32>} : memref<1x1x128xf32, #tpu.memory_space<vmem>>, vector<1x1x128xf32>,
    return
  }
  func.func @transform_0(%arg0: i32, %arg1: i32) -> (i32, i32, i32, i32) {
    %c0_i32 = arith.constant 0 : i32
    %c0_i32_0 = arith.constant 0 : i32
    %c0_i32_1 = arith.constant 0 : i32
    %c0_i32_2 = arith.constant 0 : i32
    return %arg0, %c0_i32, %c0_i32_0, %c0_i32_1 : i32, i32, i32, i32
  }
  func.func @transform_1(%arg0: i32, %arg1: i32) -> (i32, i32, i32) {
    %c0_i32 = arith.constant 0 : i32
    %c0_i32_0 = arith.constant 0 : i32
    %c0_i32_1 = arith.constant 0 : i32
    %c0_i32_2 = arith.constant 0 : i32
    return %c0_i32, %c0_i32_0, %c0_i32_1 : i32, i32, i32
  }
  func.func @transform_2(%arg0: i32, %arg1: i32) -> (i32, i32) {
    %c1_i32 = arith.constant 1 : i32
    %0 = arith.muli %arg0, %c1_i32 : i32
    %1 = arith.addi %0, %arg1 : i32
    %c0_i32 = arith.constant 0 : i32
    %c0_i32_0 = arith.constant 0 : i32
    return %1, %c0_i32 : i32, i32
  }
  func.func @transform_3(%arg0: i32, %arg1: i32) -> (i32, i32, i32) {
    %c0_i32 = arith.constant 0 : i32
    %c0_i32_0 = arith.constant 0 : i32
    %c0_i32_1 = arith.constant 0 : i32
    return %arg0, %c0_i32, %c0_i32_0 : i32, i32, i32
  }
  func.func @transform_4(%arg0: i32, %arg1: i32) -> (i32, i32, i32) {
    %c0_i32 = arith.constant 0 : i32
    %c0_i32_0 = arith.constant 0 : i32
    %c0_i32_1 = arith.constant 0 : i32
    return %arg0, %c0_i32, %c0_i32_0 : i32, i32, i32
  }
}

module attributes {stable_mosaic.version = 11 : i64} {
  func.func @kernel(%arg0: i32, %arg1: memref<64x128xbf16, #tpu.memory_space<vmem>>, %arg2: memref<1x128xf32, #tpu.memory_space<vmem>>, %arg3: memref<1x128xf32, #tpu.memory_space<vmem>>, %arg4: memref<64x128xbf16, #tpu.memory_space<vmem>>) attributes {dimension_semantics = [#tpu.dimension_semantics<parallel>], iteration_bounds = array<i64: 1>, scalar_prefetch = 0 : i64, scratch_operands = 0 : i64, tpu.core_type = #tpu.core_type<tc>, window_params = [{transform_indices = @transform_0, window_bounds = array<i64: 64, 128>}, {pipeline_mode = #tpu.pipeline_mode<synchronous>, transform_indices = @transform_1, window_bounds = array<i64: 1, 128>}, {pipeline_mode = #tpu.pipeline_mode<synchronous>, transform_indices = @transform_2, window_bounds = array<i64: 1, 128>}, {transform_indices = @transform_3, window_bounds = array<i64: 64, 128>}]} {
    %c0 = arith.constant 0 : index
    %c0_0 = arith.constant 0 : index
    %0 = vector.load %arg1[%c0, %c0_0] : memref<64x128xbf16, #tpu.memory_space<vmem>>, vector<64x128xbf16>
    %1 = arith.extf %0 : vector<64x128xbf16> to vector<64x128xf32>
    %c0_1 = arith.constant 0 : index
    %c0_2 = arith.constant 0 : index
    %2 = vector.load %arg2[%c0_1, %c0_2] : memref<1x128xf32, #tpu.memory_space<vmem>>, vector<1x128xf32>
    %3 = vector.broadcast %2 : vector<1x128xf32> to vector<64x128xf32>
    %4 = arith.mulf %1, %3 : vector<64x128xf32>
    %c0_3 = arith.constant 0 : index
    %c0_4 = arith.constant 0 : index
    %5 = vector.load %arg3[%c0_3, %c0_4] : memref<1x128xf32, #tpu.memory_space<vmem>>, vector<1x128xf32>
    %6 = vector.broadcast %5 : vector<1x128xf32> to vector<64x128xf32>
    %7 = arith.addf %4, %6 : vector<64x128xf32>
    %cst = arith.constant 0.000000e+00 : f32
    %8 = vector.broadcast %cst : f32 to vector<64x128xf32>
    %9 = arith.maximumf %7, %8 : vector<64x128xf32>
    %10 = arith.truncf %9 : vector<64x128xf32> to vector<64x128xbf16>
    %c0_5 = arith.constant 0 : index
    %c0_6 = arith.constant 0 : index
    %11 = vector.load %arg4[%c0_5, %c0_6] : memref<64x128xbf16, #tpu.memory_space<vmem>>, vector<64x128xbf16>
    tpu.vector_store %arg4[%c0_5, %c0_6], %10 {strides = array<i32>} : memref<64x128xbf16, #tpu.memory_space<vmem>>, vector<64x128xbf16>,
    return
  }
  func.func @transform_0(%arg0: i32) -> (i32, i32) {
    %c0_i32 = arith.constant 0 : i32
    %c0_i32_0 = arith.constant 0 : i32
    return %arg0, %c0_i32 : i32, i32
  }
  func.func @transform_1(%arg0: i32) -> (i32, i32) {
    %c0_i32 = arith.constant 0 : i32
    %c0_i32_0 = arith.constant 0 : i32
    %c0_i32_1 = arith.constant 0 : i32
    return %c0_i32, %c0_i32_0 : i32, i32
  }
  func.func @transform_2(%arg0: i32) -> (i32, i32) {
    %c0_i32 = arith.constant 0 : i32
    %c0_i32_0 = arith.constant 0 : i32
    %c0_i32_1 = arith.constant 0 : i32
    return %c0_i32, %c0_i32_0 : i32, i32
  }
  func.func @transform_3(%arg0: i32) -> (i32, i32) {
    %c0_i32 = arith.constant 0 : i32
    %c0_i32_0 = arith.constant 0 : i32
    return %arg0, %c0_i32 : i32, i32
  }
}

module attributes {stable_mosaic.version = 11 : i64} {
  func.func @kernel(%arg0: i32, %arg1: i32, %arg2: memref<1x11x11x16xbf16, #tpu.memory_space<vmem>>, %arg3: memref<16x16x128xbf16, #tpu.memory_space<vmem>>, %arg4: memref<64x128xbf16, #tpu.memory_space<vmem>>, %arg5: memref<1x1x128xf32, #tpu.memory_space<vmem>>, %arg6: memref<1x1x128xf32, #tpu.memory_space<vmem>>) attributes {dimension_semantics = [#tpu.dimension_semantics<parallel>, #tpu.dimension_semantics<arbitrary>], iteration_bounds = array<i64: 2, 1>, scalar_prefetch = 0 : i64, scratch_operands = 0 : i64, tpu.core_type = #tpu.core_type<tc>, window_params = [{transform_indices = @transform_0, window_bounds = array<i64: 1, 11, 11, 16>}, {pipeline_mode = #tpu.pipeline_mode<synchronous>, transform_indices = @transform_1, window_bounds = array<i64: 16, 16, 128>}, {transform_indices = @transform_2, window_bounds = array<i64: 64, 128>}, {transform_indices = @transform_3, window_bounds = array<i64: 1, 1, 128>}, {transform_indices = @transform_4, window_bounds = array<i64: 1, 1, 128>}]} {
    %c8_i32 = arith.constant 8 : i32
    %0 = arith.muli %arg1, %c8_i32 : i32
    %cst = arith.constant 0.000000e+00 : f32
    %1 = vector.broadcast %cst : f32 to vector<64x128xf32>
    %c0_i32 = arith.constant 0 : i32
    %2 = arith.addi %0, %c0_i32 : i32
    %c0 = arith.constant 0 : index
    %3 = arith.index_cast %2 : i32 to index
    %c0_0 = arith.constant 0 : index
    %c0_1 = arith.constant 0 : index
    %4 = vector.load %arg2[%c0, %3, %c0_0, %c0_1] : memref<1x11x11x16xbf16, #tpu.memory_space<vmem>>, vector<1x8x8x16xbf16>
    %5 = vector.shape_cast %4 : vector<1x8x8x16xbf16> to vector<8x8x16xbf16>
    %6 = vector.shape_cast %5 : vector<8x8x16xbf16> to vector<64x16xbf16>
    %c0_2 = arith.constant 0 : index
    %c0_3 = arith.constant 0 : index
    %c0_4 = arith.constant 0 : index
    %7 = vector.load %arg3[%c0_2, %c0_3, %c0_4] : memref<16x16x128xbf16, #tpu.memory_space<vmem>>, vector<1x16x128xbf16>
    %8 = vector.shape_cast %7 : vector<1x16x128xbf16> to vector<16x128xbf16>
    %cst_5 = arith.constant dense<0.000000e+00> : vector<64x128xf32>
    %9 = tpu.matmul %6, %8, %cst_5 {dimension_numbers = #tpu.dot_dimension_numbers<[1], [0], [0], [1], [0, 0, 1, 1], [], []>} : vector<64x16xbf16>, vector<16x128xbf16>, vector<64x128xf32> -> vector<64x128xf32>
    %10 = arith.addf %1, %9 : vector<64x128xf32>
    %c0_i32_6 = arith.constant 0 : i32
    %11 = arith.addi %0, %c0_i32_6 : i32
    %c0_7 = arith.constant 0 : index
    %12 = arith.index_cast %11 : i32 to index
    %c1 = arith.constant 1 : index
    %c0_8 = arith.constant 0 : index
    %13 = vector.load %arg2[%c0_7, %12, %c1, %c0_8] : memref<1x11x11x16xbf16, #tpu.memory_space<vmem>>, vector<1x8x8x16xbf16>
    %14 = vector.shape_cast %13 : vector<1x8x8x16xbf16> to vector<8x8x16xbf16>
    %15 = vector.shape_cast %14 : vector<8x8x16xbf16> to vector<64x16xbf16>
    %c1_9 = arith.constant 1 : index
    %c0_10 = arith.constant 0 : index
    %c0_11 = arith.constant 0 : index
    %16 = vector.load %arg3[%c1_9, %c0_10, %c0_11] : memref<16x16x128xbf16, #tpu.memory_space<vmem>>, vector<1x16x128xbf16>
    %17 = vector.shape_cast %16 : vector<1x16x128xbf16> to vector<16x128xbf16>
    %cst_12 = arith.constant dense<0.000000e+00> : vector<64x128xf32>
    %18 = tpu.matmul %15, %17, %cst_12 {dimension_numbers = #tpu.dot_dimension_numbers<[1], [0], [0], [1], [0, 0, 1, 1], [], []>} : vector<64x16xbf16>, vector<16x128xbf16>, vector<64x128xf32> -> vector<64x128xf32>
    %19 = arith.addf %10, %18 : vector<64x128xf32>
    %c0_i32_13 = arith.constant 0 : i32
    %20 = arith.addi %0, %c0_i32_13 : i32
    %c0_14 = arith.constant 0 : index
    %21 = arith.index_cast %20 : i32 to index
    %c2 = arith.constant 2 : index
    %c0_15 = arith.constant 0 : index
    %22 = vector.load %arg2[%c0_14, %21, %c2, %c0_15] : memref<1x11x11x16xbf16, #tpu.memory_space<vmem>>, vector<1x8x8x16xbf16>
    %23 = vector.shape_cast %22 : vector<1x8x8x16xbf16> to vector<8x8x16xbf16>
    %24 = vector.shape_cast %23 : vector<8x8x16xbf16> to vector<64x16xbf16>
    %c2_16 = arith.constant 2 : index
    %c0_17 = arith.constant 0 : index
    %c0_18 = arith.constant 0 : index
    %25 = vector.load %arg3[%c2_16, %c0_17, %c0_18] : memref<16x16x128xbf16, #tpu.memory_space<vmem>>, vector<1x16x128xbf16>
    %26 = vector.shape_cast %25 : vector<1x16x128xbf16> to vector<16x128xbf16>
    %cst_19 = arith.constant dense<0.000000e+00> : vector<64x128xf32>
    %27 = tpu.matmul %24, %26, %cst_19 {dimension_numbers = #tpu.dot_dimension_numbers<[1], [0], [0], [1], [0, 0, 1, 1], [], []>} : vector<64x16xbf16>, vector<16x128xbf16>, vector<64x128xf32> -> vector<64x128xf32>
    %28 = arith.addf %19, %27 : vector<64x128xf32>
    %c0_i32_20 = arith.constant 0 : i32
    %29 = arith.addi %0, %c0_i32_20 : i32
    %c0_21 = arith.constant 0 : index
    %30 = arith.index_cast %29 : i32 to index
    %c3 = arith.constant 3 : index
    %c0_22 = arith.constant 0 : index
    %31 = vector.load %arg2[%c0_21, %30, %c3, %c0_22] : memref<1x11x11x16xbf16, #tpu.memory_space<vmem>>, vector<1x8x8x16xbf16>
    %32 = vector.shape_cast %31 : vector<1x8x8x16xbf16> to vector<8x8x16xbf16>
    %33 = vector.shape_cast %32 : vector<8x8x16xbf16> to vector<64x16xbf16>
    %c3_23 = arith.constant 3 : index
    %c0_24 = arith.constant 0 : index
    %c0_25 = arith.constant 0 : index
    %34 = vector.load %arg3[%c3_23, %c0_24, %c0_25] : memref<16x16x128xbf16, #tpu.memory_space<vmem>>, vector<1x16x128xbf16>
    %35 = vector.shape_cast %34 : vector<1x16x128xbf16> to vector<16x128xbf16>
    %cst_26 = arith.constant dense<0.000000e+00> : vector<64x128xf32>
    %36 = tpu.matmul %33, %35, %cst_26 {dimension_numbers = #tpu.dot_dimension_numbers<[1], [0], [0], [1], [0, 0, 1, 1], [], []>} : vector<64x16xbf16>, vector<16x128xbf16>, vector<64x128xf32> -> vector<64x128xf32>
    %37 = arith.addf %28, %36 : vector<64x128xf32>
    %c1_i32 = arith.constant 1 : i32
    %38 = arith.addi %0, %c1_i32 : i32
    %c0_27 = arith.constant 0 : index
    %39 = arith.index_cast %38 : i32 to index
    %c0_28 = arith.constant 0 : index
    %c0_29 = arith.constant 0 : index
    %40 = vector.load %arg2[%c0_27, %39, %c0_28, %c0_29] : memref<1x11x11x16xbf16, #tpu.memory_space<vmem>>, vector<1x8x8x16xbf16>
    %41 = vector.shape_cast %40 : vector<1x8x8x16xbf16> to vector<8x8x16xbf16>
    %42 = vector.shape_cast %41 : vector<8x8x16xbf16> to vector<64x16xbf16>
    %c4 = arith.constant 4 : index
    %c0_30 = arith.constant 0 : index
    %c0_31 = arith.constant 0 : index
    %43 = vector.load %arg3[%c4, %c0_30, %c0_31] : memref<16x16x128xbf16, #tpu.memory_space<vmem>>, vector<1x16x128xbf16>
    %44 = vector.shape_cast %43 : vector<1x16x128xbf16> to vector<16x128xbf16>
    %cst_32 = arith.constant dense<0.000000e+00> : vector<64x128xf32>
    %45 = tpu.matmul %42, %44, %cst_32 {dimension_numbers = #tpu.dot_dimension_numbers<[1], [0], [0], [1], [0, 0, 1, 1], [], []>} : vector<64x16xbf16>, vector<16x128xbf16>, vector<64x128xf32> -> vector<64x128xf32>
    %46 = arith.addf %37, %45 : vector<64x128xf32>
    %c1_i32_33 = arith.constant 1 : i32
    %47 = arith.addi %0, %c1_i32_33 : i32
    %c0_34 = arith.constant 0 : index
    %48 = arith.index_cast %47 : i32 to index
    %c1_35 = arith.constant 1 : index
    %c0_36 = arith.constant 0 : index
    %49 = vector.load %arg2[%c0_34, %48, %c1_35, %c0_36] : memref<1x11x11x16xbf16, #tpu.memory_space<vmem>>, vector<1x8x8x16xbf16>
    %50 = vector.shape_cast %49 : vector<1x8x8x16xbf16> to vector<8x8x16xbf16>
    %51 = vector.shape_cast %50 : vector<8x8x16xbf16> to vector<64x16xbf16>
    %c5 = arith.constant 5 : index
    %c0_37 = arith.constant 0 : index
    %c0_38 = arith.constant 0 : index
    %52 = vector.load %arg3[%c5, %c0_37, %c0_38] : memref<16x16x128xbf16, #tpu.memory_space<vmem>>, vector<1x16x128xbf16>
    %53 = vector.shape_cast %52 : vector<1x16x128xbf16> to vector<16x128xbf16>
    %cst_39 = arith.constant dense<0.000000e+00> : vector<64x128xf32>
    %54 = tpu.matmul %51, %53, %cst_39 {dimension_numbers = #tpu.dot_dimension_numbers<[1], [0], [0], [1], [0, 0, 1, 1], [], []>} : vector<64x16xbf16>, vector<16x128xbf16>, vector<64x128xf32> -> vector<64x128xf32>
    %55 = arith.addf %46, %54 : vector<64x128xf32>
    %c1_i32_40 = arith.constant 1 : i32
    %56 = arith.addi %0, %c1_i32_40 : i32
    %c0_41 = arith.constant 0 : index
    %57 = arith.index_cast %56 : i32 to index
    %c2_42 = arith.constant 2 : index
    %c0_43 = arith.constant 0 : index
    %58 = vector.load %arg2[%c0_41, %57, %c2_42, %c0_43] : memref<1x11x11x16xbf16, #tpu.memory_space<vmem>>, vector<1x8x8x16xbf16>
    %59 = vector.shape_cast %58 : vector<1x8x8x16xbf16> to vector<8x8x16xbf16>
    %60 = vector.shape_cast %59 : vector<8x8x16xbf16> to vector<64x16xbf16>
    %c6 = arith.constant 6 : index
    %c0_44 = arith.constant 0 : index
    %c0_45 = arith.constant 0 : index
    %61 = vector.load %arg3[%c6, %c0_44, %c0_45] : memref<16x16x128xbf16, #tpu.memory_space<vmem>>, vector<1x16x128xbf16>
    %62 = vector.shape_cast %61 : vector<1x16x128xbf16> to vector<16x128xbf16>
    %cst_46 = arith.constant dense<0.000000e+00> : vector<64x128xf32>
    %63 = tpu.matmul %60, %62, %cst_46 {dimension_numbers = #tpu.dot_dimension_numbers<[1], [0], [0], [1], [0, 0, 1, 1], [], []>} : vector<64x16xbf16>, vector<16x128xbf16>, vector<64x128xf32> -> vector<64x128xf32>
    %64 = arith.addf %55, %63 : vector<64x128xf32>
    %c1_i32_47 = arith.constant 1 : i32
    %65 = arith.addi %0, %c1_i32_47 : i32
    %c0_48 = arith.constant 0 : index
    %66 = arith.index_cast %65 : i32 to index
    %c3_49 = arith.constant 3 : index
    %c0_50 = arith.constant 0 : index
    %67 = vector.load %arg2[%c0_48, %66, %c3_49, %c0_50] : memref<1x11x11x16xbf16, #tpu.memory_space<vmem>>, vector<1x8x8x16xbf16>
    %68 = vector.shape_cast %67 : vector<1x8x8x16xbf16> to vector<8x8x16xbf16>
    %69 = vector.shape_cast %68 : vector<8x8x16xbf16> to vector<64x16xbf16>
    %c7 = arith.constant 7 : index
    %c0_51 = arith.constant 0 : index
    %c0_52 = arith.constant 0 : index
    %70 = vector.load %arg3[%c7, %c0_51, %c0_52] : memref<16x16x128xbf16, #tpu.memory_space<vmem>>, vector<1x16x128xbf16>
    %71 = vector.shape_cast %70 : vector<1x16x128xbf16> to vector<16x128xbf16>
    %cst_53 = arith.constant dense<0.000000e+00> : vector<64x128xf32>
    %72 = tpu.matmul %69, %71, %cst_53 {dimension_numbers = #tpu.dot_dimension_numbers<[1], [0], [0], [1], [0, 0, 1, 1], [], []>} : vector<64x16xbf16>, vector<16x128xbf16>, vector<64x128xf32> -> vector<64x128xf32>
    %73 = arith.addf %64, %72 : vector<64x128xf32>
    %c2_i32 = arith.constant 2 : i32
    %74 = arith.addi %0, %c2_i32 : i32
    %c0_54 = arith.constant 0 : index
    %75 = arith.index_cast %74 : i32 to index
    %c0_55 = arith.constant 0 : index
    %c0_56 = arith.constant 0 : index
    %76 = vector.load %arg2[%c0_54, %75, %c0_55, %c0_56] : memref<1x11x11x16xbf16, #tpu.memory_space<vmem>>, vector<1x8x8x16xbf16>
    %77 = vector.shape_cast %76 : vector<1x8x8x16xbf16> to vector<8x8x16xbf16>
    %78 = vector.shape_cast %77 : vector<8x8x16xbf16> to vector<64x16xbf16>
    %c8 = arith.constant 8 : index
    %c0_57 = arith.constant 0 : index
    %c0_58 = arith.constant 0 : index
    %79 = vector.load %arg3[%c8, %c0_57, %c0_58] : memref<16x16x128xbf16, #tpu.memory_space<vmem>>, vector<1x16x128xbf16>
    %80 = vector.shape_cast %79 : vector<1x16x128xbf16> to vector<16x128xbf16>
    %cst_59 = arith.constant dense<0.000000e+00> : vector<64x128xf32>
    %81 = tpu.matmul %78, %80, %cst_59 {dimension_numbers = #tpu.dot_dimension_numbers<[1], [0], [0], [1], [0, 0, 1, 1], [], []>} : vector<64x16xbf16>, vector<16x128xbf16>, vector<64x128xf32> -> vector<64x128xf32>
    %82 = arith.addf %73, %81 : vector<64x128xf32>
    %c2_i32_60 = arith.constant 2 : i32
    %83 = arith.addi %0, %c2_i32_60 : i32
    %c0_61 = arith.constant 0 : index
    %84 = arith.index_cast %83 : i32 to index
    %c1_62 = arith.constant 1 : index
    %c0_63 = arith.constant 0 : index
    %85 = vector.load %arg2[%c0_61, %84, %c1_62, %c0_63] : memref<1x11x11x16xbf16, #tpu.memory_space<vmem>>, vector<1x8x8x16xbf16>
    %86 = vector.shape_cast %85 : vector<1x8x8x16xbf16> to vector<8x8x16xbf16>
    %87 = vector.shape_cast %86 : vector<8x8x16xbf16> to vector<64x16xbf16>
    %c9 = arith.constant 9 : index
    %c0_64 = arith.constant 0 : index
    %c0_65 = arith.constant 0 : index
    %88 = vector.load %arg3[%c9, %c0_64, %c0_65] : memref<16x16x128xbf16, #tpu.memory_space<vmem>>, vector<1x16x128xbf16>
    %89 = vector.shape_cast %88 : vector<1x16x128xbf16> to vector<16x128xbf16>
    %cst_66 = arith.constant dense<0.000000e+00> : vector<64x128xf32>
    %90 = tpu.matmul %87, %89, %cst_66 {dimension_numbers = #tpu.dot_dimension_numbers<[1], [0], [0], [1], [0, 0, 1, 1], [], []>} : vector<64x16xbf16>, vector<16x128xbf16>, vector<64x128xf32> -> vector<64x128xf32>
    %91 = arith.addf %82, %90 : vector<64x128xf32>
    %c2_i32_67 = arith.constant 2 : i32
    %92 = arith.addi %0, %c2_i32_67 : i32
    %c0_68 = arith.constant 0 : index
    %93 = arith.index_cast %92 : i32 to index
    %c2_69 = arith.constant 2 : index
    %c0_70 = arith.constant 0 : index
    %94 = vector.load %arg2[%c0_68, %93, %c2_69, %c0_70] : memref<1x11x11x16xbf16, #tpu.memory_space<vmem>>, vector<1x8x8x16xbf16>
    %95 = vector.shape_cast %94 : vector<1x8x8x16xbf16> to vector<8x8x16xbf16>
    %96 = vector.shape_cast %95 : vector<8x8x16xbf16> to vector<64x16xbf16>
    %c10 = arith.constant 10 : index
    %c0_71 = arith.constant 0 : index
    %c0_72 = arith.constant 0 : index
    %97 = vector.load %arg3[%c10, %c0_71, %c0_72] : memref<16x16x128xbf16, #tpu.memory_space<vmem>>, vector<1x16x128xbf16>
    %98 = vector.shape_cast %97 : vector<1x16x128xbf16> to vector<16x128xbf16>
    %cst_73 = arith.constant dense<0.000000e+00> : vector<64x128xf32>
    %99 = tpu.matmul %96, %98, %cst_73 {dimension_numbers = #tpu.dot_dimension_numbers<[1], [0], [0], [1], [0, 0, 1, 1], [], []>} : vector<64x16xbf16>, vector<16x128xbf16>, vector<64x128xf32> -> vector<64x128xf32>
    %100 = arith.addf %91, %99 : vector<64x128xf32>
    %c2_i32_74 = arith.constant 2 : i32
    %101 = arith.addi %0, %c2_i32_74 : i32
    %c0_75 = arith.constant 0 : index
    %102 = arith.index_cast %101 : i32 to index
    %c3_76 = arith.constant 3 : index
    %c0_77 = arith.constant 0 : index
    %103 = vector.load %arg2[%c0_75, %102, %c3_76, %c0_77] : memref<1x11x11x16xbf16, #tpu.memory_space<vmem>>, vector<1x8x8x16xbf16>
    %104 = vector.shape_cast %103 : vector<1x8x8x16xbf16> to vector<8x8x16xbf16>
    %105 = vector.shape_cast %104 : vector<8x8x16xbf16> to vector<64x16xbf16>
    %c11 = arith.constant 11 : index
    %c0_78 = arith.constant 0 : index
    %c0_79 = arith.constant 0 : index
    %106 = vector.load %arg3[%c11, %c0_78, %c0_79] : memref<16x16x128xbf16, #tpu.memory_space<vmem>>, vector<1x16x128xbf16>
    %107 = vector.shape_cast %106 : vector<1x16x128xbf16> to vector<16x128xbf16>
    %cst_80 = arith.constant dense<0.000000e+00> : vector<64x128xf32>
    %108 = tpu.matmul %105, %107, %cst_80 {dimension_numbers = #tpu.dot_dimension_numbers<[1], [0], [0], [1], [0, 0, 1, 1], [], []>} : vector<64x16xbf16>, vector<16x128xbf16>, vector<64x128xf32> -> vector<64x128xf32>
    %109 = arith.addf %100, %108 : vector<64x128xf32>
    %c3_i32 = arith.constant 3 : i32
    %110 = arith.addi %0, %c3_i32 : i32
    %c0_81 = arith.constant 0 : index
    %111 = arith.index_cast %110 : i32 to index
    %c0_82 = arith.constant 0 : index
    %c0_83 = arith.constant 0 : index
    %112 = vector.load %arg2[%c0_81, %111, %c0_82, %c0_83] : memref<1x11x11x16xbf16, #tpu.memory_space<vmem>>, vector<1x8x8x16xbf16>
    %113 = vector.shape_cast %112 : vector<1x8x8x16xbf16> to vector<8x8x16xbf16>
    %114 = vector.shape_cast %113 : vector<8x8x16xbf16> to vector<64x16xbf16>
    %c12 = arith.constant 12 : index
    %c0_84 = arith.constant 0 : index
    %c0_85 = arith.constant 0 : index
    %115 = vector.load %arg3[%c12, %c0_84, %c0_85] : memref<16x16x128xbf16, #tpu.memory_space<vmem>>, vector<1x16x128xbf16>
    %116 = vector.shape_cast %115 : vector<1x16x128xbf16> to vector<16x128xbf16>
    %cst_86 = arith.constant dense<0.000000e+00> : vector<64x128xf32>
    %117 = tpu.matmul %114, %116, %cst_86 {dimension_numbers = #tpu.dot_dimension_numbers<[1], [0], [0], [1], [0, 0, 1, 1], [], []>} : vector<64x16xbf16>, vector<16x128xbf16>, vector<64x128xf32> -> vector<64x128xf32>
    %118 = arith.addf %109, %117 : vector<64x128xf32>
    %c3_i32_87 = arith.constant 3 : i32
    %119 = arith.addi %0, %c3_i32_87 : i32
    %c0_88 = arith.constant 0 : index
    %120 = arith.index_cast %119 : i32 to index
    %c1_89 = arith.constant 1 : index
    %c0_90 = arith.constant 0 : index
    %121 = vector.load %arg2[%c0_88, %120, %c1_89, %c0_90] : memref<1x11x11x16xbf16, #tpu.memory_space<vmem>>, vector<1x8x8x16xbf16>
    %122 = vector.shape_cast %121 : vector<1x8x8x16xbf16> to vector<8x8x16xbf16>
    %123 = vector.shape_cast %122 : vector<8x8x16xbf16> to vector<64x16xbf16>
    %c13 = arith.constant 13 : index
    %c0_91 = arith.constant 0 : index
    %c0_92 = arith.constant 0 : index
    %124 = vector.load %arg3[%c13, %c0_91, %c0_92] : memref<16x16x128xbf16, #tpu.memory_space<vmem>>, vector<1x16x128xbf16>
    %125 = vector.shape_cast %124 : vector<1x16x128xbf16> to vector<16x128xbf16>
    %cst_93 = arith.constant dense<0.000000e+00> : vector<64x128xf32>
    %126 = tpu.matmul %123, %125, %cst_93 {dimension_numbers = #tpu.dot_dimension_numbers<[1], [0], [0], [1], [0, 0, 1, 1], [], []>} : vector<64x16xbf16>, vector<16x128xbf16>, vector<64x128xf32> -> vector<64x128xf32>
    %127 = arith.addf %118, %126 : vector<64x128xf32>
    %c3_i32_94 = arith.constant 3 : i32
    %128 = arith.addi %0, %c3_i32_94 : i32
    %c0_95 = arith.constant 0 : index
    %129 = arith.index_cast %128 : i32 to index
    %c2_96 = arith.constant 2 : index
    %c0_97 = arith.constant 0 : index
    %130 = vector.load %arg2[%c0_95, %129, %c2_96, %c0_97] : memref<1x11x11x16xbf16, #tpu.memory_space<vmem>>, vector<1x8x8x16xbf16>
    %131 = vector.shape_cast %130 : vector<1x8x8x16xbf16> to vector<8x8x16xbf16>
    %132 = vector.shape_cast %131 : vector<8x8x16xbf16> to vector<64x16xbf16>
    %c14 = arith.constant 14 : index
    %c0_98 = arith.constant 0 : index
    %c0_99 = arith.constant 0 : index
    %133 = vector.load %arg3[%c14, %c0_98, %c0_99] : memref<16x16x128xbf16, #tpu.memory_space<vmem>>, vector<1x16x128xbf16>
    %134 = vector.shape_cast %133 : vector<1x16x128xbf16> to vector<16x128xbf16>
    %cst_100 = arith.constant dense<0.000000e+00> : vector<64x128xf32>
    %135 = tpu.matmul %132, %134, %cst_100 {dimension_numbers = #tpu.dot_dimension_numbers<[1], [0], [0], [1], [0, 0, 1, 1], [], []>} : vector<64x16xbf16>, vector<16x128xbf16>, vector<64x128xf32> -> vector<64x128xf32>
    %136 = arith.addf %127, %135 : vector<64x128xf32>
    %c3_i32_101 = arith.constant 3 : i32
    %137 = arith.addi %0, %c3_i32_101 : i32
    %c0_102 = arith.constant 0 : index
    %138 = arith.index_cast %137 : i32 to index
    %c3_103 = arith.constant 3 : index
    %c0_104 = arith.constant 0 : index
    %139 = vector.load %arg2[%c0_102, %138, %c3_103, %c0_104] : memref<1x11x11x16xbf16, #tpu.memory_space<vmem>>, vector<1x8x8x16xbf16>
    %140 = vector.shape_cast %139 : vector<1x8x8x16xbf16> to vector<8x8x16xbf16>
    %141 = vector.shape_cast %140 : vector<8x8x16xbf16> to vector<64x16xbf16>
    %c15 = arith.constant 15 : index
    %c0_105 = arith.constant 0 : index
    %c0_106 = arith.constant 0 : index
    %142 = vector.load %arg3[%c15, %c0_105, %c0_106] : memref<16x16x128xbf16, #tpu.memory_space<vmem>>, vector<1x16x128xbf16>
    %143 = vector.shape_cast %142 : vector<1x16x128xbf16> to vector<16x128xbf16>
    %cst_107 = arith.constant dense<0.000000e+00> : vector<64x128xf32>
    %144 = tpu.matmul %141, %143, %cst_107 {dimension_numbers = #tpu.dot_dimension_numbers<[1], [0], [0], [1], [0, 0, 1, 1], [], []>} : vector<64x16xbf16>, vector<16x128xbf16>, vector<64x128xf32> -> vector<64x128xf32>
    %145 = arith.addf %136, %144 : vector<64x128xf32>
    %146 = arith.truncf %145 : vector<64x128xf32> to vector<64x128xbf16>
    %c0_108 = arith.constant 0 : index
    %c0_109 = arith.constant 0 : index
    %147 = vector.load %arg4[%c0_108, %c0_109] : memref<64x128xbf16, #tpu.memory_space<vmem>>, vector<64x128xbf16>
    tpu.vector_store %arg4[%c0_108, %c0_109], %146 {strides = array<i32>} : memref<64x128xbf16, #tpu.memory_space<vmem>>, vector<64x128xbf16>,
    %c0_i32_110 = arith.constant 0 : i32
    %148 = arith.cmpi eq, %arg1, %c0_i32_110 : i32
    %149 = arith.extui %148 : i1 to i32
    %c0_i32_111 = arith.constant 0 : i32
    %150 = arith.cmpi ne, %149, %c0_i32_111 : i32
    scf.if %150 {
      %cst_126 = arith.constant 0.000000e+00 : f32
      %168 = vector.broadcast %cst_126 : f32 to vector<1x128xf32>
      %c0_127 = arith.constant 0 : index
      %c0_128 = arith.constant 0 : index
      %c0_129 = arith.constant 0 : index
      %169 = vector.load %arg5[%c0_127, %c0_128, %c0_129] : memref<1x1x128xf32, #tpu.memory_space<vmem>>, vector<1x1x128xf32>
      %170 = vector.shape_cast %169 : vector<1x1x128xf32> to vector<1x128xf32>
      %171 = vector.shape_cast %168 : vector<1x128xf32> to vector<1x1x128xf32>
      tpu.vector_store %arg5[%c0_127, %c0_128, %c0_129], %171 {strides = array<i32>} : memref<1x1x128xf32, #tpu.memory_space<vmem>>, vector<1x1x128xf32>,
      %cst_130 = arith.constant 0.000000e+00 : f32
      %172 = vector.broadcast %cst_130 : f32 to vector<1x128xf32>
      %c0_131 = arith.constant 0 : index
      %c0_132 = arith.constant 0 : index
      %c0_133 = arith.constant 0 : index
      %173 = vector.load %arg6[%c0_131, %c0_132, %c0_133] : memref<1x1x128xf32, #tpu.memory_space<vmem>>, vector<1x1x128xf32>
      %174 = vector.shape_cast %173 : vector<1x1x128xf32> to vector<1x128xf32>
      %175 = vector.shape_cast %172 : vector<1x128xf32> to vector<1x1x128xf32>
      tpu.vector_store %arg6[%c0_131, %c0_132, %c0_133], %175 {strides = array<i32>} : memref<1x1x128xf32, #tpu.memory_space<vmem>>, vector<1x1x128xf32>,
    } else {
    }
    %c0_112 = arith.constant 0 : index
    %c0_113 = arith.constant 0 : index
    %c0_114 = arith.constant 0 : index
    %151 = vector.load %arg5[%c0_112, %c0_113, %c0_114] : memref<1x1x128xf32, #tpu.memory_space<vmem>>, vector<1x1x128xf32>
    %152 = vector.shape_cast %151 : vector<1x1x128xf32> to vector<1x128xf32>
    %cst_115 = arith.constant dense<0.000000e+00> : vector<128xf32>
    %153 = vector.multi_reduction <add>, %145, %cst_115 [0] : vector<64x128xf32> to vector<128xf32>
    %154 = vector.shape_cast %153 : vector<128xf32> to vector<1x128xf32>
    %155 = arith.addf %152, %154 : vector<1x128xf32>
    %c0_116 = arith.constant 0 : index
    %c0_117 = arith.constant 0 : index
    %c0_118 = arith.constant 0 : index
    %156 = vector.load %arg5[%c0_116, %c0_117, %c0_118] : memref<1x1x128xf32, #tpu.memory_space<vmem>>, vector<1x1x128xf32>
    %157 = vector.shape_cast %156 : vector<1x1x128xf32> to vector<1x128xf32>
    %158 = vector.shape_cast %155 : vector<1x128xf32> to vector<1x1x128xf32>
    tpu.vector_store %arg5[%c0_116, %c0_117, %c0_118], %158 {strides = array<i32>} : memref<1x1x128xf32, #tpu.memory_space<vmem>>, vector<1x1x128xf32>,
    %c0_119 = arith.constant 0 : index
    %c0_120 = arith.constant 0 : index
    %c0_121 = arith.constant 0 : index
    %159 = vector.load %arg6[%c0_119, %c0_120, %c0_121] : memref<1x1x128xf32, #tpu.memory_space<vmem>>, vector<1x1x128xf32>
    %160 = vector.shape_cast %159 : vector<1x1x128xf32> to vector<1x128xf32>
    %161 = arith.mulf %145, %145 : vector<64x128xf32>
    %cst_122 = arith.constant dense<0.000000e+00> : vector<128xf32>
    %162 = vector.multi_reduction <add>, %161, %cst_122 [0] : vector<64x128xf32> to vector<128xf32>
    %163 = vector.shape_cast %162 : vector<128xf32> to vector<1x128xf32>
    %164 = arith.addf %160, %163 : vector<1x128xf32>
    %c0_123 = arith.constant 0 : index
    %c0_124 = arith.constant 0 : index
    %c0_125 = arith.constant 0 : index
    %165 = vector.load %arg6[%c0_123, %c0_124, %c0_125] : memref<1x1x128xf32, #tpu.memory_space<vmem>>, vector<1x1x128xf32>
    %166 = vector.shape_cast %165 : vector<1x1x128xf32> to vector<1x128xf32>
    %167 = vector.shape_cast %164 : vector<1x128xf32> to vector<1x1x128xf32>
    tpu.vector_store %arg6[%c0_123, %c0_124, %c0_125], %167 {strides = array<i32>} : memref<1x1x128xf32, #tpu.memory_space<vmem>>, vector<1x1x128xf32>,
    return
  }
  func.func @transform_0(%arg0: i32, %arg1: i32) -> (i32, i32, i32, i32) {
    %c0_i32 = arith.constant 0 : i32
    %c0_i32_0 = arith.constant 0 : i32
    %c0_i32_1 = arith.constant 0 : i32
    %c0_i32_2 = arith.constant 0 : i32
    return %arg0, %c0_i32, %c0_i32_0, %c0_i32_1 : i32, i32, i32, i32
  }
  func.func @transform_1(%arg0: i32, %arg1: i32) -> (i32, i32, i32) {
    %c0_i32 = arith.constant 0 : i32
    %c0_i32_0 = arith.constant 0 : i32
    %c0_i32_1 = arith.constant 0 : i32
    %c0_i32_2 = arith.constant 0 : i32
    return %c0_i32, %c0_i32_0, %c0_i32_1 : i32, i32, i32
  }
  func.func @transform_2(%arg0: i32, %arg1: i32) -> (i32, i32) {
    %c1_i32 = arith.constant 1 : i32
    %0 = arith.muli %arg0, %c1_i32 : i32
    %1 = arith.addi %0, %arg1 : i32
    %c0_i32 = arith.constant 0 : i32
    %c0_i32_0 = arith.constant 0 : i32
    return %1, %c0_i32 : i32, i32
  }
  func.func @transform_3(%arg0: i32, %arg1: i32) -> (i32, i32, i32) {
    %c0_i32 = arith.constant 0 : i32
    %c0_i32_0 = arith.constant 0 : i32
    %c0_i32_1 = arith.constant 0 : i32
    return %arg0, %c0_i32, %c0_i32_0 : i32, i32, i32
  }
  func.func @transform_4(%arg0: i32, %arg1: i32) -> (i32, i32, i32) {
    %c0_i32 = arith.constant 0 : i32
    %c0_i32_0 = arith.constant 0 : i32
    %c0_i32_1 = arith.constant 0 : i32
    return %arg0, %c0_i32, %c0_i32_0 : i32, i32, i32
  }
}

module attributes {stable_mosaic.version = 11 : i64} {
  func.func @kernel(%arg0: i32, %arg1: memref<128x128xbf16, #tpu.memory_space<vmem>>, %arg2: memref<1x128xf32, #tpu.memory_space<vmem>>, %arg3: memref<1x128xf32, #tpu.memory_space<vmem>>, %arg4: memref<128x128xbf16, #tpu.memory_space<vmem>>) attributes {dimension_semantics = [#tpu.dimension_semantics<parallel>], iteration_bounds = array<i64: 1>, scalar_prefetch = 0 : i64, scratch_operands = 0 : i64, tpu.core_type = #tpu.core_type<tc>, window_params = [{transform_indices = @transform_0, window_bounds = array<i64: 128, 128>}, {pipeline_mode = #tpu.pipeline_mode<synchronous>, transform_indices = @transform_1, window_bounds = array<i64: 1, 128>}, {pipeline_mode = #tpu.pipeline_mode<synchronous>, transform_indices = @transform_2, window_bounds = array<i64: 1, 128>}, {transform_indices = @transform_3, window_bounds = array<i64: 128, 128>}]} {
    %c0 = arith.constant 0 : index
    %c0_0 = arith.constant 0 : index
    %0 = vector.load %arg1[%c0, %c0_0] : memref<128x128xbf16, #tpu.memory_space<vmem>>, vector<128x128xbf16>
    %1 = arith.extf %0 : vector<128x128xbf16> to vector<128x128xf32>
    %c0_1 = arith.constant 0 : index
    %c0_2 = arith.constant 0 : index
    %2 = vector.load %arg2[%c0_1, %c0_2] : memref<1x128xf32, #tpu.memory_space<vmem>>, vector<1x128xf32>
    %3 = vector.broadcast %2 : vector<1x128xf32> to vector<128x128xf32>
    %4 = arith.mulf %1, %3 : vector<128x128xf32>
    %c0_3 = arith.constant 0 : index
    %c0_4 = arith.constant 0 : index
    %5 = vector.load %arg3[%c0_3, %c0_4] : memref<1x128xf32, #tpu.memory_space<vmem>>, vector<1x128xf32>
    %6 = vector.broadcast %5 : vector<1x128xf32> to vector<128x128xf32>
    %7 = arith.addf %4, %6 : vector<128x128xf32>
    %cst = arith.constant 0.000000e+00 : f32
    %8 = vector.broadcast %cst : f32 to vector<128x128xf32>
    %9 = arith.maximumf %7, %8 : vector<128x128xf32>
    %10 = arith.truncf %9 : vector<128x128xf32> to vector<128x128xbf16>
    %c0_5 = arith.constant 0 : index
    %c0_6 = arith.constant 0 : index
    %11 = vector.load %arg4[%c0_5, %c0_6] : memref<128x128xbf16, #tpu.memory_space<vmem>>, vector<128x128xbf16>
    tpu.vector_store %arg4[%c0_5, %c0_6], %10 {strides = array<i32>} : memref<128x128xbf16, #tpu.memory_space<vmem>>, vector<128x128xbf16>,
    return
  }
  func.func @transform_0(%arg0: i32) -> (i32, i32) {
    %c0_i32 = arith.constant 0 : i32
    %c0_i32_0 = arith.constant 0 : i32
    return %arg0, %c0_i32 : i32, i32
  }
  func.func @transform_1(%arg0: i32) -> (i32, i32) {
    %c0_i32 = arith.constant 0 : i32
    %c0_i32_0 = arith.constant 0 : i32
    %c0_i32_1 = arith.constant 0 : i32
    return %c0_i32, %c0_i32_0 : i32, i32
  }
  func.func @transform_2(%arg0: i32) -> (i32, i32) {
    %c0_i32 = arith.constant 0 : i32
    %c0_i32_0 = arith.constant 0 : i32
    %c0_i32_1 = arith.constant 0 : i32
    return %c0_i32, %c0_i32_0 : i32, i32
  }
  func.func @transform_3(%arg0: i32) -> (i32, i32) {
    %c0_i32 = arith.constant 0 : i32
    %c0_i32_0 = arith.constant 0 : i32
    return %arg0, %c0_i32 : i32, i32
  }
}

module attributes {stable_mosaic.version = 11 : i64} {
  func.func @kernel(%arg0: i32, %arg1: i32, %arg2: memref<1x19x19x8xbf16, #tpu.memory_space<vmem>>, %arg3: memref<16x8x128xbf16, #tpu.memory_space<vmem>>, %arg4: memref<256x128xf32, #tpu.memory_space<vmem>>) attributes {dimension_semantics = [#tpu.dimension_semantics<parallel>, #tpu.dimension_semantics<parallel>], iteration_bounds = array<i64: 2, 1>, scalar_prefetch = 0 : i64, scratch_operands = 0 : i64, tpu.core_type = #tpu.core_type<tc>, window_params = [{transform_indices = @transform_0, window_bounds = array<i64: 1, 19, 19, 8>}, {pipeline_mode = #tpu.pipeline_mode<synchronous>, transform_indices = @transform_1, window_bounds = array<i64: 16, 8, 128>}, {transform_indices = @transform_2, window_bounds = array<i64: 256, 128>}]} {
    %c16_i32 = arith.constant 16 : i32
    %0 = arith.muli %arg1, %c16_i32 : i32
    %cst = arith.constant 0.000000e+00 : f32
    %1 = vector.broadcast %cst : f32 to vector<256x128xf32>
    %c0_i32 = arith.constant 0 : i32
    %2 = arith.addi %0, %c0_i32 : i32
    %c0 = arith.constant 0 : index
    %3 = arith.index_cast %2 : i32 to index
    %c0_0 = arith.constant 0 : index
    %c0_1 = arith.constant 0 : index
    %4 = vector.load %arg2[%c0, %3, %c0_0, %c0_1] : memref<1x19x19x8xbf16, #tpu.memory_space<vmem>>, vector<1x16x16x8xbf16>
    %5 = vector.shape_cast %4 : vector<1x16x16x8xbf16> to vector<16x16x8xbf16>
    %6 = vector.shape_cast %5 : vector<16x16x8xbf16> to vector<256x8xbf16>
    %c0_2 = arith.constant 0 : index
    %c0_3 = arith.constant 0 : index
    %c0_4 = arith.constant 0 : index
    %7 = vector.load %arg3[%c0_2, %c0_3, %c0_4] : memref<16x8x128xbf16, #tpu.memory_space<vmem>>, vector<1x8x128xbf16>
    %8 = vector.shape_cast %7 : vector<1x8x128xbf16> to vector<8x128xbf16>
    %cst_5 = arith.constant dense<0.000000e+00> : vector<256x128xf32>
    %9 = tpu.matmul %6, %8, %cst_5 {dimension_numbers = #tpu.dot_dimension_numbers<[1], [0], [0], [1], [0, 0, 1, 1], [], []>} : vector<256x8xbf16>, vector<8x128xbf16>, vector<256x128xf32> -> vector<256x128xf32>
    %10 = arith.addf %1, %9 : vector<256x128xf32>
    %c0_i32_6 = arith.constant 0 : i32
    %11 = arith.addi %0, %c0_i32_6 : i32
    %c0_7 = arith.constant 0 : index
    %12 = arith.index_cast %11 : i32 to index
    %c1 = arith.constant 1 : index
    %c0_8 = arith.constant 0 : index
    %13 = vector.load %arg2[%c0_7, %12, %c1, %c0_8] : memref<1x19x19x8xbf16, #tpu.memory_space<vmem>>, vector<1x16x16x8xbf16>
    %14 = vector.shape_cast %13 : vector<1x16x16x8xbf16> to vector<16x16x8xbf16>
    %15 = vector.shape_cast %14 : vector<16x16x8xbf16> to vector<256x8xbf16>
    %c1_9 = arith.constant 1 : index
    %c0_10 = arith.constant 0 : index
    %c0_11 = arith.constant 0 : index
    %16 = vector.load %arg3[%c1_9, %c0_10, %c0_11] : memref<16x8x128xbf16, #tpu.memory_space<vmem>>, vector<1x8x128xbf16>
    %17 = vector.shape_cast %16 : vector<1x8x128xbf16> to vector<8x128xbf16>
    %cst_12 = arith.constant dense<0.000000e+00> : vector<256x128xf32>
    %18 = tpu.matmul %15, %17, %cst_12 {dimension_numbers = #tpu.dot_dimension_numbers<[1], [0], [0], [1], [0, 0, 1, 1], [], []>} : vector<256x8xbf16>, vector<8x128xbf16>, vector<256x128xf32> -> vector<256x128xf32>
    %19 = arith.addf %10, %18 : vector<256x128xf32>
    %c0_i32_13 = arith.constant 0 : i32
    %20 = arith.addi %0, %c0_i32_13 : i32
    %c0_14 = arith.constant 0 : index
    %21 = arith.index_cast %20 : i32 to index
    %c2 = arith.constant 2 : index
    %c0_15 = arith.constant 0 : index
    %22 = vector.load %arg2[%c0_14, %21, %c2, %c0_15] : memref<1x19x19x8xbf16, #tpu.memory_space<vmem>>, vector<1x16x16x8xbf16>
    %23 = vector.shape_cast %22 : vector<1x16x16x8xbf16> to vector<16x16x8xbf16>
    %24 = vector.shape_cast %23 : vector<16x16x8xbf16> to vector<256x8xbf16>
    %c2_16 = arith.constant 2 : index
    %c0_17 = arith.constant 0 : index
    %c0_18 = arith.constant 0 : index
    %25 = vector.load %arg3[%c2_16, %c0_17, %c0_18] : memref<16x8x128xbf16, #tpu.memory_space<vmem>>, vector<1x8x128xbf16>
    %26 = vector.shape_cast %25 : vector<1x8x128xbf16> to vector<8x128xbf16>
    %cst_19 = arith.constant dense<0.000000e+00> : vector<256x128xf32>
    %27 = tpu.matmul %24, %26, %cst_19 {dimension_numbers = #tpu.dot_dimension_numbers<[1], [0], [0], [1], [0, 0, 1, 1], [], []>} : vector<256x8xbf16>, vector<8x128xbf16>, vector<256x128xf32> -> vector<256x128xf32>
    %28 = arith.addf %19, %27 : vector<256x128xf32>
    %c0_i32_20 = arith.constant 0 : i32
    %29 = arith.addi %0, %c0_i32_20 : i32
    %c0_21 = arith.constant 0 : index
    %30 = arith.index_cast %29 : i32 to index
    %c3 = arith.constant 3 : index
    %c0_22 = arith.constant 0 : index
    %31 = vector.load %arg2[%c0_21, %30, %c3, %c0_22] : memref<1x19x19x8xbf16, #tpu.memory_space<vmem>>, vector<1x16x16x8xbf16>
    %32 = vector.shape_cast %31 : vector<1x16x16x8xbf16> to vector<16x16x8xbf16>
    %33 = vector.shape_cast %32 : vector<16x16x8xbf16> to vector<256x8xbf16>
    %c3_23 = arith.constant 3 : index
    %c0_24 = arith.constant 0 : index
    %c0_25 = arith.constant 0 : index
    %34 = vector.load %arg3[%c3_23, %c0_24, %c0_25] : memref<16x8x128xbf16, #tpu.memory_space<vmem>>, vector<1x8x128xbf16>
    %35 = vector.shape_cast %34 : vector<1x8x128xbf16> to vector<8x128xbf16>
    %cst_26 = arith.constant dense<0.000000e+00> : vector<256x128xf32>
    %36 = tpu.matmul %33, %35, %cst_26 {dimension_numbers = #tpu.dot_dimension_numbers<[1], [0], [0], [1], [0, 0, 1, 1], [], []>} : vector<256x8xbf16>, vector<8x128xbf16>, vector<256x128xf32> -> vector<256x128xf32>
    %37 = arith.addf %28, %36 : vector<256x128xf32>
    %c1_i32 = arith.constant 1 : i32
    %38 = arith.addi %0, %c1_i32 : i32
    %c0_27 = arith.constant 0 : index
    %39 = arith.index_cast %38 : i32 to index
    %c0_28 = arith.constant 0 : index
    %c0_29 = arith.constant 0 : index
    %40 = vector.load %arg2[%c0_27, %39, %c0_28, %c0_29] : memref<1x19x19x8xbf16, #tpu.memory_space<vmem>>, vector<1x16x16x8xbf16>
    %41 = vector.shape_cast %40 : vector<1x16x16x8xbf16> to vector<16x16x8xbf16>
    %42 = vector.shape_cast %41 : vector<16x16x8xbf16> to vector<256x8xbf16>
    %c4 = arith.constant 4 : index
    %c0_30 = arith.constant 0 : index
    %c0_31 = arith.constant 0 : index
    %43 = vector.load %arg3[%c4, %c0_30, %c0_31] : memref<16x8x128xbf16, #tpu.memory_space<vmem>>, vector<1x8x128xbf16>
    %44 = vector.shape_cast %43 : vector<1x8x128xbf16> to vector<8x128xbf16>
    %cst_32 = arith.constant dense<0.000000e+00> : vector<256x128xf32>
    %45 = tpu.matmul %42, %44, %cst_32 {dimension_numbers = #tpu.dot_dimension_numbers<[1], [0], [0], [1], [0, 0, 1, 1], [], []>} : vector<256x8xbf16>, vector<8x128xbf16>, vector<256x128xf32> -> vector<256x128xf32>
    %46 = arith.addf %37, %45 : vector<256x128xf32>
    %c1_i32_33 = arith.constant 1 : i32
    %47 = arith.addi %0, %c1_i32_33 : i32
    %c0_34 = arith.constant 0 : index
    %48 = arith.index_cast %47 : i32 to index
    %c1_35 = arith.constant 1 : index
    %c0_36 = arith.constant 0 : index
    %49 = vector.load %arg2[%c0_34, %48, %c1_35, %c0_36] : memref<1x19x19x8xbf16, #tpu.memory_space<vmem>>, vector<1x16x16x8xbf16>
    %50 = vector.shape_cast %49 : vector<1x16x16x8xbf16> to vector<16x16x8xbf16>
    %51 = vector.shape_cast %50 : vector<16x16x8xbf16> to vector<256x8xbf16>
    %c5 = arith.constant 5 : index
    %c0_37 = arith.constant 0 : index
    %c0_38 = arith.constant 0 : index
    %52 = vector.load %arg3[%c5, %c0_37, %c0_38] : memref<16x8x128xbf16, #tpu.memory_space<vmem>>, vector<1x8x128xbf16>
    %53 = vector.shape_cast %52 : vector<1x8x128xbf16> to vector<8x128xbf16>
    %cst_39 = arith.constant dense<0.000000e+00> : vector<256x128xf32>
    %54 = tpu.matmul %51, %53, %cst_39 {dimension_numbers = #tpu.dot_dimension_numbers<[1], [0], [0], [1], [0, 0, 1, 1], [], []>} : vector<256x8xbf16>, vector<8x128xbf16>, vector<256x128xf32> -> vector<256x128xf32>
    %55 = arith.addf %46, %54 : vector<256x128xf32>
    %c1_i32_40 = arith.constant 1 : i32
    %56 = arith.addi %0, %c1_i32_40 : i32
    %c0_41 = arith.constant 0 : index
    %57 = arith.index_cast %56 : i32 to index
    %c2_42 = arith.constant 2 : index
    %c0_43 = arith.constant 0 : index
    %58 = vector.load %arg2[%c0_41, %57, %c2_42, %c0_43] : memref<1x19x19x8xbf16, #tpu.memory_space<vmem>>, vector<1x16x16x8xbf16>
    %59 = vector.shape_cast %58 : vector<1x16x16x8xbf16> to vector<16x16x8xbf16>
    %60 = vector.shape_cast %59 : vector<16x16x8xbf16> to vector<256x8xbf16>
    %c6 = arith.constant 6 : index
    %c0_44 = arith.constant 0 : index
    %c0_45 = arith.constant 0 : index
    %61 = vector.load %arg3[%c6, %c0_44, %c0_45] : memref<16x8x128xbf16, #tpu.memory_space<vmem>>, vector<1x8x128xbf16>
    %62 = vector.shape_cast %61 : vector<1x8x128xbf16> to vector<8x128xbf16>
    %cst_46 = arith.constant dense<0.000000e+00> : vector<256x128xf32>
    %63 = tpu.matmul %60, %62, %cst_46 {dimension_numbers = #tpu.dot_dimension_numbers<[1], [0], [0], [1], [0, 0, 1, 1], [], []>} : vector<256x8xbf16>, vector<8x128xbf16>, vector<256x128xf32> -> vector<256x128xf32>
    %64 = arith.addf %55, %63 : vector<256x128xf32>
    %c1_i32_47 = arith.constant 1 : i32
    %65 = arith.addi %0, %c1_i32_47 : i32
    %c0_48 = arith.constant 0 : index
    %66 = arith.index_cast %65 : i32 to index
    %c3_49 = arith.constant 3 : index
    %c0_50 = arith.constant 0 : index
    %67 = vector.load %arg2[%c0_48, %66, %c3_49, %c0_50] : memref<1x19x19x8xbf16, #tpu.memory_space<vmem>>, vector<1x16x16x8xbf16>
    %68 = vector.shape_cast %67 : vector<1x16x16x8xbf16> to vector<16x16x8xbf16>
    %69 = vector.shape_cast %68 : vector<16x16x8xbf16> to vector<256x8xbf16>
    %c7 = arith.constant 7 : index
    %c0_51 = arith.constant 0 : index
    %c0_52 = arith.constant 0 : index
    %70 = vector.load %arg3[%c7, %c0_51, %c0_52] : memref<16x8x128xbf16, #tpu.memory_space<vmem>>, vector<1x8x128xbf16>
    %71 = vector.shape_cast %70 : vector<1x8x128xbf16> to vector<8x128xbf16>
    %cst_53 = arith.constant dense<0.000000e+00> : vector<256x128xf32>
    %72 = tpu.matmul %69, %71, %cst_53 {dimension_numbers = #tpu.dot_dimension_numbers<[1], [0], [0], [1], [0, 0, 1, 1], [], []>} : vector<256x8xbf16>, vector<8x128xbf16>, vector<256x128xf32> -> vector<256x128xf32>
    %73 = arith.addf %64, %72 : vector<256x128xf32>
    %c2_i32 = arith.constant 2 : i32
    %74 = arith.addi %0, %c2_i32 : i32
    %c0_54 = arith.constant 0 : index
    %75 = arith.index_cast %74 : i32 to index
    %c0_55 = arith.constant 0 : index
    %c0_56 = arith.constant 0 : index
    %76 = vector.load %arg2[%c0_54, %75, %c0_55, %c0_56] : memref<1x19x19x8xbf16, #tpu.memory_space<vmem>>, vector<1x16x16x8xbf16>
    %77 = vector.shape_cast %76 : vector<1x16x16x8xbf16> to vector<16x16x8xbf16>
    %78 = vector.shape_cast %77 : vector<16x16x8xbf16> to vector<256x8xbf16>
    %c8 = arith.constant 8 : index
    %c0_57 = arith.constant 0 : index
    %c0_58 = arith.constant 0 : index
    %79 = vector.load %arg3[%c8, %c0_57, %c0_58] : memref<16x8x128xbf16, #tpu.memory_space<vmem>>, vector<1x8x128xbf16>
    %80 = vector.shape_cast %79 : vector<1x8x128xbf16> to vector<8x128xbf16>
    %cst_59 = arith.constant dense<0.000000e+00> : vector<256x128xf32>
    %81 = tpu.matmul %78, %80, %cst_59 {dimension_numbers = #tpu.dot_dimension_numbers<[1], [0], [0], [1], [0, 0, 1, 1], [], []>} : vector<256x8xbf16>, vector<8x128xbf16>, vector<256x128xf32> -> vector<256x128xf32>
    %82 = arith.addf %73, %81 : vector<256x128xf32>
    %c2_i32_60 = arith.constant 2 : i32
    %83 = arith.addi %0, %c2_i32_60 : i32
    %c0_61 = arith.constant 0 : index
    %84 = arith.index_cast %83 : i32 to index
    %c1_62 = arith.constant 1 : index
    %c0_63 = arith.constant 0 : index
    %85 = vector.load %arg2[%c0_61, %84, %c1_62, %c0_63] : memref<1x19x19x8xbf16, #tpu.memory_space<vmem>>, vector<1x16x16x8xbf16>
    %86 = vector.shape_cast %85 : vector<1x16x16x8xbf16> to vector<16x16x8xbf16>
    %87 = vector.shape_cast %86 : vector<16x16x8xbf16> to vector<256x8xbf16>
    %c9 = arith.constant 9 : index
    %c0_64 = arith.constant 0 : index
    %c0_65 = arith.constant 0 : index
    %88 = vector.load %arg3[%c9, %c0_64, %c0_65] : memref<16x8x128xbf16, #tpu.memory_space<vmem>>, vector<1x8x128xbf16>
    %89 = vector.shape_cast %88 : vector<1x8x128xbf16> to vector<8x128xbf16>
    %cst_66 = arith.constant dense<0.000000e+00> : vector<256x128xf32>
    %90 = tpu.matmul %87, %89, %cst_66 {dimension_numbers = #tpu.dot_dimension_numbers<[1], [0], [0], [1], [0, 0, 1, 1], [], []>} : vector<256x8xbf16>, vector<8x128xbf16>, vector<256x128xf32> -> vector<256x128xf32>
    %91 = arith.addf %82, %90 : vector<256x128xf32>
    %c2_i32_67 = arith.constant 2 : i32
    %92 = arith.addi %0, %c2_i32_67 : i32
    %c0_68 = arith.constant 0 : index
    %93 = arith.index_cast %92 : i32 to index
    %c2_69 = arith.constant 2 : index
    %c0_70 = arith.constant 0 : index
    %94 = vector.load %arg2[%c0_68, %93, %c2_69, %c0_70] : memref<1x19x19x8xbf16, #tpu.memory_space<vmem>>, vector<1x16x16x8xbf16>
    %95 = vector.shape_cast %94 : vector<1x16x16x8xbf16> to vector<16x16x8xbf16>
    %96 = vector.shape_cast %95 : vector<16x16x8xbf16> to vector<256x8xbf16>
    %c10 = arith.constant 10 : index
    %c0_71 = arith.constant 0 : index
    %c0_72 = arith.constant 0 : index
    %97 = vector.load %arg3[%c10, %c0_71, %c0_72] : memref<16x8x128xbf16, #tpu.memory_space<vmem>>, vector<1x8x128xbf16>
    %98 = vector.shape_cast %97 : vector<1x8x128xbf16> to vector<8x128xbf16>
    %cst_73 = arith.constant dense<0.000000e+00> : vector<256x128xf32>
    %99 = tpu.matmul %96, %98, %cst_73 {dimension_numbers = #tpu.dot_dimension_numbers<[1], [0], [0], [1], [0, 0, 1, 1], [], []>} : vector<256x8xbf16>, vector<8x128xbf16>, vector<256x128xf32> -> vector<256x128xf32>
    %100 = arith.addf %91, %99 : vector<256x128xf32>
    %c2_i32_74 = arith.constant 2 : i32
    %101 = arith.addi %0, %c2_i32_74 : i32
    %c0_75 = arith.constant 0 : index
    %102 = arith.index_cast %101 : i32 to index
    %c3_76 = arith.constant 3 : index
    %c0_77 = arith.constant 0 : index
    %103 = vector.load %arg2[%c0_75, %102, %c3_76, %c0_77] : memref<1x19x19x8xbf16, #tpu.memory_space<vmem>>, vector<1x16x16x8xbf16>
    %104 = vector.shape_cast %103 : vector<1x16x16x8xbf16> to vector<16x16x8xbf16>
    %105 = vector.shape_cast %104 : vector<16x16x8xbf16> to vector<256x8xbf16>
    %c11 = arith.constant 11 : index
    %c0_78 = arith.constant 0 : index
    %c0_79 = arith.constant 0 : index
    %106 = vector.load %arg3[%c11, %c0_78, %c0_79] : memref<16x8x128xbf16, #tpu.memory_space<vmem>>, vector<1x8x128xbf16>
    %107 = vector.shape_cast %106 : vector<1x8x128xbf16> to vector<8x128xbf16>
    %cst_80 = arith.constant dense<0.000000e+00> : vector<256x128xf32>
    %108 = tpu.matmul %105, %107, %cst_80 {dimension_numbers = #tpu.dot_dimension_numbers<[1], [0], [0], [1], [0, 0, 1, 1], [], []>} : vector<256x8xbf16>, vector<8x128xbf16>, vector<256x128xf32> -> vector<256x128xf32>
    %109 = arith.addf %100, %108 : vector<256x128xf32>
    %c3_i32 = arith.constant 3 : i32
    %110 = arith.addi %0, %c3_i32 : i32
    %c0_81 = arith.constant 0 : index
    %111 = arith.index_cast %110 : i32 to index
    %c0_82 = arith.constant 0 : index
    %c0_83 = arith.constant 0 : index
    %112 = vector.load %arg2[%c0_81, %111, %c0_82, %c0_83] : memref<1x19x19x8xbf16, #tpu.memory_space<vmem>>, vector<1x16x16x8xbf16>
    %113 = vector.shape_cast %112 : vector<1x16x16x8xbf16> to vector<16x16x8xbf16>
    %114 = vector.shape_cast %113 : vector<16x16x8xbf16> to vector<256x8xbf16>
    %c12 = arith.constant 12 : index
    %c0_84 = arith.constant 0 : index
    %c0_85 = arith.constant 0 : index
    %115 = vector.load %arg3[%c12, %c0_84, %c0_85] : memref<16x8x128xbf16, #tpu.memory_space<vmem>>, vector<1x8x128xbf16>
    %116 = vector.shape_cast %115 : vector<1x8x128xbf16> to vector<8x128xbf16>
    %cst_86 = arith.constant dense<0.000000e+00> : vector<256x128xf32>
    %117 = tpu.matmul %114, %116, %cst_86 {dimension_numbers = #tpu.dot_dimension_numbers<[1], [0], [0], [1], [0, 0, 1, 1], [], []>} : vector<256x8xbf16>, vector<8x128xbf16>, vector<256x128xf32> -> vector<256x128xf32>
    %118 = arith.addf %109, %117 : vector<256x128xf32>
    %c3_i32_87 = arith.constant 3 : i32
    %119 = arith.addi %0, %c3_i32_87 : i32
    %c0_88 = arith.constant 0 : index
    %120 = arith.index_cast %119 : i32 to index
    %c1_89 = arith.constant 1 : index
    %c0_90 = arith.constant 0 : index
    %121 = vector.load %arg2[%c0_88, %120, %c1_89, %c0_90] : memref<1x19x19x8xbf16, #tpu.memory_space<vmem>>, vector<1x16x16x8xbf16>
    %122 = vector.shape_cast %121 : vector<1x16x16x8xbf16> to vector<16x16x8xbf16>
    %123 = vector.shape_cast %122 : vector<16x16x8xbf16> to vector<256x8xbf16>
    %c13 = arith.constant 13 : index
    %c0_91 = arith.constant 0 : index
    %c0_92 = arith.constant 0 : index
    %124 = vector.load %arg3[%c13, %c0_91, %c0_92] : memref<16x8x128xbf16, #tpu.memory_space<vmem>>, vector<1x8x128xbf16>
    %125 = vector.shape_cast %124 : vector<1x8x128xbf16> to vector<8x128xbf16>
    %cst_93 = arith.constant dense<0.000000e+00> : vector<256x128xf32>
    %126 = tpu.matmul %123, %125, %cst_93 {dimension_numbers = #tpu.dot_dimension_numbers<[1], [0], [0], [1], [0, 0, 1, 1], [], []>} : vector<256x8xbf16>, vector<8x128xbf16>, vector<256x128xf32> -> vector<256x128xf32>
    %127 = arith.addf %118, %126 : vector<256x128xf32>
    %c3_i32_94 = arith.constant 3 : i32
    %128 = arith.addi %0, %c3_i32_94 : i32
    %c0_95 = arith.constant 0 : index
    %129 = arith.index_cast %128 : i32 to index
    %c2_96 = arith.constant 2 : index
    %c0_97 = arith.constant 0 : index
    %130 = vector.load %arg2[%c0_95, %129, %c2_96, %c0_97] : memref<1x19x19x8xbf16, #tpu.memory_space<vmem>>, vector<1x16x16x8xbf16>
    %131 = vector.shape_cast %130 : vector<1x16x16x8xbf16> to vector<16x16x8xbf16>
    %132 = vector.shape_cast %131 : vector<16x16x8xbf16> to vector<256x8xbf16>
    %c14 = arith.constant 14 : index
    %c0_98 = arith.constant 0 : index
    %c0_99 = arith.constant 0 : index
    %133 = vector.load %arg3[%c14, %c0_98, %c0_99] : memref<16x8x128xbf16, #tpu.memory_space<vmem>>, vector<1x8x128xbf16>
    %134 = vector.shape_cast %133 : vector<1x8x128xbf16> to vector<8x128xbf16>
    %cst_100 = arith.constant dense<0.000000e+00> : vector<256x128xf32>
    %135 = tpu.matmul %132, %134, %cst_100 {dimension_numbers = #tpu.dot_dimension_numbers<[1], [0], [0], [1], [0, 0, 1, 1], [], []>} : vector<256x8xbf16>, vector<8x128xbf16>, vector<256x128xf32> -> vector<256x128xf32>
    %136 = arith.addf %127, %135 : vector<256x128xf32>
    %c3_i32_101 = arith.constant 3 : i32
    %137 = arith.addi %0, %c3_i32_101 : i32
    %c0_102 = arith.constant 0 : index
    %138 = arith.index_cast %137 : i32 to index
    %c3_103 = arith.constant 3 : index
    %c0_104 = arith.constant 0 : index
    %139 = vector.load %arg2[%c0_102, %138, %c3_103, %c0_104] : memref<1x19x19x8xbf16, #tpu.memory_space<vmem>>, vector<1x16x16x8xbf16>
    %140 = vector.shape_cast %139 : vector<1x16x16x8xbf16> to vector<16x16x8xbf16>
    %141 = vector.shape_cast %140 : vector<16x16x8xbf16> to vector<256x8xbf16>
    %c15 = arith.constant 15 : index
    %c0_105 = arith.constant 0 : index
    %c0_106 = arith.constant 0 : index
    %142 = vector.load %arg3[%c15, %c0_105, %c0_106] : memref<16x8x128xbf16, #tpu.memory_space<vmem>>, vector<1x8x128xbf16>
    %143 = vector.shape_cast %142 : vector<1x8x128xbf16> to vector<8x128xbf16>
    %cst_107 = arith.constant dense<0.000000e+00> : vector<256x128xf32>
    %144 = tpu.matmul %141, %143, %cst_107 {dimension_numbers = #tpu.dot_dimension_numbers<[1], [0], [0], [1], [0, 0, 1, 1], [], []>} : vector<256x8xbf16>, vector<8x128xbf16>, vector<256x128xf32> -> vector<256x128xf32>
    %145 = arith.addf %136, %144 : vector<256x128xf32>
    %146 = math.tanh %145 : vector<256x128xf32>
    %c0_108 = arith.constant 0 : index
    %c0_109 = arith.constant 0 : index
    %147 = vector.load %arg4[%c0_108, %c0_109] : memref<256x128xf32, #tpu.memory_space<vmem>>, vector<256x128xf32>
    tpu.vector_store %arg4[%c0_108, %c0_109], %146 {strides = array<i32>} : memref<256x128xf32, #tpu.memory_space<vmem>>, vector<256x128xf32>,
    return
  }
  func.func @transform_0(%arg0: i32, %arg1: i32) -> (i32, i32, i32, i32) {
    %c0_i32 = arith.constant 0 : i32
    %c0_i32_0 = arith.constant 0 : i32
    %c0_i32_1 = arith.constant 0 : i32
    %c0_i32_2 = arith.constant 0 : i32
    return %arg0, %c0_i32, %c0_i32_0, %c0_i32_1 : i32, i32, i32, i32
  }
  func.func @transform_1(%arg0: i32, %arg1: i32) -> (i32, i32, i32) {
    %c0_i32 = arith.constant 0 : i32
    %c0_i32_0 = arith.constant 0 : i32
    %c0_i32_1 = arith.constant 0 : i32
    %c0_i32_2 = arith.constant 0 : i32
    return %c0_i32, %c0_i32_0, %c0_i32_1 : i32, i32, i32
  }
  func.func @transform_2(%arg0: i32, %arg1: i32) -> (i32, i32) {
    %c1_i32 = arith.constant 1 : i32
    %0 = arith.muli %arg0, %c1_i32 : i32
    %1 = arith.addi %0, %arg1 : i32
    %c0_i32 = arith.constant 0 : i32
    %c0_i32_0 = arith.constant 0 : i32
    return %1, %c0_i32 : i32, i32
  }
}

</mosaic_0001>

<llo_original>
// kernel: _lambda_.6
$region0: #{_lambda_.6}
  #allocation0 [shape = 'u32[]', space=smem, size = 0x4, offset = 0x4, fixed_abs, tag = 'smem constant byte address 0x4 - core index']
  #allocation1 [shape = 'u32[72,128]{1,0:T(1,128)}', space=vmem, size = 0x9000, scoped, tag = 'internal scratch']
  %s0 = inlined_call_operand.vmem [shape: bf16[64,128], index: 0, kind: input, shape index: {}, may-alias: {0,3}]
  %s1 = inlined_call_operand.vmem [shape: f32[1,128], index: 1, kind: input, shape index: {}]
  %s2 = inlined_call_operand.vmem [shape: f32[1,128], index: 2, kind: input, shape index: {}]
  %s3 = inlined_call_operand.vmem [shape: bf16[64,128], index: 3, kind: output, shape index: {}, may-alias: {0,3}]
  %s4 = sld [smem:[#allocation0]]
  $region22: #{_lambda_.6} parent=0
    _
  %s6 = ssub.s32 1, %s4
  %s7 = scalar_select 0, %s6, %s4
  // Predicated region
  $region2: #{_lambda_.6} parent=0 // pred_check
    _
  $region3: #{_lambda_.6} parent=0 // pred_check_branch
    %9 = sbr.rel (0) target = $region5
  $region4: #{_lambda_.6} parent=0 // pred_region
    _
  $region5: #{_lambda_.6} parent=0 // pred_fallthru
    _
  // Predicated region
  $region6: #{_lambda_.6} parent=0 // pred_check
    _
  $region7: #{_lambda_.6} parent=0 // pred_check_branch
    %11 = sbr.rel (0) target = $region9
  $region8: #{_lambda_.6} parent=0 // pred_region
    _
  $region9: #{_lambda_.6} parent=0 // pred_fallthru
    _
  // Predicated region
  $region10: #{_lambda_.6} parent=0 // pred_check
    _
  $region11: #{_lambda_.6} parent=0 // pred_check_branch
    %13 = sbr.rel (0) target = $region13
  $region12: #{_lambda_.6} parent=0 // pred_region
    _
  $region13: #{_lambda_.6} parent=0 // pred_fallthru
    _
  %v14 = vld [vmem:[%s0] sm:$0xf]
  %v15 = vld [vmem:[%s0 + $0x4] sm:$0xf]
  %v16 = vld [vmem:[%s0 + $0x8] sm:$0xf]
  %v17 = vld [vmem:[%s0 + $0xc] sm:$0xf]
  %v18 = vld [vmem:[%s0 + $0x10] sm:$0xf]
  %v19 = vld [vmem:[%s0 + $0x14] sm:$0xf]
  %v20 = vld [vmem:[%s0 + $0x18] sm:$0xf]
  %v21 = vld [vmem:[%s0 + $0x1c] sm:$0xf]
  %v22 = vunpack.c.l.bf16 %v14
  %v23 = vunpack.c.l.bf16 %v15
  %v24 = vunpack.c.l.bf16 %v16
  %v25 = vunpack.c.l.bf16 %v17
  %v26 = vunpack.c.l.bf16 %v18
  %v27 = vunpack.c.l.bf16 %v19
  %v28 = vunpack.c.l.bf16 %v20
  %v29 = vunpack.c.l.bf16 %v21
  %v30 = vld [vmem:[%s1] sm:$0x1]
  %v32 = vperm.slane %v30, 0
  %v34 = vmul.f32 %v22, %v32
  %v35 = vmul.f32 %v23, %v32
  %v36 = vmul.f32 %v24, %v32
  %v37 = vmul.f32 %v25, %v32
  %v38 = vmul.f32 %v26, %v32
  %v39 = vmul.f32 %v27, %v32
  %v40 = vmul.f32 %v28, %v32
  %v41 = vmul.f32 %v29, %v32
  %v42 = vld [vmem:[%s2] sm:$0x1]
  %v44 = vperm.slane %v42, 0
  %v46 = vadd.f32 %v34, %v44
  %v47 = vadd.f32 %v35, %v44
  %v48 = vadd.f32 %v36, %v44
  %v49 = vadd.f32 %v37, %v44
  %v50 = vadd.f32 %v38, %v44
  %v51 = vadd.f32 %v39, %v44
  %v52 = vadd.f32 %v40, %v44
  %v53 = vadd.f32 %v41, %v44
  %v54 = vmax.f32 %v46, 0.0
  %v55 = vmax.f32 %v47, 0.0
  %v56 = vmax.f32 %v48, 0.0
  %v57 = vmax.f32 %v49, 0.0
  %v58 = vmax.f32 %v50, 0.0
  %v59 = vmax.f32 %v51, 0.0
  %v60 = vmax.f32 %v52, 0.0
  %v61 = vmax.f32 %v53, 0.0
  %v62 = vpack.c.bf16 %v54, %v54
  %v63 = vpack.c.bf16 %v55, %v55
  %v64 = vpack.c.bf16 %v56, %v56
  %v65 = vpack.c.bf16 %v57, %v57
  %v66 = vpack.c.bf16 %v58, %v58
  %v67 = vpack.c.bf16 %v59, %v59
  %v68 = vpack.c.bf16 %v60, %v60
  %v69 = vpack.c.bf16 %v61, %v61
  %70 = vst [vmem:[%s3] sm:$0xf] %v62
  %71 = vst [vmem:[%s3 + $0x4] sm:$0xf] %v63
  %72 = vst [vmem:[%s3 + $0x8] sm:$0xf] %v64
  %73 = vst [vmem:[%s3 + $0xc] sm:$0xf] %v65
  %74 = vst [vmem:[%s3 + $0x10] sm:$0xf] %v66
  %75 = vst [vmem:[%s3 + $0x14] sm:$0xf] %v67
  %76 = vst [vmem:[%s3 + $0x18] sm:$0xf] %v68
  %77 = vst [vmem:[%s3 + $0x1c] sm:$0xf] %v69
  // Predicated region
  $region14: #{_lambda_.6} parent=0 // pred_check
    _
  $region15: #{_lambda_.6} parent=0 // pred_check_branch
    %79 = sbr.rel (0) target = $region17
  $region16: #{_lambda_.6} parent=0 // pred_region
    _
  $region17: #{_lambda_.6} parent=0 // pred_fallthru
    _
  // Predicated region
  $region18: #{_lambda_.6} parent=0 // pred_check
    _
  $region19: #{_lambda_.6} parent=0 // pred_check_branch
    %81 = sbr.rel (0) target = $region21
  $region20: #{_lambda_.6} parent=0 // pred_region
    _
  $region21: #{_lambda_.6} parent=0 // pred_fallthru
    _

// kernel: _lambda_.5
$region0: #{_lambda_.5}
  #allocation0 [shape = 'u32[]', space=smem, size = 0x4, offset = 0x4, fixed_abs, tag = 'smem constant byte address 0x4 - core index']
  #allocation1 [shape = 'u32[72,128]{1,0:T(1,128)}', space=vmem, size = 0x9000, scoped, tag = 'internal scratch']
  %s0 = inlined_call_operand.vmem [shape: bf16[2,7,11,8], index: 0, kind: input, shape index: {}]
  %s1 = inlined_call_operand.vmem [shape: bf16[16,8,128], index: 1, kind: input, shape index: {}]
  %s2 = inlined_call_operand.vmem [shape: bf16[64,128], index: 2, kind: output, shape index: {0}]
  %s3 = inlined_call_operand.vmem [shape: f32[2,1,128], index: 3, kind: output, shape index: {1}]
  %s4 = inlined_call_operand.vmem [shape: f32[2,1,128], index: 4, kind: output, shape index: {2}]
  %5 = xla_tuple %s2, %s3, %s4
  %s6 = sld [smem:[#allocation0]]
  $region61: #{_lambda_.5} parent=0
    _
  %s8 = ssub.s32 1, %s6
  %s9 = scalar_select 0, %s8, %s6
  loop: start=0, step=1, limit=4
  $region2: #{_lambda_.5} parent=0 // loop_pre_header
    _
  $region3: #{_lambda_.5} parent=0 // loop_header
    %s11 = sphi 0, %s15
    %p12 = scmp.ge.s32.totalorder %s11, 4
    %s18 = sphi 0, %s30
    %s19 = sphi 0, %s26
    %s20 = sphi 0, %s18
    %s21 = sphi 0, %s19
    %s22 = sphi 0, %s20
    %s23 = sphi 0, %s21
    %s33 = sphi 0, %s35
    %s36 = sphi 0, %s33
    %s37 = sphi 0, %s36
    %s53 = sphi 0, %s37
    %s57 = sphi 0, %s57
    %s59 = sphi 0, %s57
    %s60 = sphi 0, %s59
    %s74 = sphi 0, %s60
    %s82 = sphi 0, %s84
    %s85 = sphi 0, %s82
    %s86 = sphi 0, %s85
    %s102 = sphi 0, %s86
    %s108 = sphi 0, %s110
    %s111 = sphi 0, %s108
    %s112 = sphi 0, %s111
    %s128 = sphi 0, %s112
    %s134 = sphi 0, %s136
    %s137 = sphi 0, %s134
    %s138 = sphi 0, %s137
    %s154 = sphi 0, %s138
  $region4: #{_lambda_.5} parent=0 // loop_header_branch
    %14 = sbr.rel (%p12) target = $region8
  $region5: #{_lambda_.5} parent=0 // loop_body
    %s16 = ssub.s32 %s11, 1
    %s17 = ssub.s32 %s11, 2
    %s24 = sadd.s32 1, %s19
    %p25 = scmp.ge.s32.totalorder %s24, 1
    %s26 = scalar_select %p25, 0, %s24
    %s27 = sadd.s32 1, %s18
    %s28 = scalar_select %p25, %s27, %s18
    %p29 = scmp.ge.s32.totalorder %s28, 2
    %s30 = scalar_select %p29, 0, %s28
    %s31 = ssub.s32 %s18, %s30
    %p32 = scmp.eq.s32.totalorder %s31, 0
    %s34 = sadd.s32 %s33, 1
    %s35 = scalar_select %p32, %s33, %s34
    %p38 = pneg %p32
    %p39 = scmp.eq.s32.totalorder %s11, 1
    %p40 = por %p38, %p39
    %p41 = scmp.ne.s32.totalorder %s33, %s36
    %p42 = scmp.eq.s32.totalorder %s11, 0
    %p43 = por %p41, %p42
    %p44 = scmp.ne.s32.totalorder %s33, %s36
    %p45 = scmp.eq.s32.totalorder %s16, 1
    %p46 = por %p44, %p45
    %p47 = scmp.ne.s32.totalorder %s36, %s37
    %p48 = scmp.eq.s32.totalorder %s16, 0
    %p49 = por %p47, %p48
    %p50 = scmp.ne.s32.totalorder %s36, %s37
    %p51 = scmp.eq.s32.totalorder %s17, 1
    %p52 = por %p50, %p51
    %p54 = scmp.ne.s32.totalorder %s37, %s53
    %p55 = scmp.eq.s32.totalorder %s17, 0
    %p56 = por %p54, %p55
    %s58 = sadd.s32 %s57, 1
    %p61 = scmp.eq.s32.totalorder %s11, 1
    %p62 = scmp.ne.s32.totalorder %s57, %s59
    %p63 = scmp.eq.s32.totalorder %s11, 0
    %p64 = por %p62, %p63
    %p65 = scmp.ne.s32.totalorder %s57, %s59
    %p66 = scmp.eq.s32.totalorder %s16, 1
    %p67 = por %p65, %p66
    %p68 = scmp.ne.s32.totalorder %s59, %s60
    %p69 = scmp.eq.s32.totalorder %s16, 0
    %p70 = por %p68, %p69
    %p71 = scmp.ne.s32.totalorder %s59, %s60
    %p72 = scmp.eq.s32.totalorder %s17, 1
    %p73 = por %p71, %p72
    %p75 = scmp.ne.s32.totalorder %s60, %s74
    %p76 = scmp.eq.s32.totalorder %s17, 0
    %p77 = por %p75, %p76
    %s78 = sadd.s32 %s18, %s19
    %s79 = sadd.s32 %s30, %s26
    %s80 = ssub.s32 %s78, %s79
    %p81 = scmp.eq.s32.totalorder %s80, 0
    %s83 = sadd.s32 %s82, 1
    %s84 = scalar_select %p81, %s82, %s83
    %p87 = pneg %p81
    %p88 = scmp.eq.s32.totalorder %s11, 1
    %p89 = por %p87, %p88
    %p90 = scmp.ne.s32.totalorder %s82, %s85
    %p91 = scmp.eq.s32.totalorder %s11, 0
    %p92 = por %p90, %p91
    %p93 = scmp.ne.s32.totalorder %s82, %s85
    %p94 = scmp.eq.s32.totalorder %s16, 1
    %p95 = por %p93, %p94
    %p96 = scmp.ne.s32.totalorder %s85, %s86
    %p97 = scmp.eq.s32.totalorder %s16, 0
    %p98 = por %p96, %p97
    %p99 = scmp.ne.s32.totalorder %s85, %s86
    %p100 = scmp.eq.s32.totalorder %s17, 1
    %p101 = por %p99, %p100
    %p103 = scmp.ne.s32.totalorder %s86, %s102
    %p104 = scmp.eq.s32.totalorder %s17, 0
    %p105 = por %p103, %p104
    %s106 = ssub.s32 %s18, %s30
    %p107 = scmp.eq.s32.totalorder %s106, 0
    %s109 = sadd.s32 %s108, 1
    %s110 = scalar_select %p107, %s108, %s109
    %p113 = pneg %p107
    %p114 = scmp.eq.s32.totalorder %s11, 1
    %p115 = por %p113, %p114
    %p116 = scmp.ne.s32.totalorder %s108, %s111
    %p117 = scmp.eq.s32.totalorder %s11, 0
    %p118 = por %p116, %p117
    %p119 = scmp.ne.s32.totalorder %s108, %s111
    %p120 = scmp.eq.s32.totalorder %s16, 1
    %p121 = por %p119, %p120
    %p122 = scmp.ne.s32.totalorder %s111, %s112
    %p123 = scmp.eq.s32.totalorder %s16, 0
    %p124 = por %p122, %p123
    %p125 = scmp.ne.s32.totalorder %s111, %s112
    %p126 = scmp.eq.s32.totalorder %s17, 1
    %p127 = por %p125, %p126
    %p129 = scmp.ne.s32.totalorder %s112, %s128
    %p130 = scmp.eq.s32.totalorder %s17, 0
    %p131 = por %p129, %p130
    %s132 = ssub.s32 %s18, %s30
    %p133 = scmp.eq.s32.totalorder %s132, 0
    %s135 = sadd.s32 %s134, 1
    %s136 = scalar_select %p133, %s134, %s135
    %p139 = pneg %p133
    %p140 = scmp.eq.s32.totalorder %s11, 1
    %p141 = por %p139, %p140
    %p142 = scmp.ne.s32.totalorder %s134, %s137
    %p143 = scmp.eq.s32.totalorder %s11, 0
    %p144 = por %p142, %p143
    %p145 = scmp.ne.s32.totalorder %s134, %s137
    %p146 = scmp.eq.s32.totalorder %s16, 1
    %p147 = por %p145, %p146
    %p148 = scmp.ne.s32.totalorder %s137, %s138
    %p149 = scmp.eq.s32.totalorder %s16, 0
    %p150 = por %p148, %p149
    %p151 = scmp.ne.s32.totalorder %s137, %s138
    %p152 = scmp.eq.s32.totalorder %s17, 1
    %p153 = por %p151, %p152
    %p155 = scmp.ne.s32.totalorder %s138, %s154
    %p156 = scmp.eq.s32.totalorder %s17, 0
    %p157 = por %p155, %p156
    %p158 = scmp.le.s32.totalorder 1, %s11
    %p159 = scmp.lt.s32.totalorder %s11, 3
    %p160 = pnand %p158, %p159
    %p161 = pneg %p160
    // Predicated region
    $region9: #{_lambda_.5} parent=5 // pred_check
      _
    $region10: #{_lambda_.5} parent=5 // pred_check_branch
      %163 = sbr.rel (%p160) target = $region12
    $region11: #{_lambda_.5} parent=5 // pred_region
      %s164 = ssub.s32 %s11, 1
      // Predicated region
      $region13: #{_lambda_.5} parent=11 // pred_check
        %p165 = pneg %p70
      $region14: #{_lambda_.5} parent=11 // pred_check_branch
        %167 = sbr.rel (%p165) target = $region16
      $region15: #{_lambda_.5} parent=11 // pred_region
        _
      $region16: #{_lambda_.5} parent=11 // pred_fallthru
        _
    $region12: #{_lambda_.5} parent=5 // pred_fallthru
      _
    %p168 = scmp.lt.s32.totalorder %s11, 2
    // Predicated region
    $region17: #{_lambda_.5} parent=5 // pred_check
      %p169 = pneg %p168
    $region18: #{_lambda_.5} parent=5 // pred_check_branch
      %171 = sbr.rel (%p169) target = $region20
    $region19: #{_lambda_.5} parent=5 // pred_region
      // Predicated region
      $region21: #{_lambda_.5} parent=19 // pred_check
        %p172 = pneg %p43
      $region22: #{_lambda_.5} parent=19 // pred_check_branch
        %174 = sbr.rel (%p172) target = $region24
      $region23: #{_lambda_.5} parent=19 // pred_region
        %p175 = scmp.lt.s32.totalorder %s18, 1
        %s176 = scalar_select %p175, %s18, 1
        %s177 = smul.addr %s176, 14
        %s178 = smul.addr %s177, 4
        %s179 = scalar_lea.vmem %s0, %s178
      $region24: #{_lambda_.5} parent=19 // pred_fallthru
        _
    $region20: #{_lambda_.5} parent=5 // pred_fallthru
      _
    %p180 = scmp.le.s32.totalorder 1, %s11
    %p181 = scmp.lt.s32.totalorder %s11, 3
    %p182 = pnand %p180, %p181
    %p183 = pneg %p182
    // Predicated region
    $region25: #{_lambda_.5} parent=5 // pred_check
      _
    $region26: #{_lambda_.5} parent=5 // pred_check_branch
      %185 = sbr.rel (%p182) target = $region28
    $region27: #{_lambda_.5} parent=5 // pred_region
      %s186 = ssub.s32 %s11, 1
      %p187 = scmp.lt.s32.totalorder %s20, 1
      %s188 = scalar_select %p187, %s20, 1
      %s189 = smul.addr %s188, 14
      %s190 = smul.addr %s189, 4
      %s191 = scalar_lea.vmem %s0, %s190
      %p192 = pneg %p49
      %p193 = pneg %p46
      %p194 = pneg %p70
      %p195 = pneg %p67
      %p196 = pneg %p98
      %p197 = pneg %p95
      %s198 = sadd.s32 %s20, %s21
      %s199 = smul.u32 4, %s198
      %p200 = scmp.lt.s32.totalorder %s199, 7
      %s201 = scalar_select %p200, %s199, 7
      %s202 = smul.addr %s201, 4
      %s203 = scalar_lea.vmem %s2, %s202
      %p204 = pneg %p124
      %p205 = pneg %p121
      %p206 = scmp.lt.s32.totalorder %s20, 1
      %s207 = scalar_select %p206, %s20, 1
      %s208 = scalar_lea.vmem %s3, %s207
      %p209 = pneg %p150
      %p210 = pneg %p147
      %p211 = scmp.lt.s32.totalorder %s20, 1
      %s212 = scalar_select %p211, %s20, 1
      %s213 = scalar_lea.vmem %s4, %s212
      %p214 = scmp.lt.s32.totalorder %s20, 1
      %s215 = scalar_select %p214, %s20, 1
      %s216 = smul.addr %s215, 14
      %s217 = smul.addr %s216, 4
      %s218 = scalar_lea.vmem %s0, %s217
      %s219 = sadd.s32 %s20, %s21
      %s220 = smul.u32 4, %s219
      %p221 = scmp.lt.s32.totalorder %s220, 7
      %s222 = scalar_select %p221, %s220, 7
      %s223 = smul.addr %s222, 4
      %s224 = scalar_lea.vmem %s2, %s223
      %s225 = sadd.s32 %s20, %s21
      %s226 = smul.u32 4, %s225
      %p227 = scmp.lt.s32.totalorder %s20, 1
      %s228 = scalar_select %p227, %s20, 1
      %s229 = scalar_lea.vmem %s3, %s228
      %p230 = scmp.lt.s32.totalorder %s20, 1
      %s231 = scalar_select %p230, %s20, 1
      %s232 = scalar_lea.vmem %s4, %s231
      %s234 = smul.u32 %s21, 4
      %s235 = smul.u32 %s234, 2
      %s236 = smul.addr %s235, 4
      %s237 = scalar_lea.vmem %s218, %s236
      %v238 = vld [vmem:[%s237] sm:$0xf]
      %v239 = vld [vmem:[%s237 + $0x8] sm:$0xf]
      %v240 = vld [vmem:[%s237 + $0x10] sm:$0xf]
      %v241 = vld [vmem:[%s237 + $0x18] sm:$0xf]
      %v242 = vld [vmem:[%s1] sm:$0xf]
      %v243 = vld [vmem:[%s237 + $0x4] sm:$0x1]
      %v244 = vld [vmem:[%s237 + $0xc] sm:$0x1]
      %v245 = vld [vmem:[%s237 + $0x14] sm:$0x1]
      %v246 = vld [vmem:[%s237 + $0x1c] sm:$0x1]
      %vm247 = vsmask.f32 3328
      %vm248 = vsmask.f32 7440
      %vm249 = vmor %vm247, %vm248
      %v251 = vshrl.u32 %v238, 16
      %v253 = vrot.slane %v251, 4
      %v254 = vshll.u32 %v238, 16
      %v256 = vrot.slane %v254, 5
      %v257 = vor.u32 %v253, %v256
      %v258 = vrot.slane %v257, 4
      %v260 = vshll.u32 %v243, 16
      %v262 = vrot.slane %v260, 5
      %v263 = vsel %vm249, %v258, %v262
      %v265 = vshrl.u32 %v239, 16
      %v267 = vrot.slane %v265, 4
      %v268 = vshll.u32 %v239, 16
      %v270 = vrot.slane %v268, 5
      %v271 = vor.u32 %v267, %v270
      %v272 = vrot.slane %v271, 4
      %v274 = vshll.u32 %v244, 16
      %v276 = vrot.slane %v274, 5
      %v277 = vsel %vm249, %v272, %v276
      %v279 = vshrl.u32 %v240, 16
      %v281 = vrot.slane %v279, 4
      %v282 = vshll.u32 %v240, 16
      %v284 = vrot.slane %v282, 5
      %v285 = vor.u32 %v281, %v284
      %v286 = vrot.slane %v285, 4
      %v288 = vshll.u32 %v245, 16
      %v290 = vrot.slane %v288, 5
      %v291 = vsel %vm249, %v286, %v290
      %v293 = vshrl.u32 %v241, 16
      %v295 = vrot.slane %v293, 4
      %v296 = vshll.u32 %v241, 16
      %v298 = vrot.slane %v296, 5
      %v299 = vor.u32 %v295, %v298
      %v300 = vrot.slane %v299, 4
      %v302 = vshll.u32 %v246, 16
      %v304 = vrot.slane %v302, 5
      %v305 = vsel %vm249, %v300, %v304
      %s306 = scalar_lea.vmem %s1, 4
      %v307 = vld [vmem:[%s306] sm:$0xf]
      %v308 = vunpack.c.l.b16 %v263
      %v309 = vunpack.c.l.b16 %v277
      %v310 = vunpack.c.l.b16 %v291
      %v311 = vunpack.c.l.b16 %v305
      %v312 = vpack.c.b16 %v309, %v308
      %v313 = vpack.c.b16 %v311, %v310
      %vm314 = vcmask 64512
      %v316 = vsel %vm314, %v312, 0
      %v319 = vsel %vm314, %v313, 0
      %vm321 = vcmask 1043456
      %v323 = vsel %vm321, %v307, 0
      %325 = vmatpush.bf16.msra.mxu0 0
      %326 = vmatpush.bf16.msra.mxu0 0
      %327 = vmatpush.bf16.msra.mxu0 0
      %328 = vmatpush.bf16.msra.mxu0 0
      %329 = vmatpush.bf16.msra.mxu0 0
      %330 = vmatpush.bf16.msra.mxu0 0
      %331 = vmatpush.bf16.msra.mxu0 0
      %332 = vmatpush.bf16.msra.mxu0 %v323
      %333 = vmatmul.bf16.gmra.mxu0 %v316
      %v334 = vpop.f32.mrf.mxu0
      %v335 = vadd.f32 0.0, %v334
      %v336 = vpop.f32.mrf.mxu0
      %v337 = vadd.f32 0.0, %v336
      %338 = vmatmul.bf16.gmra.mxu0 %v319
      %v339 = vpop.f32.mrf.mxu0
      %v340 = vadd.f32 0.0, %v339
      %v341 = vpop.f32.mrf.mxu0
      %v342 = vadd.f32 0.0, %v341
      %343 = vdwg.mxu0
      %v348 = vunpack.c.l.b16 %v238
      %v349 = vunpack.c.l.b16 %v239
      %v350 = vunpack.c.l.b16 %v240
      %v351 = vunpack.c.l.b16 %v241
      %v352 = vpack.c.b16 %v349, %v348
      %v353 = vpack.c.b16 %v351, %v350
      %v355 = vsel %vm314, %v352, 0
      %v358 = vsel %vm314, %v353, 0
      %v361 = vsel %vm321, %v242, 0
      %363 = vmatpush.bf16.msra.mxu0 0
      %364 = vmatpush.bf16.msra.mxu0 0
      %365 = vmatpush.bf16.msra.mxu0 0
      %366 = vmatpush.bf16.msra.mxu0 0
      %367 = vmatpush.bf16.msra.mxu0 0
      %368 = vmatpush.bf16.msra.mxu0 0
      %369 = vmatpush.bf16.msra.mxu0 0
      %370 = vmatpush.bf16.msra.mxu0 %v361
      %371 = vmatmul.bf16.gmra.mxu0 %v355
      %v372 = vpop.f32.mrf.mxu0
      %v373 = vadd.f32 %v335, %v372
      %v374 = vpop.f32.mrf.mxu0
      %v375 = vadd.f32 %v337, %v374
      %376 = vmatmul.bf16.gmra.mxu0 %v358
      %v377 = vpop.f32.mrf.mxu0
      %v378 = vadd.f32 %v340, %v377
      %v379 = vpop.f32.mrf.mxu0
      %v380 = vadd.f32 %v342, %v379
      %381 = vdwg.mxu0
      %v382 = vld [vmem:[%s237] sm:$0xe]
      %v383 = vld [vmem:[%s237 + $0x8] sm:$0xe]
      %v384 = vld [vmem:[%s237 + $0x10] sm:$0xe]
      %v385 = vld [vmem:[%s237 + $0x18] sm:$0xe]
      %vm394 = vcmask 1042432
      %vm395 = vcmask 1046532
      %vm396 = vmor %vm394, %vm395
      %v397 = vrot.slane %v382, 5
      %v398 = vrot.slane %v397, 4
      %v399 = vrot.slane %v243, 5
      %v400 = vsel %vm396, %v398, %v399
      %v401 = vrot.slane %v383, 5
      %v402 = vrot.slane %v401, 4
      %v403 = vrot.slane %v244, 5
      %v404 = vsel %vm396, %v402, %v403
      %v405 = vrot.slane %v384, 5
      %v406 = vrot.slane %v405, 4
      %v407 = vrot.slane %v245, 5
      %v408 = vsel %vm396, %v406, %v407
      %v409 = vrot.slane %v385, 5
      %v410 = vrot.slane %v409, 4
      %v411 = vrot.slane %v246, 5
      %v412 = vsel %vm396, %v410, %v411
      %s413 = scalar_lea.vmem %s1, 8
      %v414 = vld [vmem:[%s413] sm:$0xf]
      %v415 = vunpack.c.l.b16 %v400
      %v416 = vunpack.c.l.b16 %v404
      %v417 = vunpack.c.l.b16 %v408
      %v418 = vunpack.c.l.b16 %v412
      %v419 = vpack.c.b16 %v416, %v415
      %v420 = vpack.c.b16 %v418, %v417
      %v422 = vsel %vm314, %v419, 0
      %v425 = vsel %vm314, %v420, 0
      %v428 = vsel %vm321, %v414, 0
      %430 = vmatpush.bf16.msra.mxu0 0
      %431 = vmatpush.bf16.msra.mxu0 0
      %432 = vmatpush.bf16.msra.mxu0 0
      %433 = vmatpush.bf16.msra.mxu0 0
      %434 = vmatpush.bf16.msra.mxu0 0
      %435 = vmatpush.bf16.msra.mxu0 0
      %436 = vmatpush.bf16.msra.mxu0 0
      %437 = vmatpush.bf16.msra.mxu0 %v428
      %438 = vmatmul.bf16.gmra.mxu0 %v422
      %v439 = vpop.f32.mrf.mxu0
      %v440 = vadd.f32 0.0, %v439
      %v441 = vpop.f32.mrf.mxu0
      %v442 = vadd.f32 0.0, %v441
      %443 = vmatmul.bf16.gmra.mxu0 %v425
      %v444 = vpop.f32.mrf.mxu0
      %v445 = vadd.f32 0.0, %v444
      %v446 = vpop.f32.mrf.mxu0
      %v447 = vadd.f32 0.0, %v446
      %448 = vdwg.mxu0
      %v449 = vadd.f32 %v373, %v440
      %v450 = vadd.f32 %v375, %v442
      %v451 = vadd.f32 %v378, %v445
      %v452 = vadd.f32 %v380, %v447
      %v453 = vld [vmem:[%s237 + $0x4] sm:$0x3]
      %v454 = vld [vmem:[%s237 + $0xc] sm:$0x3]
      %v455 = vld [vmem:[%s237 + $0x14] sm:$0x3]
      %v456 = vld [vmem:[%s237 + $0x1c] sm:$0x3]
      %vm457 = vsmask.f32 2304
      %vm458 = vsmask.f32 6416
      %vm459 = vmor %vm457, %vm458
      %v461 = vshrl.u32 %v382, 16
      %v463 = vrot.slane %v461, 5
      %v464 = vshll.u32 %v382, 16
      %v466 = vrot.slane %v464, 6
      %v467 = vor.u32 %v463, %v466
      %v468 = vrot.slane %v467, 4
      %v470 = vshrl.u32 %v453, 16
      %v472 = vrot.slane %v470, 5
      %v473 = vshll.u32 %v453, 16
      %v475 = vrot.slane %v473, 6
      %v476 = vor.u32 %v472, %v475
      %v477 = vsel %vm459, %v468, %v476
      %v479 = vshrl.u32 %v383, 16
      %v481 = vrot.slane %v479, 5
      %v482 = vshll.u32 %v383, 16
      %v484 = vrot.slane %v482, 6
      %v485 = vor.u32 %v481, %v484
      %v486 = vrot.slane %v485, 4
      %v488 = vshrl.u32 %v454, 16
      %v490 = vrot.slane %v488, 5
      %v491 = vshll.u32 %v454, 16
      %v493 = vrot.slane %v491, 6
      %v494 = vor.u32 %v490, %v493
      %v495 = vsel %vm459, %v486, %v494
      %v497 = vshrl.u32 %v384, 16
      %v499 = vrot.slane %v497, 5
      %v500 = vshll.u32 %v384, 16
      %v502 = vrot.slane %v500, 6
      %v503 = vor.u32 %v499, %v502
      %v504 = vrot.slane %v503, 4
      %v506 = vshrl.u32 %v455, 16
      %v508 = vrot.slane %v506, 5
      %v509 = vshll.u32 %v455, 16
      %v511 = vrot.slane %v509, 6
      %v512 = vor.u32 %v508, %v511
      %v513 = vsel %vm459, %v504, %v512
      %v515 = vshrl.u32 %v385, 16
      %v517 = vrot.slane %v515, 5
      %v518 = vshll.u32 %v385, 16
      %v520 = vrot.slane %v518, 6
      %v521 = vor.u32 %v517, %v520
      %v522 = vrot.slane %v521, 4
      %v524 = vshrl.u32 %v456, 16
      %v526 = vrot.slane %v524, 5
      %v527 = vshll.u32 %v456, 16
      %v529 = vrot.slane %v527, 6
      %v530 = vor.u32 %v526, %v529
      %v531 = vsel %vm459, %v522, %v530
      %s532 = scalar_lea.vmem %s1, 12
      %v533 = vld [vmem:[%s532] sm:$0xf]
      %v534 = vunpack.c.l.b16 %v477
      %v535 = vunpack.c.l.b16 %v495
      %v536 = vunpack.c.l.b16 %v513
      %v537 = vunpack.c.l.b16 %v531
      %v538 = vpack.c.b16 %v535, %v534
      %v539 = vpack.c.b16 %v537, %v536
      %v541 = vsel %vm314, %v538, 0
      %v544 = vsel %vm314, %v539, 0
      %v547 = vsel %vm321, %v533, 0
      %549 = vmatpush.bf16.msra.mxu0 0
      %550 = vmatpush.bf16.msra.mxu0 0
      %551 = vmatpush.bf16.msra.mxu0 0
      %552 = vmatpush.bf16.msra.mxu0 0
      %553 = vmatpush.bf16.msra.mxu0 0
      %554 = vmatpush.bf16.msra.mxu0 0
      %555 = vmatpush.bf16.msra.mxu0 0
      %556 = vmatpush.bf16.msra.mxu0 %v547
      %557 = vmatmul.bf16.gmra.mxu0 %v541
      %v558 = vpop.f32.mrf.mxu0
      %v559 = vadd.f32 0.0, %v558
      %v560 = vpop.f32.mrf.mxu0
      %v561 = vadd.f32 0.0, %v560
      %562 = vmatmul.bf16.gmra.mxu0 %v544
      %v563 = vpop.f32.mrf.mxu0
      %v564 = vadd.f32 0.0, %v563
      %v565 = vpop.f32.mrf.mxu0
      %v566 = vadd.f32 0.0, %v565
      %567 = vdwg.mxu0
      %v568 = vadd.f32 %v449, %v559
      %v569 = vadd.f32 %v450, %v561
      %v570 = vadd.f32 %v451, %v564
      %v571 = vadd.f32 %v452, %v566
      %s572 = sadd.s32 %s234, 1
      %s573 = smul.u32 %s572, 2
      %s574 = smul.addr %s573, 4
      %s575 = scalar_lea.vmem %s218, %s574
      %v576 = vld [vmem:[%s575] sm:$0xf]
      %v577 = vld [vmem:[%s575 + $0x8] sm:$0xf]
      %v578 = vld [vmem:[%s575 + $0x10] sm:$0xf]
      %v579 = vld [vmem:[%s575 + $0x18] sm:$0xf]
      %s580 = scalar_lea.vmem %s1, 16
      %v581 = vld [vmem:[%s580] sm:$0xf]
      %v586 = vunpack.c.l.b16 %v576
      %v587 = vunpack.c.l.b16 %v577
      %v588 = vunpack.c.l.b16 %v578
      %v589 = vunpack.c.l.b16 %v579
      %v590 = vpack.c.b16 %v587, %v586
      %v591 = vpack.c.b16 %v589, %v588
      %v593 = vsel %vm314, %v590, 0
      %v596 = vsel %vm314, %v591, 0
      %v599 = vsel %vm321, %v581, 0
      %601 = vmatpush.bf16.msra.mxu0 0
      %602 = vmatpush.bf16.msra.mxu0 0
      %603 = vmatpush.bf16.msra.mxu0 0
      %604 = vmatpush.bf16.msra.mxu0 0
      %605 = vmatpush.bf16.msra.mxu0 0
      %606 = vmatpush.bf16.msra.mxu0 0
      %607 = vmatpush.bf16.msra.mxu0 0
      %608 = vmatpush.bf16.msra.mxu0 %v599
      %609 = vmatmul.bf16.gmra.mxu0 %v593
      %v610 = vpop.f32.mrf.mxu0
      %v611 = vadd.f32 0.0, %v610
      %v612 = vpop.f32.mrf.mxu0
      %v613 = vadd.f32 0.0, %v612
      %614 = vmatmul.bf16.gmra.mxu0 %v596
      %v615 = vpop.f32.mrf.mxu0
      %v616 = vadd.f32 0.0, %v615
      %v617 = vpop.f32.mrf.mxu0
      %v618 = vadd.f32 0.0, %v617
      %619 = vdwg.mxu0
      %v620 = vadd.f32 %v568, %v611
      %v621 = vadd.f32 %v569, %v613
      %v622 = vadd.f32 %v570, %v616
      %v623 = vadd.f32 %v571, %v618
      %v624 = vld [vmem:[%s575] sm:$0xf]
      %v625 = vld [vmem:[%s575 + $0x4] sm:$0x1]
      %v626 = vld [vmem:[%s575 + $0x8] sm:$0xf]
      %v627 = vld [vmem:[%s575 + $0xc] sm:$0x1]
      %v628 = vld [vmem:[%s575 + $0x10] sm:$0xf]
      %v629 = vld [vmem:[%s575 + $0x14] sm:$0x1]
      %v630 = vld [vmem:[%s575 + $0x18] sm:$0xf]
      %v631 = vld [vmem:[%s575 + $0x1c] sm:$0x1]
      %v633 = vshrl.u32 %v624, 16
      %v635 = vrot.slane %v633, 4
      %v636 = vshll.u32 %v624, 16
      %v638 = vrot.slane %v636, 5
      %v639 = vor.u32 %v635, %v638
      %v640 = vrot.slane %v639, 4
      %v642 = vshll.u32 %v625, 16
      %v644 = vrot.slane %v642, 5
      %v645 = vsel %vm249, %v640, %v644
      %v647 = vshrl.u32 %v626, 16
      %v649 = vrot.slane %v647, 4
      %v650 = vshll.u32 %v626, 16
      %v652 = vrot.slane %v650, 5
      %v653 = vor.u32 %v649, %v652
      %v654 = vrot.slane %v653, 4
      %v656 = vshll.u32 %v627, 16
      %v658 = vrot.slane %v656, 5
      %v659 = vsel %vm249, %v654, %v658
      %v661 = vshrl.u32 %v628, 16
      %v663 = vrot.slane %v661, 4
      %v664 = vshll.u32 %v628, 16
      %v666 = vrot.slane %v664, 5
      %v667 = vor.u32 %v663, %v666
      %v668 = vrot.slane %v667, 4
      %v670 = vshll.u32 %v629, 16
      %v672 = vrot.slane %v670, 5
      %v673 = vsel %vm249, %v668, %v672
      %v675 = vshrl.u32 %v630, 16
      %v677 = vrot.slane %v675, 4
      %v678 = vshll.u32 %v630, 16
      %v680 = vrot.slane %v678, 5
      %v681 = vor.u32 %v677, %v680
      %v682 = vrot.slane %v681, 4
      %v684 = vshll.u32 %v631, 16
      %v686 = vrot.slane %v684, 5
      %v687 = vsel %vm249, %v682, %v686
      %s688 = scalar_lea.vmem %s1, 20
      %v689 = vld [vmem:[%s688] sm:$0xf]
      %v690 = vunpack.c.l.b16 %v645
      %v691 = vunpack.c.l.b16 %v659
      %v692 = vunpack.c.l.b16 %v673
      %v693 = vunpack.c.l.b16 %v687
      %v694 = vpack.c.b16 %v691, %v690
      %v695 = vpack.c.b16 %v693, %v692
      %v697 = vsel %vm314, %v694, 0
      %v700 = vsel %vm314, %v695, 0
      %v703 = vsel %vm321, %v689, 0
      %705 = vmatpush.bf16.msra.mxu0 0
      %706 = vmatpush.bf16.msra.mxu0 0
      %707 = vmatpush.bf16.msra.mxu0 0
      %708 = vmatpush.bf16.msra.mxu0 0
      %709 = vmatpush.bf16.msra.mxu0 0
      %710 = vmatpush.bf16.msra.mxu0 0
      %711 = vmatpush.bf16.msra.mxu0 0
      %712 = vmatpush.bf16.msra.mxu0 %v703
      %713 = vmatmul.bf16.gmra.mxu0 %v697
      %v714 = vpop.f32.mrf.mxu0
      %v715 = vadd.f32 0.0, %v714
      %v716 = vpop.f32.mrf.mxu0
      %v717 = vadd.f32 0.0, %v716
      %718 = vmatmul.bf16.gmra.mxu0 %v700
      %v719 = vpop.f32.mrf.mxu0
      %v720 = vadd.f32 0.0, %v719
      %v721 = vpop.f32.mrf.mxu0
      %v722 = vadd.f32 0.0, %v721
      %723 = vdwg.mxu0
      %v724 = vadd.f32 %v620, %v715
      %v725 = vadd.f32 %v621, %v717
      %v726 = vadd.f32 %v622, %v720
      %v727 = vadd.f32 %v623, %v722
      %v728 = vld [vmem:[%s575] sm:$0xe]
      %v729 = vld [vmem:[%s575 + $0x8] sm:$0xe]
      %v730 = vld [vmem:[%s575 + $0x10] sm:$0xe]
      %v731 = vld [vmem:[%s575 + $0x18] sm:$0xe]
      %v740 = vrot.slane %v728, 5
      %v741 = vrot.slane %v740, 4
      %v742 = vrot.slane %v625, 5
      %v743 = vsel %vm396, %v741, %v742
      %v744 = vrot.slane %v729, 5
      %v745 = vrot.slane %v744, 4
      %v746 = vrot.slane %v627, 5
      %v747 = vsel %vm396, %v745, %v746
      %v748 = vrot.slane %v730, 5
      %v749 = vrot.slane %v748, 4
      %v750 = vrot.slane %v629, 5
      %v751 = vsel %vm396, %v749, %v750
      %v752 = vrot.slane %v731, 5
      %v753 = vrot.slane %v752, 4
      %v754 = vrot.slane %v631, 5
      %v755 = vsel %vm396, %v753, %v754
      %s756 = scalar_lea.vmem %s1, 24
      %v757 = vld [vmem:[%s756] sm:$0xf]
      %v758 = vunpack.c.l.b16 %v743
      %v759 = vunpack.c.l.b16 %v747
      %v760 = vunpack.c.l.b16 %v751
      %v761 = vunpack.c.l.b16 %v755
      %v762 = vpack.c.b16 %v759, %v758
      %v763 = vpack.c.b16 %v761, %v760
      %v765 = vsel %vm314, %v762, 0
      %v768 = vsel %vm314, %v763, 0
      %v771 = vsel %vm321, %v757, 0
      %773 = vmatpush.bf16.msra.mxu0 0
      %774 = vmatpush.bf16.msra.mxu0 0
      %775 = vmatpush.bf16.msra.mxu0 0
      %776 = vmatpush.bf16.msra.mxu0 0
      %777 = vmatpush.bf16.msra.mxu0 0
      %778 = vmatpush.bf16.msra.mxu0 0
      %779 = vmatpush.bf16.msra.mxu0 0
      %780 = vmatpush.bf16.msra.mxu0 %v771
      %781 = vmatmul.bf16.gmra.mxu0 %v765
      %v782 = vpop.f32.mrf.mxu0
      %v783 = vadd.f32 0.0, %v782
      %v784 = vpop.f32.mrf.mxu0
      %v785 = vadd.f32 0.0, %v784
      %786 = vmatmul.bf16.gmra.mxu0 %v768
      %v787 = vpop.f32.mrf.mxu0
      %v788 = vadd.f32 0.0, %v787
      %v789 = vpop.f32.mrf.mxu0
      %v790 = vadd.f32 0.0, %v789
      %791 = vdwg.mxu0
      %v792 = vadd.f32 %v724, %v783
      %v793 = vadd.f32 %v725, %v785
      %v794 = vadd.f32 %v726, %v788
      %v795 = vadd.f32 %v727, %v790
      %v796 = vld [vmem:[%s575 + $0x4] sm:$0x3]
      %v797 = vld [vmem:[%s575 + $0xc] sm:$0x3]
      %v798 = vld [vmem:[%s575 + $0x14] sm:$0x3]
      %v799 = vld [vmem:[%s575 + $0x1c] sm:$0x3]
      %v801 = vshrl.u32 %v728, 16
      %v803 = vrot.slane %v801, 5
      %v804 = vshll.u32 %v728, 16
      %v806 = vrot.slane %v804, 6
      %v807 = vor.u32 %v803, %v806
      %v808 = vrot.slane %v807, 4
      %v810 = vshrl.u32 %v796, 16
      %v812 = vrot.slane %v810, 5
      %v813 = vshll.u32 %v796, 16
      %v815 = vrot.slane %v813, 6
      %v816 = vor.u32 %v812, %v815
      %v817 = vsel %vm459, %v808, %v816
      %v819 = vshrl.u32 %v729, 16
      %v821 = vrot.slane %v819, 5
      %v822 = vshll.u32 %v729, 16
      %v824 = vrot.slane %v822, 6
      %v825 = vor.u32 %v821, %v824
      %v826 = vrot.slane %v825, 4
      %v828 = vshrl.u32 %v797, 16
      %v830 = vrot.slane %v828, 5
      %v831 = vshll.u32 %v797, 16
      %v833 = vrot.slane %v831, 6
      %v834 = vor.u32 %v830, %v833
      %v835 = vsel %vm459, %v826, %v834
      %v837 = vshrl.u32 %v730, 16
      %v839 = vrot.slane %v837, 5
      %v840 = vshll.u32 %v730, 16
      %v842 = vrot.slane %v840, 6
      %v843 = vor.u32 %v839, %v842
      %v844 = vrot.slane %v843, 4
      %v846 = vshrl.u32 %v798, 16
      %v848 = vrot.slane %v846, 5
      %v849 = vshll.u32 %v798, 16
      %v851 = vrot.slane %v849, 6
      %v852 = vor.u32 %v848, %v851
      %v853 = vsel %vm459, %v844, %v852
      %v855 = vshrl.u32 %v731, 16
      %v857 = vrot.slane %v855, 5
      %v858 = vshll.u32 %v731, 16
      %v860 = vrot.slane %v858, 6
      %v861 = vor.u32 %v857, %v860
      %v862 = vrot.slane %v861, 4
      %v864 = vshrl.u32 %v799, 16
      %v866 = vrot.slane %v864, 5
      %v867 = vshll.u32 %v799, 16
      %v869 = vrot.slane %v867, 6
      %v870 = vor.u32 %v866, %v869
      %v871 = vsel %vm459, %v862, %v870
      %s872 = scalar_lea.vmem %s1, 28
      %v873 = vld [vmem:[%s872] sm:$0xf]
      %v874 = vunpack.c.l.b16 %v817
      %v875 = vunpack.c.l.b16 %v835
      %v876 = vunpack.c.l.b16 %v853
      %v877 = vunpack.c.l.b16 %v871
      %v878 = vpack.c.b16 %v875, %v874
      %v879 = vpack.c.b16 %v877, %v876
      %v881 = vsel %vm314, %v878, 0
      %v884 = vsel %vm314, %v879, 0
      %v887 = vsel %vm321, %v873, 0
      %889 = vmatpush.bf16.msra.mxu0 0
      %890 = vmatpush.bf16.msra.mxu0 0
      %891 = vmatpush.bf16.msra.mxu0 0
      %892 = vmatpush.bf16.msra.mxu0 0
      %893 = vmatpush.bf16.msra.mxu0 0
      %894 = vmatpush.bf16.msra.mxu0 0
      %895 = vmatpush.bf16.msra.mxu0 0
      %896 = vmatpush.bf16.msra.mxu0 %v887
      %897 = vmatmul.bf16.gmra.mxu0 %v881
      %v898 = vpop.f32.mrf.mxu0
      %v899 = vadd.f32 0.0, %v898
      %v900 = vpop.f32.mrf.mxu0
      %v901 = vadd.f32 0.0, %v900
      %902 = vmatmul.bf16.gmra.mxu0 %v884
      %v903 = vpop.f32.mrf.mxu0
      %v904 = vadd.f32 0.0, %v903
      %v905 = vpop.f32.mrf.mxu0
      %v906 = vadd.f32 0.0, %v905
      %907 = vdwg.mxu0
      %v908 = vadd.f32 %v792, %v899
      %v909 = vadd.f32 %v793, %v901
      %v910 = vadd.f32 %v794, %v904
      %v911 = vadd.f32 %v795, %v906
      %s912 = sadd.s32 %s234, 2
      %s913 = smul.u32 %s912, 2
      %s914 = smul.addr %s913, 4
      %s915 = scalar_lea.vmem %s218, %s914
      %v916 = vld [vmem:[%s915] sm:$0xf]
      %v917 = vld [vmem:[%s915 + $0x8] sm:$0xf]
      %v918 = vld [vmem:[%s915 + $0x10] sm:$0xf]
      %v919 = vld [vmem:[%s915 + $0x18] sm:$0xf]
      %s920 = scalar_lea.vmem %s1, 32
      %v921 = vld [vmem:[%s920] sm:$0xf]
      %v926 = vunpack.c.l.b16 %v916
      %v927 = vunpack.c.l.b16 %v917
      %v928 = vunpack.c.l.b16 %v918
      %v929 = vunpack.c.l.b16 %v919
      %v930 = vpack.c.b16 %v927, %v926
      %v931 = vpack.c.b16 %v929, %v928
      %v933 = vsel %vm314, %v930, 0
      %v936 = vsel %vm314, %v931, 0
      %v939 = vsel %vm321, %v921, 0
      %941 = vmatpush.bf16.msra.mxu0 0
      %942 = vmatpush.bf16.msra.mxu0 0
      %943 = vmatpush.bf16.msra.mxu0 0
      %944 = vmatpush.bf16.msra.mxu0 0
      %945 = vmatpush.bf16.msra.mxu0 0
      %946 = vmatpush.bf16.msra.mxu0 0
      %947 = vmatpush.bf16.msra.mxu0 0
      %948 = vmatpush.bf16.msra.mxu0 %v939
      %949 = vmatmul.bf16.gmra.mxu0 %v933
      %v950 = vpop.f32.mrf.mxu0
      %v951 = vadd.f32 0.0, %v950
      %v952 = vpop.f32.mrf.mxu0
      %v953 = vadd.f32 0.0, %v952
      %954 = vmatmul.bf16.gmra.mxu0 %v936
      %v955 = vpop.f32.mrf.mxu0
      %v956 = vadd.f32 0.0, %v955
      %v957 = vpop.f32.mrf.mxu0
      %v958 = vadd.f32 0.0, %v957
      %959 = vdwg.mxu0
      %v960 = vadd.f32 %v908, %v951
      %v961 = vadd.f32 %v909, %v953
      %v962 = vadd.f32 %v910, %v956
      %v963 = vadd.f32 %v911, %v958
      %v964 = vld [vmem:[%s915] sm:$0xf]
      %v965 = vld [vmem:[%s915 + $0x4] sm:$0x1]
      %v966 = vld [vmem:[%s915 + $0x8] sm:$0xf]
      %v967 = vld [vmem:[%s915 + $0xc] sm:$0x1]
      %v968 = vld [vmem:[%s915 + $0x10] sm:$0xf]
      %v969 = vld [vmem:[%s915 + $0x14] sm:$0x1]
      %v970 = vld [vmem:[%s915 + $0x18] sm:$0xf]
      %v971 = vld [vmem:[%s915 + $0x1c] sm:$0x1]
      %v973 = vshrl.u32 %v964, 16
      %v975 = vrot.slane %v973, 4
      %v976 = vshll.u32 %v964, 16
      %v978 = vrot.slane %v976, 5
      %v979 = vor.u32 %v975, %v978
      %v980 = vrot.slane %v979, 4
      %v982 = vshll.u32 %v965, 16
      %v984 = vrot.slane %v982, 5
      %v985 = vsel %vm249, %v980, %v984
      %v987 = vshrl.u32 %v966, 16
      %v989 = vrot.slane %v987, 4
      %v990 = vshll.u32 %v966, 16
      %v992 = vrot.slane %v990, 5
      %v993 = vor.u32 %v989, %v992
      %v994 = vrot.slane %v993, 4
      %v996 = vshll.u32 %v967, 16
      %v998 = vrot.slane %v996, 5
      %v999 = vsel %vm249, %v994, %v998
      %v1001 = vshrl.u32 %v968, 16
      %v1003 = vrot.slane %v1001, 4
      %v1004 = vshll.u32 %v968, 16
      %v1006 = vrot.slane %v1004, 5
      %v1007 = vor.u32 %v1003, %v1006
      %v1008 = vrot.slane %v1007, 4
      %v1010 = vshll.u32 %v969, 16
      %v1012 = vrot.slane %v1010, 5
      %v1013 = vsel %vm249, %v1008, %v1012
      %v1015 = vshrl.u32 %v970, 16
      %v1017 = vrot.slane %v1015, 4
      %v1018 = vshll.u32 %v970, 16
      %v1020 = vrot.slane %v1018, 5
      %v1021 = vor.u32 %v1017, %v1020
      %v1022 = vrot.slane %v1021, 4
      %v1024 = vshll.u32 %v971, 16
      %v1026 = vrot.slane %v1024, 5
      %v1027 = vsel %vm249, %v1022, %v1026
      %s1028 = scalar_lea.vmem %s1, 36
      %v1029 = vld [vmem:[%s1028] sm:$0xf]
      %v1030 = vunpack.c.l.b16 %v985
      %v1031 = vunpack.c.l.b16 %v999
      %v1032 = vunpack.c.l.b16 %v1013
      %v1033 = vunpack.c.l.b16 %v1027
      %v1034 = vpack.c.b16 %v1031, %v1030
      %v1035 = vpack.c.b16 %v1033, %v1032
      %v1037 = vsel %vm314, %v1034, 0
      %v1040 = vsel %vm314, %v1035, 0
      %v1043 = vsel %vm321, %v1029, 0
      %1045 = vmatpush.bf16.msra.mxu0 0
      %1046 = vmatpush.bf16.msra.mxu0 0
      %1047 = vmatpush.bf16.msra.mxu0 0
      %1048 = vmatpush.bf16.msra.mxu0 0
      %1049 = vmatpush.bf16.msra.mxu0 0
      %1050 = vmatpush.bf16.msra.mxu0 0
      %1051 = vmatpush.bf16.msra.mxu0 0
      %1052 = vmatpush.bf16.msra.mxu0 %v1043
      %1053 = vmatmul.bf16.gmra.mxu0 %v1037
      %v1054 = vpop.f32.mrf.mxu0
      %v1055 = vadd.f32 0.0, %v1054
      %v1056 = vpop.f32.mrf.mxu0
      %v1057 = vadd.f32 0.0, %v1056
      %1058 = vmatmul.bf16.gmra.mxu0 %v1040
      %v1059 = vpop.f32.mrf.mxu0
      %v1060 = vadd.f32 0.0, %v1059
      %v1061 = vpop.f32.mrf.mxu0
      %v1062 = vadd.f32 0.0, %v1061
      %1063 = vdwg.mxu0
      %v1064 = vadd.f32 %v960, %v1055
      %v1065 = vadd.f32 %v961, %v1057
      %v1066 = vadd.f32 %v962, %v1060
      %v1067 = vadd.f32 %v963, %v1062
      %v1068 = vld [vmem:[%s915] sm:$0xe]
      %v1069 = vld [vmem:[%s915 + $0x8] sm:$0xe]
      %v1070 = vld [vmem:[%s915 + $0x10] sm:$0xe]
      %v1071 = vld [vmem:[%s915 + $0x18] sm:$0xe]
      %v1080 = vrot.slane %v1068, 5
      %v1081 = vrot.slane %v1080, 4
      %v1082 = vrot.slane %v965, 5
      %v1083 = vsel %vm396, %v1081, %v1082
      %v1084 = vrot.slane %v1069, 5
      %v1085 = vrot.slane %v1084, 4
      %v1086 = vrot.slane %v967, 5
      %v1087 = vsel %vm396, %v1085, %v1086
      %v1088 = vrot.slane %v1070, 5
      %v1089 = vrot.slane %v1088, 4
      %v1090 = vrot.slane %v969, 5
      %v1091 = vsel %vm396, %v1089, %v1090
      %v1092 = vrot.slane %v1071, 5
      %v1093 = vrot.slane %v1092, 4
      %v1094 = vrot.slane %v971, 5
      %v1095 = vsel %vm396, %v1093, %v1094
      %s1096 = scalar_lea.vmem %s1, 40
      %v1097 = vld [vmem:[%s1096] sm:$0xf]
      %v1098 = vunpack.c.l.b16 %v1083
      %v1099 = vunpack.c.l.b16 %v1087
      %v1100 = vunpack.c.l.b16 %v1091
      %v1101 = vunpack.c.l.b16 %v1095
      %v1102 = vpack.c.b16 %v1099, %v1098
      %v1103 = vpack.c.b16 %v1101, %v1100
      %v1105 = vsel %vm314, %v1102, 0
      %v1108 = vsel %vm314, %v1103, 0
      %v1111 = vsel %vm321, %v1097, 0
      %1113 = vmatpush.bf16.msra.mxu0 0
      %1114 = vmatpush.bf16.msra.mxu0 0
      %1115 = vmatpush.bf16.msra.mxu0 0
      %1116 = vmatpush.bf16.msra.mxu0 0
      %1117 = vmatpush.bf16.msra.mxu0 0
      %1118 = vmatpush.bf16.msra.mxu0 0
      %1119 = vmatpush.bf16.msra.mxu0 0
      %1120 = vmatpush.bf16.msra.mxu0 %v1111
      %1121 = vmatmul.bf16.gmra.mxu0 %v1105
      %v1122 = vpop.f32.mrf.mxu0
      %v1123 = vadd.f32 0.0, %v1122
      %v1124 = vpop.f32.mrf.mxu0
      %v1125 = vadd.f32 0.0, %v1124
      %1126 = vmatmul.bf16.gmra.mxu0 %v1108
      %v1127 = vpop.f32.mrf.mxu0
      %v1128 = vadd.f32 0.0, %v1127
      %v1129 = vpop.f32.mrf.mxu0
      %v1130 = vadd.f32 0.0, %v1129
      %1131 = vdwg.mxu0
      %v1132 = vadd.f32 %v1064, %v1123
      %v1133 = vadd.f32 %v1065, %v1125
      %v1134 = vadd.f32 %v1066, %v1128
      %v1135 = vadd.f32 %v1067, %v1130
      %v1136 = vld [vmem:[%s915 + $0x4] sm:$0x3]
      %v1137 = vld [vmem:[%s915 + $0xc] sm:$0x3]
      %v1138 = vld [vmem:[%s915 + $0x14] sm:$0x3]
      %v1139 = vld [vmem:[%s915 + $0x1c] sm:$0x3]
      %v1141 = vshrl.u32 %v1068, 16
      %v1143 = vrot.slane %v1141, 5
      %v1144 = vshll.u32 %v1068, 16
      %v1146 = vrot.slane %v1144, 6
      %v1147 = vor.u32 %v1143, %v1146
      %v1148 = vrot.slane %v1147, 4
      %v1150 = vshrl.u32 %v1136, 16
      %v1152 = vrot.slane %v1150, 5
      %v1153 = vshll.u32 %v1136, 16
      %v1155 = vrot.slane %v1153, 6
      %v1156 = vor.u32 %v1152, %v1155
      %v1157 = vsel %vm459, %v1148, %v1156
      %v1159 = vshrl.u32 %v1069, 16
      %v1161 = vrot.slane %v1159, 5
      %v1162 = vshll.u32 %v1069, 16
      %v1164 = vrot.slane %v1162, 6
      %v1165 = vor.u32 %v1161, %v1164
      %v1166 = vrot.slane %v1165, 4
      %v1168 = vshrl.u32 %v1137, 16
      %v1170 = vrot.slane %v1168, 5
      %v1171 = vshll.u32 %v1137, 16
      %v1173 = vrot.slane %v1171, 6
      %v1174 = vor.u32 %v1170, %v1173
      %v1175 = vsel %vm459, %v1166, %v1174
      %v1177 = vshrl.u32 %v1070, 16
      %v1179 = vrot.slane %v1177, 5
      %v1180 = vshll.u32 %v1070, 16
      %v1182 = vrot.slane %v1180, 6
      %v1183 = vor.u32 %v1179, %v1182
      %v1184 = vrot.slane %v1183, 4
      %v1186 = vshrl.u32 %v1138, 16
      %v1188 = vrot.slane %v1186, 5
      %v1189 = vshll.u32 %v1138, 16
      %v1191 = vrot.slane %v1189, 6
      %v1192 = vor.u32 %v1188, %v1191
      %v1193 = vsel %vm459, %v1184, %v1192
      %v1195 = vshrl.u32 %v1071, 16
      %v1197 = vrot.slane %v1195, 5
      %v1198 = vshll.u32 %v1071, 16
      %v1200 = vrot.slane %v1198, 6
      %v1201 = vor.u32 %v1197, %v1200
      %v1202 = vrot.slane %v1201, 4
      %v1204 = vshrl.u32 %v1139, 16
      %v1206 = vrot.slane %v1204, 5
      %v1207 = vshll.u32 %v1139, 16
      %v1209 = vrot.slane %v1207, 6
      %v1210 = vor.u32 %v1206, %v1209
      %v1211 = vsel %vm459, %v1202, %v1210
      %s1212 = scalar_lea.vmem %s1, 44
      %v1213 = vld [vmem:[%s1212] sm:$0xf]
      %v1214 = vunpack.c.l.b16 %v1157
      %v1215 = vunpack.c.l.b16 %v1175
      %v1216 = vunpack.c.l.b16 %v1193
      %v1217 = vunpack.c.l.b16 %v1211
      %v1218 = vpack.c.b16 %v1215, %v1214
      %v1219 = vpack.c.b16 %v1217, %v1216
      %v1221 = vsel %vm314, %v1218, 0
      %v1224 = vsel %vm314, %v1219, 0
      %v1227 = vsel %vm321, %v1213, 0
      %1229 = vmatpush.bf16.msra.mxu0 0
      %1230 = vmatpush.bf16.msra.mxu0 0
      %1231 = vmatpush.bf16.msra.mxu0 0
      %1232 = vmatpush.bf16.msra.mxu0 0
      %1233 = vmatpush.bf16.msra.mxu0 0
      %1234 = vmatpush.bf16.msra.mxu0 0
      %1235 = vmatpush.bf16.msra.mxu0 0
      %1236 = vmatpush.bf16.msra.mxu0 %v1227
      %1237 = vmatmul.bf16.gmra.mxu0 %v1221
      %v1238 = vpop.f32.mrf.mxu0
      %v1239 = vadd.f32 0.0, %v1238
      %v1240 = vpop.f32.mrf.mxu0
      %v1241 = vadd.f32 0.0, %v1240
      %1242 = vmatmul.bf16.gmra.mxu0 %v1224
      %v1243 = vpop.f32.mrf.mxu0
      %v1244 = vadd.f32 0.0, %v1243
      %v1245 = vpop.f32.mrf.mxu0
      %v1246 = vadd.f32 0.0, %v1245
      %1247 = vdwg.mxu0
      %v1248 = vadd.f32 %v1132, %v1239
      %v1249 = vadd.f32 %v1133, %v1241
      %v1250 = vadd.f32 %v1134, %v1244
      %v1251 = vadd.f32 %v1135, %v1246
      %s1252 = sadd.s32 %s234, 3
      %s1253 = smul.u32 %s1252, 2
      %s1254 = smul.addr %s1253, 4
      %s1255 = scalar_lea.vmem %s218, %s1254
      %v1256 = vld [vmem:[%s1255] sm:$0xf]
      %v1257 = vld [vmem:[%s1255 + $0x8] sm:$0xf]
      %v1258 = vld [vmem:[%s1255 + $0x10] sm:$0xf]
      %v1259 = vld [vmem:[%s1255 + $0x18] sm:$0xf]
      %s1260 = scalar_lea.vmem %s1, 48
      %v1261 = vld [vmem:[%s1260] sm:$0xf]
      %v1266 = vunpack.c.l.b16 %v1256
      %v1267 = vunpack.c.l.b16 %v1257
      %v1268 = vunpack.c.l.b16 %v1258
      %v1269 = vunpack.c.l.b16 %v1259
      %v1270 = vpack.c.b16 %v1267, %v1266
      %v1271 = vpack.c.b16 %v1269, %v1268
      %v1273 = vsel %vm314, %v1270, 0
      %v1276 = vsel %vm314, %v1271, 0
      %v1279 = vsel %vm321, %v1261, 0
      %1281 = vmatpush.bf16.msra.mxu0 0
      %1282 = vmatpush.bf16.msra.mxu0 0
      %1283 = vmatpush.bf16.msra.mxu0 0
      %1284 = vmatpush.bf16.msra.mxu0 0
      %1285 = vmatpush.bf16.msra.mxu0 0
      %1286 = vmatpush.bf16.msra.mxu0 0
      %1287 = vmatpush.bf16.msra.mxu0 0
      %1288 = vmatpush.bf16.msra.mxu0 %v1279
      %1289 = vmatmul.bf16.gmra.mxu0 %v1273
      %v1290 = vpop.f32.mrf.mxu0
      %v1291 = vadd.f32 0.0, %v1290
      %v1292 = vpop.f32.mrf.mxu0
      %v1293 = vadd.f32 0.0, %v1292
      %1294 = vmatmul.bf16.gmra.mxu0 %v1276
      %v1295 = vpop.f32.mrf.mxu0
      %v1296 = vadd.f32 0.0, %v1295
      %v1297 = vpop.f32.mrf.mxu0
      %v1298 = vadd.f32 0.0, %v1297
      %1299 = vdwg.mxu0
      %v1300 = vadd.f32 %v1248, %v1291
      %v1301 = vadd.f32 %v1249, %v1293
      %v1302 = vadd.f32 %v1250, %v1296
      %v1303 = vadd.f32 %v1251, %v1298
      %v1304 = vld [vmem:[%s1255] sm:$0xf]
      %v1305 = vld [vmem:[%s1255 + $0x4] sm:$0x1]
      %v1306 = vld [vmem:[%s1255 + $0x8] sm:$0xf]
      %v1307 = vld [vmem:[%s1255 + $0xc] sm:$0x1]
      %v1308 = vld [vmem:[%s1255 + $0x10] sm:$0xf]
      %v1309 = vld [vmem:[%s1255 + $0x14] sm:$0x1]
      %v1310 = vld [vmem:[%s1255 + $0x18] sm:$0xf]
      %v1311 = vld [vmem:[%s1255 + $0x1c] sm:$0x1]
      %v1313 = vshrl.u32 %v1304, 16
      %v1315 = vrot.slane %v1313, 4
      %v1316 = vshll.u32 %v1304, 16
      %v1318 = vrot.slane %v1316, 5
      %v1319 = vor.u32 %v1315, %v1318
      %v1320 = vrot.slane %v1319, 4
      %v1322 = vshll.u32 %v1305, 16
      %v1324 = vrot.slane %v1322, 5
      %v1325 = vsel %vm249, %v1320, %v1324
      %v1327 = vshrl.u32 %v1306, 16
      %v1329 = vrot.slane %v1327, 4
      %v1330 = vshll.u32 %v1306, 16
      %v1332 = vrot.slane %v1330, 5
      %v1333 = vor.u32 %v1329, %v1332
      %v1334 = vrot.slane %v1333, 4
      %v1336 = vshll.u32 %v1307, 16
      %v1338 = vrot.slane %v1336, 5
      %v1339 = vsel %vm249, %v1334, %v1338
      %v1341 = vshrl.u32 %v1308, 16
      %v1343 = vrot.slane %v1341, 4
      %v1344 = vshll.u32 %v1308, 16
      %v1346 = vrot.slane %v1344, 5
      %v1347 = vor.u32 %v1343, %v1346
      %v1348 = vrot.slane %v1347, 4
      %v1350 = vshll.u32 %v1309, 16
      %v1352 = vrot.slane %v1350, 5
      %v1353 = vsel %vm249, %v1348, %v1352
      %v1355 = vshrl.u32 %v1310, 16
      %v1357 = vrot.slane %v1355, 4
      %v1358 = vshll.u32 %v1310, 16
      %v1360 = vrot.slane %v1358, 5
      %v1361 = vor.u32 %v1357, %v1360
      %v1362 = vrot.slane %v1361, 4
      %v1364 = vshll.u32 %v1311, 16
      %v1366 = vrot.slane %v1364, 5
      %v1367 = vsel %vm249, %v1362, %v1366
      %s1368 = scalar_lea.vmem %s1, 52
      %v1369 = vld [vmem:[%s1368] sm:$0xf]
      %v1370 = vunpack.c.l.b16 %v1325
      %v1371 = vunpack.c.l.b16 %v1339
      %v1372 = vunpack.c.l.b16 %v1353
      %v1373 = vunpack.c.l.b16 %v1367
      %v1374 = vpack.c.b16 %v1371, %v1370
      %v1375 = vpack.c.b16 %v1373, %v1372
      %v1377 = vsel %vm314, %v1374, 0
      %v1380 = vsel %vm314, %v1375, 0
      %v1383 = vsel %vm321, %v1369, 0
      %1385 = vmatpush.bf16.msra.mxu0 0
      %1386 = vmatpush.bf16.msra.mxu0 0
      %1387 = vmatpush.bf16.msra.mxu0 0
      %1388 = vmatpush.bf16.msra.mxu0 0
      %1389 = vmatpush.bf16.msra.mxu0 0
      %1390 = vmatpush.bf16.msra.mxu0 0
      %1391 = vmatpush.bf16.msra.mxu0 0
      %1392 = vmatpush.bf16.msra.mxu0 %v1383
      %1393 = vmatmul.bf16.gmra.mxu0 %v1377
      %v1394 = vpop.f32.mrf.mxu0
      %v1395 = vadd.f32 0.0, %v1394
      %v1396 = vpop.f32.mrf.mxu0
      %v1397 = vadd.f32 0.0, %v1396
      %1398 = vmatmul.bf16.gmra.mxu0 %v1380
      %v1399 = vpop.f32.mrf.mxu0
      %v1400 = vadd.f32 0.0, %v1399
      %v1401 = vpop.f32.mrf.mxu0
      %v1402 = vadd.f32 0.0, %v1401
      %1403 = vdwg.mxu0
      %v1404 = vadd.f32 %v1300, %v1395
      %v1405 = vadd.f32 %v1301, %v1397
      %v1406 = vadd.f32 %v1302, %v1400
      %v1407 = vadd.f32 %v1303, %v1402
      %v1408 = vld [vmem:[%s1255] sm:$0xe]
      %v1409 = vld [vmem:[%s1255 + $0x8] sm:$0xe]
      %v1410 = vld [vmem:[%s1255 + $0x10] sm:$0xe]
      %v1411 = vld [vmem:[%s1255 + $0x18] sm:$0xe]
      %v1420 = vrot.slane %v1408, 5
      %v1421 = vrot.slane %v1420, 4
      %v1422 = vrot.slane %v1305, 5
      %v1423 = vsel %vm396, %v1421, %v1422
      %v1424 = vrot.slane %v1409, 5
      %v1425 = vrot.slane %v1424, 4
      %v1426 = vrot.slane %v1307, 5
      %v1427 = vsel %vm396, %v1425, %v1426
      %v1428 = vrot.slane %v1410, 5
      %v1429 = vrot.slane %v1428, 4
      %v1430 = vrot.slane %v1309, 5
      %v1431 = vsel %vm396, %v1429, %v1430
      %v1432 = vrot.slane %v1411, 5
      %v1433 = vrot.slane %v1432, 4
      %v1434 = vrot.slane %v1311, 5
      %v1435 = vsel %vm396, %v1433, %v1434
      %s1436 = scalar_lea.vmem %s1, 56
      %v1437 = vld [vmem:[%s1436] sm:$0xf]
      %v1438 = vunpack.c.l.b16 %v1423
      %v1439 = vunpack.c.l.b16 %v1427
      %v1440 = vunpack.c.l.b16 %v1431
      %v1441 = vunpack.c.l.b16 %v1435
      %v1442 = vpack.c.b16 %v1439, %v1438
      %v1443 = vpack.c.b16 %v1441, %v1440
      %v1445 = vsel %vm314, %v1442, 0
      %v1448 = vsel %vm314, %v1443, 0
      %v1451 = vsel %vm321, %v1437, 0
      %1453 = vmatpush.bf16.msra.mxu0 0
      %1454 = vmatpush.bf16.msra.mxu0 0
      %1455 = vmatpush.bf16.msra.mxu0 0
      %1456 = vmatpush.bf16.msra.mxu0 0
      %1457 = vmatpush.bf16.msra.mxu0 0
      %1458 = vmatpush.bf16.msra.mxu0 0
      %1459 = vmatpush.bf16.msra.mxu0 0
      %1460 = vmatpush.bf16.msra.mxu0 %v1451
      %1461 = vmatmul.bf16.gmra.mxu0 %v1445
      %v1462 = vpop.f32.mrf.mxu0
      %v1463 = vadd.f32 0.0, %v1462
      %v1464 = vpop.f32.mrf.mxu0
      %v1465 = vadd.f32 0.0, %v1464
      %1466 = vmatmul.bf16.gmra.mxu0 %v1448
      %v1467 = vpop.f32.mrf.mxu0
      %v1468 = vadd.f32 0.0, %v1467
      %v1469 = vpop.f32.mrf.mxu0
      %v1470 = vadd.f32 0.0, %v1469
      %1471 = vdwg.mxu0
      %v1472 = vadd.f32 %v1404, %v1463
      %v1473 = vadd.f32 %v1405, %v1465
      %v1474 = vadd.f32 %v1406, %v1468
      %v1475 = vadd.f32 %v1407, %v1470
      %v1476 = vld [vmem:[%s1255 + $0x4] sm:$0x3]
      %v1477 = vld [vmem:[%s1255 + $0xc] sm:$0x3]
      %v1478 = vld [vmem:[%s1255 + $0x14] sm:$0x3]
      %v1479 = vld [vmem:[%s1255 + $0x1c] sm:$0x3]
      %v1481 = vshrl.u32 %v1408, 16
      %v1483 = vrot.slane %v1481, 5
      %v1484 = vshll.u32 %v1408, 16
      %v1486 = vrot.slane %v1484, 6
      %v1487 = vor.u32 %v1483, %v1486
      %v1488 = vrot.slane %v1487, 4
      %v1490 = vshrl.u32 %v1476, 16
      %v1492 = vrot.slane %v1490, 5
      %v1493 = vshll.u32 %v1476, 16
      %v1495 = vrot.slane %v1493, 6
      %v1496 = vor.u32 %v1492, %v1495
      %v1497 = vsel %vm459, %v1488, %v1496
      %v1499 = vshrl.u32 %v1409, 16
      %v1501 = vrot.slane %v1499, 5
      %v1502 = vshll.u32 %v1409, 16
      %v1504 = vrot.slane %v1502, 6
      %v1505 = vor.u32 %v1501, %v1504
      %v1506 = vrot.slane %v1505, 4
      %v1508 = vshrl.u32 %v1477, 16
      %v1510 = vrot.slane %v1508, 5
      %v1511 = vshll.u32 %v1477, 16
      %v1513 = vrot.slane %v1511, 6
      %v1514 = vor.u32 %v1510, %v1513
      %v1515 = vsel %vm459, %v1506, %v1514
      %v1517 = vshrl.u32 %v1410, 16
      %v1519 = vrot.slane %v1517, 5
      %v1520 = vshll.u32 %v1410, 16
      %v1522 = vrot.slane %v1520, 6
      %v1523 = vor.u32 %v1519, %v1522
      %v1524 = vrot.slane %v1523, 4
      %v1526 = vshrl.u32 %v1478, 16
      %v1528 = vrot.slane %v1526, 5
      %v1529 = vshll.u32 %v1478, 16
      %v1531 = vrot.slane %v1529, 6
      %v1532 = vor.u32 %v1528, %v1531
      %v1533 = vsel %vm459, %v1524, %v1532
      %v1535 = vshrl.u32 %v1411, 16
      %v1537 = vrot.slane %v1535, 5
      %v1538 = vshll.u32 %v1411, 16
      %v1540 = vrot.slane %v1538, 6
      %v1541 = vor.u32 %v1537, %v1540
      %v1542 = vrot.slane %v1541, 4
      %v1544 = vshrl.u32 %v1479, 16
      %v1546 = vrot.slane %v1544, 5
      %v1547 = vshll.u32 %v1479, 16
      %v1549 = vrot.slane %v1547, 6
      %v1550 = vor.u32 %v1546, %v1549
      %v1551 = vsel %vm459, %v1542, %v1550
      %s1552 = scalar_lea.vmem %s1, 60
      %v1553 = vld [vmem:[%s1552] sm:$0xf]
      %v1554 = vunpack.c.l.b16 %v1497
      %v1555 = vunpack.c.l.b16 %v1515
      %v1556 = vunpack.c.l.b16 %v1533
      %v1557 = vunpack.c.l.b16 %v1551
      %v1558 = vpack.c.b16 %v1555, %v1554
      %v1559 = vpack.c.b16 %v1557, %v1556
      %v1561 = vsel %vm314, %v1558, 0
      %v1564 = vsel %vm314, %v1559, 0
      %v1567 = vsel %vm321, %v1553, 0
      %1569 = vmatpush.bf16.msra.mxu0 0
      %1570 = vmatpush.bf16.msra.mxu0 0
      %1571 = vmatpush.bf16.msra.mxu0 0
      %1572 = vmatpush.bf16.msra.mxu0 0
      %1573 = vmatpush.bf16.msra.mxu0 0
      %1574 = vmatpush.bf16.msra.mxu0 0
      %1575 = vmatpush.bf16.msra.mxu0 0
      %1576 = vmatpush.bf16.msra.mxu0 %v1567
      %1577 = vmatmul.bf16.gmra.mxu0 %v1561
      %v1578 = vpop.f32.mrf.mxu0
      %v1579 = vadd.f32 0.0, %v1578
      %v1580 = vpop.f32.mrf.mxu0
      %v1581 = vadd.f32 0.0, %v1580
      %1582 = vmatmul.bf16.gmra.mxu0 %v1564
      %v1583 = vpop.f32.mrf.mxu0
      %v1584 = vadd.f32 0.0, %v1583
      %v1585 = vpop.f32.mrf.mxu0
      %v1586 = vadd.f32 0.0, %v1585
      %1587 = vdwg.mxu0
      %v1588 = vadd.f32 %v1472, %v1579
      %v1589 = vadd.f32 %v1473, %v1581
      %v1590 = vadd.f32 %v1474, %v1584
      %v1591 = vadd.f32 %v1475, %v1586
      %v1592 = vlaneseq
      %v1593 = vshrl.u32 %v1592, 7
      %v1594 = vadd.s32 %v1593, 8
      %v1595 = vadd.s32 %v1593, 16
      %v1596 = vadd.s32 %v1593, 24
      %vm1597 = vcmp.lt.s32.totalorder %v1593, 0
      %v1598 = vsub.s32 0, %v1593
      %v1599 = vsel %vm1597, %v1598, %v1593
      %v1600 = vshrl.u32 %v1599, 3
      %v1601 = vand.u32 %v1599, 7
      %v1602 = vsub.s32 0, %v1601
      %v1603 = vsel %vm1597, %v1602, %v1601
      %vm1604 = vcmp.lt.s32.totalorder %v1594, 0
      %v1605 = vsub.s32 0, %v1594
      %v1606 = vsel %vm1604, %v1605, %v1594
      %v1607 = vshrl.u32 %v1606, 3
      %v1608 = vand.u32 %v1606, 7
      %v1609 = vsub.s32 0, %v1608
      %v1610 = vsel %vm1604, %v1609, %v1608
      %vm1611 = vcmp.lt.s32.totalorder %v1595, 0
      %v1612 = vsub.s32 0, %v1595
      %v1613 = vsel %vm1611, %v1612, %v1595
      %v1614 = vshrl.u32 %v1613, 3
      %v1615 = vand.u32 %v1613, 7
      %v1616 = vsub.s32 0, %v1615
      %v1617 = vsel %vm1611, %v1616, %v1615
      %vm1618 = vcmp.lt.s32.totalorder %v1596, 0
      %v1619 = vsub.s32 0, %v1596
      %v1620 = vsel %vm1618, %v1619, %v1596
      %v1621 = vshrl.u32 %v1620, 3
      %v1622 = vand.u32 %v1620, 7
      %v1623 = vsub.s32 0, %v1622
      %v1624 = vsel %vm1618, %v1623, %v1622
      %vm1625 = vcmp.ne.s32.totalorder %v1603, 0
      %vm1626 = vcmp.ne.s32.totalorder %v1610, 0
      %vm1627 = vcmp.ne.s32.totalorder %v1617, 0
      %vm1628 = vcmp.ne.s32.totalorder %v1624, 0
      %vm1629 = vcmp.lt.s32.totalorder %v1603, 0
      %vm1630 = vcmp.lt.s32.totalorder %v1610, 0
      %vm1631 = vcmp.lt.s32.totalorder %v1617, 0
      %vm1632 = vcmp.lt.s32.totalorder %v1624, 0
      %vm1633 = vmand %vm1629, %vm1625
      %vm1634 = vmand %vm1630, %vm1626
      %vm1635 = vmand %vm1631, %vm1627
      %vm1636 = vmand %vm1632, %vm1628
      %v1637 = vadd.s32 %v1603, 8
      %v1638 = vadd.s32 %v1610, 8
      %v1639 = vadd.s32 %v1617, 8
      %v1640 = vadd.s32 %v1624, 8
      %v1641 = vsel %vm1633, %v1637, %v1603
      %v1642 = vsel %vm1634, %v1638, %v1610
      %v1643 = vsel %vm1635, %v1639, %v1617
      %v1644 = vsel %vm1636, %v1640, %v1624
      %vm1645 = vcmp.lt.s32.totalorder %v1641, 4
      %vm1646 = vcmp.lt.s32.totalorder %v1642, 4
      %vm1647 = vcmp.lt.s32.totalorder %v1643, 4
      %vm1648 = vcmp.lt.s32.totalorder %v1644, 4
      %v1649 = vsel %vm1645, 1, 0
      %v1650 = vsel %vm1646, 1, 0
      %v1651 = vsel %vm1647, 1, 0
      %v1652 = vsel %vm1648, 1, 0
      %vm1653 = vcmp.eq.s32.totalorder %v1649, 1
      %vm1654 = vcmp.eq.s32.totalorder %v1650, 1
      %vm1655 = vcmp.eq.s32.totalorder %v1651, 1
      %vm1656 = vcmp.eq.s32.totalorder %v1652, 1
      %v1657 = vsel %vm1653, %v1588, 0.0
      %v1658 = vsel %vm1654, %v1589, 0.0
      %v1659 = vsel %vm1655, %v1590, 0.0
      %v1660 = vsel %vm1656, %v1591, 0.0
      %v1661 = vpack.c.bf16 %v1657, %v1657
      %v1662 = vpack.c.bf16 %v1658, %v1658
      %v1663 = vpack.c.bf16 %v1659, %v1659
      %v1664 = vpack.c.bf16 %v1660, %v1660
      %1665 = vst [vmem:[%s224] sm:$0xf] %v1661
      %1666 = vst [vmem:[%s224 + $0x4] sm:$0xf] %v1662
      %1667 = vst [vmem:[%s224 + $0x8] sm:$0xf] %v1663
      %1668 = vst [vmem:[%s224 + $0xc] sm:$0xf] %v1664
      %p1669 = scmp.eq.s32.totalorder %s21, 0
      // Predicated region
      $region29: #{_lambda_.5} parent=27 // pred_check
        %p1670 = pneg %p1669
      $region30: #{_lambda_.5} parent=27 // pred_check_branch
        %1672 = sbr.rel (%p1670) target = $region32
      $region31: #{_lambda_.5} parent=27 // pred_region
        %1673 = vst [vmem:[%s229] sm:$0x1] 0.0
        %1674 = vst [vmem:[%s232] sm:$0x1] 0.0
      $region32: #{_lambda_.5} parent=27 // pred_fallthru
        _
      %v1675 = vld [vmem:[%s229] sm:$0x1]
      %v1676 = vadd.f32 %v1657, %v1658
      %v1677 = vadd.f32 %v1676, %v1659
      %v1678 = vadd.f32 %v1677, %v1660
      %v1679 = vrot.slane %v1678, 4
      %v1680 = vadd.f32 %v1678, %v1679
      %v1681 = vrot.slane %v1680, 2
      %v1682 = vadd.f32 %v1680, %v1681
      %v1683 = vrot.slane %v1682, 1
      %v1684 = vadd.f32 %v1682, %v1683
      %v1685 = vadd.f32 %v1675, %v1684
      %1686 = vst [vmem:[%s229] sm:$0x1] %v1685
      %v1687 = vld [vmem:[%s232] sm:$0x1]
      %v1688 = vmul.f32 %v1657, %v1657
      %v1689 = vmul.f32 %v1658, %v1658
      %v1690 = vmul.f32 %v1659, %v1659
      %v1691 = vmul.f32 %v1660, %v1660
      %v1692 = vadd.f32 %v1688, %v1689
      %v1693 = vadd.f32 %v1692, %v1690
      %v1694 = vadd.f32 %v1693, %v1691
      %v1695 = vrot.slane %v1694, 4
      %v1696 = vadd.f32 %v1694, %v1695
      %v1697 = vrot.slane %v1696, 2
      %v1698 = vadd.f32 %v1696, %v1697
      %v1699 = vrot.slane %v1698, 1
      %v1700 = vadd.f32 %v1698, %v1699
      %v1701 = vadd.f32 %v1687, %v1700
      %1702 = vst [vmem:[%s232] sm:$0x1] %v1701
      %s1703 = sadd.s32 %s20, %s21
      %s1704 = smul.u32 4, %s1703
      %p1705 = scmp.lt.s32.totalorder %s1704, 7
      %s1706 = scalar_select %p1705, %s1704, 7
      %s1707 = smul.addr %s1706, 4
      %s1708 = scalar_lea.vmem %s2, %s1707
      %p1709 = scmp.lt.s32.totalorder %s20, 1
      %s1710 = scalar_select %p1709, %s20, 1
      %s1711 = scalar_lea.vmem %s3, %s1710
      %p1712 = scmp.lt.s32.totalorder %s20, 1
      %s1713 = scalar_select %p1712, %s20, 1
      %s1714 = scalar_lea.vmem %s4, %s1713
      // Predicated region
      $region33: #{_lambda_.5} parent=27 // pred_check
        %p1715 = pneg %p95
      $region34: #{_lambda_.5} parent=27 // pred_check_branch
        %1717 = sbr.rel (%p1715) target = $region36
      $region35: #{_lambda_.5} parent=27 // pred_region
        %s1718 = sadd.s32 %s20, %s21
        %s1719 = smul.u32 4, %s1718
      $region36: #{_lambda_.5} parent=27 // pred_fallthru
        _
      // Predicated region
      $region37: #{_lambda_.5} parent=27 // pred_check
        %p1720 = pneg %p121
      $region38: #{_lambda_.5} parent=27 // pred_check_branch
        %1722 = sbr.rel (%p1720) target = $region40
      $region39: #{_lambda_.5} parent=27 // pred_region
        _
      $region40: #{_lambda_.5} parent=27 // pred_fallthru
        _
      // Predicated region
      $region41: #{_lambda_.5} parent=27 // pred_check
        %p1723 = pneg %p147
      $region42: #{_lambda_.5} parent=27 // pred_check_branch
        %1725 = sbr.rel (%p1723) target = $region44
      $region43: #{_lambda_.5} parent=27 // pred_region
        _
      $region44: #{_lambda_.5} parent=27 // pred_fallthru
        _
    $region28: #{_lambda_.5} parent=5 // pred_fallthru
      _
    %p1726 = scmp.le.s32.totalorder 2, %s11
    // Predicated region
    $region45: #{_lambda_.5} parent=5 // pred_check
      %p1727 = pneg %p1726
    $region46: #{_lambda_.5} parent=5 // pred_check_branch
      %1729 = sbr.rel (%p1727) target = $region48
    $region47: #{_lambda_.5} parent=5 // pred_region
      %s1730 = ssub.s32 %s11, 2
      // Predicated region
      $region49: #{_lambda_.5} parent=47 // pred_check
        %p1731 = pneg %p101
      $region50: #{_lambda_.5} parent=47 // pred_check_branch
        %1733 = sbr.rel (%p1731) target = $region52
      $region51: #{_lambda_.5} parent=47 // pred_region
        %s1734 = sadd.s32 %s22, %s23
        %s1735 = smul.u32 4, %s1734
        %p1736 = scmp.lt.s32.totalorder %s1735, 7
        %s1737 = scalar_select %p1736, %s1735, 7
        %s1738 = smul.addr %s1737, 4
        %s1739 = scalar_lea.vmem %s2, %s1738
      $region52: #{_lambda_.5} parent=47 // pred_fallthru
        _
      // Predicated region
      $region53: #{_lambda_.5} parent=47 // pred_check
        %p1740 = pneg %p127
      $region54: #{_lambda_.5} parent=47 // pred_check_branch
        %1742 = sbr.rel (%p1740) target = $region56
      $region55: #{_lambda_.5} parent=47 // pred_region
        %p1743 = scmp.lt.s32.totalorder %s22, 1
        %s1744 = scalar_select %p1743, %s22, 1
        %s1745 = scalar_lea.vmem %s3, %s1744
      $region56: #{_lambda_.5} parent=47 // pred_fallthru
        _
      // Predicated region
      $region57: #{_lambda_.5} parent=47 // pred_check
        %p1746 = pneg %p153
      $region58: #{_lambda_.5} parent=47 // pred_check_branch
        %1748 = sbr.rel (%p1746) target = $region60
      $region59: #{_lambda_.5} parent=47 // pred_region
        %p1749 = scmp.lt.s32.totalorder %s22, 1
        %s1750 = scalar_select %p1749, %s22, 1
        %s1751 = scalar_lea.vmem %s4, %s1750
      $region60: #{_lambda_.5} parent=47 // pred_fallthru
        _
    $region48: #{_lambda_.5} parent=5 // pred_fallthru
      _
  $region6: #{_lambda_.5} parent=0 // loop_footer
    %s15 = sadd.s32 1, %s11
  $region7: #{_lambda_.5} parent=0 // loop_footer_branch
    %10 = sbr.rel target = $region3
  $region8: #{_lambda_.5} parent=0 // loop_exit
    _

// kernel: _lambda_.8
$region0: #{_lambda_.8}
  #allocation0 [shape = 'u32[]', space=smem, size = 0x4, offset = 0x4, fixed_abs, tag = 'smem constant byte address 0x4 - core index']
  #allocation1 [shape = 'u32[72,128]{1,0:T(1,128)}', space=vmem, size = 0x9000, scoped, tag = 'internal scratch']
  %s0 = inlined_call_operand.vmem [shape: bf16[128,128], index: 0, kind: input, shape index: {}, may-alias: {0,3}]
  %s1 = inlined_call_operand.vmem [shape: f32[1,128], index: 1, kind: input, shape index: {}]
  %s2 = inlined_call_operand.vmem [shape: f32[1,128], index: 2, kind: input, shape index: {}]
  %s3 = inlined_call_operand.vmem [shape: bf16[128,128], index: 3, kind: output, shape index: {}, may-alias: {0,3}]
  %s4 = sld [smem:[#allocation0]]
  $region22: #{_lambda_.8} parent=0
    _
  %s6 = ssub.s32 1, %s4
  %s7 = scalar_select 0, %s6, %s4
  // Predicated region
  $region2: #{_lambda_.8} parent=0 // pred_check
    _
  $region3: #{_lambda_.8} parent=0 // pred_check_branch
    %9 = sbr.rel (0) target = $region5
  $region4: #{_lambda_.8} parent=0 // pred_region
    _
  $region5: #{_lambda_.8} parent=0 // pred_fallthru
    _
  // Predicated region
  $region6: #{_lambda_.8} parent=0 // pred_check
    _
  $region7: #{_lambda_.8} parent=0 // pred_check_branch
    %11 = sbr.rel (0) target = $region9
  $region8: #{_lambda_.8} parent=0 // pred_region
    _
  $region9: #{_lambda_.8} parent=0 // pred_fallthru
    _
  // Predicated region
  $region10: #{_lambda_.8} parent=0 // pred_check
    _
  $region11: #{_lambda_.8} parent=0 // pred_check_branch
    %13 = sbr.rel (0) target = $region13
  $region12: #{_lambda_.8} parent=0 // pred_region
    _
  $region13: #{_lambda_.8} parent=0 // pred_fallthru
    _
  %v14 = vld [vmem:[%s0] sm:$0xf]
  %v15 = vld [vmem:[%s0 + $0x4] sm:$0xf]
  %v16 = vld [vmem:[%s0 + $0x8] sm:$0xf]
  %v17 = vld [vmem:[%s0 + $0xc] sm:$0xf]
  %v18 = vld [vmem:[%s0 + $0x10] sm:$0xf]
  %v19 = vld [vmem:[%s0 + $0x14] sm:$0xf]
  %v20 = vld [vmem:[%s0 + $0x18] sm:$0xf]
  %v21 = vld [vmem:[%s0 + $0x1c] sm:$0xf]
  %v22 = vld [vmem:[%s0 + $0x20] sm:$0xf]
  %v23 = vld [vmem:[%s0 + $0x24] sm:$0xf]
  %v24 = vld [vmem:[%s0 + $0x28] sm:$0xf]
  %v25 = vld [vmem:[%s0 + $0x2c] sm:$0xf]
  %v26 = vld [vmem:[%s0 + $0x30] sm:$0xf]
  %v27 = vld [vmem:[%s0 + $0x34] sm:$0xf]
  %v28 = vld [vmem:[%s0 + $0x38] sm:$0xf]
  %v29 = vld [vmem:[%s0 + $0x3c] sm:$0xf]
  %v30 = vunpack.c.l.bf16 %v14
  %v31 = vunpack.c.l.bf16 %v15
  %v32 = vunpack.c.l.bf16 %v16
  %v33 = vunpack.c.l.bf16 %v17
  %v34 = vunpack.c.l.bf16 %v18
  %v35 = vunpack.c.l.bf16 %v19
  %v36 = vunpack.c.l.bf16 %v20
  %v37 = vunpack.c.l.bf16 %v21
  %v38 = vunpack.c.l.bf16 %v22
  %v39 = vunpack.c.l.bf16 %v23
  %v40 = vunpack.c.l.bf16 %v24
  %v41 = vunpack.c.l.bf16 %v25
  %v42 = vunpack.c.l.bf16 %v26
  %v43 = vunpack.c.l.bf16 %v27
  %v44 = vunpack.c.l.bf16 %v28
  %v45 = vunpack.c.l.bf16 %v29
  %v46 = vld [vmem:[%s1] sm:$0x1]
  %v48 = vperm.slane %v46, 0
  %v50 = vmul.f32 %v30, %v48
  %v51 = vmul.f32 %v31, %v48
  %v52 = vmul.f32 %v32, %v48
  %v53 = vmul.f32 %v33, %v48
  %v54 = vmul.f32 %v34, %v48
  %v55 = vmul.f32 %v35, %v48
  %v56 = vmul.f32 %v36, %v48
  %v57 = vmul.f32 %v37, %v48
  %v58 = vmul.f32 %v38, %v48
  %v59 = vmul.f32 %v39, %v48
  %v60 = vmul.f32 %v40, %v48
  %v61 = vmul.f32 %v41, %v48
  %v62 = vmul.f32 %v42, %v48
  %v63 = vmul.f32 %v43, %v48
  %v64 = vmul.f32 %v44, %v48
  %v65 = vmul.f32 %v45, %v48
  %v66 = vld [vmem:[%s2] sm:$0x1]
  %v68 = vperm.slane %v66, 0
  %v70 = vadd.f32 %v50, %v68
  %v71 = vadd.f32 %v51, %v68
  %v72 = vadd.f32 %v52, %v68
  %v73 = vadd.f32 %v53, %v68
  %v74 = vadd.f32 %v54, %v68
  %v75 = vadd.f32 %v55, %v68
  %v76 = vadd.f32 %v56, %v68
  %v77 = vadd.f32 %v57, %v68
  %v78 = vadd.f32 %v58, %v68
  %v79 = vadd.f32 %v59, %v68
  %v80 = vadd.f32 %v60, %v68
  %v81 = vadd.f32 %v61, %v68
  %v82 = vadd.f32 %v62, %v68
  %v83 = vadd.f32 %v63, %v68
  %v84 = vadd.f32 %v64, %v68
  %v85 = vadd.f32 %v65, %v68
  %v86 = vmax.f32 %v70, 0.0
  %v87 = vmax.f32 %v71, 0.0
  %v88 = vmax.f32 %v72, 0.0
  %v89 = vmax.f32 %v73, 0.0
  %v90 = vmax.f32 %v74, 0.0
  %v91 = vmax.f32 %v75, 0.0
  %v92 = vmax.f32 %v76, 0.0
  %v93 = vmax.f32 %v77, 0.0
  %v94 = vmax.f32 %v78, 0.0
  %v95 = vmax.f32 %v79, 0.0
  %v96 = vmax.f32 %v80, 0.0
  %v97 = vmax.f32 %v81, 0.0
  %v98 = vmax.f32 %v82, 0.0
  %v99 = vmax.f32 %v83, 0.0
  %v100 = vmax.f32 %v84, 0.0
  %v101 = vmax.f32 %v85, 0.0
  %v102 = vpack.c.bf16 %v86, %v86
  %v103 = vpack.c.bf16 %v87, %v87
  %v104 = vpack.c.bf16 %v88, %v88
  %v105 = vpack.c.bf16 %v89, %v89
  %v106 = vpack.c.bf16 %v90, %v90
  %v107 = vpack.c.bf16 %v91, %v91
  %v108 = vpack.c.bf16 %v92, %v92
  %v109 = vpack.c.bf16 %v93, %v93
  %v110 = vpack.c.bf16 %v94, %v94
  %v111 = vpack.c.bf16 %v95, %v95
  %v112 = vpack.c.bf16 %v96, %v96
  %v113 = vpack.c.bf16 %v97, %v97
  %v114 = vpack.c.bf16 %v98, %v98
  %v115 = vpack.c.bf16 %v99, %v99
  %v116 = vpack.c.bf16 %v100, %v100
  %v117 = vpack.c.bf16 %v101, %v101
  %118 = vst [vmem:[%s3] sm:$0xf] %v102
  %119 = vst [vmem:[%s3 + $0x4] sm:$0xf] %v103
  %120 = vst [vmem:[%s3 + $0x8] sm:$0xf] %v104
  %121 = vst [vmem:[%s3 + $0xc] sm:$0xf] %v105
  %122 = vst [vmem:[%s3 + $0x10] sm:$0xf] %v106
  %123 = vst [vmem:[%s3 + $0x14] sm:$0xf] %v107
  %124 = vst [vmem:[%s3 + $0x18] sm:$0xf] %v108
  %125 = vst [vmem:[%s3 + $0x1c] sm:$0xf] %v109
  %126 = vst [vmem:[%s3 + $0x20] sm:$0xf] %v110
  %127 = vst [vmem:[%s3 + $0x24] sm:$0xf] %v111
  %128 = vst [vmem:[%s3 + $0x28] sm:$0xf] %v112
  %129 = vst [vmem:[%s3 + $0x2c] sm:$0xf] %v113
  %130 = vst [vmem:[%s3 + $0x30] sm:$0xf] %v114
  %131 = vst [vmem:[%s3 + $0x34] sm:$0xf] %v115
  %132 = vst [vmem:[%s3 + $0x38] sm:$0xf] %v116
  %133 = vst [vmem:[%s3 + $0x3c] sm:$0xf] %v117
  // Predicated region
  $region14: #{_lambda_.8} parent=0 // pred_check
    _
  $region15: #{_lambda_.8} parent=0 // pred_check_branch
    %135 = sbr.rel (0) target = $region17
  $region16: #{_lambda_.8} parent=0 // pred_region
    _
  $region17: #{_lambda_.8} parent=0 // pred_fallthru
    _
  // Predicated region
  $region18: #{_lambda_.8} parent=0 // pred_check
    _
  $region19: #{_lambda_.8} parent=0 // pred_check_branch
    %137 = sbr.rel (0) target = $region21
  $region20: #{_lambda_.8} parent=0 // pred_region
    _
  $region21: #{_lambda_.8} parent=0 // pred_fallthru
    _

// kernel: _lambda_.7
$region0: #{_lambda_.7}
  #allocation0 [shape = 'u32[]', space=smem, size = 0x4, offset = 0x4, fixed_abs, tag = 'smem constant byte address 0x4 - core index']
  #allocation1 [shape = 'u32[72,128]{1,0:T(1,128)}', space=vmem, size = 0x9000, scoped, tag = 'internal scratch']
  %s0 = inlined_call_operand.vmem [shape: bf16[2,11,11,16], index: 0, kind: input, shape index: {}]
  %s1 = inlined_call_operand.vmem [shape: bf16[16,16,128], index: 1, kind: input, shape index: {}]
  %s2 = inlined_call_operand.vmem [shape: bf16[128,128], index: 2, kind: output, shape index: {0}]
  %s3 = inlined_call_operand.vmem [shape: f32[2,1,128], index: 3, kind: output, shape index: {1}]
  %s4 = inlined_call_operand.vmem [shape: f32[2,1,128], index: 4, kind: output, shape index: {2}]
  %5 = xla_tuple %s2, %s3, %s4
  %s6 = sld [smem:[#allocation0]]
  $region61: #{_lambda_.7} parent=0
    _
  %s8 = ssub.s32 1, %s6
  %s9 = scalar_select 0, %s8, %s6
  loop: start=0, step=1, limit=4
  $region2: #{_lambda_.7} parent=0 // loop_pre_header
    _
  $region3: #{_lambda_.7} parent=0 // loop_header
    %s11 = sphi 0, %s15
    %p12 = scmp.ge.s32.totalorder %s11, 4
    %s18 = sphi 0, %s30
    %s19 = sphi 0, %s26
    %s20 = sphi 0, %s18
    %s21 = sphi 0, %s19
    %s22 = sphi 0, %s20
    %s23 = sphi 0, %s21
    %s33 = sphi 0, %s35
    %s36 = sphi 0, %s33
    %s37 = sphi 0, %s36
    %s53 = sphi 0, %s37
    %s57 = sphi 0, %s57
    %s59 = sphi 0, %s57
    %s60 = sphi 0, %s59
    %s74 = sphi 0, %s60
    %s82 = sphi 0, %s84
    %s85 = sphi 0, %s82
    %s86 = sphi 0, %s85
    %s102 = sphi 0, %s86
    %s108 = sphi 0, %s110
    %s111 = sphi 0, %s108
    %s112 = sphi 0, %s111
    %s128 = sphi 0, %s112
    %s134 = sphi 0, %s136
    %s137 = sphi 0, %s134
    %s138 = sphi 0, %s137
    %s154 = sphi 0, %s138
  $region4: #{_lambda_.7} parent=0 // loop_header_branch
    %14 = sbr.rel (%p12) target = $region8
  $region5: #{_lambda_.7} parent=0 // loop_body
    %s16 = ssub.s32 %s11, 1
    %s17 = ssub.s32 %s11, 2
    %s24 = sadd.s32 1, %s19
    %p25 = scmp.ge.s32.totalorder %s24, 1
    %s26 = scalar_select %p25, 0, %s24
    %s27 = sadd.s32 1, %s18
    %s28 = scalar_select %p25, %s27, %s18
    %p29 = scmp.ge.s32.totalorder %s28, 2
    %s30 = scalar_select %p29, 0, %s28
    %s31 = ssub.s32 %s18, %s30
    %p32 = scmp.eq.s32.totalorder %s31, 0
    %s34 = sadd.s32 %s33, 1
    %s35 = scalar_select %p32, %s33, %s34
    %p38 = pneg %p32
    %p39 = scmp.eq.s32.totalorder %s11, 1
    %p40 = por %p38, %p39
    %p41 = scmp.ne.s32.totalorder %s33, %s36
    %p42 = scmp.eq.s32.totalorder %s11, 0
    %p43 = por %p41, %p42
    %p44 = scmp.ne.s32.totalorder %s33, %s36
    %p45 = scmp.eq.s32.totalorder %s16, 1
    %p46 = por %p44, %p45
    %p47 = scmp.ne.s32.totalorder %s36, %s37
    %p48 = scmp.eq.s32.totalorder %s16, 0
    %p49 = por %p47, %p48
    %p50 = scmp.ne.s32.totalorder %s36, %s37
    %p51 = scmp.eq.s32.totalorder %s17, 1
    %p52 = por %p50, %p51
    %p54 = scmp.ne.s32.totalorder %s37, %s53
    %p55 = scmp.eq.s32.totalorder %s17, 0
    %p56 = por %p54, %p55
    %s58 = sadd.s32 %s57, 1
    %p61 = scmp.eq.s32.totalorder %s11, 1
    %p62 = scmp.ne.s32.totalorder %s57, %s59
    %p63 = scmp.eq.s32.totalorder %s11, 0
    %p64 = por %p62, %p63
    %p65 = scmp.ne.s32.totalorder %s57, %s59
    %p66 = scmp.eq.s32.totalorder %s16, 1
    %p67 = por %p65, %p66
    %p68 = scmp.ne.s32.totalorder %s59, %s60
    %p69 = scmp.eq.s32.totalorder %s16, 0
    %p70 = por %p68, %p69
    %p71 = scmp.ne.s32.totalorder %s59, %s60
    %p72 = scmp.eq.s32.totalorder %s17, 1
    %p73 = por %p71, %p72
    %p75 = scmp.ne.s32.totalorder %s60, %s74
    %p76 = scmp.eq.s32.totalorder %s17, 0
    %p77 = por %p75, %p76
    %s78 = sadd.s32 %s18, %s19
    %s79 = sadd.s32 %s30, %s26
    %s80 = ssub.s32 %s78, %s79
    %p81 = scmp.eq.s32.totalorder %s80, 0
    %s83 = sadd.s32 %s82, 1
    %s84 = scalar_select %p81, %s82, %s83
    %p87 = pneg %p81
    %p88 = scmp.eq.s32.totalorder %s11, 1
    %p89 = por %p87, %p88
    %p90 = scmp.ne.s32.totalorder %s82, %s85
    %p91 = scmp.eq.s32.totalorder %s11, 0
    %p92 = por %p90, %p91
    %p93 = scmp.ne.s32.totalorder %s82, %s85
    %p94 = scmp.eq.s32.totalorder %s16, 1
    %p95 = por %p93, %p94
    %p96 = scmp.ne.s32.totalorder %s85, %s86
    %p97 = scmp.eq.s32.totalorder %s16, 0
    %p98 = por %p96, %p97
    %p99 = scmp.ne.s32.totalorder %s85, %s86
    %p100 = scmp.eq.s32.totalorder %s17, 1
    %p101 = por %p99, %p100
    %p103 = scmp.ne.s32.totalorder %s86, %s102
    %p104 = scmp.eq.s32.totalorder %s17, 0
    %p105 = por %p103, %p104
    %s106 = ssub.s32 %s18, %s30
    %p107 = scmp.eq.s32.totalorder %s106, 0
    %s109 = sadd.s32 %s108, 1
    %s110 = scalar_select %p107, %s108, %s109
    %p113 = pneg %p107
    %p114 = scmp.eq.s32.totalorder %s11, 1
    %p115 = por %p113, %p114
    %p116 = scmp.ne.s32.totalorder %s108, %s111
    %p117 = scmp.eq.s32.totalorder %s11, 0
    %p118 = por %p116, %p117
    %p119 = scmp.ne.s32.totalorder %s108, %s111
    %p120 = scmp.eq.s32.totalorder %s16, 1
    %p121 = por %p119, %p120
    %p122 = scmp.ne.s32.totalorder %s111, %s112
    %p123 = scmp.eq.s32.totalorder %s16, 0
    %p124 = por %p122, %p123
    %p125 = scmp.ne.s32.totalorder %s111, %s112
    %p126 = scmp.eq.s32.totalorder %s17, 1
    %p127 = por %p125, %p126
    %p129 = scmp.ne.s32.totalorder %s112, %s128
    %p130 = scmp.eq.s32.totalorder %s17, 0
    %p131 = por %p129, %p130
    %s132 = ssub.s32 %s18, %s30
    %p133 = scmp.eq.s32.totalorder %s132, 0
    %s135 = sadd.s32 %s134, 1
    %s136 = scalar_select %p133, %s134, %s135
    %p139 = pneg %p133
    %p140 = scmp.eq.s32.totalorder %s11, 1
    %p141 = por %p139, %p140
    %p142 = scmp.ne.s32.totalorder %s134, %s137
    %p143 = scmp.eq.s32.totalorder %s11, 0
    %p144 = por %p142, %p143
    %p145 = scmp.ne.s32.totalorder %s134, %s137
    %p146 = scmp.eq.s32.totalorder %s16, 1
    %p147 = por %p145, %p146
    %p148 = scmp.ne.s32.totalorder %s137, %s138
    %p149 = scmp.eq.s32.totalorder %s16, 0
    %p150 = por %p148, %p149
    %p151 = scmp.ne.s32.totalorder %s137, %s138
    %p152 = scmp.eq.s32.totalorder %s17, 1
    %p153 = por %p151, %p152
    %p155 = scmp.ne.s32.totalorder %s138, %s154
    %p156 = scmp.eq.s32.totalorder %s17, 0
    %p157 = por %p155, %p156
    %p158 = scmp.le.s32.totalorder 1, %s11
    %p159 = scmp.lt.s32.totalorder %s11, 3
    %p160 = pnand %p158, %p159
    %p161 = pneg %p160
    // Predicated region
    $region9: #{_lambda_.7} parent=5 // pred_check
      _
    $region10: #{_lambda_.7} parent=5 // pred_check_branch
      %163 = sbr.rel (%p160) target = $region12
    $region11: #{_lambda_.7} parent=5 // pred_region
      %s164 = ssub.s32 %s11, 1
      // Predicated region
      $region13: #{_lambda_.7} parent=11 // pred_check
        %p165 = pneg %p70
      $region14: #{_lambda_.7} parent=11 // pred_check_branch
        %167 = sbr.rel (%p165) target = $region16
      $region15: #{_lambda_.7} parent=11 // pred_region
        _
      $region16: #{_lambda_.7} parent=11 // pred_fallthru
        _
    $region12: #{_lambda_.7} parent=5 // pred_fallthru
      _
    %p168 = scmp.lt.s32.totalorder %s11, 2
    // Predicated region
    $region17: #{_lambda_.7} parent=5 // pred_check
      %p169 = pneg %p168
    $region18: #{_lambda_.7} parent=5 // pred_check_branch
      %171 = sbr.rel (%p169) target = $region20
    $region19: #{_lambda_.7} parent=5 // pred_region
      // Predicated region
      $region21: #{_lambda_.7} parent=19 // pred_check
        %p172 = pneg %p43
      $region22: #{_lambda_.7} parent=19 // pred_check_branch
        %174 = sbr.rel (%p172) target = $region24
      $region23: #{_lambda_.7} parent=19 // pred_region
        %p175 = scmp.lt.s32.totalorder %s18, 1
        %s176 = scalar_select %p175, %s18, 1
        %s177 = smul.addr %s176, 22
        %s178 = smul.addr %s177, 4
        %s179 = scalar_lea.vmem %s0, %s178
      $region24: #{_lambda_.7} parent=19 // pred_fallthru
        _
    $region20: #{_lambda_.7} parent=5 // pred_fallthru
      _
    %p180 = scmp.le.s32.totalorder 1, %s11
    %p181 = scmp.lt.s32.totalorder %s11, 3
    %p182 = pnand %p180, %p181
    %p183 = pneg %p182
    // Predicated region
    $region25: #{_lambda_.7} parent=5 // pred_check
      _
    $region26: #{_lambda_.7} parent=5 // pred_check_branch
      %185 = sbr.rel (%p182) target = $region28
    $region27: #{_lambda_.7} parent=5 // pred_region
      %s186 = ssub.s32 %s11, 1
      %p187 = scmp.lt.s32.totalorder %s20, 1
      %s188 = scalar_select %p187, %s20, 1
      %s189 = smul.addr %s188, 22
      %s190 = smul.addr %s189, 4
      %s191 = scalar_lea.vmem %s0, %s190
      %p192 = pneg %p49
      %p193 = pneg %p46
      %p194 = pneg %p70
      %p195 = pneg %p67
      %p196 = pneg %p98
      %p197 = pneg %p95
      %s198 = sadd.s32 %s20, %s21
      %s199 = smul.u32 8, %s198
      %p200 = scmp.lt.s32.totalorder %s199, 15
      %s201 = scalar_select %p200, %s199, 15
      %s202 = smul.addr %s201, 4
      %s203 = scalar_lea.vmem %s2, %s202
      %p204 = pneg %p124
      %p205 = pneg %p121
      %p206 = scmp.lt.s32.totalorder %s20, 1
      %s207 = scalar_select %p206, %s20, 1
      %s208 = scalar_lea.vmem %s3, %s207
      %p209 = pneg %p150
      %p210 = pneg %p147
      %p211 = scmp.lt.s32.totalorder %s20, 1
      %s212 = scalar_select %p211, %s20, 1
      %s213 = scalar_lea.vmem %s4, %s212
      %p214 = scmp.lt.s32.totalorder %s20, 1
      %s215 = scalar_select %p214, %s20, 1
      %s216 = smul.addr %s215, 22
      %s217 = smul.addr %s216, 4
      %s218 = scalar_lea.vmem %s0, %s217
      %s219 = sadd.s32 %s20, %s21
      %s220 = smul.u32 8, %s219
      %p221 = scmp.lt.s32.totalorder %s220, 15
      %s222 = scalar_select %p221, %s220, 15
      %s223 = smul.addr %s222, 4
      %s224 = scalar_lea.vmem %s2, %s223
      %s225 = sadd.s32 %s20, %s21
      %s226 = smul.u32 8, %s225
      %p227 = scmp.lt.s32.totalorder %s20, 1
      %s228 = scalar_select %p227, %s20, 1
      %s229 = scalar_lea.vmem %s3, %s228
      %p230 = scmp.lt.s32.totalorder %s20, 1
      %s231 = scalar_select %p230, %s20, 1
      %s232 = scalar_lea.vmem %s4, %s231
      %s234 = smul.u32 %s21, 8
      %s235 = smul.u32 %s234, 2
      %s236 = smul.addr %s235, 4
      %s237 = scalar_lea.vmem %s218, %s236
      %v238 = vld [vmem:[%s237] sm:$0xf]
      %v239 = vld [vmem:[%s237 + $0x8] sm:$0xf]
      %v240 = vld [vmem:[%s237 + $0x10] sm:$0xf]
      %v241 = vld [vmem:[%s237 + $0x18] sm:$0xf]
      %v242 = vld [vmem:[%s237 + $0x20] sm:$0xf]
      %v243 = vld [vmem:[%s237 + $0x28] sm:$0xf]
      %v244 = vld [vmem:[%s237 + $0x30] sm:$0xf]
      %v245 = vld [vmem:[%s237 + $0x38] sm:$0xf]
      %v246 = vld [vmem:[%s1] sm:$0xf]
      %v247 = vld [vmem:[%s1 + $0x4] sm:$0xf]
      %v248 = vld [vmem:[%s237 + $0x4] sm:$0x1]
      %v249 = vld [vmem:[%s237 + $0xc] sm:$0x1]
      %v250 = vld [vmem:[%s237 + $0x14] sm:$0x1]
      %v251 = vld [vmem:[%s237 + $0x1c] sm:$0x1]
      %v252 = vld [vmem:[%s237 + $0x24] sm:$0x1]
      %v253 = vld [vmem:[%s237 + $0x2c] sm:$0x1]
      %v254 = vld [vmem:[%s237 + $0x34] sm:$0x1]
      %v255 = vld [vmem:[%s237 + $0x3c] sm:$0x1]
      %vm256 = vsmask.f32 3328
      %vm257 = vsmask.f32 7440
      %vm258 = vmor %vm256, %vm257
      %v260 = vshrl.u32 %v238, 16
      %v262 = vrot.slane %v260, 4
      %v263 = vshll.u32 %v238, 16
      %v265 = vrot.slane %v263, 5
      %v266 = vor.u32 %v262, %v265
      %v267 = vrot.slane %v266, 4
      %v269 = vshll.u32 %v248, 16
      %v271 = vrot.slane %v269, 5
      %v272 = vsel %vm258, %v267, %v271
      %v274 = vshrl.u32 %v239, 16
      %v276 = vrot.slane %v274, 4
      %v277 = vshll.u32 %v239, 16
      %v279 = vrot.slane %v277, 5
      %v280 = vor.u32 %v276, %v279
      %v281 = vrot.slane %v280, 4
      %v283 = vshll.u32 %v249, 16
      %v285 = vrot.slane %v283, 5
      %v286 = vsel %vm258, %v281, %v285
      %v288 = vshrl.u32 %v240, 16
      %v290 = vrot.slane %v288, 4
      %v291 = vshll.u32 %v240, 16
      %v293 = vrot.slane %v291, 5
      %v294 = vor.u32 %v290, %v293
      %v295 = vrot.slane %v294, 4
      %v297 = vshll.u32 %v250, 16
      %v299 = vrot.slane %v297, 5
      %v300 = vsel %vm258, %v295, %v299
      %v302 = vshrl.u32 %v241, 16
      %v304 = vrot.slane %v302, 4
      %v305 = vshll.u32 %v241, 16
      %v307 = vrot.slane %v305, 5
      %v308 = vor.u32 %v304, %v307
      %v309 = vrot.slane %v308, 4
      %v311 = vshll.u32 %v251, 16
      %v313 = vrot.slane %v311, 5
      %v314 = vsel %vm258, %v309, %v313
      %v316 = vshrl.u32 %v242, 16
      %v318 = vrot.slane %v316, 4
      %v319 = vshll.u32 %v242, 16
      %v321 = vrot.slane %v319, 5
      %v322 = vor.u32 %v318, %v321
      %v323 = vrot.slane %v322, 4
      %v325 = vshll.u32 %v252, 16
      %v327 = vrot.slane %v325, 5
      %v328 = vsel %vm258, %v323, %v327
      %v330 = vshrl.u32 %v243, 16
      %v332 = vrot.slane %v330, 4
      %v333 = vshll.u32 %v243, 16
      %v335 = vrot.slane %v333, 5
      %v336 = vor.u32 %v332, %v335
      %v337 = vrot.slane %v336, 4
      %v339 = vshll.u32 %v253, 16
      %v341 = vrot.slane %v339, 5
      %v342 = vsel %vm258, %v337, %v341
      %v344 = vshrl.u32 %v244, 16
      %v346 = vrot.slane %v344, 4
      %v347 = vshll.u32 %v244, 16
      %v349 = vrot.slane %v347, 5
      %v350 = vor.u32 %v346, %v349
      %v351 = vrot.slane %v350, 4
      %v353 = vshll.u32 %v254, 16
      %v355 = vrot.slane %v353, 5
      %v356 = vsel %vm258, %v351, %v355
      %v358 = vshrl.u32 %v245, 16
      %v360 = vrot.slane %v358, 4
      %v361 = vshll.u32 %v245, 16
      %v363 = vrot.slane %v361, 5
      %v364 = vor.u32 %v360, %v363
      %v365 = vrot.slane %v364, 4
      %v367 = vshll.u32 %v255, 16
      %v369 = vrot.slane %v367, 5
      %v370 = vsel %vm258, %v365, %v369
      %s371 = scalar_lea.vmem %s1, 8
      %v372 = vld [vmem:[%s371] sm:$0xf]
      %v373 = vld [vmem:[%s371 + $0x4] sm:$0xf]
      %v374 = vunpack.c.l.b16 %v272
      %v375 = vunpack.c.l.b16 %v286
      %v376 = vunpack.c.l.b16 %v300
      %v377 = vunpack.c.l.b16 %v314
      %v378 = vunpack.c.l.b16 %v328
      %v379 = vunpack.c.l.b16 %v342
      %v380 = vunpack.c.l.b16 %v356
      %v381 = vunpack.c.l.b16 %v370
      %v382 = vpack.c.b16 %v375, %v374
      %v383 = vpack.c.b16 %v377, %v376
      %v384 = vpack.c.b16 %v379, %v378
      %v385 = vpack.c.b16 %v381, %v380
      %v388 = vunpack.c.l.b16 %v372
      %v389 = vunpack.c.l.b16 %v373
      %v390 = vpack.c.b16 %v389, %v388
      %vm392 = vcmask 130048
      %v394 = vsel %vm392, %v382, 0
      %v397 = vsel %vm392, %v383, 0
      %v400 = vsel %vm392, %v384, 0
      %v403 = vsel %vm392, %v385, 0
      %405 = vmatpush.bf16.msra.mxu0 0
      %406 = vmatpush.bf16.msra.mxu0 0
      %407 = vmatpush.bf16.msra.mxu0 0
      %408 = vmatpush.bf16.msra.mxu0 0
      %409 = vmatpush.bf16.msra.mxu0 0
      %410 = vmatpush.bf16.msra.mxu0 0
      %411 = vmatpush.bf16.msra.mxu0 0
      %412 = vmatpush.bf16.msra.mxu0 %v390
      %413 = vmatmul.bf16.gmra.mxu0 %v394
      %v414 = vpop.f32.mrf.mxu0
      %v415 = vadd.f32 0.0, %v414
      %v416 = vpop.f32.mrf.mxu0
      %v417 = vadd.f32 0.0, %v416
      %418 = vmatmul.bf16.gmra.mxu0 %v397
      %v419 = vpop.f32.mrf.mxu0
      %v420 = vadd.f32 0.0, %v419
      %v421 = vpop.f32.mrf.mxu0
      %v422 = vadd.f32 0.0, %v421
      %423 = vmatmul.bf16.gmra.mxu0 %v400
      %v424 = vpop.f32.mrf.mxu0
      %v425 = vadd.f32 0.0, %v424
      %v426 = vpop.f32.mrf.mxu0
      %v427 = vadd.f32 0.0, %v426
      %428 = vmatmul.bf16.gmra.mxu0 %v403
      %v429 = vpop.f32.mrf.mxu0
      %v430 = vadd.f32 0.0, %v429
      %v431 = vpop.f32.mrf.mxu0
      %v432 = vadd.f32 0.0, %v431
      %433 = vdwg.mxu0
      %v442 = vunpack.c.l.b16 %v238
      %v443 = vunpack.c.l.b16 %v239
      %v444 = vunpack.c.l.b16 %v240
      %v445 = vunpack.c.l.b16 %v241
      %v446 = vunpack.c.l.b16 %v242
      %v447 = vunpack.c.l.b16 %v243
      %v448 = vunpack.c.l.b16 %v244
      %v449 = vunpack.c.l.b16 %v245
      %v450 = vpack.c.b16 %v443, %v442
      %v451 = vpack.c.b16 %v445, %v444
      %v452 = vpack.c.b16 %v447, %v446
      %v453 = vpack.c.b16 %v449, %v448
      %v456 = vunpack.c.l.b16 %v246
      %v457 = vunpack.c.l.b16 %v247
      %v458 = vpack.c.b16 %v457, %v456
      %v461 = vsel %vm392, %v450, 0
      %v464 = vsel %vm392, %v451, 0
      %v467 = vsel %vm392, %v452, 0
      %v470 = vsel %vm392, %v453, 0
      %472 = vmatpush.bf16.msra.mxu0 0
      %473 = vmatpush.bf16.msra.mxu0 0
      %474 = vmatpush.bf16.msra.mxu0 0
      %475 = vmatpush.bf16.msra.mxu0 0
      %476 = vmatpush.bf16.msra.mxu0 0
      %477 = vmatpush.bf16.msra.mxu0 0
      %478 = vmatpush.bf16.msra.mxu0 0
      %479 = vmatpush.bf16.msra.mxu0 %v458
      %480 = vmatmul.bf16.gmra.mxu0 %v461
      %v481 = vpop.f32.mrf.mxu0
      %v482 = vadd.f32 %v415, %v481
      %v483 = vpop.f32.mrf.mxu0
      %v484 = vadd.f32 %v417, %v483
      %485 = vmatmul.bf16.gmra.mxu0 %v464
      %v486 = vpop.f32.mrf.mxu0
      %v487 = vadd.f32 %v420, %v486
      %v488 = vpop.f32.mrf.mxu0
      %v489 = vadd.f32 %v422, %v488
      %490 = vmatmul.bf16.gmra.mxu0 %v467
      %v491 = vpop.f32.mrf.mxu0
      %v492 = vadd.f32 %v425, %v491
      %v493 = vpop.f32.mrf.mxu0
      %v494 = vadd.f32 %v427, %v493
      %495 = vmatmul.bf16.gmra.mxu0 %v470
      %v496 = vpop.f32.mrf.mxu0
      %v497 = vadd.f32 %v430, %v496
      %v498 = vpop.f32.mrf.mxu0
      %v499 = vadd.f32 %v432, %v498
      %500 = vdwg.mxu0
      %v501 = vld [vmem:[%s237] sm:$0xe]
      %v502 = vld [vmem:[%s237 + $0x8] sm:$0xe]
      %v503 = vld [vmem:[%s237 + $0x10] sm:$0xe]
      %v504 = vld [vmem:[%s237 + $0x18] sm:$0xe]
      %v505 = vld [vmem:[%s237 + $0x20] sm:$0xe]
      %v506 = vld [vmem:[%s237 + $0x28] sm:$0xe]
      %v507 = vld [vmem:[%s237 + $0x30] sm:$0xe]
      %v508 = vld [vmem:[%s237 + $0x38] sm:$0xe]
      %vm525 = vcmask 1042432
      %vm526 = vcmask 1046532
      %vm527 = vmor %vm525, %vm526
      %v528 = vrot.slane %v501, 5
      %v529 = vrot.slane %v528, 4
      %v530 = vrot.slane %v248, 5
      %v531 = vsel %vm527, %v529, %v530
      %v532 = vrot.slane %v502, 5
      %v533 = vrot.slane %v532, 4
      %v534 = vrot.slane %v249, 5
      %v535 = vsel %vm527, %v533, %v534
      %v536 = vrot.slane %v503, 5
      %v537 = vrot.slane %v536, 4
      %v538 = vrot.slane %v250, 5
      %v539 = vsel %vm527, %v537, %v538
      %v540 = vrot.slane %v504, 5
      %v541 = vrot.slane %v540, 4
      %v542 = vrot.slane %v251, 5
      %v543 = vsel %vm527, %v541, %v542
      %v544 = vrot.slane %v505, 5
      %v545 = vrot.slane %v544, 4
      %v546 = vrot.slane %v252, 5
      %v547 = vsel %vm527, %v545, %v546
      %v548 = vrot.slane %v506, 5
      %v549 = vrot.slane %v548, 4
      %v550 = vrot.slane %v253, 5
      %v551 = vsel %vm527, %v549, %v550
      %v552 = vrot.slane %v507, 5
      %v553 = vrot.slane %v552, 4
      %v554 = vrot.slane %v254, 5
      %v555 = vsel %vm527, %v553, %v554
      %v556 = vrot.slane %v508, 5
      %v557 = vrot.slane %v556, 4
      %v558 = vrot.slane %v255, 5
      %v559 = vsel %vm527, %v557, %v558
      %s560 = scalar_lea.vmem %s1, 16
      %v561 = vld [vmem:[%s560] sm:$0xf]
      %v562 = vld [vmem:[%s560 + $0x4] sm:$0xf]
      %v563 = vunpack.c.l.b16 %v531
      %v564 = vunpack.c.l.b16 %v535
      %v565 = vunpack.c.l.b16 %v539
      %v566 = vunpack.c.l.b16 %v543
      %v567 = vunpack.c.l.b16 %v547
      %v568 = vunpack.c.l.b16 %v551
      %v569 = vunpack.c.l.b16 %v555
      %v570 = vunpack.c.l.b16 %v559
      %v571 = vpack.c.b16 %v564, %v563
      %v572 = vpack.c.b16 %v566, %v565
      %v573 = vpack.c.b16 %v568, %v567
      %v574 = vpack.c.b16 %v570, %v569
      %v577 = vunpack.c.l.b16 %v561
      %v578 = vunpack.c.l.b16 %v562
      %v579 = vpack.c.b16 %v578, %v577
      %v582 = vsel %vm392, %v571, 0
      %v585 = vsel %vm392, %v572, 0
      %v588 = vsel %vm392, %v573, 0
      %v591 = vsel %vm392, %v574, 0
      %593 = vmatpush.bf16.msra.mxu0 0
      %594 = vmatpush.bf16.msra.mxu0 0
      %595 = vmatpush.bf16.msra.mxu0 0
      %596 = vmatpush.bf16.msra.mxu0 0
      %597 = vmatpush.bf16.msra.mxu0 0
      %598 = vmatpush.bf16.msra.mxu0 0
      %599 = vmatpush.bf16.msra.mxu0 0
      %600 = vmatpush.bf16.msra.mxu0 %v579
      %601 = vmatmul.bf16.gmra.mxu0 %v582
      %v602 = vpop.f32.mrf.mxu0
      %v603 = vadd.f32 0.0, %v602
      %v604 = vpop.f32.mrf.mxu0
      %v605 = vadd.f32 0.0, %v604
      %606 = vmatmul.bf16.gmra.mxu0 %v585
      %v607 = vpop.f32.mrf.mxu0
      %v608 = vadd.f32 0.0, %v607
      %v609 = vpop.f32.mrf.mxu0
      %v610 = vadd.f32 0.0, %v609
      %611 = vmatmul.bf16.gmra.mxu0 %v588
      %v612 = vpop.f32.mrf.mxu0
      %v613 = vadd.f32 0.0, %v612
      %v614 = vpop.f32.mrf.mxu0
      %v615 = vadd.f32 0.0, %v614
      %616 = vmatmul.bf16.gmra.mxu0 %v591
      %v617 = vpop.f32.mrf.mxu0
      %v618 = vadd.f32 0.0, %v617
      %v619 = vpop.f32.mrf.mxu0
      %v620 = vadd.f32 0.0, %v619
      %621 = vdwg.mxu0
      %v622 = vadd.f32 %v482, %v603
      %v623 = vadd.f32 %v484, %v605
      %v624 = vadd.f32 %v487, %v608
      %v625 = vadd.f32 %v489, %v610
      %v626 = vadd.f32 %v492, %v613
      %v627 = vadd.f32 %v494, %v615
      %v628 = vadd.f32 %v497, %v618
      %v629 = vadd.f32 %v499, %v620
      %v630 = vld [vmem:[%s237 + $0x4] sm:$0x3]
      %v631 = vld [vmem:[%s237 + $0xc] sm:$0x3]
      %v632 = vld [vmem:[%s237 + $0x14] sm:$0x3]
      %v633 = vld [vmem:[%s237 + $0x1c] sm:$0x3]
      %v634 = vld [vmem:[%s237 + $0x24] sm:$0x3]
      %v635 = vld [vmem:[%s237 + $0x2c] sm:$0x3]
      %v636 = vld [vmem:[%s237 + $0x34] sm:$0x3]
      %v637 = vld [vmem:[%s237 + $0x3c] sm:$0x3]
      %vm638 = vsmask.f32 2304
      %vm639 = vsmask.f32 6416
      %vm640 = vmor %vm638, %vm639
      %v642 = vshrl.u32 %v501, 16
      %v644 = vrot.slane %v642, 5
      %v645 = vshll.u32 %v501, 16
      %v647 = vrot.slane %v645, 6
      %v648 = vor.u32 %v644, %v647
      %v649 = vrot.slane %v648, 4
      %v651 = vshrl.u32 %v630, 16
      %v653 = vrot.slane %v651, 5
      %v654 = vshll.u32 %v630, 16
      %v656 = vrot.slane %v654, 6
      %v657 = vor.u32 %v653, %v656
      %v658 = vsel %vm640, %v649, %v657
      %v660 = vshrl.u32 %v502, 16
      %v662 = vrot.slane %v660, 5
      %v663 = vshll.u32 %v502, 16
      %v665 = vrot.slane %v663, 6
      %v666 = vor.u32 %v662, %v665
      %v667 = vrot.slane %v666, 4
      %v669 = vshrl.u32 %v631, 16
      %v671 = vrot.slane %v669, 5
      %v672 = vshll.u32 %v631, 16
      %v674 = vrot.slane %v672, 6
      %v675 = vor.u32 %v671, %v674
      %v676 = vsel %vm640, %v667, %v675
      %v678 = vshrl.u32 %v503, 16
      %v680 = vrot.slane %v678, 5
      %v681 = vshll.u32 %v503, 16
      %v683 = vrot.slane %v681, 6
      %v684 = vor.u32 %v680, %v683
      %v685 = vrot.slane %v684, 4
      %v687 = vshrl.u32 %v632, 16
      %v689 = vrot.slane %v687, 5
      %v690 = vshll.u32 %v632, 16
      %v692 = vrot.slane %v690, 6
      %v693 = vor.u32 %v689, %v692
      %v694 = vsel %vm640, %v685, %v693
      %v696 = vshrl.u32 %v504, 16
      %v698 = vrot.slane %v696, 5
      %v699 = vshll.u32 %v504, 16
      %v701 = vrot.slane %v699, 6
      %v702 = vor.u32 %v698, %v701
      %v703 = vrot.slane %v702, 4
      %v705 = vshrl.u32 %v633, 16
      %v707 = vrot.slane %v705, 5
      %v708 = vshll.u32 %v633, 16
      %v710 = vrot.slane %v708, 6
      %v711 = vor.u32 %v707, %v710
      %v712 = vsel %vm640, %v703, %v711
      %v714 = vshrl.u32 %v505, 16
      %v716 = vrot.slane %v714, 5
      %v717 = vshll.u32 %v505, 16
      %v719 = vrot.slane %v717, 6
      %v720 = vor.u32 %v716, %v719
      %v721 = vrot.slane %v720, 4
      %v723 = vshrl.u32 %v634, 16
      %v725 = vrot.slane %v723, 5
      %v726 = vshll.u32 %v634, 16
      %v728 = vrot.slane %v726, 6
      %v729 = vor.u32 %v725, %v728
      %v730 = vsel %vm640, %v721, %v729
      %v732 = vshrl.u32 %v506, 16
      %v734 = vrot.slane %v732, 5
      %v735 = vshll.u32 %v506, 16
      %v737 = vrot.slane %v735, 6
      %v738 = vor.u32 %v734, %v737
      %v739 = vrot.slane %v738, 4
      %v741 = vshrl.u32 %v635, 16
      %v743 = vrot.slane %v741, 5
      %v744 = vshll.u32 %v635, 16
      %v746 = vrot.slane %v744, 6
      %v747 = vor.u32 %v743, %v746
      %v748 = vsel %vm640, %v739, %v747
      %v750 = vshrl.u32 %v507, 16
      %v752 = vrot.slane %v750, 5
      %v753 = vshll.u32 %v507, 16
      %v755 = vrot.slane %v753, 6
      %v756 = vor.u32 %v752, %v755
      %v757 = vrot.slane %v756, 4
      %v759 = vshrl.u32 %v636, 16
      %v761 = vrot.slane %v759, 5
      %v762 = vshll.u32 %v636, 16
      %v764 = vrot.slane %v762, 6
      %v765 = vor.u32 %v761, %v764
      %v766 = vsel %vm640, %v757, %v765
      %v768 = vshrl.u32 %v508, 16
      %v770 = vrot.slane %v768, 5
      %v771 = vshll.u32 %v508, 16
      %v773 = vrot.slane %v771, 6
      %v774 = vor.u32 %v770, %v773
      %v775 = vrot.slane %v774, 4
      %v777 = vshrl.u32 %v637, 16
      %v779 = vrot.slane %v777, 5
      %v780 = vshll.u32 %v637, 16
      %v782 = vrot.slane %v780, 6
      %v783 = vor.u32 %v779, %v782
      %v784 = vsel %vm640, %v775, %v783
      %s785 = scalar_lea.vmem %s1, 24
      %v786 = vld [vmem:[%s785] sm:$0xf]
      %v787 = vld [vmem:[%s785 + $0x4] sm:$0xf]
      %v788 = vunpack.c.l.b16 %v658
      %v789 = vunpack.c.l.b16 %v676
      %v790 = vunpack.c.l.b16 %v694
      %v791 = vunpack.c.l.b16 %v712
      %v792 = vunpack.c.l.b16 %v730
      %v793 = vunpack.c.l.b16 %v748
      %v794 = vunpack.c.l.b16 %v766
      %v795 = vunpack.c.l.b16 %v784
      %v796 = vpack.c.b16 %v789, %v788
      %v797 = vpack.c.b16 %v791, %v790
      %v798 = vpack.c.b16 %v793, %v792
      %v799 = vpack.c.b16 %v795, %v794
      %v802 = vunpack.c.l.b16 %v786
      %v803 = vunpack.c.l.b16 %v787
      %v804 = vpack.c.b16 %v803, %v802
      %v807 = vsel %vm392, %v796, 0
      %v810 = vsel %vm392, %v797, 0
      %v813 = vsel %vm392, %v798, 0
      %v816 = vsel %vm392, %v799, 0
      %818 = vmatpush.bf16.msra.mxu0 0
      %819 = vmatpush.bf16.msra.mxu0 0
      %820 = vmatpush.bf16.msra.mxu0 0
      %821 = vmatpush.bf16.msra.mxu0 0
      %822 = vmatpush.bf16.msra.mxu0 0
      %823 = vmatpush.bf16.msra.mxu0 0
      %824 = vmatpush.bf16.msra.mxu0 0
      %825 = vmatpush.bf16.msra.mxu0 %v804
      %826 = vmatmul.bf16.gmra.mxu0 %v807
      %v827 = vpop.f32.mrf.mxu0
      %v828 = vadd.f32 0.0, %v827
      %v829 = vpop.f32.mrf.mxu0
      %v830 = vadd.f32 0.0, %v829
      %831 = vmatmul.bf16.gmra.mxu0 %v810
      %v832 = vpop.f32.mrf.mxu0
      %v833 = vadd.f32 0.0, %v832
      %v834 = vpop.f32.mrf.mxu0
      %v835 = vadd.f32 0.0, %v834
      %836 = vmatmul.bf16.gmra.mxu0 %v813
      %v837 = vpop.f32.mrf.mxu0
      %v838 = vadd.f32 0.0, %v837
      %v839 = vpop.f32.mrf.mxu0
      %v840 = vadd.f32 0.0, %v839
      %841 = vmatmul.bf16.gmra.mxu0 %v816
      %v842 = vpop.f32.mrf.mxu0
      %v843 = vadd.f32 0.0, %v842
      %v844 = vpop.f32.mrf.mxu0
      %v845 = vadd.f32 0.0, %v844
      %846 = vdwg.mxu0
      %v847 = vadd.f32 %v622, %v828
      %v848 = vadd.f32 %v623, %v830
      %v849 = vadd.f32 %v624, %v833
      %v850 = vadd.f32 %v625, %v835
      %v851 = vadd.f32 %v626, %v838
      %v852 = vadd.f32 %v627, %v840
      %v853 = vadd.f32 %v628, %v843
      %v854 = vadd.f32 %v629, %v845
      %s855 = sadd.s32 %s234, 1
      %s856 = smul.u32 %s855, 2
      %s857 = smul.addr %s856, 4
      %s858 = scalar_lea.vmem %s218, %s857
      %v859 = vld [vmem:[%s858] sm:$0xf]
      %v860 = vld [vmem:[%s858 + $0x8] sm:$0xf]
      %v861 = vld [vmem:[%s858 + $0x10] sm:$0xf]
      %v862 = vld [vmem:[%s858 + $0x18] sm:$0xf]
      %v863 = vld [vmem:[%s858 + $0x20] sm:$0xf]
      %v864 = vld [vmem:[%s858 + $0x28] sm:$0xf]
      %v865 = vld [vmem:[%s858 + $0x30] sm:$0xf]
      %v866 = vld [vmem:[%s858 + $0x38] sm:$0xf]
      %s867 = scalar_lea.vmem %s1, 32
      %v868 = vld [vmem:[%s867] sm:$0xf]
      %v869 = vld [vmem:[%s867 + $0x4] sm:$0xf]
      %v878 = vunpack.c.l.b16 %v859
      %v879 = vunpack.c.l.b16 %v860
      %v880 = vunpack.c.l.b16 %v861
      %v881 = vunpack.c.l.b16 %v862
      %v882 = vunpack.c.l.b16 %v863
      %v883 = vunpack.c.l.b16 %v864
      %v884 = vunpack.c.l.b16 %v865
      %v885 = vunpack.c.l.b16 %v866
      %v886 = vpack.c.b16 %v879, %v878
      %v887 = vpack.c.b16 %v881, %v880
      %v888 = vpack.c.b16 %v883, %v882
      %v889 = vpack.c.b16 %v885, %v884
      %v892 = vunpack.c.l.b16 %v868
      %v893 = vunpack.c.l.b16 %v869
      %v894 = vpack.c.b16 %v893, %v892
      %v897 = vsel %vm392, %v886, 0
      %v900 = vsel %vm392, %v887, 0
      %v903 = vsel %vm392, %v888, 0
      %v906 = vsel %vm392, %v889, 0
      %908 = vmatpush.bf16.msra.mxu0 0
      %909 = vmatpush.bf16.msra.mxu0 0
      %910 = vmatpush.bf16.msra.mxu0 0
      %911 = vmatpush.bf16.msra.mxu0 0
      %912 = vmatpush.bf16.msra.mxu0 0
      %913 = vmatpush.bf16.msra.mxu0 0
      %914 = vmatpush.bf16.msra.mxu0 0
      %915 = vmatpush.bf16.msra.mxu0 %v894
      %916 = vmatmul.bf16.gmra.mxu0 %v897
      %v917 = vpop.f32.mrf.mxu0
      %v918 = vadd.f32 0.0, %v917
      %v919 = vpop.f32.mrf.mxu0
      %v920 = vadd.f32 0.0, %v919
      %921 = vmatmul.bf16.gmra.mxu0 %v900
      %v922 = vpop.f32.mrf.mxu0
      %v923 = vadd.f32 0.0, %v922
      %v924 = vpop.f32.mrf.mxu0
      %v925 = vadd.f32 0.0, %v924
      %926 = vmatmul.bf16.gmra.mxu0 %v903
      %v927 = vpop.f32.mrf.mxu0
      %v928 = vadd.f32 0.0, %v927
      %v929 = vpop.f32.mrf.mxu0
      %v930 = vadd.f32 0.0, %v929
      %931 = vmatmul.bf16.gmra.mxu0 %v906
      %v932 = vpop.f32.mrf.mxu0
      %v933 = vadd.f32 0.0, %v932
      %v934 = vpop.f32.mrf.mxu0
      %v935 = vadd.f32 0.0, %v934
      %936 = vdwg.mxu0
      %v937 = vadd.f32 %v847, %v918
      %v938 = vadd.f32 %v848, %v920
      %v939 = vadd.f32 %v849, %v923
      %v940 = vadd.f32 %v850, %v925
      %v941 = vadd.f32 %v851, %v928
      %v942 = vadd.f32 %v852, %v930
      %v943 = vadd.f32 %v853, %v933
      %v944 = vadd.f32 %v854, %v935
      %v945 = vld [vmem:[%s858] sm:$0xf]
      %v946 = vld [vmem:[%s858 + $0x4] sm:$0x1]
      %v947 = vld [vmem:[%s858 + $0x8] sm:$0xf]
      %v948 = vld [vmem:[%s858 + $0xc] sm:$0x1]
      %v949 = vld [vmem:[%s858 + $0x10] sm:$0xf]
      %v950 = vld [vmem:[%s858 + $0x14] sm:$0x1]
      %v951 = vld [vmem:[%s858 + $0x18] sm:$0xf]
      %v952 = vld [vmem:[%s858 + $0x1c] sm:$0x1]
      %v953 = vld [vmem:[%s858 + $0x20] sm:$0xf]
      %v954 = vld [vmem:[%s858 + $0x24] sm:$0x1]
      %v955 = vld [vmem:[%s858 + $0x28] sm:$0xf]
      %v956 = vld [vmem:[%s858 + $0x2c] sm:$0x1]
      %v957 = vld [vmem:[%s858 + $0x30] sm:$0xf]
      %v958 = vld [vmem:[%s858 + $0x34] sm:$0x1]
      %v959 = vld [vmem:[%s858 + $0x38] sm:$0xf]
      %v960 = vld [vmem:[%s858 + $0x3c] sm:$0x1]
      %v962 = vshrl.u32 %v945, 16
      %v964 = vrot.slane %v962, 4
      %v965 = vshll.u32 %v945, 16
      %v967 = vrot.slane %v965, 5
      %v968 = vor.u32 %v964, %v967
      %v969 = vrot.slane %v968, 4
      %v971 = vshll.u32 %v946, 16
      %v973 = vrot.slane %v971, 5
      %v974 = vsel %vm258, %v969, %v973
      %v976 = vshrl.u32 %v947, 16
      %v978 = vrot.slane %v976, 4
      %v979 = vshll.u32 %v947, 16
      %v981 = vrot.slane %v979, 5
      %v982 = vor.u32 %v978, %v981
      %v983 = vrot.slane %v982, 4
      %v985 = vshll.u32 %v948, 16
      %v987 = vrot.slane %v985, 5
      %v988 = vsel %vm258, %v983, %v987
      %v990 = vshrl.u32 %v949, 16
      %v992 = vrot.slane %v990, 4
      %v993 = vshll.u32 %v949, 16
      %v995 = vrot.slane %v993, 5
      %v996 = vor.u32 %v992, %v995
      %v997 = vrot.slane %v996, 4
      %v999 = vshll.u32 %v950, 16
      %v1001 = vrot.slane %v999, 5
      %v1002 = vsel %vm258, %v997, %v1001
      %v1004 = vshrl.u32 %v951, 16
      %v1006 = vrot.slane %v1004, 4
      %v1007 = vshll.u32 %v951, 16
      %v1009 = vrot.slane %v1007, 5
      %v1010 = vor.u32 %v1006, %v1009
      %v1011 = vrot.slane %v1010, 4
      %v1013 = vshll.u32 %v952, 16
      %v1015 = vrot.slane %v1013, 5
      %v1016 = vsel %vm258, %v1011, %v1015
      %v1018 = vshrl.u32 %v953, 16
      %v1020 = vrot.slane %v1018, 4
      %v1021 = vshll.u32 %v953, 16
      %v1023 = vrot.slane %v1021, 5
      %v1024 = vor.u32 %v1020, %v1023
      %v1025 = vrot.slane %v1024, 4
      %v1027 = vshll.u32 %v954, 16
      %v1029 = vrot.slane %v1027, 5
      %v1030 = vsel %vm258, %v1025, %v1029
      %v1032 = vshrl.u32 %v955, 16
      %v1034 = vrot.slane %v1032, 4
      %v1035 = vshll.u32 %v955, 16
      %v1037 = vrot.slane %v1035, 5
      %v1038 = vor.u32 %v1034, %v1037
      %v1039 = vrot.slane %v1038, 4
      %v1041 = vshll.u32 %v956, 16
      %v1043 = vrot.slane %v1041, 5
      %v1044 = vsel %vm258, %v1039, %v1043
      %v1046 = vshrl.u32 %v957, 16
      %v1048 = vrot.slane %v1046, 4
      %v1049 = vshll.u32 %v957, 16
      %v1051 = vrot.slane %v1049, 5
      %v1052 = vor.u32 %v1048, %v1051
      %v1053 = vrot.slane %v1052, 4
      %v1055 = vshll.u32 %v958, 16
      %v1057 = vrot.slane %v1055, 5
      %v1058 = vsel %vm258, %v1053, %v1057
      %v1060 = vshrl.u32 %v959, 16
      %v1062 = vrot.slane %v1060, 4
      %v1063 = vshll.u32 %v959, 16
      %v1065 = vrot.slane %v1063, 5
      %v1066 = vor.u32 %v1062, %v1065
      %v1067 = vrot.slane %v1066, 4
      %v1069 = vshll.u32 %v960, 16
      %v1071 = vrot.slane %v1069, 5
      %v1072 = vsel %vm258, %v1067, %v1071
      %s1073 = scalar_lea.vmem %s1, 40
      %v1074 = vld [vmem:[%s1073] sm:$0xf]
      %v1075 = vld [vmem:[%s1073 + $0x4] sm:$0xf]
      %v1076 = vunpack.c.l.b16 %v974
      %v1077 = vunpack.c.l.b16 %v988
      %v1078 = vunpack.c.l.b16 %v1002
      %v1079 = vunpack.c.l.b16 %v1016
      %v1080 = vunpack.c.l.b16 %v1030
      %v1081 = vunpack.c.l.b16 %v1044
      %v1082 = vunpack.c.l.b16 %v1058
      %v1083 = vunpack.c.l.b16 %v1072
      %v1084 = vpack.c.b16 %v1077, %v1076
      %v1085 = vpack.c.b16 %v1079, %v1078
      %v1086 = vpack.c.b16 %v1081, %v1080
      %v1087 = vpack.c.b16 %v1083, %v1082
      %v1090 = vunpack.c.l.b16 %v1074
      %v1091 = vunpack.c.l.b16 %v1075
      %v1092 = vpack.c.b16 %v1091, %v1090
      %v1095 = vsel %vm392, %v1084, 0
      %v1098 = vsel %vm392, %v1085, 0
      %v1101 = vsel %vm392, %v1086, 0
      %v1104 = vsel %vm392, %v1087, 0
      %1106 = vmatpush.bf16.msra.mxu0 0
      %1107 = vmatpush.bf16.msra.mxu0 0
      %1108 = vmatpush.bf16.msra.mxu0 0
      %1109 = vmatpush.bf16.msra.mxu0 0
      %1110 = vmatpush.bf16.msra.mxu0 0
      %1111 = vmatpush.bf16.msra.mxu0 0
      %1112 = vmatpush.bf16.msra.mxu0 0
      %1113 = vmatpush.bf16.msra.mxu0 %v1092
      %1114 = vmatmul.bf16.gmra.mxu0 %v1095
      %v1115 = vpop.f32.mrf.mxu0
      %v1116 = vadd.f32 0.0, %v1115
      %v1117 = vpop.f32.mrf.mxu0
      %v1118 = vadd.f32 0.0, %v1117
      %1119 = vmatmul.bf16.gmra.mxu0 %v1098
      %v1120 = vpop.f32.mrf.mxu0
      %v1121 = vadd.f32 0.0, %v1120
      %v1122 = vpop.f32.mrf.mxu0
      %v1123 = vadd.f32 0.0, %v1122
      %1124 = vmatmul.bf16.gmra.mxu0 %v1101
      %v1125 = vpop.f32.mrf.mxu0
      %v1126 = vadd.f32 0.0, %v1125
      %v1127 = vpop.f32.mrf.mxu0
      %v1128 = vadd.f32 0.0, %v1127
      %1129 = vmatmul.bf16.gmra.mxu0 %v1104
      %v1130 = vpop.f32.mrf.mxu0
      %v1131 = vadd.f32 0.0, %v1130
      %v1132 = vpop.f32.mrf.mxu0
      %v1133 = vadd.f32 0.0, %v1132
      %1134 = vdwg.mxu0
      %v1135 = vadd.f32 %v937, %v1116
      %v1136 = vadd.f32 %v938, %v1118
      %v1137 = vadd.f32 %v939, %v1121
      %v1138 = vadd.f32 %v940, %v1123
      %v1139 = vadd.f32 %v941, %v1126
      %v1140 = vadd.f32 %v942, %v1128
      %v1141 = vadd.f32 %v943, %v1131
      %v1142 = vadd.f32 %v944, %v1133
      %v1143 = vld [vmem:[%s858] sm:$0xe]
      %v1144 = vld [vmem:[%s858 + $0x8] sm:$0xe]
      %v1145 = vld [vmem:[%s858 + $0x10] sm:$0xe]
      %v1146 = vld [vmem:[%s858 + $0x18] sm:$0xe]
      %v1147 = vld [vmem:[%s858 + $0x20] sm:$0xe]
      %v1148 = vld [vmem:[%s858 + $0x28] sm:$0xe]
      %v1149 = vld [vmem:[%s858 + $0x30] sm:$0xe]
      %v1150 = vld [vmem:[%s858 + $0x38] sm:$0xe]
      %v1167 = vrot.slane %v1143, 5
      %v1168 = vrot.slane %v1167, 4
      %v1169 = vrot.slane %v946, 5
      %v1170 = vsel %vm527, %v1168, %v1169
      %v1171 = vrot.slane %v1144, 5
      %v1172 = vrot.slane %v1171, 4
      %v1173 = vrot.slane %v948, 5
      %v1174 = vsel %vm527, %v1172, %v1173
      %v1175 = vrot.slane %v1145, 5
      %v1176 = vrot.slane %v1175, 4
      %v1177 = vrot.slane %v950, 5
      %v1178 = vsel %vm527, %v1176, %v1177
      %v1179 = vrot.slane %v1146, 5
      %v1180 = vrot.slane %v1179, 4
      %v1181 = vrot.slane %v952, 5
      %v1182 = vsel %vm527, %v1180, %v1181
      %v1183 = vrot.slane %v1147, 5
      %v1184 = vrot.slane %v1183, 4
      %v1185 = vrot.slane %v954, 5
      %v1186 = vsel %vm527, %v1184, %v1185
      %v1187 = vrot.slane %v1148, 5
      %v1188 = vrot.slane %v1187, 4
      %v1189 = vrot.slane %v956, 5
      %v1190 = vsel %vm527, %v1188, %v1189
      %v1191 = vrot.slane %v1149, 5
      %v1192 = vrot.slane %v1191, 4
      %v1193 = vrot.slane %v958, 5
      %v1194 = vsel %vm527, %v1192, %v1193
      %v1195 = vrot.slane %v1150, 5
      %v1196 = vrot.slane %v1195, 4
      %v1197 = vrot.slane %v960, 5
      %v1198 = vsel %vm527, %v1196, %v1197
      %s1199 = scalar_lea.vmem %s1, 48
      %v1200 = vld [vmem:[%s1199] sm:$0xf]
      %v1201 = vld [vmem:[%s1199 + $0x4] sm:$0xf]
      %v1202 = vunpack.c.l.b16 %v1170
      %v1203 = vunpack.c.l.b16 %v1174
      %v1204 = vunpack.c.l.b16 %v1178
      %v1205 = vunpack.c.l.b16 %v1182
      %v1206 = vunpack.c.l.b16 %v1186
      %v1207 = vunpack.c.l.b16 %v1190
      %v1208 = vunpack.c.l.b16 %v1194
      %v1209 = vunpack.c.l.b16 %v1198
      %v1210 = vpack.c.b16 %v1203, %v1202
      %v1211 = vpack.c.b16 %v1205, %v1204
      %v1212 = vpack.c.b16 %v1207, %v1206
      %v1213 = vpack.c.b16 %v1209, %v1208
      %v1216 = vunpack.c.l.b16 %v1200
      %v1217 = vunpack.c.l.b16 %v1201
      %v1218 = vpack.c.b16 %v1217, %v1216
      %v1221 = vsel %vm392, %v1210, 0
      %v1224 = vsel %vm392, %v1211, 0
      %v1227 = vsel %vm392, %v1212, 0
      %v1230 = vsel %vm392, %v1213, 0
      %1232 = vmatpush.bf16.msra.mxu0 0
      %1233 = vmatpush.bf16.msra.mxu0 0
      %1234 = vmatpush.bf16.msra.mxu0 0
      %1235 = vmatpush.bf16.msra.mxu0 0
      %1236 = vmatpush.bf16.msra.mxu0 0
      %1237 = vmatpush.bf16.msra.mxu0 0
      %1238 = vmatpush.bf16.msra.mxu0 0
      %1239 = vmatpush.bf16.msra.mxu0 %v1218
      %1240 = vmatmul.bf16.gmra.mxu0 %v1221
      %v1241 = vpop.f32.mrf.mxu0
      %v1242 = vadd.f32 0.0, %v1241
      %v1243 = vpop.f32.mrf.mxu0
      %v1244 = vadd.f32 0.0, %v1243
      %1245 = vmatmul.bf16.gmra.mxu0 %v1224
      %v1246 = vpop.f32.mrf.mxu0
      %v1247 = vadd.f32 0.0, %v1246
      %v1248 = vpop.f32.mrf.mxu0
      %v1249 = vadd.f32 0.0, %v1248
      %1250 = vmatmul.bf16.gmra.mxu0 %v1227
      %v1251 = vpop.f32.mrf.mxu0
      %v1252 = vadd.f32 0.0, %v1251
      %v1253 = vpop.f32.mrf.mxu0
      %v1254 = vadd.f32 0.0, %v1253
      %1255 = vmatmul.bf16.gmra.mxu0 %v1230
      %v1256 = vpop.f32.mrf.mxu0
      %v1257 = vadd.f32 0.0, %v1256
      %v1258 = vpop.f32.mrf.mxu0
      %v1259 = vadd.f32 0.0, %v1258
      %1260 = vdwg.mxu0
      %v1261 = vadd.f32 %v1135, %v1242
      %v1262 = vadd.f32 %v1136, %v1244
      %v1263 = vadd.f32 %v1137, %v1247
      %v1264 = vadd.f32 %v1138, %v1249
      %v1265 = vadd.f32 %v1139, %v1252
      %v1266 = vadd.f32 %v1140, %v1254
      %v1267 = vadd.f32 %v1141, %v1257
      %v1268 = vadd.f32 %v1142, %v1259
      %v1269 = vld [vmem:[%s858 + $0x4] sm:$0x3]
      %v1270 = vld [vmem:[%s858 + $0xc] sm:$0x3]
      %v1271 = vld [vmem:[%s858 + $0x14] sm:$0x3]
      %v1272 = vld [vmem:[%s858 + $0x1c] sm:$0x3]
      %v1273 = vld [vmem:[%s858 + $0x24] sm:$0x3]
      %v1274 = vld [vmem:[%s858 + $0x2c] sm:$0x3]
      %v1275 = vld [vmem:[%s858 + $0x34] sm:$0x3]
      %v1276 = vld [vmem:[%s858 + $0x3c] sm:$0x3]
      %v1278 = vshrl.u32 %v1143, 16
      %v1280 = vrot.slane %v1278, 5
      %v1281 = vshll.u32 %v1143, 16
      %v1283 = vrot.slane %v1281, 6
      %v1284 = vor.u32 %v1280, %v1283
      %v1285 = vrot.slane %v1284, 4
      %v1287 = vshrl.u32 %v1269, 16
      %v1289 = vrot.slane %v1287, 5
      %v1290 = vshll.u32 %v1269, 16
      %v1292 = vrot.slane %v1290, 6
      %v1293 = vor.u32 %v1289, %v1292
      %v1294 = vsel %vm640, %v1285, %v1293
      %v1296 = vshrl.u32 %v1144, 16
      %v1298 = vrot.slane %v1296, 5
      %v1299 = vshll.u32 %v1144, 16
      %v1301 = vrot.slane %v1299, 6
      %v1302 = vor.u32 %v1298, %v1301
      %v1303 = vrot.slane %v1302, 4
      %v1305 = vshrl.u32 %v1270, 16
      %v1307 = vrot.slane %v1305, 5
      %v1308 = vshll.u32 %v1270, 16
      %v1310 = vrot.slane %v1308, 6
      %v1311 = vor.u32 %v1307, %v1310
      %v1312 = vsel %vm640, %v1303, %v1311
      %v1314 = vshrl.u32 %v1145, 16
      %v1316 = vrot.slane %v1314, 5
      %v1317 = vshll.u32 %v1145, 16
      %v1319 = vrot.slane %v1317, 6
      %v1320 = vor.u32 %v1316, %v1319
      %v1321 = vrot.slane %v1320, 4
      %v1323 = vshrl.u32 %v1271, 16
      %v1325 = vrot.slane %v1323, 5
      %v1326 = vshll.u32 %v1271, 16
      %v1328 = vrot.slane %v1326, 6
      %v1329 = vor.u32 %v1325, %v1328
      %v1330 = vsel %vm640, %v1321, %v1329
      %v1332 = vshrl.u32 %v1146, 16
      %v1334 = vrot.slane %v1332, 5
      %v1335 = vshll.u32 %v1146, 16
      %v1337 = vrot.slane %v1335, 6
      %v1338 = vor.u32 %v1334, %v1337
      %v1339 = vrot.slane %v1338, 4
      %v1341 = vshrl.u32 %v1272, 16
      %v1343 = vrot.slane %v1341, 5
      %v1344 = vshll.u32 %v1272, 16
      %v1346 = vrot.slane %v1344, 6
      %v1347 = vor.u32 %v1343, %v1346
      %v1348 = vsel %vm640, %v1339, %v1347
      %v1350 = vshrl.u32 %v1147, 16
      %v1352 = vrot.slane %v1350, 5
      %v1353 = vshll.u32 %v1147, 16
      %v1355 = vrot.slane %v1353, 6
      %v1356 = vor.u32 %v1352, %v1355
      %v1357 = vrot.slane %v1356, 4
      %v1359 = vshrl.u32 %v1273, 16
      %v1361 = vrot.slane %v1359, 5
      %v1362 = vshll.u32 %v1273, 16
      %v1364 = vrot.slane %v1362, 6
      %v1365 = vor.u32 %v1361, %v1364
      %v1366 = vsel %vm640, %v1357, %v1365
      %v1368 = vshrl.u32 %v1148, 16
      %v1370 = vrot.slane %v1368, 5
      %v1371 = vshll.u32 %v1148, 16
      %v1373 = vrot.slane %v1371, 6
      %v1374 = vor.u32 %v1370, %v1373
      %v1375 = vrot.slane %v1374, 4
      %v1377 = vshrl.u32 %v1274, 16
      %v1379 = vrot.slane %v1377, 5
      %v1380 = vshll.u32 %v1274, 16
      %v1382 = vrot.slane %v1380, 6
      %v1383 = vor.u32 %v1379, %v1382
      %v1384 = vsel %vm640, %v1375, %v1383
      %v1386 = vshrl.u32 %v1149, 16
      %v1388 = vrot.slane %v1386, 5
      %v1389 = vshll.u32 %v1149, 16
      %v1391 = vrot.slane %v1389, 6
      %v1392 = vor.u32 %v1388, %v1391
      %v1393 = vrot.slane %v1392, 4
      %v1395 = vshrl.u32 %v1275, 16
      %v1397 = vrot.slane %v1395, 5
      %v1398 = vshll.u32 %v1275, 16
      %v1400 = vrot.slane %v1398, 6
      %v1401 = vor.u32 %v1397, %v1400
      %v1402 = vsel %vm640, %v1393, %v1401
      %v1404 = vshrl.u32 %v1150, 16
      %v1406 = vrot.slane %v1404, 5
      %v1407 = vshll.u32 %v1150, 16
      %v1409 = vrot.slane %v1407, 6
      %v1410 = vor.u32 %v1406, %v1409
      %v1411 = vrot.slane %v1410, 4
      %v1413 = vshrl.u32 %v1276, 16
      %v1415 = vrot.slane %v1413, 5
      %v1416 = vshll.u32 %v1276, 16
      %v1418 = vrot.slane %v1416, 6
      %v1419 = vor.u32 %v1415, %v1418
      %v1420 = vsel %vm640, %v1411, %v1419
      %s1421 = scalar_lea.vmem %s1, 56
      %v1422 = vld [vmem:[%s1421] sm:$0xf]
      %v1423 = vld [vmem:[%s1421 + $0x4] sm:$0xf]
      %v1424 = vunpack.c.l.b16 %v1294
      %v1425 = vunpack.c.l.b16 %v1312
      %v1426 = vunpack.c.l.b16 %v1330
      %v1427 = vunpack.c.l.b16 %v1348
      %v1428 = vunpack.c.l.b16 %v1366
      %v1429 = vunpack.c.l.b16 %v1384
      %v1430 = vunpack.c.l.b16 %v1402
      %v1431 = vunpack.c.l.b16 %v1420
      %v1432 = vpack.c.b16 %v1425, %v1424
      %v1433 = vpack.c.b16 %v1427, %v1426
      %v1434 = vpack.c.b16 %v1429, %v1428
      %v1435 = vpack.c.b16 %v1431, %v1430
      %v1438 = vunpack.c.l.b16 %v1422
      %v1439 = vunpack.c.l.b16 %v1423
      %v1440 = vpack.c.b16 %v1439, %v1438
      %v1443 = vsel %vm392, %v1432, 0
      %v1446 = vsel %vm392, %v1433, 0
      %v1449 = vsel %vm392, %v1434, 0
      %v1452 = vsel %vm392, %v1435, 0
      %1454 = vmatpush.bf16.msra.mxu0 0
      %1455 = vmatpush.bf16.msra.mxu0 0
      %1456 = vmatpush.bf16.msra.mxu0 0
      %1457 = vmatpush.bf16.msra.mxu0 0
      %1458 = vmatpush.bf16.msra.mxu0 0
      %1459 = vmatpush.bf16.msra.mxu0 0
      %1460 = vmatpush.bf16.msra.mxu0 0
      %1461 = vmatpush.bf16.msra.mxu0 %v1440
      %1462 = vmatmul.bf16.gmra.mxu0 %v1443
      %v1463 = vpop.f32.mrf.mxu0
      %v1464 = vadd.f32 0.0, %v1463
      %v1465 = vpop.f32.mrf.mxu0
      %v1466 = vadd.f32 0.0, %v1465
      %1467 = vmatmul.bf16.gmra.mxu0 %v1446
      %v1468 = vpop.f32.mrf.mxu0
      %v1469 = vadd.f32 0.0, %v1468
      %v1470 = vpop.f32.mrf.mxu0
      %v1471 = vadd.f32 0.0, %v1470
      %1472 = vmatmul.bf16.gmra.mxu0 %v1449
      %v1473 = vpop.f32.mrf.mxu0
      %v1474 = vadd.f32 0.0, %v1473
      %v1475 = vpop.f32.mrf.mxu0
      %v1476 = vadd.f32 0.0, %v1475
      %1477 = vmatmul.bf16.gmra.mxu0 %v1452
      %v1478 = vpop.f32.mrf.mxu0
      %v1479 = vadd.f32 0.0, %v1478
      %v1480 = vpop.f32.mrf.mxu0
      %v1481 = vadd.f32 0.0, %v1480
      %1482 = vdwg.mxu0
      %v1483 = vadd.f32 %v1261, %v1464
      %v1484 = vadd.f32 %v1262, %v1466
      %v1485 = vadd.f32 %v1263, %v1469
      %v1486 = vadd.f32 %v1264, %v1471
      %v1487 = vadd.f32 %v1265, %v1474
      %v1488 = vadd.f32 %v1266, %v1476
      %v1489 = vadd.f32 %v1267, %v1479
      %v1490 = vadd.f32 %v1268, %v1481
      %s1491 = sadd.s32 %s234, 2
      %s1492 = smul.u32 %s1491, 2
      %s1493 = smul.addr %s1492, 4
      %s1494 = scalar_lea.vmem %s218, %s1493
      %v1495 = vld [vmem:[%s1494] sm:$0xf]
      %v1496 = vld [vmem:[%s1494 + $0x8] sm:$0xf]
      %v1497 = vld [vmem:[%s1494 + $0x10] sm:$0xf]
      %v1498 = vld [vmem:[%s1494 + $0x18] sm:$0xf]
      %v1499 = vld [vmem:[%s1494 + $0x20] sm:$0xf]
      %v1500 = vld [vmem:[%s1494 + $0x28] sm:$0xf]
      %v1501 = vld [vmem:[%s1494 + $0x30] sm:$0xf]
      %v1502 = vld [vmem:[%s1494 + $0x38] sm:$0xf]
      %s1503 = scalar_lea.vmem %s1, 64
      %v1504 = vld [vmem:[%s1503] sm:$0xf]
      %v1505 = vld [vmem:[%s1503 + $0x4] sm:$0xf]
      %v1514 = vunpack.c.l.b16 %v1495
      %v1515 = vunpack.c.l.b16 %v1496
      %v1516 = vunpack.c.l.b16 %v1497
      %v1517 = vunpack.c.l.b16 %v1498
      %v1518 = vunpack.c.l.b16 %v1499
      %v1519 = vunpack.c.l.b16 %v1500
      %v1520 = vunpack.c.l.b16 %v1501
      %v1521 = vunpack.c.l.b16 %v1502
      %v1522 = vpack.c.b16 %v1515, %v1514
      %v1523 = vpack.c.b16 %v1517, %v1516
      %v1524 = vpack.c.b16 %v1519, %v1518
      %v1525 = vpack.c.b16 %v1521, %v1520
      %v1528 = vunpack.c.l.b16 %v1504
      %v1529 = vunpack.c.l.b16 %v1505
      %v1530 = vpack.c.b16 %v1529, %v1528
      %v1533 = vsel %vm392, %v1522, 0
      %v1536 = vsel %vm392, %v1523, 0
      %v1539 = vsel %vm392, %v1524, 0
      %v1542 = vsel %vm392, %v1525, 0
      %1544 = vmatpush.bf16.msra.mxu0 0
      %1545 = vmatpush.bf16.msra.mxu0 0
      %1546 = vmatpush.bf16.msra.mxu0 0
      %1547 = vmatpush.bf16.msra.mxu0 0
      %1548 = vmatpush.bf16.msra.mxu0 0
      %1549 = vmatpush.bf16.msra.mxu0 0
      %1550 = vmatpush.bf16.msra.mxu0 0
      %1551 = vmatpush.bf16.msra.mxu0 %v1530
      %1552 = vmatmul.bf16.gmra.mxu0 %v1533
      %v1553 = vpop.f32.mrf.mxu0
      %v1554 = vadd.f32 0.0, %v1553
      %v1555 = vpop.f32.mrf.mxu0
      %v1556 = vadd.f32 0.0, %v1555
      %1557 = vmatmul.bf16.gmra.mxu0 %v1536
      %v1558 = vpop.f32.mrf.mxu0
      %v1559 = vadd.f32 0.0, %v1558
      %v1560 = vpop.f32.mrf.mxu0
      %v1561 = vadd.f32 0.0, %v1560
      %1562 = vmatmul.bf16.gmra.mxu0 %v1539
      %v1563 = vpop.f32.mrf.mxu0
      %v1564 = vadd.f32 0.0, %v1563
      %v1565 = vpop.f32.mrf.mxu0
      %v1566 = vadd.f32 0.0, %v1565
      %1567 = vmatmul.bf16.gmra.mxu0 %v1542
      %v1568 = vpop.f32.mrf.mxu0
      %v1569 = vadd.f32 0.0, %v1568
      %v1570 = vpop.f32.mrf.mxu0
      %v1571 = vadd.f32 0.0, %v1570
      %1572 = vdwg.mxu0
      %v1573 = vadd.f32 %v1483, %v1554
      %v1574 = vadd.f32 %v1484, %v1556
      %v1575 = vadd.f32 %v1485, %v1559
      %v1576 = vadd.f32 %v1486, %v1561
      %v1577 = vadd.f32 %v1487, %v1564
      %v1578 = vadd.f32 %v1488, %v1566
      %v1579 = vadd.f32 %v1489, %v1569
      %v1580 = vadd.f32 %v1490, %v1571
      %v1581 = vld [vmem:[%s1494] sm:$0xf]
      %v1582 = vld [vmem:[%s1494 + $0x4] sm:$0x1]
      %v1583 = vld [vmem:[%s1494 + $0x8] sm:$0xf]
      %v1584 = vld [vmem:[%s1494 + $0xc] sm:$0x1]
      %v1585 = vld [vmem:[%s1494 + $0x10] sm:$0xf]
      %v1586 = vld [vmem:[%s1494 + $0x14] sm:$0x1]
      %v1587 = vld [vmem:[%s1494 + $0x18] sm:$0xf]
      %v1588 = vld [vmem:[%s1494 + $0x1c] sm:$0x1]
      %v1589 = vld [vmem:[%s1494 + $0x20] sm:$0xf]
      %v1590 = vld [vmem:[%s1494 + $0x24] sm:$0x1]
      %v1591 = vld [vmem:[%s1494 + $0x28] sm:$0xf]
      %v1592 = vld [vmem:[%s1494 + $0x2c] sm:$0x1]
      %v1593 = vld [vmem:[%s1494 + $0x30] sm:$0xf]
      %v1594 = vld [vmem:[%s1494 + $0x34] sm:$0x1]
      %v1595 = vld [vmem:[%s1494 + $0x38] sm:$0xf]
      %v1596 = vld [vmem:[%s1494 + $0x3c] sm:$0x1]
      %v1598 = vshrl.u32 %v1581, 16
      %v1600 = vrot.slane %v1598, 4
      %v1601 = vshll.u32 %v1581, 16
      %v1603 = vrot.slane %v1601, 5
      %v1604 = vor.u32 %v1600, %v1603
      %v1605 = vrot.slane %v1604, 4
      %v1607 = vshll.u32 %v1582, 16
      %v1609 = vrot.slane %v1607, 5
      %v1610 = vsel %vm258, %v1605, %v1609
      %v1612 = vshrl.u32 %v1583, 16
      %v1614 = vrot.slane %v1612, 4
      %v1615 = vshll.u32 %v1583, 16
      %v1617 = vrot.slane %v1615, 5
      %v1618 = vor.u32 %v1614, %v1617
      %v1619 = vrot.slane %v1618, 4
      %v1621 = vshll.u32 %v1584, 16
      %v1623 = vrot.slane %v1621, 5
      %v1624 = vsel %vm258, %v1619, %v1623
      %v1626 = vshrl.u32 %v1585, 16
      %v1628 = vrot.slane %v1626, 4
      %v1629 = vshll.u32 %v1585, 16
      %v1631 = vrot.slane %v1629, 5
      %v1632 = vor.u32 %v1628, %v1631
      %v1633 = vrot.slane %v1632, 4
      %v1635 = vshll.u32 %v1586, 16
      %v1637 = vrot.slane %v1635, 5
      %v1638 = vsel %vm258, %v1633, %v1637
      %v1640 = vshrl.u32 %v1587, 16
      %v1642 = vrot.slane %v1640, 4
      %v1643 = vshll.u32 %v1587, 16
      %v1645 = vrot.slane %v1643, 5
      %v1646 = vor.u32 %v1642, %v1645
      %v1647 = vrot.slane %v1646, 4
      %v1649 = vshll.u32 %v1588, 16
      %v1651 = vrot.slane %v1649, 5
      %v1652 = vsel %vm258, %v1647, %v1651
      %v1654 = vshrl.u32 %v1589, 16
      %v1656 = vrot.slane %v1654, 4
      %v1657 = vshll.u32 %v1589, 16
      %v1659 = vrot.slane %v1657, 5
      %v1660 = vor.u32 %v1656, %v1659
      %v1661 = vrot.slane %v1660, 4
      %v1663 = vshll.u32 %v1590, 16
      %v1665 = vrot.slane %v1663, 5
      %v1666 = vsel %vm258, %v1661, %v1665
      %v1668 = vshrl.u32 %v1591, 16
      %v1670 = vrot.slane %v1668, 4
      %v1671 = vshll.u32 %v1591, 16
      %v1673 = vrot.slane %v1671, 5
      %v1674 = vor.u32 %v1670, %v1673
      %v1675 = vrot.slane %v1674, 4
      %v1677 = vshll.u32 %v1592, 16
      %v1679 = vrot.slane %v1677, 5
      %v1680 = vsel %vm258, %v1675, %v1679
      %v1682 = vshrl.u32 %v1593, 16
      %v1684 = vrot.slane %v1682, 4
      %v1685 = vshll.u32 %v1593, 16
      %v1687 = vrot.slane %v1685, 5
      %v1688 = vor.u32 %v1684, %v1687
      %v1689 = vrot.slane %v1688, 4
      %v1691 = vshll.u32 %v1594, 16
      %v1693 = vrot.slane %v1691, 5
      %v1694 = vsel %vm258, %v1689, %v1693
      %v1696 = vshrl.u32 %v1595, 16
      %v1698 = vrot.slane %v1696, 4
      %v1699 = vshll.u32 %v1595, 16
      %v1701 = vrot.slane %v1699, 5
      %v1702 = vor.u32 %v1698, %v1701
      %v1703 = vrot.slane %v1702, 4
      %v1705 = vshll.u32 %v1596, 16
      %v1707 = vrot.slane %v1705, 5
      %v1708 = vsel %vm258, %v1703, %v1707
      %s1709 = scalar_lea.vmem %s1, 72
      %v1710 = vld [vmem:[%s1709] sm:$0xf]
      %v1711 = vld [vmem:[%s1709 + $0x4] sm:$0xf]
      %v1712 = vunpack.c.l.b16 %v1610
      %v1713 = vunpack.c.l.b16 %v1624
      %v1714 = vunpack.c.l.b16 %v1638
      %v1715 = vunpack.c.l.b16 %v1652
      %v1716 = vunpack.c.l.b16 %v1666
      %v1717 = vunpack.c.l.b16 %v1680
      %v1718 = vunpack.c.l.b16 %v1694
      %v1719 = vunpack.c.l.b16 %v1708
      %v1720 = vpack.c.b16 %v1713, %v1712
      %v1721 = vpack.c.b16 %v1715, %v1714
      %v1722 = vpack.c.b16 %v1717, %v1716
      %v1723 = vpack.c.b16 %v1719, %v1718
      %v1726 = vunpack.c.l.b16 %v1710
      %v1727 = vunpack.c.l.b16 %v1711
      %v1728 = vpack.c.b16 %v1727, %v1726
      %v1731 = vsel %vm392, %v1720, 0
      %v1734 = vsel %vm392, %v1721, 0
      %v1737 = vsel %vm392, %v1722, 0
      %v1740 = vsel %vm392, %v1723, 0
      %1742 = vmatpush.bf16.msra.mxu0 0
      %1743 = vmatpush.bf16.msra.mxu0 0
      %1744 = vmatpush.bf16.msra.mxu0 0
      %1745 = vmatpush.bf16.msra.mxu0 0
      %1746 = vmatpush.bf16.msra.mxu0 0
      %1747 = vmatpush.bf16.msra.mxu0 0
      %1748 = vmatpush.bf16.msra.mxu0 0
      %1749 = vmatpush.bf16.msra.mxu0 %v1728
      %1750 = vmatmul.bf16.gmra.mxu0 %v1731
      %v1751 = vpop.f32.mrf.mxu0
      %v1752 = vadd.f32 0.0, %v1751
      %v1753 = vpop.f32.mrf.mxu0
      %v1754 = vadd.f32 0.0, %v1753
      %1755 = vmatmul.bf16.gmra.mxu0 %v1734
      %v1756 = vpop.f32.mrf.mxu0
      %v1757 = vadd.f32 0.0, %v1756
      %v1758 = vpop.f32.mrf.mxu0
      %v1759 = vadd.f32 0.0, %v1758
      %1760 = vmatmul.bf16.gmra.mxu0 %v1737
      %v1761 = vpop.f32.mrf.mxu0
      %v1762 = vadd.f32 0.0, %v1761
      %v1763 = vpop.f32.mrf.mxu0
      %v1764 = vadd.f32 0.0, %v1763
      %1765 = vmatmul.bf16.gmra.mxu0 %v1740
      %v1766 = vpop.f32.mrf.mxu0
      %v1767 = vadd.f32 0.0, %v1766
      %v1768 = vpop.f32.mrf.mxu0
      %v1769 = vadd.f32 0.0, %v1768
      %1770 = vdwg.mxu0
      %v1771 = vadd.f32 %v1573, %v1752
      %v1772 = vadd.f32 %v1574, %v1754
      %v1773 = vadd.f32 %v1575, %v1757
      %v1774 = vadd.f32 %v1576, %v1759
      %v1775 = vadd.f32 %v1577, %v1762
      %v1776 = vadd.f32 %v1578, %v1764
      %v1777 = vadd.f32 %v1579, %v1767
      %v1778 = vadd.f32 %v1580, %v1769
      %v1779 = vld [vmem:[%s1494] sm:$0xe]
      %v1780 = vld [vmem:[%s1494 + $0x8] sm:$0xe]
      %v1781 = vld [vmem:[%s1494 + $0x10] sm:$0xe]
      %v1782 = vld [vmem:[%s1494 + $0x18] sm:$0xe]
      %v1783 = vld [vmem:[%s1494 + $0x20] sm:$0xe]
      %v1784 = vld [vmem:[%s1494 + $0x28] sm:$0xe]
      %v1785 = vld [vmem:[%s1494 + $0x30] sm:$0xe]
      %v1786 = vld [vmem:[%s1494 + $0x38] sm:$0xe]
      %v1803 = vrot.slane %v1779, 5
      %v1804 = vrot.slane %v1803, 4
      %v1805 = vrot.slane %v1582, 5
      %v1806 = vsel %vm527, %v1804, %v1805
      %v1807 = vrot.slane %v1780, 5
      %v1808 = vrot.slane %v1807, 4
      %v1809 = vrot.slane %v1584, 5
      %v1810 = vsel %vm527, %v1808, %v1809
      %v1811 = vrot.slane %v1781, 5
      %v1812 = vrot.slane %v1811, 4
      %v1813 = vrot.slane %v1586, 5
      %v1814 = vsel %vm527, %v1812, %v1813
      %v1815 = vrot.slane %v1782, 5
      %v1816 = vrot.slane %v1815, 4
      %v1817 = vrot.slane %v1588, 5
      %v1818 = vsel %vm527, %v1816, %v1817
      %v1819 = vrot.slane %v1783, 5
      %v1820 = vrot.slane %v1819, 4
      %v1821 = vrot.slane %v1590, 5
      %v1822 = vsel %vm527, %v1820, %v1821
      %v1823 = vrot.slane %v1784, 5
      %v1824 = vrot.slane %v1823, 4
      %v1825 = vrot.slane %v1592, 5
      %v1826 = vsel %vm527, %v1824, %v1825
      %v1827 = vrot.slane %v1785, 5
      %v1828 = vrot.slane %v1827, 4
      %v1829 = vrot.slane %v1594, 5
      %v1830 = vsel %vm527, %v1828, %v1829
      %v1831 = vrot.slane %v1786, 5
      %v1832 = vrot.slane %v1831, 4
      %v1833 = vrot.slane %v1596, 5
      %v1834 = vsel %vm527, %v1832, %v1833
      %s1835 = scalar_lea.vmem %s1, 80
      %v1836 = vld [vmem:[%s1835] sm:$0xf]
      %v1837 = vld [vmem:[%s1835 + $0x4] sm:$0xf]
      %v1838 = vunpack.c.l.b16 %v1806
      %v1839 = vunpack.c.l.b16 %v1810
      %v1840 = vunpack.c.l.b16 %v1814
      %v1841 = vunpack.c.l.b16 %v1818
      %v1842 = vunpack.c.l.b16 %v1822
      %v1843 = vunpack.c.l.b16 %v1826
      %v1844 = vunpack.c.l.b16 %v1830
      %v1845 = vunpack.c.l.b16 %v1834
      %v1846 = vpack.c.b16 %v1839, %v1838
      %v1847 = vpack.c.b16 %v1841, %v1840
      %v1848 = vpack.c.b16 %v1843, %v1842
      %v1849 = vpack.c.b16 %v1845, %v1844
      %v1852 = vunpack.c.l.b16 %v1836
      %v1853 = vunpack.c.l.b16 %v1837
      %v1854 = vpack.c.b16 %v1853, %v1852
      %v1857 = vsel %vm392, %v1846, 0
      %v1860 = vsel %vm392, %v1847, 0
      %v1863 = vsel %vm392, %v1848, 0
      %v1866 = vsel %vm392, %v1849, 0
      %1868 = vmatpush.bf16.msra.mxu0 0
      %1869 = vmatpush.bf16.msra.mxu0 0
      %1870 = vmatpush.bf16.msra.mxu0 0
      %1871 = vmatpush.bf16.msra.mxu0 0
      %1872 = vmatpush.bf16.msra.mxu0 0
      %1873 = vmatpush.bf16.msra.mxu0 0
      %1874 = vmatpush.bf16.msra.mxu0 0
      %1875 = vmatpush.bf16.msra.mxu0 %v1854
      %1876 = vmatmul.bf16.gmra.mxu0 %v1857
      %v1877 = vpop.f32.mrf.mxu0
      %v1878 = vadd.f32 0.0, %v1877
      %v1879 = vpop.f32.mrf.mxu0
      %v1880 = vadd.f32 0.0, %v1879
      %1881 = vmatmul.bf16.gmra.mxu0 %v1860
      %v1882 = vpop.f32.mrf.mxu0
      %v1883 = vadd.f32 0.0, %v1882
      %v1884 = vpop.f32.mrf.mxu0
      %v1885 = vadd.f32 0.0, %v1884
      %1886 = vmatmul.bf16.gmra.mxu0 %v1863
      %v1887 = vpop.f32.mrf.mxu0
      %v1888 = vadd.f32 0.0, %v1887
      %v1889 = vpop.f32.mrf.mxu0
      %v1890 = vadd.f32 0.0, %v1889
      %1891 = vmatmul.bf16.gmra.mxu0 %v1866
      %v1892 = vpop.f32.mrf.mxu0
      %v1893 = vadd.f32 0.0, %v1892
      %v1894 = vpop.f32.mrf.mxu0
      %v1895 = vadd.f32 0.0, %v1894
      %1896 = vdwg.mxu0
      %v1897 = vadd.f32 %v1771, %v1878
      %v1898 = vadd.f32 %v1772, %v1880
      %v1899 = vadd.f32 %v1773, %v1883
      %v1900 = vadd.f32 %v1774, %v1885
      %v1901 = vadd.f32 %v1775, %v1888
      %v1902 = vadd.f32 %v1776, %v1890
      %v1903 = vadd.f32 %v1777, %v1893
      %v1904 = vadd.f32 %v1778, %v1895
      %v1905 = vld [vmem:[%s1494 + $0x4] sm:$0x3]
      %v1906 = vld [vmem:[%s1494 + $0xc] sm:$0x3]
      %v1907 = vld [vmem:[%s1494 + $0x14] sm:$0x3]
      %v1908 = vld [vmem:[%s1494 + $0x1c] sm:$0x3]
      %v1909 = vld [vmem:[%s1494 + $0x24] sm:$0x3]
      %v1910 = vld [vmem:[%s1494 + $0x2c] sm:$0x3]
      %v1911 = vld [vmem:[%s1494 + $0x34] sm:$0x3]
      %v1912 = vld [vmem:[%s1494 + $0x3c] sm:$0x3]
      %v1914 = vshrl.u32 %v1779, 16
      %v1916 = vrot.slane %v1914, 5
      %v1917 = vshll.u32 %v1779, 16
      %v1919 = vrot.slane %v1917, 6
      %v1920 = vor.u32 %v1916, %v1919
      %v1921 = vrot.slane %v1920, 4
      %v1923 = vshrl.u32 %v1905, 16
      %v1925 = vrot.slane %v1923, 5
      %v1926 = vshll.u32 %v1905, 16
      %v1928 = vrot.slane %v1926, 6
      %v1929 = vor.u32 %v1925, %v1928
      %v1930 = vsel %vm640, %v1921, %v1929
      %v1932 = vshrl.u32 %v1780, 16
      %v1934 = vrot.slane %v1932, 5
      %v1935 = vshll.u32 %v1780, 16
      %v1937 = vrot.slane %v1935, 6
      %v1938 = vor.u32 %v1934, %v1937
      %v1939 = vrot.slane %v1938, 4
      %v1941 = vshrl.u32 %v1906, 16
      %v1943 = vrot.slane %v1941, 5
      %v1944 = vshll.u32 %v1906, 16
      %v1946 = vrot.slane %v1944, 6
      %v1947 = vor.u32 %v1943, %v1946
      %v1948 = vsel %vm640, %v1939, %v1947
      %v1950 = vshrl.u32 %v1781, 16
      %v1952 = vrot.slane %v1950, 5
      %v1953 = vshll.u32 %v1781, 16
      %v1955 = vrot.slane %v1953, 6
      %v1956 = vor.u32 %v1952, %v1955
      %v1957 = vrot.slane %v1956, 4
      %v1959 = vshrl.u32 %v1907, 16
      %v1961 = vrot.slane %v1959, 5
      %v1962 = vshll.u32 %v1907, 16
      %v1964 = vrot.slane %v1962, 6
      %v1965 = vor.u32 %v1961, %v1964
      %v1966 = vsel %vm640, %v1957, %v1965
      %v1968 = vshrl.u32 %v1782, 16
      %v1970 = vrot.slane %v1968, 5
      %v1971 = vshll.u32 %v1782, 16
      %v1973 = vrot.slane %v1971, 6
      %v1974 = vor.u32 %v1970, %v1973
      %v1975 = vrot.slane %v1974, 4
      %v1977 = vshrl.u32 %v1908, 16
      %v1979 = vrot.slane %v1977, 5
      %v1980 = vshll.u32 %v1908, 16
      %v1982 = vrot.slane %v1980, 6
      %v1983 = vor.u32 %v1979, %v1982
      %v1984 = vsel %vm640, %v1975, %v1983
      %v1986 = vshrl.u32 %v1783, 16
      %v1988 = vrot.slane %v1986, 5
      %v1989 = vshll.u32 %v1783, 16
      %v1991 = vrot.slane %v1989, 6
      %v1992 = vor.u32 %v1988, %v1991
      %v1993 = vrot.slane %v1992, 4
      %v1995 = vshrl.u32 %v1909, 16
      %v1997 = vrot.slane %v1995, 5
      %v1998 = vshll.u32 %v1909, 16
      %v2000 = vrot.slane %v1998, 6
      %v2001 = vor.u32 %v1997, %v2000
      %v2002 = vsel %vm640, %v1993, %v2001
      %v2004 = vshrl.u32 %v1784, 16
      %v2006 = vrot.slane %v2004, 5
      %v2007 = vshll.u32 %v1784, 16
      %v2009 = vrot.slane %v2007, 6
      %v2010 = vor.u32 %v2006, %v2009
      %v2011 = vrot.slane %v2010, 4
      %v2013 = vshrl.u32 %v1910, 16
      %v2015 = vrot.slane %v2013, 5
      %v2016 = vshll.u32 %v1910, 16
      %v2018 = vrot.slane %v2016, 6
      %v2019 = vor.u32 %v2015, %v2018
      %v2020 = vsel %vm640, %v2011, %v2019
      %v2022 = vshrl.u32 %v1785, 16
      %v2024 = vrot.slane %v2022, 5
      %v2025 = vshll.u32 %v1785, 16
      %v2027 = vrot.slane %v2025, 6
      %v2028 = vor.u32 %v2024, %v2027
      %v2029 = vrot.slane %v2028, 4
      %v2031 = vshrl.u32 %v1911, 16
      %v2033 = vrot.slane %v2031, 5
      %v2034 = vshll.u32 %v1911, 16
      %v2036 = vrot.slane %v2034, 6
      %v2037 = vor.u32 %v2033, %v2036
      %v2038 = vsel %vm640, %v2029, %v2037
      %v2040 = vshrl.u32 %v1786, 16
      %v2042 = vrot.slane %v2040, 5
      %v2043 = vshll.u32 %v1786, 16
      %v2045 = vrot.slane %v2043, 6
      %v2046 = vor.u32 %v2042, %v2045
      %v2047 = vrot.slane %v2046, 4
      %v2049 = vshrl.u32 %v1912, 16
      %v2051 = vrot.slane %v2049, 5
      %v2052 = vshll.u32 %v1912, 16
      %v2054 = vrot.slane %v2052, 6
      %v2055 = vor.u32 %v2051, %v2054
      %v2056 = vsel %vm640, %v2047, %v2055
      %s2057 = scalar_lea.vmem %s1, 88
      %v2058 = vld [vmem:[%s2057] sm:$0xf]
      %v2059 = vld [vmem:[%s2057 + $0x4] sm:$0xf]
      %v2060 = vunpack.c.l.b16 %v1930
      %v2061 = vunpack.c.l.b16 %v1948
      %v2062 = vunpack.c.l.b16 %v1966
      %v2063 = vunpack.c.l.b16 %v1984
      %v2064 = vunpack.c.l.b16 %v2002
      %v2065 = vunpack.c.l.b16 %v2020
      %v2066 = vunpack.c.l.b16 %v2038
      %v2067 = vunpack.c.l.b16 %v2056
      %v2068 = vpack.c.b16 %v2061, %v2060
      %v2069 = vpack.c.b16 %v2063, %v2062
      %v2070 = vpack.c.b16 %v2065, %v2064
      %v2071 = vpack.c.b16 %v2067, %v2066
      %v2074 = vunpack.c.l.b16 %v2058
      %v2075 = vunpack.c.l.b16 %v2059
      %v2076 = vpack.c.b16 %v2075, %v2074
      %v2079 = vsel %vm392, %v2068, 0
      %v2082 = vsel %vm392, %v2069, 0
      %v2085 = vsel %vm392, %v2070, 0
      %v2088 = vsel %vm392, %v2071, 0
      %2090 = vmatpush.bf16.msra.mxu0 0
      %2091 = vmatpush.bf16.msra.mxu0 0
      %2092 = vmatpush.bf16.msra.mxu0 0
      %2093 = vmatpush.bf16.msra.mxu0 0
      %2094 = vmatpush.bf16.msra.mxu0 0
      %2095 = vmatpush.bf16.msra.mxu0 0
      %2096 = vmatpush.bf16.msra.mxu0 0
      %2097 = vmatpush.bf16.msra.mxu0 %v2076
      %2098 = vmatmul.bf16.gmra.mxu0 %v2079
      %v2099 = vpop.f32.mrf.mxu0
      %v2100 = vadd.f32 0.0, %v2099
      %v2101 = vpop.f32.mrf.mxu0
      %v2102 = vadd.f32 0.0, %v2101
      %2103 = vmatmul.bf16.gmra.mxu0 %v2082
      %v2104 = vpop.f32.mrf.mxu0
      %v2105 = vadd.f32 0.0, %v2104
      %v2106 = vpop.f32.mrf.mxu0
      %v2107 = vadd.f32 0.0, %v2106
      %2108 = vmatmul.bf16.gmra.mxu0 %v2085
      %v2109 = vpop.f32.mrf.mxu0
      %v2110 = vadd.f32 0.0, %v2109
      %v2111 = vpop.f32.mrf.mxu0
      %v2112 = vadd.f32 0.0, %v2111
      %2113 = vmatmul.bf16.gmra.mxu0 %v2088
      %v2114 = vpop.f32.mrf.mxu0
      %v2115 = vadd.f32 0.0, %v2114
      %v2116 = vpop.f32.mrf.mxu0
      %v2117 = vadd.f32 0.0, %v2116
      %2118 = vdwg.mxu0
      %v2119 = vadd.f32 %v1897, %v2100
      %v2120 = vadd.f32 %v1898, %v2102
      %v2121 = vadd.f32 %v1899, %v2105
      %v2122 = vadd.f32 %v1900, %v2107
      %v2123 = vadd.f32 %v1901, %v2110
      %v2124 = vadd.f32 %v1902, %v2112
      %v2125 = vadd.f32 %v1903, %v2115
      %v2126 = vadd.f32 %v1904, %v2117
      %s2127 = sadd.s32 %s234, 3
      %s2128 = smul.u32 %s2127, 2
      %s2129 = smul.addr %s2128, 4
      %s2130 = scalar_lea.vmem %s218, %s2129
      %v2131 = vld [vmem:[%s2130] sm:$0xf]
      %v2132 = vld [vmem:[%s2130 + $0x8] sm:$0xf]
      %v2133 = vld [vmem:[%s2130 + $0x10] sm:$0xf]
      %v2134 = vld [vmem:[%s2130 + $0x18] sm:$0xf]
      %v2135 = vld [vmem:[%s2130 + $0x20] sm:$0xf]
      %v2136 = vld [vmem:[%s2130 + $0x28] sm:$0xf]
      %v2137 = vld [vmem:[%s2130 + $0x30] sm:$0xf]
      %v2138 = vld [vmem:[%s2130 + $0x38] sm:$0xf]
      %s2139 = scalar_lea.vmem %s1, 96
      %v2140 = vld [vmem:[%s2139] sm:$0xf]
      %v2141 = vld [vmem:[%s2139 + $0x4] sm:$0xf]
      %v2150 = vunpack.c.l.b16 %v2131
      %v2151 = vunpack.c.l.b16 %v2132
      %v2152 = vunpack.c.l.b16 %v2133
      %v2153 = vunpack.c.l.b16 %v2134
      %v2154 = vunpack.c.l.b16 %v2135
      %v2155 = vunpack.c.l.b16 %v2136
      %v2156 = vunpack.c.l.b16 %v2137
      %v2157 = vunpack.c.l.b16 %v2138
      %v2158 = vpack.c.b16 %v2151, %v2150
      %v2159 = vpack.c.b16 %v2153, %v2152
      %v2160 = vpack.c.b16 %v2155, %v2154
      %v2161 = vpack.c.b16 %v2157, %v2156
      %v2164 = vunpack.c.l.b16 %v2140
      %v2165 = vunpack.c.l.b16 %v2141
      %v2166 = vpack.c.b16 %v2165, %v2164
      %v2169 = vsel %vm392, %v2158, 0
      %v2172 = vsel %vm392, %v2159, 0
      %v2175 = vsel %vm392, %v2160, 0
      %v2178 = vsel %vm392, %v2161, 0
      %2180 = vmatpush.bf16.msra.mxu0 0
      %2181 = vmatpush.bf16.msra.mxu0 0
      %2182 = vmatpush.bf16.msra.mxu0 0
      %2183 = vmatpush.bf16.msra.mxu0 0
      %2184 = vmatpush.bf16.msra.mxu0 0
      %2185 = vmatpush.bf16.msra.mxu0 0
      %2186 = vmatpush.bf16.msra.mxu0 0
      %2187 = vmatpush.bf16.msra.mxu0 %v2166
      %2188 = vmatmul.bf16.gmra.mxu0 %v2169
      %v2189 = vpop.f32.mrf.mxu0
      %v2190 = vadd.f32 0.0, %v2189
      %v2191 = vpop.f32.mrf.mxu0
      %v2192 = vadd.f32 0.0, %v2191
      %2193 = vmatmul.bf16.gmra.mxu0 %v2172
      %v2194 = vpop.f32.mrf.mxu0
      %v2195 = vadd.f32 0.0, %v2194
      %v2196 = vpop.f32.mrf.mxu0
      %v2197 = vadd.f32 0.0, %v2196
      %2198 = vmatmul.bf16.gmra.mxu0 %v2175
      %v2199 = vpop.f32.mrf.mxu0
      %v2200 = vadd.f32 0.0, %v2199
      %v2201 = vpop.f32.mrf.mxu0
      %v2202 = vadd.f32 0.0, %v2201
      %2203 = vmatmul.bf16.gmra.mxu0 %v2178
      %v2204 = vpop.f32.mrf.mxu0
      %v2205 = vadd.f32 0.0, %v2204
      %v2206 = vpop.f32.mrf.mxu0
      %v2207 = vadd.f32 0.0, %v2206
      %2208 = vdwg.mxu0
      %v2209 = vadd.f32 %v2119, %v2190
      %v2210 = vadd.f32 %v2120, %v2192
      %v2211 = vadd.f32 %v2121, %v2195
      %v2212 = vadd.f32 %v2122, %v2197
      %v2213 = vadd.f32 %v2123, %v2200
      %v2214 = vadd.f32 %v2124, %v2202
      %v2215 = vadd.f32 %v2125, %v2205
      %v2216 = vadd.f32 %v2126, %v2207
      %v2217 = vld [vmem:[%s2130] sm:$0xf]
      %v2218 = vld [vmem:[%s2130 + $0x4] sm:$0x1]
      %v2219 = vld [vmem:[%s2130 + $0x8] sm:$0xf]
      %v2220 = vld [vmem:[%s2130 + $0xc] sm:$0x1]
      %v2221 = vld [vmem:[%s2130 + $0x10] sm:$0xf]
      %v2222 = vld [vmem:[%s2130 + $0x14] sm:$0x1]
      %v2223 = vld [vmem:[%s2130 + $0x18] sm:$0xf]
      %v2224 = vld [vmem:[%s2130 + $0x1c] sm:$0x1]
      %v2225 = vld [vmem:[%s2130 + $0x20] sm:$0xf]
      %v2226 = vld [vmem:[%s2130 + $0x24] sm:$0x1]
      %v2227 = vld [vmem:[%s2130 + $0x28] sm:$0xf]
      %v2228 = vld [vmem:[%s2130 + $0x2c] sm:$0x1]
      %v2229 = vld [vmem:[%s2130 + $0x30] sm:$0xf]
      %v2230 = vld [vmem:[%s2130 + $0x34] sm:$0x1]
      %v2231 = vld [vmem:[%s2130 + $0x38] sm:$0xf]
      %v2232 = vld [vmem:[%s2130 + $0x3c] sm:$0x1]
      %v2234 = vshrl.u32 %v2217, 16
      %v2236 = vrot.slane %v2234, 4
      %v2237 = vshll.u32 %v2217, 16
      %v2239 = vrot.slane %v2237, 5
      %v2240 = vor.u32 %v2236, %v2239
      %v2241 = vrot.slane %v2240, 4
      %v2243 = vshll.u32 %v2218, 16
      %v2245 = vrot.slane %v2243, 5
      %v2246 = vsel %vm258, %v2241, %v2245
      %v2248 = vshrl.u32 %v2219, 16
      %v2250 = vrot.slane %v2248, 4
      %v2251 = vshll.u32 %v2219, 16
      %v2253 = vrot.slane %v2251, 5
      %v2254 = vor.u32 %v2250, %v2253
      %v2255 = vrot.slane %v2254, 4
      %v2257 = vshll.u32 %v2220, 16
      %v2259 = vrot.slane %v2257, 5
      %v2260 = vsel %vm258, %v2255, %v2259
      %v2262 = vshrl.u32 %v2221, 16
      %v2264 = vrot.slane %v2262, 4
      %v2265 = vshll.u32 %v2221, 16
      %v2267 = vrot.slane %v2265, 5
      %v2268 = vor.u32 %v2264, %v2267
      %v2269 = vrot.slane %v2268, 4
      %v2271 = vshll.u32 %v2222, 16
      %v2273 = vrot.slane %v2271, 5
      %v2274 = vsel %vm258, %v2269, %v2273
      %v2276 = vshrl.u32 %v2223, 16
      %v2278 = vrot.slane %v2276, 4
      %v2279 = vshll.u32 %v2223, 16
      %v2281 = vrot.slane %v2279, 5
      %v2282 = vor.u32 %v2278, %v2281
      %v2283 = vrot.slane %v2282, 4
      %v2285 = vshll.u32 %v2224, 16
      %v2287 = vrot.slane %v2285, 5
      %v2288 = vsel %vm258, %v2283, %v2287
      %v2290 = vshrl.u32 %v2225, 16
      %v2292 = vrot.slane %v2290, 4
      %v2293 = vshll.u32 %v2225, 16
      %v2295 = vrot.slane %v2293, 5
      %v2296 = vor.u32 %v2292, %v2295
      %v2297 = vrot.slane %v2296, 4
      %v2299 = vshll.u32 %v2226, 16
      %v2301 = vrot.slane %v2299, 5
      %v2302 = vsel %vm258, %v2297, %v2301
      %v2304 = vshrl.u32 %v2227, 16
      %v2306 = vrot.slane %v2304, 4
      %v2307 = vshll.u32 %v2227, 16
      %v2309 = vrot.slane %v2307, 5
      %v2310 = vor.u32 %v2306, %v2309
      %v2311 = vrot.slane %v2310, 4
      %v2313 = vshll.u32 %v2228, 16
      %v2315 = vrot.slane %v2313, 5
      %v2316 = vsel %vm258, %v2311, %v2315
      %v2318 = vshrl.u32 %v2229, 16
      %v2320 = vrot.slane %v2318, 4
      %v2321 = vshll.u32 %v2229, 16
      %v2323 = vrot.slane %v2321, 5
      %v2324 = vor.u32 %v2320, %v2323
      %v2325 = vrot.slane %v2324, 4
      %v2327 = vshll.u32 %v2230, 16
      %v2329 = vrot.slane %v2327, 5
      %v2330 = vsel %vm258, %v2325, %v2329
      %v2332 = vshrl.u32 %v2231, 16
      %v2334 = vrot.slane %v2332, 4
      %v2335 = vshll.u32 %v2231, 16
      %v2337 = vrot.slane %v2335, 5
      %v2338 = vor.u32 %v2334, %v2337
      %v2339 = vrot.slane %v2338, 4
      %v2341 = vshll.u32 %v2232, 16
      %v2343 = vrot.slane %v2341, 5
      %v2344 = vsel %vm258, %v2339, %v2343
      %s2345 = scalar_lea.vmem %s1, 104
      %v2346 = vld [vmem:[%s2345] sm:$0xf]
      %v2347 = vld [vmem:[%s2345 + $0x4] sm:$0xf]
      %v2348 = vunpack.c.l.b16 %v2246
      %v2349 = vunpack.c.l.b16 %v2260
      %v2350 = vunpack.c.l.b16 %v2274
      %v2351 = vunpack.c.l.b16 %v2288
      %v2352 = vunpack.c.l.b16 %v2302
      %v2353 = vunpack.c.l.b16 %v2316
      %v2354 = vunpack.c.l.b16 %v2330
      %v2355 = vunpack.c.l.b16 %v2344
      %v2356 = vpack.c.b16 %v2349, %v2348
      %v2357 = vpack.c.b16 %v2351, %v2350
      %v2358 = vpack.c.b16 %v2353, %v2352
      %v2359 = vpack.c.b16 %v2355, %v2354
      %v2362 = vunpack.c.l.b16 %v2346
      %v2363 = vunpack.c.l.b16 %v2347
      %v2364 = vpack.c.b16 %v2363, %v2362
      %v2367 = vsel %vm392, %v2356, 0
      %v2370 = vsel %vm392, %v2357, 0
      %v2373 = vsel %vm392, %v2358, 0
      %v2376 = vsel %vm392, %v2359, 0
      %2378 = vmatpush.bf16.msra.mxu0 0
      %2379 = vmatpush.bf16.msra.mxu0 0
      %2380 = vmatpush.bf16.msra.mxu0 0
      %2381 = vmatpush.bf16.msra.mxu0 0
      %2382 = vmatpush.bf16.msra.mxu0 0
      %2383 = vmatpush.bf16.msra.mxu0 0
      %2384 = vmatpush.bf16.msra.mxu0 0
      %2385 = vmatpush.bf16.msra.mxu0 %v2364
      %2386 = vmatmul.bf16.gmra.mxu0 %v2367
      %v2387 = vpop.f32.mrf.mxu0
      %v2388 = vadd.f32 0.0, %v2387
      %v2389 = vpop.f32.mrf.mxu0
      %v2390 = vadd.f32 0.0, %v2389
      %2391 = vmatmul.bf16.gmra.mxu0 %v2370
      %v2392 = vpop.f32.mrf.mxu0
      %v2393 = vadd.f32 0.0, %v2392
      %v2394 = vpop.f32.mrf.mxu0
      %v2395 = vadd.f32 0.0, %v2394
      %2396 = vmatmul.bf16.gmra.mxu0 %v2373
      %v2397 = vpop.f32.mrf.mxu0
      %v2398 = vadd.f32 0.0, %v2397
      %v2399 = vpop.f32.mrf.mxu0
      %v2400 = vadd.f32 0.0, %v2399
      %2401 = vmatmul.bf16.gmra.mxu0 %v2376
      %v2402 = vpop.f32.mrf.mxu0
      %v2403 = vadd.f32 0.0, %v2402
      %v2404 = vpop.f32.mrf.mxu0
      %v2405 = vadd.f32 0.0, %v2404
      %2406 = vdwg.mxu0
      %v2407 = vadd.f32 %v2209, %v2388
      %v2408 = vadd.f32 %v2210, %v2390
      %v2409 = vadd.f32 %v2211, %v2393
      %v2410 = vadd.f32 %v2212, %v2395
      %v2411 = vadd.f32 %v2213, %v2398
      %v2412 = vadd.f32 %v2214, %v2400
      %v2413 = vadd.f32 %v2215, %v2403
      %v2414 = vadd.f32 %v2216, %v2405
      %v2415 = vld [vmem:[%s2130] sm:$0xe]
      %v2416 = vld [vmem:[%s2130 + $0x8] sm:$0xe]
      %v2417 = vld [vmem:[%s2130 + $0x10] sm:$0xe]
      %v2418 = vld [vmem:[%s2130 + $0x18] sm:$0xe]
      %v2419 = vld [vmem:[%s2130 + $0x20] sm:$0xe]
      %v2420 = vld [vmem:[%s2130 + $0x28] sm:$0xe]
      %v2421 = vld [vmem:[%s2130 + $0x30] sm:$0xe]
      %v2422 = vld [vmem:[%s2130 + $0x38] sm:$0xe]
      %v2439 = vrot.slane %v2415, 5
      %v2440 = vrot.slane %v2439, 4
      %v2441 = vrot.slane %v2218, 5
      %v2442 = vsel %vm527, %v2440, %v2441
      %v2443 = vrot.slane %v2416, 5
      %v2444 = vrot.slane %v2443, 4
      %v2445 = vrot.slane %v2220, 5
      %v2446 = vsel %vm527, %v2444, %v2445
      %v2447 = vrot.slane %v2417, 5
      %v2448 = vrot.slane %v2447, 4
      %v2449 = vrot.slane %v2222, 5
      %v2450 = vsel %vm527, %v2448, %v2449
      %v2451 = vrot.slane %v2418, 5
      %v2452 = vrot.slane %v2451, 4
      %v2453 = vrot.slane %v2224, 5
      %v2454 = vsel %vm527, %v2452, %v2453
      %v2455 = vrot.slane %v2419, 5
      %v2456 = vrot.slane %v2455, 4
      %v2457 = vrot.slane %v2226, 5
      %v2458 = vsel %vm527, %v2456, %v2457
      %v2459 = vrot.slane %v2420, 5
      %v2460 = vrot.slane %v2459, 4
      %v2461 = vrot.slane %v2228, 5
      %v2462 = vsel %vm527, %v2460, %v2461
      %v2463 = vrot.slane %v2421, 5
      %v2464 = vrot.slane %v2463, 4
      %v2465 = vrot.slane %v2230, 5
      %v2466 = vsel %vm527, %v2464, %v2465
      %v2467 = vrot.slane %v2422, 5
      %v2468 = vrot.slane %v2467, 4
      %v2469 = vrot.slane %v2232, 5
      %v2470 = vsel %vm527, %v2468, %v2469
      %s2471 = scalar_lea.vmem %s1, 112
      %v2472 = vld [vmem:[%s2471] sm:$0xf]
      %v2473 = vld [vmem:[%s2471 + $0x4] sm:$0xf]
      %v2474 = vunpack.c.l.b16 %v2442
      %v2475 = vunpack.c.l.b16 %v2446
      %v2476 = vunpack.c.l.b16 %v2450
      %v2477 = vunpack.c.l.b16 %v2454
      %v2478 = vunpack.c.l.b16 %v2458
      %v2479 = vunpack.c.l.b16 %v2462
      %v2480 = vunpack.c.l.b16 %v2466
      %v2481 = vunpack.c.l.b16 %v2470
      %v2482 = vpack.c.b16 %v2475, %v2474
      %v2483 = vpack.c.b16 %v2477, %v2476
      %v2484 = vpack.c.b16 %v2479, %v2478
      %v2485 = vpack.c.b16 %v2481, %v2480
      %v2488 = vunpack.c.l.b16 %v2472
      %v2489 = vunpack.c.l.b16 %v2473
      %v2490 = vpack.c.b16 %v2489, %v2488
      %v2493 = vsel %vm392, %v2482, 0
      %v2496 = vsel %vm392, %v2483, 0
      %v2499 = vsel %vm392, %v2484, 0
      %v2502 = vsel %vm392, %v2485, 0
      %2504 = vmatpush.bf16.msra.mxu0 0
      %2505 = vmatpush.bf16.msra.mxu0 0
      %2506 = vmatpush.bf16.msra.mxu0 0
      %2507 = vmatpush.bf16.msra.mxu0 0
      %2508 = vmatpush.bf16.msra.mxu0 0
      %2509 = vmatpush.bf16.msra.mxu0 0
      %2510 = vmatpush.bf16.msra.mxu0 0
      %2511 = vmatpush.bf16.msra.mxu0 %v2490
      %2512 = vmatmul.bf16.gmra.mxu0 %v2493
      %v2513 = vpop.f32.mrf.mxu0
      %v2514 = vadd.f32 0.0, %v2513
      %v2515 = vpop.f32.mrf.mxu0
      %v2516 = vadd.f32 0.0, %v2515
      %2517 = vmatmul.bf16.gmra.mxu0 %v2496
      %v2518 = vpop.f32.mrf.mxu0
      %v2519 = vadd.f32 0.0, %v2518
      %v2520 = vpop.f32.mrf.mxu0
      %v2521 = vadd.f32 0.0, %v2520
      %2522 = vmatmul.bf16.gmra.mxu0 %v2499
      %v2523 = vpop.f32.mrf.mxu0
      %v2524 = vadd.f32 0.0, %v2523
      %v2525 = vpop.f32.mrf.mxu0
      %v2526 = vadd.f32 0.0, %v2525
      %2527 = vmatmul.bf16.gmra.mxu0 %v2502
      %v2528 = vpop.f32.mrf.mxu0
      %v2529 = vadd.f32 0.0, %v2528
      %v2530 = vpop.f32.mrf.mxu0
      %v2531 = vadd.f32 0.0, %v2530
      %2532 = vdwg.mxu0
      %v2533 = vadd.f32 %v2407, %v2514
      %v2534 = vadd.f32 %v2408, %v2516
      %v2535 = vadd.f32 %v2409, %v2519
      %v2536 = vadd.f32 %v2410, %v2521
      %v2537 = vadd.f32 %v2411, %v2524
      %v2538 = vadd.f32 %v2412, %v2526
      %v2539 = vadd.f32 %v2413, %v2529
      %v2540 = vadd.f32 %v2414, %v2531
      %v2541 = vld [vmem:[%s2130 + $0x4] sm:$0x3]
      %v2542 = vld [vmem:[%s2130 + $0xc] sm:$0x3]
      %v2543 = vld [vmem:[%s2130 + $0x14] sm:$0x3]
      %v2544 = vld [vmem:[%s2130 + $0x1c] sm:$0x3]
      %v2545 = vld [vmem:[%s2130 + $0x24] sm:$0x3]
      %v2546 = vld [vmem:[%s2130 + $0x2c] sm:$0x3]
      %v2547 = vld [vmem:[%s2130 + $0x34] sm:$0x3]
      %v2548 = vld [vmem:[%s2130 + $0x3c] sm:$0x3]
      %v2550 = vshrl.u32 %v2415, 16
      %v2552 = vrot.slane %v2550, 5
      %v2553 = vshll.u32 %v2415, 16
      %v2555 = vrot.slane %v2553, 6
      %v2556 = vor.u32 %v2552, %v2555
      %v2557 = vrot.slane %v2556, 4
      %v2559 = vshrl.u32 %v2541, 16
      %v2561 = vrot.slane %v2559, 5
      %v2562 = vshll.u32 %v2541, 16
      %v2564 = vrot.slane %v2562, 6
      %v2565 = vor.u32 %v2561, %v2564
      %v2566 = vsel %vm640, %v2557, %v2565
      %v2568 = vshrl.u32 %v2416, 16
      %v2570 = vrot.slane %v2568, 5
      %v2571 = vshll.u32 %v2416, 16
      %v2573 = vrot.slane %v2571, 6
      %v2574 = vor.u32 %v2570, %v2573
      %v2575 = vrot.slane %v2574, 4
      %v2577 = vshrl.u32 %v2542, 16
      %v2579 = vrot.slane %v2577, 5
      %v2580 = vshll.u32 %v2542, 16
      %v2582 = vrot.slane %v2580, 6
      %v2583 = vor.u32 %v2579, %v2582
      %v2584 = vsel %vm640, %v2575, %v2583
      %v2586 = vshrl.u32 %v2417, 16
      %v2588 = vrot.slane %v2586, 5
      %v2589 = vshll.u32 %v2417, 16
      %v2591 = vrot.slane %v2589, 6
      %v2592 = vor.u32 %v2588, %v2591
      %v2593 = vrot.slane %v2592, 4
      %v2595 = vshrl.u32 %v2543, 16
      %v2597 = vrot.slane %v2595, 5
      %v2598 = vshll.u32 %v2543, 16
      %v2600 = vrot.slane %v2598, 6
      %v2601 = vor.u32 %v2597, %v2600
      %v2602 = vsel %vm640, %v2593, %v2601
      %v2604 = vshrl.u32 %v2418, 16
      %v2606 = vrot.slane %v2604, 5
      %v2607 = vshll.u32 %v2418, 16
      %v2609 = vrot.slane %v2607, 6
      %v2610 = vor.u32 %v2606, %v2609
      %v2611 = vrot.slane %v2610, 4
      %v2613 = vshrl.u32 %v2544, 16
      %v2615 = vrot.slane %v2613, 5
      %v2616 = vshll.u32 %v2544, 16
      %v2618 = vrot.slane %v2616, 6
      %v2619 = vor.u32 %v2615, %v2618
      %v2620 = vsel %vm640, %v2611, %v2619
      %v2622 = vshrl.u32 %v2419, 16
      %v2624 = vrot.slane %v2622, 5
      %v2625 = vshll.u32 %v2419, 16
      %v2627 = vrot.slane %v2625, 6
      %v2628 = vor.u32 %v2624, %v2627
      %v2629 = vrot.slane %v2628, 4
      %v2631 = vshrl.u32 %v2545, 16
      %v2633 = vrot.slane %v2631, 5
      %v2634 = vshll.u32 %v2545, 16
      %v2636 = vrot.slane %v2634, 6
      %v2637 = vor.u32 %v2633, %v2636
      %v2638 = vsel %vm640, %v2629, %v2637
      %v2640 = vshrl.u32 %v2420, 16
      %v2642 = vrot.slane %v2640, 5
      %v2643 = vshll.u32 %v2420, 16
      %v2645 = vrot.slane %v2643, 6
      %v2646 = vor.u32 %v2642, %v2645
      %v2647 = vrot.slane %v2646, 4
      %v2649 = vshrl.u32 %v2546, 16
      %v2651 = vrot.slane %v2649, 5
      %v2652 = vshll.u32 %v2546, 16
      %v2654 = vrot.slane %v2652, 6
      %v2655 = vor.u32 %v2651, %v2654
      %v2656 = vsel %vm640, %v2647, %v2655
      %v2658 = vshrl.u32 %v2421, 16
      %v2660 = vrot.slane %v2658, 5
      %v2661 = vshll.u32 %v2421, 16
      %v2663 = vrot.slane %v2661, 6
      %v2664 = vor.u32 %v2660, %v2663
      %v2665 = vrot.slane %v2664, 4
      %v2667 = vshrl.u32 %v2547, 16
      %v2669 = vrot.slane %v2667, 5
      %v2670 = vshll.u32 %v2547, 16
      %v2672 = vrot.slane %v2670, 6
      %v2673 = vor.u32 %v2669, %v2672
      %v2674 = vsel %vm640, %v2665, %v2673
      %v2676 = vshrl.u32 %v2422, 16
      %v2678 = vrot.slane %v2676, 5
      %v2679 = vshll.u32 %v2422, 16
      %v2681 = vrot.slane %v2679, 6
      %v2682 = vor.u32 %v2678, %v2681
      %v2683 = vrot.slane %v2682, 4
      %v2685 = vshrl.u32 %v2548, 16
      %v2687 = vrot.slane %v2685, 5
      %v2688 = vshll.u32 %v2548, 16
      %v2690 = vrot.slane %v2688, 6
      %v2691 = vor.u32 %v2687, %v2690
      %v2692 = vsel %vm640, %v2683, %v2691
      %s2693 = scalar_lea.vmem %s1, 120
      %v2694 = vld [vmem:[%s2693] sm:$0xf]
      %v2695 = vld [vmem:[%s2693 + $0x4] sm:$0xf]
      %v2696 = vunpack.c.l.b16 %v2566
      %v2697 = vunpack.c.l.b16 %v2584
      %v2698 = vunpack.c.l.b16 %v2602
      %v2699 = vunpack.c.l.b16 %v2620
      %v2700 = vunpack.c.l.b16 %v2638
      %v2701 = vunpack.c.l.b16 %v2656
      %v2702 = vunpack.c.l.b16 %v2674
      %v2703 = vunpack.c.l.b16 %v2692
      %v2704 = vpack.c.b16 %v2697, %v2696
      %v2705 = vpack.c.b16 %v2699, %v2698
      %v2706 = vpack.c.b16 %v2701, %v2700
      %v2707 = vpack.c.b16 %v2703, %v2702
      %v2710 = vunpack.c.l.b16 %v2694
      %v2711 = vunpack.c.l.b16 %v2695
      %v2712 = vpack.c.b16 %v2711, %v2710
      %v2715 = vsel %vm392, %v2704, 0
      %v2718 = vsel %vm392, %v2705, 0
      %v2721 = vsel %vm392, %v2706, 0
      %v2724 = vsel %vm392, %v2707, 0
      %2726 = vmatpush.bf16.msra.mxu0 0
      %2727 = vmatpush.bf16.msra.mxu0 0
      %2728 = vmatpush.bf16.msra.mxu0 0
      %2729 = vmatpush.bf16.msra.mxu0 0
      %2730 = vmatpush.bf16.msra.mxu0 0
      %2731 = vmatpush.bf16.msra.mxu0 0
      %2732 = vmatpush.bf16.msra.mxu0 0
      %2733 = vmatpush.bf16.msra.mxu0 %v2712
      %2734 = vmatmul.bf16.gmra.mxu0 %v2715
      %v2735 = vpop.f32.mrf.mxu0
      %v2736 = vadd.f32 0.0, %v2735
      %v2737 = vpop.f32.mrf.mxu0
      %v2738 = vadd.f32 0.0, %v2737
      %2739 = vmatmul.bf16.gmra.mxu0 %v2718
      %v2740 = vpop.f32.mrf.mxu0
      %v2741 = vadd.f32 0.0, %v2740
      %v2742 = vpop.f32.mrf.mxu0
      %v2743 = vadd.f32 0.0, %v2742
      %2744 = vmatmul.bf16.gmra.mxu0 %v2721
      %v2745 = vpop.f32.mrf.mxu0
      %v2746 = vadd.f32 0.0, %v2745
      %v2747 = vpop.f32.mrf.mxu0
      %v2748 = vadd.f32 0.0, %v2747
      %2749 = vmatmul.bf16.gmra.mxu0 %v2724
      %v2750 = vpop.f32.mrf.mxu0
      %v2751 = vadd.f32 0.0, %v2750
      %v2752 = vpop.f32.mrf.mxu0
      %v2753 = vadd.f32 0.0, %v2752
      %2754 = vdwg.mxu0
      %v2755 = vadd.f32 %v2533, %v2736
      %v2756 = vadd.f32 %v2534, %v2738
      %v2757 = vadd.f32 %v2535, %v2741
      %v2758 = vadd.f32 %v2536, %v2743
      %v2759 = vadd.f32 %v2537, %v2746
      %v2760 = vadd.f32 %v2538, %v2748
      %v2761 = vadd.f32 %v2539, %v2751
      %v2762 = vadd.f32 %v2540, %v2753
      %v2763 = vpack.c.bf16 %v2755, %v2755
      %v2764 = vpack.c.bf16 %v2756, %v2756
      %v2765 = vpack.c.bf16 %v2757, %v2757
      %v2766 = vpack.c.bf16 %v2758, %v2758
      %v2767 = vpack.c.bf16 %v2759, %v2759
      %v2768 = vpack.c.bf16 %v2760, %v2760
      %v2769 = vpack.c.bf16 %v2761, %v2761
      %v2770 = vpack.c.bf16 %v2762, %v2762
      %2771 = vst [vmem:[%s224] sm:$0xf] %v2763
      %2772 = vst [vmem:[%s224 + $0x4] sm:$0xf] %v2764
      %2773 = vst [vmem:[%s224 + $0x8] sm:$0xf] %v2765
      %2774 = vst [vmem:[%s224 + $0xc] sm:$0xf] %v2766
      %2775 = vst [vmem:[%s224 + $0x10] sm:$0xf] %v2767
      %2776 = vst [vmem:[%s224 + $0x14] sm:$0xf] %v2768
      %2777 = vst [vmem:[%s224 + $0x18] sm:$0xf] %v2769
      %2778 = vst [vmem:[%s224 + $0x1c] sm:$0xf] %v2770
      %p2779 = scmp.eq.s32.totalorder %s21, 0
      // Predicated region
      $region29: #{_lambda_.7} parent=27 // pred_check
        %p2780 = pneg %p2779
      $region30: #{_lambda_.7} parent=27 // pred_check_branch
        %2782 = sbr.rel (%p2780) target = $region32
      $region31: #{_lambda_.7} parent=27 // pred_region
        %2783 = vst [vmem:[%s229] sm:$0x1] 0.0
        %2784 = vst [vmem:[%s232] sm:$0x1] 0.0
      $region32: #{_lambda_.7} parent=27 // pred_fallthru
        _
      %v2785 = vld [vmem:[%s229] sm:$0x1]
      %v2786 = vadd.f32 %v2755, %v2756
      %v2787 = vadd.f32 %v2786, %v2757
      %v2788 = vadd.f32 %v2787, %v2758
      %v2789 = vadd.f32 %v2788, %v2759
      %v2790 = vadd.f32 %v2789, %v2760
      %v2791 = vadd.f32 %v2790, %v2761
      %v2792 = vadd.f32 %v2791, %v2762
      %v2793 = vrot.slane %v2792, 4
      %v2794 = vadd.f32 %v2792, %v2793
      %v2795 = vrot.slane %v2794, 2
      %v2796 = vadd.f32 %v2794, %v2795
      %v2797 = vrot.slane %v2796, 1
      %v2798 = vadd.f32 %v2796, %v2797
      %v2799 = vadd.f32 %v2785, %v2798
      %2800 = vst [vmem:[%s229] sm:$0x1] %v2799
      %v2801 = vld [vmem:[%s232] sm:$0x1]
      %v2802 = vmul.f32 %v2755, %v2755
      %v2803 = vmul.f32 %v2756, %v2756
      %v2804 = vmul.f32 %v2757, %v2757
      %v2805 = vmul.f32 %v2758, %v2758
      %v2806 = vmul.f32 %v2759, %v2759
      %v2807 = vmul.f32 %v2760, %v2760
      %v2808 = vmul.f32 %v2761, %v2761
      %v2809 = vmul.f32 %v2762, %v2762
      %v2810 = vadd.f32 %v2802, %v2803
      %v2811 = vadd.f32 %v2810, %v2804
      %v2812 = vadd.f32 %v2811, %v2805
      %v2813 = vadd.f32 %v2812, %v2806
      %v2814 = vadd.f32 %v2813, %v2807
      %v2815 = vadd.f32 %v2814, %v2808
      %v2816 = vadd.f32 %v2815, %v2809
      %v2817 = vrot.slane %v2816, 4
      %v2818 = vadd.f32 %v2816, %v2817
      %v2819 = vrot.slane %v2818, 2
      %v2820 = vadd.f32 %v2818, %v2819
      %v2821 = vrot.slane %v2820, 1
      %v2822 = vadd.f32 %v2820, %v2821
      %v2823 = vadd.f32 %v2801, %v2822
      %2824 = vst [vmem:[%s232] sm:$0x1] %v2823
      %s2825 = sadd.s32 %s20, %s21
      %s2826 = smul.u32 8, %s2825
      %p2827 = scmp.lt.s32.totalorder %s2826, 15
      %s2828 = scalar_select %p2827, %s2826, 15
      %s2829 = smul.addr %s2828, 4
      %s2830 = scalar_lea.vmem %s2, %s2829
      %p2831 = scmp.lt.s32.totalorder %s20, 1
      %s2832 = scalar_select %p2831, %s20, 1
      %s2833 = scalar_lea.vmem %s3, %s2832
      %p2834 = scmp.lt.s32.totalorder %s20, 1
      %s2835 = scalar_select %p2834, %s20, 1
      %s2836 = scalar_lea.vmem %s4, %s2835
      // Predicated region
      $region33: #{_lambda_.7} parent=27 // pred_check
        %p2837 = pneg %p95
      $region34: #{_lambda_.7} parent=27 // pred_check_branch
        %2839 = sbr.rel (%p2837) target = $region36
      $region35: #{_lambda_.7} parent=27 // pred_region
        %s2840 = sadd.s32 %s20, %s21
        %s2841 = smul.u32 8, %s2840
      $region36: #{_lambda_.7} parent=27 // pred_fallthru
        _
      // Predicated region
      $region37: #{_lambda_.7} parent=27 // pred_check
        %p2842 = pneg %p121
      $region38: #{_lambda_.7} parent=27 // pred_check_branch
        %2844 = sbr.rel (%p2842) target = $region40
      $region39: #{_lambda_.7} parent=27 // pred_region
        _
      $region40: #{_lambda_.7} parent=27 // pred_fallthru
        _
      // Predicated region
      $region41: #{_lambda_.7} parent=27 // pred_check
        %p2845 = pneg %p147
      $region42: #{_lambda_.7} parent=27 // pred_check_branch
        %2847 = sbr.rel (%p2845) target = $region44
      $region43: #{_lambda_.7} parent=27 // pred_region
        _
      $region44: #{_lambda_.7} parent=27 // pred_fallthru
        _
    $region28: #{_lambda_.7} parent=5 // pred_fallthru
      _
    %p2848 = scmp.le.s32.totalorder 2, %s11
    // Predicated region
    $region45: #{_lambda_.7} parent=5 // pred_check
      %p2849 = pneg %p2848
    $region46: #{_lambda_.7} parent=5 // pred_check_branch
      %2851 = sbr.rel (%p2849) target = $region48
    $region47: #{_lambda_.7} parent=5 // pred_region
      %s2852 = ssub.s32 %s11, 2
      // Predicated region
      $region49: #{_lambda_.7} parent=47 // pred_check
        %p2853 = pneg %p101
      $region50: #{_lambda_.7} parent=47 // pred_check_branch
        %2855 = sbr.rel (%p2853) target = $region52
      $region51: #{_lambda_.7} parent=47 // pred_region
        %s2856 = sadd.s32 %s22, %s23
        %s2857 = smul.u32 8, %s2856
        %p2858 = scmp.lt.s32.totalorder %s2857, 15
        %s2859 = scalar_select %p2858, %s2857, 15
        %s2860 = smul.addr %s2859, 4
        %s2861 = scalar_lea.vmem %s2, %s2860
      $region52: #{_lambda_.7} parent=47 // pred_fallthru
        _
      // Predicated region
      $region53: #{_lambda_.7} parent=47 // pred_check
        %p2862 = pneg %p127
      $region54: #{_lambda_.7} parent=47 // pred_check_branch
        %2864 = sbr.rel (%p2862) target = $region56
      $region55: #{_lambda_.7} parent=47 // pred_region
        %p2865 = scmp.lt.s32.totalorder %s22, 1
        %s2866 = scalar_select %p2865, %s22, 1
        %s2867 = scalar_lea.vmem %s3, %s2866
      $region56: #{_lambda_.7} parent=47 // pred_fallthru
        _
      // Predicated region
      $region57: #{_lambda_.7} parent=47 // pred_check
        %p2868 = pneg %p153
      $region58: #{_lambda_.7} parent=47 // pred_check_branch
        %2870 = sbr.rel (%p2868) target = $region60
      $region59: #{_lambda_.7} parent=47 // pred_region
        %p2871 = scmp.lt.s32.totalorder %s22, 1
        %s2872 = scalar_select %p2871, %s22, 1
        %s2873 = scalar_lea.vmem %s4, %s2872
      $region60: #{_lambda_.7} parent=47 // pred_fallthru
        _
    $region48: #{_lambda_.7} parent=5 // pred_fallthru
      _
  $region6: #{_lambda_.7} parent=0 // loop_footer
    %s15 = sadd.s32 1, %s11
  $region7: #{_lambda_.7} parent=0 // loop_footer_branch
    %10 = sbr.rel target = $region3
  $region8: #{_lambda_.7} parent=0 // loop_exit
    _

// kernel: _lambda_.9
$region0: #{_lambda_.9}
  #allocation0 [shape = 'u32[]', space=smem, size = 0x4, offset = 0x4, fixed_abs, tag = 'smem constant byte address 0x4 - core index']
  #allocation1 [shape = 'u32[72,128]{1,0:T(1,128)}', space=vmem, size = 0x9000, scoped, tag = 'internal scratch']
  %s0 = inlined_call_operand.vmem [shape: bf16[2,19,19,8], index: 0, kind: input, shape index: {}]
  %s1 = inlined_call_operand.vmem [shape: bf16[16,8,128], index: 1, kind: input, shape index: {}]
  %s2 = inlined_call_operand.vmem [shape: f32[512,128], index: 2, kind: output, shape index: {}]
  %s3 = sld [smem:[#allocation0]]
  $region41: #{_lambda_.9} parent=0
    _
  %s5 = ssub.s32 1, %s3
  %s6 = scalar_select 0, %s5, %s3
  loop: start=0, step=1, limit=4
  $region2: #{_lambda_.9} parent=0 // loop_pre_header
    _
  $region3: #{_lambda_.9} parent=0 // loop_header
    %s8 = sphi 0, %s12
    %p9 = scmp.ge.s32.totalorder %s8, 4
    %s15 = sphi 0, %s27
    %s16 = sphi 0, %s23
    %s17 = sphi 0, %s15
    %s18 = sphi 0, %s16
    %s19 = sphi 0, %s17
    %s20 = sphi 0, %s18
    %s30 = sphi 0, %s32
    %s33 = sphi 0, %s30
    %s34 = sphi 0, %s33
    %s50 = sphi 0, %s34
    %s54 = sphi 0, %s54
    %s56 = sphi 0, %s54
    %s57 = sphi 0, %s56
    %s71 = sphi 0, %s57
    %s79 = sphi 0, %s81
    %s82 = sphi 0, %s79
    %s83 = sphi 0, %s82
    %s99 = sphi 0, %s83
  $region4: #{_lambda_.9} parent=0 // loop_header_branch
    %11 = sbr.rel (%p9) target = $region8
  $region5: #{_lambda_.9} parent=0 // loop_body
    %s13 = ssub.s32 %s8, 1
    %s14 = ssub.s32 %s8, 2
    %s21 = sadd.s32 1, %s16
    %p22 = scmp.ge.s32.totalorder %s21, 1
    %s23 = scalar_select %p22, 0, %s21
    %s24 = sadd.s32 1, %s15
    %s25 = scalar_select %p22, %s24, %s15
    %p26 = scmp.ge.s32.totalorder %s25, 2
    %s27 = scalar_select %p26, 0, %s25
    %s28 = ssub.s32 %s15, %s27
    %p29 = scmp.eq.s32.totalorder %s28, 0
    %s31 = sadd.s32 %s30, 1
    %s32 = scalar_select %p29, %s30, %s31
    %p35 = pneg %p29
    %p36 = scmp.eq.s32.totalorder %s8, 1
    %p37 = por %p35, %p36
    %p38 = scmp.ne.s32.totalorder %s30, %s33
    %p39 = scmp.eq.s32.totalorder %s8, 0
    %p40 = por %p38, %p39
    %p41 = scmp.ne.s32.totalorder %s30, %s33
    %p42 = scmp.eq.s32.totalorder %s13, 1
    %p43 = por %p41, %p42
    %p44 = scmp.ne.s32.totalorder %s33, %s34
    %p45 = scmp.eq.s32.totalorder %s13, 0
    %p46 = por %p44, %p45
    %p47 = scmp.ne.s32.totalorder %s33, %s34
    %p48 = scmp.eq.s32.totalorder %s14, 1
    %p49 = por %p47, %p48
    %p51 = scmp.ne.s32.totalorder %s34, %s50
    %p52 = scmp.eq.s32.totalorder %s14, 0
    %p53 = por %p51, %p52
    %s55 = sadd.s32 %s54, 1
    %p58 = scmp.eq.s32.totalorder %s8, 1
    %p59 = scmp.ne.s32.totalorder %s54, %s56
    %p60 = scmp.eq.s32.totalorder %s8, 0
    %p61 = por %p59, %p60
    %p62 = scmp.ne.s32.totalorder %s54, %s56
    %p63 = scmp.eq.s32.totalorder %s13, 1
    %p64 = por %p62, %p63
    %p65 = scmp.ne.s32.totalorder %s56, %s57
    %p66 = scmp.eq.s32.totalorder %s13, 0
    %p67 = por %p65, %p66
    %p68 = scmp.ne.s32.totalorder %s56, %s57
    %p69 = scmp.eq.s32.totalorder %s14, 1
    %p70 = por %p68, %p69
    %p72 = scmp.ne.s32.totalorder %s57, %s71
    %p73 = scmp.eq.s32.totalorder %s14, 0
    %p74 = por %p72, %p73
    %s75 = sadd.s32 %s15, %s16
    %s76 = sadd.s32 %s27, %s23
    %s77 = ssub.s32 %s75, %s76
    %p78 = scmp.eq.s32.totalorder %s77, 0
    %s80 = sadd.s32 %s79, 1
    %s81 = scalar_select %p78, %s79, %s80
    %p84 = pneg %p78
    %p85 = scmp.eq.s32.totalorder %s8, 1
    %p86 = por %p84, %p85
    %p87 = scmp.ne.s32.totalorder %s79, %s82
    %p88 = scmp.eq.s32.totalorder %s8, 0
    %p89 = por %p87, %p88
    %p90 = scmp.ne.s32.totalorder %s79, %s82
    %p91 = scmp.eq.s32.totalorder %s13, 1
    %p92 = por %p90, %p91
    %p93 = scmp.ne.s32.totalorder %s82, %s83
    %p94 = scmp.eq.s32.totalorder %s13, 0
    %p95 = por %p93, %p94
    %p96 = scmp.ne.s32.totalorder %s82, %s83
    %p97 = scmp.eq.s32.totalorder %s14, 1
    %p98 = por %p96, %p97
    %p100 = scmp.ne.s32.totalorder %s83, %s99
    %p101 = scmp.eq.s32.totalorder %s14, 0
    %p102 = por %p100, %p101
    %p103 = scmp.le.s32.totalorder 1, %s8
    %p104 = scmp.lt.s32.totalorder %s8, 3
    %p105 = pnand %p103, %p104
    %p106 = pneg %p105
    // Predicated region
    $region9: #{_lambda_.9} parent=5 // pred_check
      _
    $region10: #{_lambda_.9} parent=5 // pred_check_branch
      %108 = sbr.rel (%p105) target = $region12
    $region11: #{_lambda_.9} parent=5 // pred_region
      %s109 = ssub.s32 %s8, 1
      // Predicated region
      $region13: #{_lambda_.9} parent=11 // pred_check
        %p110 = pneg %p67
      $region14: #{_lambda_.9} parent=11 // pred_check_branch
        %112 = sbr.rel (%p110) target = $region16
      $region15: #{_lambda_.9} parent=11 // pred_region
        _
      $region16: #{_lambda_.9} parent=11 // pred_fallthru
        _
    $region12: #{_lambda_.9} parent=5 // pred_fallthru
      _
    %p113 = scmp.lt.s32.totalorder %s8, 2
    // Predicated region
    $region17: #{_lambda_.9} parent=5 // pred_check
      %p114 = pneg %p113
    $region18: #{_lambda_.9} parent=5 // pred_check_branch
      %116 = sbr.rel (%p114) target = $region20
    $region19: #{_lambda_.9} parent=5 // pred_region
      // Predicated region
      $region21: #{_lambda_.9} parent=19 // pred_check
        %p117 = pneg %p40
      $region22: #{_lambda_.9} parent=19 // pred_check_branch
        %119 = sbr.rel (%p117) target = $region24
      $region23: #{_lambda_.9} parent=19 // pred_region
        %p120 = scmp.lt.s32.totalorder %s15, 1
        %s121 = scalar_select %p120, %s15, 1
        %s122 = smul.addr %s121, 57
        %s123 = smul.addr %s122, 4
        %s124 = scalar_lea.vmem %s0, %s123
      $region24: #{_lambda_.9} parent=19 // pred_fallthru
        _
    $region20: #{_lambda_.9} parent=5 // pred_fallthru
      _
    %p125 = scmp.le.s32.totalorder 1, %s8
    %p126 = scmp.lt.s32.totalorder %s8, 3
    %p127 = pnand %p125, %p126
    %p128 = pneg %p127
    // Predicated region
    $region25: #{_lambda_.9} parent=5 // pred_check
      _
    $region26: #{_lambda_.9} parent=5 // pred_check_branch
      %130 = sbr.rel (%p127) target = $region28
    $region27: #{_lambda_.9} parent=5 // pred_region
      %s131 = ssub.s32 %s8, 1
      %p132 = scmp.lt.s32.totalorder %s17, 1
      %s133 = scalar_select %p132, %s17, 1
      %s134 = smul.addr %s133, 57
      %s135 = smul.addr %s134, 4
      %s136 = scalar_lea.vmem %s0, %s135
      %p137 = pneg %p46
      %p138 = pneg %p43
      %p139 = pneg %p67
      %p140 = pneg %p64
      %p141 = pneg %p95
      %p142 = pneg %p92
      %s143 = sadd.s32 %s17, %s18
      %s144 = smul.u32 32, %s143
      %p145 = scmp.lt.s32.totalorder %s144, 63
      %s146 = scalar_select %p145, %s144, 63
      %s147 = smul.addr %s146, 8
      %s148 = scalar_lea.vmem %s2, %s147
      %p149 = scmp.lt.s32.totalorder %s17, 1
      %s150 = scalar_select %p149, %s17, 1
      %s151 = smul.addr %s150, 57
      %s152 = smul.addr %s151, 4
      %s153 = scalar_lea.vmem %s0, %s152
      %s154 = sadd.s32 %s17, %s18
      %s155 = smul.u32 32, %s154
      %p156 = scmp.lt.s32.totalorder %s155, 63
      %s157 = scalar_select %p156, %s155, 63
      %s158 = smul.addr %s157, 8
      %s159 = scalar_lea.vmem %s2, %s158
      %s160 = sadd.s32 %s17, %s18
      %s161 = smul.u32 32, %s160
      %s163 = smul.u32 %s18, 16
      %s164 = smul.u32 %s163, 3
      %s165 = smul.addr %s164, 4
      %s166 = scalar_lea.vmem %s153, %s165
      %v167 = vld [vmem:[%s166] sm:$0xf]
      %v168 = vld [vmem:[%s166 + $0x4] sm:$0xf]
      %v169 = vld [vmem:[%s166 + $0xc] sm:$0xf]
      %v170 = vld [vmem:[%s166 + $0x10] sm:$0xf]
      %v171 = vld [vmem:[%s166 + $0x18] sm:$0xf]
      %v172 = vld [vmem:[%s166 + $0x1c] sm:$0xf]
      %v173 = vld [vmem:[%s166 + $0x24] sm:$0xf]
      %v174 = vld [vmem:[%s166 + $0x28] sm:$0xf]
      %v175 = vld [vmem:[%s166 + $0x30] sm:$0xf]
      %v176 = vld [vmem:[%s166 + $0x34] sm:$0xf]
      %v177 = vld [vmem:[%s166 + $0x3c] sm:$0xf]
      %v178 = vld [vmem:[%s166 + $0x40] sm:$0xf]
      %v179 = vld [vmem:[%s166 + $0x48] sm:$0xf]
      %v180 = vld [vmem:[%s166 + $0x4c] sm:$0xf]
      %v181 = vld [vmem:[%s166 + $0x54] sm:$0xf]
      %v182 = vld [vmem:[%s166 + $0x58] sm:$0xf]
      %v183 = vld [vmem:[%s166 + $0x60] sm:$0xf]
      %v184 = vld [vmem:[%s166 + $0x64] sm:$0xf]
      %v185 = vld [vmem:[%s166 + $0x6c] sm:$0xf]
      %v186 = vld [vmem:[%s166 + $0x70] sm:$0xf]
      %v187 = vld [vmem:[%s166 + $0x78] sm:$0xf]
      %v188 = vld [vmem:[%s166 + $0x7c] sm:$0xf]
      %v189 = vld [vmem:[%s166 + $0x84] sm:$0xf]
      %v190 = vld [vmem:[%s166 + $0x88] sm:$0xf]
      %v191 = vld [vmem:[%s166 + $0x90] sm:$0xf]
      %v192 = vld [vmem:[%s166 + $0x94] sm:$0xf]
      %v193 = vld [vmem:[%s166 + $0x9c] sm:$0xf]
      %v194 = vld [vmem:[%s166 + $0xa0] sm:$0xf]
      %v195 = vld [vmem:[%s166 + $0xa8] sm:$0xf]
      %v196 = vld [vmem:[%s166 + $0xac] sm:$0xf]
      %v197 = vld [vmem:[%s166 + $0xb4] sm:$0xf]
      %v198 = vld [vmem:[%s166 + $0xb8] sm:$0xf]
      %v199 = vld [vmem:[%s1] sm:$0xf]
      %v200 = vld [vmem:[%s166 + $0x8] sm:$0x1]
      %v201 = vld [vmem:[%s166 + $0x14] sm:$0x1]
      %v202 = vld [vmem:[%s166 + $0x20] sm:$0x1]
      %v203 = vld [vmem:[%s166 + $0x2c] sm:$0x1]
      %v204 = vld [vmem:[%s166 + $0x38] sm:$0x1]
      %v205 = vld [vmem:[%s166 + $0x44] sm:$0x1]
      %v206 = vld [vmem:[%s166 + $0x50] sm:$0x1]
      %v207 = vld [vmem:[%s166 + $0x5c] sm:$0x1]
      %v208 = vld [vmem:[%s166 + $0x68] sm:$0x1]
      %v209 = vld [vmem:[%s166 + $0x74] sm:$0x1]
      %v210 = vld [vmem:[%s166 + $0x80] sm:$0x1]
      %v211 = vld [vmem:[%s166 + $0x8c] sm:$0x1]
      %v212 = vld [vmem:[%s166 + $0x98] sm:$0x1]
      %v213 = vld [vmem:[%s166 + $0xa4] sm:$0x1]
      %v214 = vld [vmem:[%s166 + $0xb0] sm:$0x1]
      %v215 = vld [vmem:[%s166 + $0xbc] sm:$0x1]
      %vm216 = vsmask.f32 3328
      %vm217 = vsmask.f32 7440
      %vm218 = vmor %vm216, %vm217
      %v220 = vshrl.u32 %v167, 16
      %v222 = vrot.slane %v220, 4
      %v223 = vshll.u32 %v167, 16
      %v225 = vrot.slane %v223, 5
      %v226 = vor.u32 %v222, %v225
      %v227 = vrot.slane %v226, 4
      %v229 = vshll.u32 %v168, 16
      %v231 = vrot.slane %v229, 5
      %v232 = vsel %vm218, %v227, %v231
      %v233 = vshrl.u32 %v168, 16
      %v235 = vrot.slane %v233, 4
      %v236 = vor.u32 %v235, %v231
      %v237 = vrot.slane %v236, 4
      %v239 = vshll.u32 %v200, 16
      %v241 = vrot.slane %v239, 5
      %v242 = vsel %vm218, %v237, %v241
      %v244 = vshrl.u32 %v169, 16
      %v246 = vrot.slane %v244, 4
      %v247 = vshll.u32 %v169, 16
      %v249 = vrot.slane %v247, 5
      %v250 = vor.u32 %v246, %v249
      %v251 = vrot.slane %v250, 4
      %v253 = vshll.u32 %v170, 16
      %v255 = vrot.slane %v253, 5
      %v256 = vsel %vm218, %v251, %v255
      %v257 = vshrl.u32 %v170, 16
      %v259 = vrot.slane %v257, 4
      %v260 = vor.u32 %v259, %v255
      %v261 = vrot.slane %v260, 4
      %v263 = vshll.u32 %v201, 16
      %v265 = vrot.slane %v263, 5
      %v266 = vsel %vm218, %v261, %v265
      %v268 = vshrl.u32 %v171, 16
      %v270 = vrot.slane %v268, 4
      %v271 = vshll.u32 %v171, 16
      %v273 = vrot.slane %v271, 5
      %v274 = vor.u32 %v270, %v273
      %v275 = vrot.slane %v274, 4
      %v277 = vshll.u32 %v172, 16
      %v279 = vrot.slane %v277, 5
      %v280 = vsel %vm218, %v275, %v279
      %v281 = vshrl.u32 %v172, 16
      %v283 = vrot.slane %v281, 4
      %v284 = vor.u32 %v283, %v279
      %v285 = vrot.slane %v284, 4
      %v287 = vshll.u32 %v202, 16
      %v289 = vrot.slane %v287, 5
      %v290 = vsel %vm218, %v285, %v289
      %v292 = vshrl.u32 %v173, 16
      %v294 = vrot.slane %v292, 4
      %v295 = vshll.u32 %v173, 16
      %v297 = vrot.slane %v295, 5
      %v298 = vor.u32 %v294, %v297
      %v299 = vrot.slane %v298, 4
      %v301 = vshll.u32 %v174, 16
      %v303 = vrot.slane %v301, 5
      %v304 = vsel %vm218, %v299, %v303
      %v305 = vshrl.u32 %v174, 16
      %v307 = vrot.slane %v305, 4
      %v308 = vor.u32 %v307, %v303
      %v309 = vrot.slane %v308, 4
      %v311 = vshll.u32 %v203, 16
      %v313 = vrot.slane %v311, 5
      %v314 = vsel %vm218, %v309, %v313
      %v316 = vshrl.u32 %v175, 16
      %v318 = vrot.slane %v316, 4
      %v319 = vshll.u32 %v175, 16
      %v321 = vrot.slane %v319, 5
      %v322 = vor.u32 %v318, %v321
      %v323 = vrot.slane %v322, 4
      %v325 = vshll.u32 %v176, 16
      %v327 = vrot.slane %v325, 5
      %v328 = vsel %vm218, %v323, %v327
      %v329 = vshrl.u32 %v176, 16
      %v331 = vrot.slane %v329, 4
      %v332 = vor.u32 %v331, %v327
      %v333 = vrot.slane %v332, 4
      %v335 = vshll.u32 %v204, 16
      %v337 = vrot.slane %v335, 5
      %v338 = vsel %vm218, %v333, %v337
      %v340 = vshrl.u32 %v177, 16
      %v342 = vrot.slane %v340, 4
      %v343 = vshll.u32 %v177, 16
      %v345 = vrot.slane %v343, 5
      %v346 = vor.u32 %v342, %v345
      %v347 = vrot.slane %v346, 4
      %v349 = vshll.u32 %v178, 16
      %v351 = vrot.slane %v349, 5
      %v352 = vsel %vm218, %v347, %v351
      %v353 = vshrl.u32 %v178, 16
      %v355 = vrot.slane %v353, 4
      %v356 = vor.u32 %v355, %v351
      %v357 = vrot.slane %v356, 4
      %v359 = vshll.u32 %v205, 16
      %v361 = vrot.slane %v359, 5
      %v362 = vsel %vm218, %v357, %v361
      %v364 = vshrl.u32 %v179, 16
      %v366 = vrot.slane %v364, 4
      %v367 = vshll.u32 %v179, 16
      %v369 = vrot.slane %v367, 5
      %v370 = vor.u32 %v366, %v369
      %v371 = vrot.slane %v370, 4
      %v373 = vshll.u32 %v180, 16
      %v375 = vrot.slane %v373, 5
      %v376 = vsel %vm218, %v371, %v375
      %v377 = vshrl.u32 %v180, 16
      %v379 = vrot.slane %v377, 4
      %v380 = vor.u32 %v379, %v375
      %v381 = vrot.slane %v380, 4
      %v383 = vshll.u32 %v206, 16
      %v385 = vrot.slane %v383, 5
      %v386 = vsel %vm218, %v381, %v385
      %v388 = vshrl.u32 %v181, 16
      %v390 = vrot.slane %v388, 4
      %v391 = vshll.u32 %v181, 16
      %v393 = vrot.slane %v391, 5
      %v394 = vor.u32 %v390, %v393
      %v395 = vrot.slane %v394, 4
      %v397 = vshll.u32 %v182, 16
      %v399 = vrot.slane %v397, 5
      %v400 = vsel %vm218, %v395, %v399
      %v401 = vshrl.u32 %v182, 16
      %v403 = vrot.slane %v401, 4
      %v404 = vor.u32 %v403, %v399
      %v405 = vrot.slane %v404, 4
      %v407 = vshll.u32 %v207, 16
      %v409 = vrot.slane %v407, 5
      %v410 = vsel %vm218, %v405, %v409
      %v412 = vshrl.u32 %v183, 16
      %v414 = vrot.slane %v412, 4
      %v415 = vshll.u32 %v183, 16
      %v417 = vrot.slane %v415, 5
      %v418 = vor.u32 %v414, %v417
      %v419 = vrot.slane %v418, 4
      %v421 = vshll.u32 %v184, 16
      %v423 = vrot.slane %v421, 5
      %v424 = vsel %vm218, %v419, %v423
      %v425 = vshrl.u32 %v184, 16
      %v427 = vrot.slane %v425, 4
      %v428 = vor.u32 %v427, %v423
      %v429 = vrot.slane %v428, 4
      %v431 = vshll.u32 %v208, 16
      %v433 = vrot.slane %v431, 5
      %v434 = vsel %vm218, %v429, %v433
      %v436 = vshrl.u32 %v185, 16
      %v438 = vrot.slane %v436, 4
      %v439 = vshll.u32 %v185, 16
      %v441 = vrot.slane %v439, 5
      %v442 = vor.u32 %v438, %v441
      %v443 = vrot.slane %v442, 4
      %v445 = vshll.u32 %v186, 16
      %v447 = vrot.slane %v445, 5
      %v448 = vsel %vm218, %v443, %v447
      %v449 = vshrl.u32 %v186, 16
      %v451 = vrot.slane %v449, 4
      %v452 = vor.u32 %v451, %v447
      %v453 = vrot.slane %v452, 4
      %v455 = vshll.u32 %v209, 16
      %v457 = vrot.slane %v455, 5
      %v458 = vsel %vm218, %v453, %v457
      %v460 = vshrl.u32 %v187, 16
      %v462 = vrot.slane %v460, 4
      %v463 = vshll.u32 %v187, 16
      %v465 = vrot.slane %v463, 5
      %v466 = vor.u32 %v462, %v465
      %v467 = vrot.slane %v466, 4
      %v469 = vshll.u32 %v188, 16
      %v471 = vrot.slane %v469, 5
      %v472 = vsel %vm218, %v467, %v471
      %v473 = vshrl.u32 %v188, 16
      %v475 = vrot.slane %v473, 4
      %v476 = vor.u32 %v475, %v471
      %v477 = vrot.slane %v476, 4
      %v479 = vshll.u32 %v210, 16
      %v481 = vrot.slane %v479, 5
      %v482 = vsel %vm218, %v477, %v481
      %v484 = vshrl.u32 %v189, 16
      %v486 = vrot.slane %v484, 4
      %v487 = vshll.u32 %v189, 16
      %v489 = vrot.slane %v487, 5
      %v490 = vor.u32 %v486, %v489
      %v491 = vrot.slane %v490, 4
      %v493 = vshll.u32 %v190, 16
      %v495 = vrot.slane %v493, 5
      %v496 = vsel %vm218, %v491, %v495
      %v497 = vshrl.u32 %v190, 16
      %v499 = vrot.slane %v497, 4
      %v500 = vor.u32 %v499, %v495
      %v501 = vrot.slane %v500, 4
      %v503 = vshll.u32 %v211, 16
      %v505 = vrot.slane %v503, 5
      %v506 = vsel %vm218, %v501, %v505
      %v508 = vshrl.u32 %v191, 16
      %v510 = vrot.slane %v508, 4
      %v511 = vshll.u32 %v191, 16
      %v513 = vrot.slane %v511, 5
      %v514 = vor.u32 %v510, %v513
      %v515 = vrot.slane %v514, 4
      %v517 = vshll.u32 %v192, 16
      %v519 = vrot.slane %v517, 5
      %v520 = vsel %vm218, %v515, %v519
      %v521 = vshrl.u32 %v192, 16
      %v523 = vrot.slane %v521, 4
      %v524 = vor.u32 %v523, %v519
      %v525 = vrot.slane %v524, 4
      %v527 = vshll.u32 %v212, 16
      %v529 = vrot.slane %v527, 5
      %v530 = vsel %vm218, %v525, %v529
      %v532 = vshrl.u32 %v193, 16
      %v534 = vrot.slane %v532, 4
      %v535 = vshll.u32 %v193, 16
      %v537 = vrot.slane %v535, 5
      %v538 = vor.u32 %v534, %v537
      %v539 = vrot.slane %v538, 4
      %v541 = vshll.u32 %v194, 16
      %v543 = vrot.slane %v541, 5
      %v544 = vsel %vm218, %v539, %v543
      %v545 = vshrl.u32 %v194, 16
      %v547 = vrot.slane %v545, 4
      %v548 = vor.u32 %v547, %v543
      %v549 = vrot.slane %v548, 4
      %v551 = vshll.u32 %v213, 16
      %v553 = vrot.slane %v551, 5
      %v554 = vsel %vm218, %v549, %v553
      %v556 = vshrl.u32 %v195, 16
      %v558 = vrot.slane %v556, 4
      %v559 = vshll.u32 %v195, 16
      %v561 = vrot.slane %v559, 5
      %v562 = vor.u32 %v558, %v561
      %v563 = vrot.slane %v562, 4
      %v565 = vshll.u32 %v196, 16
      %v567 = vrot.slane %v565, 5
      %v568 = vsel %vm218, %v563, %v567
      %v569 = vshrl.u32 %v196, 16
      %v571 = vrot.slane %v569, 4
      %v572 = vor.u32 %v571, %v567
      %v573 = vrot.slane %v572, 4
      %v575 = vshll.u32 %v214, 16
      %v577 = vrot.slane %v575, 5
      %v578 = vsel %vm218, %v573, %v577
      %v580 = vshrl.u32 %v197, 16
      %v582 = vrot.slane %v580, 4
      %v583 = vshll.u32 %v197, 16
      %v585 = vrot.slane %v583, 5
      %v586 = vor.u32 %v582, %v585
      %v587 = vrot.slane %v586, 4
      %v589 = vshll.u32 %v198, 16
      %v591 = vrot.slane %v589, 5
      %v592 = vsel %vm218, %v587, %v591
      %v593 = vshrl.u32 %v198, 16
      %v595 = vrot.slane %v593, 4
      %v596 = vor.u32 %v595, %v591
      %v597 = vrot.slane %v596, 4
      %v599 = vshll.u32 %v215, 16
      %v601 = vrot.slane %v599, 5
      %v602 = vsel %vm218, %v597, %v601
      %s603 = scalar_lea.vmem %s1, 4
      %v604 = vld [vmem:[%s603] sm:$0xf]
      %v605 = vunpack.c.l.b16 %v232
      %v606 = vunpack.c.l.b16 %v242
      %v607 = vunpack.c.l.b16 %v256
      %v608 = vunpack.c.l.b16 %v266
      %v609 = vunpack.c.l.b16 %v280
      %v610 = vunpack.c.l.b16 %v290
      %v611 = vunpack.c.l.b16 %v304
      %v612 = vunpack.c.l.b16 %v314
      %v613 = vunpack.c.l.b16 %v328
      %v614 = vunpack.c.l.b16 %v338
      %v615 = vunpack.c.l.b16 %v352
      %v616 = vunpack.c.l.b16 %v362
      %v617 = vunpack.c.l.b16 %v376
      %v618 = vunpack.c.l.b16 %v386
      %v619 = vunpack.c.l.b16 %v400
      %v620 = vunpack.c.l.b16 %v410
      %v621 = vunpack.c.l.b16 %v424
      %v622 = vunpack.c.l.b16 %v434
      %v623 = vunpack.c.l.b16 %v448
      %v624 = vunpack.c.l.b16 %v458
      %v625 = vunpack.c.l.b16 %v472
      %v626 = vunpack.c.l.b16 %v482
      %v627 = vunpack.c.l.b16 %v496
      %v628 = vunpack.c.l.b16 %v506
      %v629 = vunpack.c.l.b16 %v520
      %v630 = vunpack.c.l.b16 %v530
      %v631 = vunpack.c.l.b16 %v544
      %v632 = vunpack.c.l.b16 %v554
      %v633 = vunpack.c.l.b16 %v568
      %v634 = vunpack.c.l.b16 %v578
      %v635 = vunpack.c.l.b16 %v592
      %v636 = vunpack.c.l.b16 %v602
      %v637 = vpack.c.b16 %v606, %v605
      %v638 = vpack.c.b16 %v608, %v607
      %v639 = vpack.c.b16 %v610, %v609
      %v640 = vpack.c.b16 %v612, %v611
      %v641 = vpack.c.b16 %v614, %v613
      %v642 = vpack.c.b16 %v616, %v615
      %v643 = vpack.c.b16 %v618, %v617
      %v644 = vpack.c.b16 %v620, %v619
      %v645 = vpack.c.b16 %v622, %v621
      %v646 = vpack.c.b16 %v624, %v623
      %v647 = vpack.c.b16 %v626, %v625
      %v648 = vpack.c.b16 %v628, %v627
      %v649 = vpack.c.b16 %v630, %v629
      %v650 = vpack.c.b16 %v632, %v631
      %v651 = vpack.c.b16 %v634, %v633
      %v652 = vpack.c.b16 %v636, %v635
      %vm653 = vcmask 64512
      %v655 = vsel %vm653, %v637, 0
      %v658 = vsel %vm653, %v638, 0
      %v661 = vsel %vm653, %v639, 0
      %v664 = vsel %vm653, %v640, 0
      %v667 = vsel %vm653, %v641, 0
      %v670 = vsel %vm653, %v642, 0
      %v673 = vsel %vm653, %v643, 0
      %v676 = vsel %vm653, %v644, 0
      %v679 = vsel %vm653, %v645, 0
      %v682 = vsel %vm653, %v646, 0
      %v685 = vsel %vm653, %v647, 0
      %v688 = vsel %vm653, %v648, 0
      %v691 = vsel %vm653, %v649, 0
      %v694 = vsel %vm653, %v650, 0
      %v697 = vsel %vm653, %v651, 0
      %v700 = vsel %vm653, %v652, 0
      %vm702 = vcmask 1043456
      %v704 = vsel %vm702, %v604, 0
      %706 = vmatpush.bf16.msra.mxu0 0
      %707 = vmatpush.bf16.msra.mxu0 0
      %708 = vmatpush.bf16.msra.mxu0 0
      %709 = vmatpush.bf16.msra.mxu0 0
      %710 = vmatpush.bf16.msra.mxu0 0
      %711 = vmatpush.bf16.msra.mxu0 0
      %712 = vmatpush.bf16.msra.mxu0 0
      %713 = vmatpush.bf16.msra.mxu0 %v704
      %714 = vmatmul.bf16.gmra.mxu0 %v655
      %v715 = vpop.f32.mrf.mxu0
      %v716 = vadd.f32 0.0, %v715
      %v717 = vpop.f32.mrf.mxu0
      %v718 = vadd.f32 0.0, %v717
      %719 = vmatmul.bf16.gmra.mxu0 %v658
      %v720 = vpop.f32.mrf.mxu0
      %v721 = vadd.f32 0.0, %v720
      %v722 = vpop.f32.mrf.mxu0
      %v723 = vadd.f32 0.0, %v722
      %724 = vmatmul.bf16.gmra.mxu0 %v661
      %v725 = vpop.f32.mrf.mxu0
      %v726 = vadd.f32 0.0, %v725
      %v727 = vpop.f32.mrf.mxu0
      %v728 = vadd.f32 0.0, %v727
      %729 = vmatmul.bf16.gmra.mxu0 %v664
      %v730 = vpop.f32.mrf.mxu0
      %v731 = vadd.f32 0.0, %v730
      %v732 = vpop.f32.mrf.mxu0
      %v733 = vadd.f32 0.0, %v732
      %734 = vmatmul.bf16.gmra.mxu0 %v667
      %v735 = vpop.f32.mrf.mxu0
      %v736 = vadd.f32 0.0, %v735
      %v737 = vpop.f32.mrf.mxu0
      %v738 = vadd.f32 0.0, %v737
      %739 = vmatmul.bf16.gmra.mxu0 %v670
      %v740 = vpop.f32.mrf.mxu0
      %v741 = vadd.f32 0.0, %v740
      %v742 = vpop.f32.mrf.mxu0
      %v743 = vadd.f32 0.0, %v742
      %744 = vmatmul.bf16.gmra.mxu0 %v673
      %v745 = vpop.f32.mrf.mxu0
      %v746 = vadd.f32 0.0, %v745
      %v747 = vpop.f32.mrf.mxu0
      %v748 = vadd.f32 0.0, %v747
      %749 = vmatmul.bf16.gmra.mxu0 %v676
      %v750 = vpop.f32.mrf.mxu0
      %v751 = vadd.f32 0.0, %v750
      %v752 = vpop.f32.mrf.mxu0
      %v753 = vadd.f32 0.0, %v752
      %754 = vmatmul.bf16.gmra.mxu0 %v679
      %v755 = vpop.f32.mrf.mxu0
      %v756 = vadd.f32 0.0, %v755
      %v757 = vpop.f32.mrf.mxu0
      %v758 = vadd.f32 0.0, %v757
      %759 = vmatmul.bf16.gmra.mxu0 %v682
      %v760 = vpop.f32.mrf.mxu0
      %v761 = vadd.f32 0.0, %v760
      %v762 = vpop.f32.mrf.mxu0
      %v763 = vadd.f32 0.0, %v762
      %764 = vmatmul.bf16.gmra.mxu0 %v685
      %v765 = vpop.f32.mrf.mxu0
      %v766 = vadd.f32 0.0, %v765
      %v767 = vpop.f32.mrf.mxu0
      %v768 = vadd.f32 0.0, %v767
      %769 = vmatmul.bf16.gmra.mxu0 %v688
      %v770 = vpop.f32.mrf.mxu0
      %v771 = vadd.f32 0.0, %v770
      %v772 = vpop.f32.mrf.mxu0
      %v773 = vadd.f32 0.0, %v772
      %774 = vmatmul.bf16.gmra.mxu0 %v691
      %v775 = vpop.f32.mrf.mxu0
      %v776 = vadd.f32 0.0, %v775
      %v777 = vpop.f32.mrf.mxu0
      %v778 = vadd.f32 0.0, %v777
      %779 = vmatmul.bf16.gmra.mxu0 %v694
      %v780 = vpop.f32.mrf.mxu0
      %v781 = vadd.f32 0.0, %v780
      %v782 = vpop.f32.mrf.mxu0
      %v783 = vadd.f32 0.0, %v782
      %784 = vmatmul.bf16.gmra.mxu0 %v697
      %v785 = vpop.f32.mrf.mxu0
      %v786 = vadd.f32 0.0, %v785
      %v787 = vpop.f32.mrf.mxu0
      %v788 = vadd.f32 0.0, %v787
      %789 = vmatmul.bf16.gmra.mxu0 %v700
      %v790 = vpop.f32.mrf.mxu0
      %v791 = vadd.f32 0.0, %v790
      %v792 = vpop.f32.mrf.mxu0
      %v793 = vadd.f32 0.0, %v792
      %794 = vdwg.mxu0
      %v827 = vunpack.c.l.b16 %v167
      %v828 = vunpack.c.l.b16 %v168
      %v829 = vunpack.c.l.b16 %v169
      %v830 = vunpack.c.l.b16 %v170
      %v831 = vunpack.c.l.b16 %v171
      %v832 = vunpack.c.l.b16 %v172
      %v833 = vunpack.c.l.b16 %v173
      %v834 = vunpack.c.l.b16 %v174
      %v835 = vunpack.c.l.b16 %v175
      %v836 = vunpack.c.l.b16 %v176
      %v837 = vunpack.c.l.b16 %v177
      %v838 = vunpack.c.l.b16 %v178
      %v839 = vunpack.c.l.b16 %v179
      %v840 = vunpack.c.l.b16 %v180
      %v841 = vunpack.c.l.b16 %v181
      %v842 = vunpack.c.l.b16 %v182
      %v843 = vunpack.c.l.b16 %v183
      %v844 = vunpack.c.l.b16 %v184
      %v845 = vunpack.c.l.b16 %v185
      %v846 = vunpack.c.l.b16 %v186
      %v847 = vunpack.c.l.b16 %v187
      %v848 = vunpack.c.l.b16 %v188
      %v849 = vunpack.c.l.b16 %v189
      %v850 = vunpack.c.l.b16 %v190
      %v851 = vunpack.c.l.b16 %v191
      %v852 = vunpack.c.l.b16 %v192
      %v853 = vunpack.c.l.b16 %v193
      %v854 = vunpack.c.l.b16 %v194
      %v855 = vunpack.c.l.b16 %v195
      %v856 = vunpack.c.l.b16 %v196
      %v857 = vunpack.c.l.b16 %v197
      %v858 = vunpack.c.l.b16 %v198
      %v859 = vpack.c.b16 %v828, %v827
      %v860 = vpack.c.b16 %v830, %v829
      %v861 = vpack.c.b16 %v832, %v831
      %v862 = vpack.c.b16 %v834, %v833
      %v863 = vpack.c.b16 %v836, %v835
      %v864 = vpack.c.b16 %v838, %v837
      %v865 = vpack.c.b16 %v840, %v839
      %v866 = vpack.c.b16 %v842, %v841
      %v867 = vpack.c.b16 %v844, %v843
      %v868 = vpack.c.b16 %v846, %v845
      %v869 = vpack.c.b16 %v848, %v847
      %v870 = vpack.c.b16 %v850, %v849
      %v871 = vpack.c.b16 %v852, %v851
      %v872 = vpack.c.b16 %v854, %v853
      %v873 = vpack.c.b16 %v856, %v855
      %v874 = vpack.c.b16 %v858, %v857
      %v876 = vsel %vm653, %v859, 0
      %v879 = vsel %vm653, %v860, 0
      %v882 = vsel %vm653, %v861, 0
      %v885 = vsel %vm653, %v862, 0
      %v888 = vsel %vm653, %v863, 0
      %v891 = vsel %vm653, %v864, 0
      %v894 = vsel %vm653, %v865, 0
      %v897 = vsel %vm653, %v866, 0
      %v900 = vsel %vm653, %v867, 0
      %v903 = vsel %vm653, %v868, 0
      %v906 = vsel %vm653, %v869, 0
      %v909 = vsel %vm653, %v870, 0
      %v912 = vsel %vm653, %v871, 0
      %v915 = vsel %vm653, %v872, 0
      %v918 = vsel %vm653, %v873, 0
      %v921 = vsel %vm653, %v874, 0
      %v924 = vsel %vm702, %v199, 0
      %926 = vmatpush.bf16.msra.mxu0 0
      %927 = vmatpush.bf16.msra.mxu0 0
      %928 = vmatpush.bf16.msra.mxu0 0
      %929 = vmatpush.bf16.msra.mxu0 0
      %930 = vmatpush.bf16.msra.mxu0 0
      %931 = vmatpush.bf16.msra.mxu0 0
      %932 = vmatpush.bf16.msra.mxu0 0
      %933 = vmatpush.bf16.msra.mxu0 %v924
      %934 = vmatmul.bf16.gmra.mxu0 %v876
      %v935 = vpop.f32.mrf.mxu0
      %v936 = vadd.f32 %v716, %v935
      %v937 = vpop.f32.mrf.mxu0
      %v938 = vadd.f32 %v718, %v937
      %939 = vmatmul.bf16.gmra.mxu0 %v879
      %v940 = vpop.f32.mrf.mxu0
      %v941 = vadd.f32 %v721, %v940
      %v942 = vpop.f32.mrf.mxu0
      %v943 = vadd.f32 %v723, %v942
      %944 = vmatmul.bf16.gmra.mxu0 %v882
      %v945 = vpop.f32.mrf.mxu0
      %v946 = vadd.f32 %v726, %v945
      %v947 = vpop.f32.mrf.mxu0
      %v948 = vadd.f32 %v728, %v947
      %949 = vmatmul.bf16.gmra.mxu0 %v885
      %v950 = vpop.f32.mrf.mxu0
      %v951 = vadd.f32 %v731, %v950
      %v952 = vpop.f32.mrf.mxu0
      %v953 = vadd.f32 %v733, %v952
      %954 = vmatmul.bf16.gmra.mxu0 %v888
      %v955 = vpop.f32.mrf.mxu0
      %v956 = vadd.f32 %v736, %v955
      %v957 = vpop.f32.mrf.mxu0
      %v958 = vadd.f32 %v738, %v957
      %959 = vmatmul.bf16.gmra.mxu0 %v891
      %v960 = vpop.f32.mrf.mxu0
      %v961 = vadd.f32 %v741, %v960
      %v962 = vpop.f32.mrf.mxu0
      %v963 = vadd.f32 %v743, %v962
      %964 = vmatmul.bf16.gmra.mxu0 %v894
      %v965 = vpop.f32.mrf.mxu0
      %v966 = vadd.f32 %v746, %v965
      %v967 = vpop.f32.mrf.mxu0
      %v968 = vadd.f32 %v748, %v967
      %969 = vmatmul.bf16.gmra.mxu0 %v897
      %v970 = vpop.f32.mrf.mxu0
      %v971 = vadd.f32 %v751, %v970
      %v972 = vpop.f32.mrf.mxu0
      %v973 = vadd.f32 %v753, %v972
      %974 = vmatmul.bf16.gmra.mxu0 %v900
      %v975 = vpop.f32.mrf.mxu0
      %v976 = vadd.f32 %v756, %v975
      %v977 = vpop.f32.mrf.mxu0
      %v978 = vadd.f32 %v758, %v977
      %979 = vmatmul.bf16.gmra.mxu0 %v903
      %v980 = vpop.f32.mrf.mxu0
      %v981 = vadd.f32 %v761, %v980
      %v982 = vpop.f32.mrf.mxu0
      %v983 = vadd.f32 %v763, %v982
      %984 = vmatmul.bf16.gmra.mxu0 %v906
      %v985 = vpop.f32.mrf.mxu0
      %v986 = vadd.f32 %v766, %v985
      %v987 = vpop.f32.mrf.mxu0
      %v988 = vadd.f32 %v768, %v987
      %989 = vmatmul.bf16.gmra.mxu0 %v909
      %v990 = vpop.f32.mrf.mxu0
      %v991 = vadd.f32 %v771, %v990
      %v992 = vpop.f32.mrf.mxu0
      %v993 = vadd.f32 %v773, %v992
      %994 = vmatmul.bf16.gmra.mxu0 %v912
      %v995 = vpop.f32.mrf.mxu0
      %v996 = vadd.f32 %v776, %v995
      %v997 = vpop.f32.mrf.mxu0
      %v998 = vadd.f32 %v778, %v997
      %999 = vmatmul.bf16.gmra.mxu0 %v915
      %v1000 = vpop.f32.mrf.mxu0
      %v1001 = vadd.f32 %v781, %v1000
      %v1002 = vpop.f32.mrf.mxu0
      %v1003 = vadd.f32 %v783, %v1002
      %1004 = vmatmul.bf16.gmra.mxu0 %v918
      %v1005 = vpop.f32.mrf.mxu0
      %v1006 = vadd.f32 %v786, %v1005
      %v1007 = vpop.f32.mrf.mxu0
      %v1008 = vadd.f32 %v788, %v1007
      %1009 = vmatmul.bf16.gmra.mxu0 %v921
      %v1010 = vpop.f32.mrf.mxu0
      %v1011 = vadd.f32 %v791, %v1010
      %v1012 = vpop.f32.mrf.mxu0
      %v1013 = vadd.f32 %v793, %v1012
      %1014 = vdwg.mxu0
      %v1015 = vld [vmem:[%s166] sm:$0xe]
      %v1016 = vld [vmem:[%s166 + $0xc] sm:$0xe]
      %v1017 = vld [vmem:[%s166 + $0x18] sm:$0xe]
      %v1018 = vld [vmem:[%s166 + $0x24] sm:$0xe]
      %v1019 = vld [vmem:[%s166 + $0x30] sm:$0xe]
      %v1020 = vld [vmem:[%s166 + $0x3c] sm:$0xe]
      %v1021 = vld [vmem:[%s166 + $0x48] sm:$0xe]
      %v1022 = vld [vmem:[%s166 + $0x54] sm:$0xe]
      %v1023 = vld [vmem:[%s166 + $0x60] sm:$0xe]
      %v1024 = vld [vmem:[%s166 + $0x6c] sm:$0xe]
      %v1025 = vld [vmem:[%s166 + $0x78] sm:$0xe]
      %v1026 = vld [vmem:[%s166 + $0x84] sm:$0xe]
      %v1027 = vld [vmem:[%s166 + $0x90] sm:$0xe]
      %v1028 = vld [vmem:[%s166 + $0x9c] sm:$0xe]
      %v1029 = vld [vmem:[%s166 + $0xa8] sm:$0xe]
      %v1030 = vld [vmem:[%s166 + $0xb4] sm:$0xe]
      %vm1063 = vcmask 1042432
      %vm1064 = vcmask 1046532
      %vm1065 = vmor %vm1063, %vm1064
      %v1066 = vrot.slane %v1015, 5
      %v1067 = vrot.slane %v1066, 4
      %v1068 = vrot.slane %v168, 5
      %v1069 = vsel %vm1065, %v1067, %v1068
      %v1070 = vrot.slane %v1068, 4
      %v1071 = vrot.slane %v200, 5
      %v1072 = vsel %vm1065, %v1070, %v1071
      %v1073 = vrot.slane %v1016, 5
      %v1074 = vrot.slane %v1073, 4
      %v1075 = vrot.slane %v170, 5
      %v1076 = vsel %vm1065, %v1074, %v1075
      %v1077 = vrot.slane %v1075, 4
      %v1078 = vrot.slane %v201, 5
      %v1079 = vsel %vm1065, %v1077, %v1078
      %v1080 = vrot.slane %v1017, 5
      %v1081 = vrot.slane %v1080, 4
      %v1082 = vrot.slane %v172, 5
      %v1083 = vsel %vm1065, %v1081, %v1082
      %v1084 = vrot.slane %v1082, 4
      %v1085 = vrot.slane %v202, 5
      %v1086 = vsel %vm1065, %v1084, %v1085
      %v1087 = vrot.slane %v1018, 5
      %v1088 = vrot.slane %v1087, 4
      %v1089 = vrot.slane %v174, 5
      %v1090 = vsel %vm1065, %v1088, %v1089
      %v1091 = vrot.slane %v1089, 4
      %v1092 = vrot.slane %v203, 5
      %v1093 = vsel %vm1065, %v1091, %v1092
      %v1094 = vrot.slane %v1019, 5
      %v1095 = vrot.slane %v1094, 4
      %v1096 = vrot.slane %v176, 5
      %v1097 = vsel %vm1065, %v1095, %v1096
      %v1098 = vrot.slane %v1096, 4
      %v1099 = vrot.slane %v204, 5
      %v1100 = vsel %vm1065, %v1098, %v1099
      %v1101 = vrot.slane %v1020, 5
      %v1102 = vrot.slane %v1101, 4
      %v1103 = vrot.slane %v178, 5
      %v1104 = vsel %vm1065, %v1102, %v1103
      %v1105 = vrot.slane %v1103, 4
      %v1106 = vrot.slane %v205, 5
      %v1107 = vsel %vm1065, %v1105, %v1106
      %v1108 = vrot.slane %v1021, 5
      %v1109 = vrot.slane %v1108, 4
      %v1110 = vrot.slane %v180, 5
      %v1111 = vsel %vm1065, %v1109, %v1110
      %v1112 = vrot.slane %v1110, 4
      %v1113 = vrot.slane %v206, 5
      %v1114 = vsel %vm1065, %v1112, %v1113
      %v1115 = vrot.slane %v1022, 5
      %v1116 = vrot.slane %v1115, 4
      %v1117 = vrot.slane %v182, 5
      %v1118 = vsel %vm1065, %v1116, %v1117
      %v1119 = vrot.slane %v1117, 4
      %v1120 = vrot.slane %v207, 5
      %v1121 = vsel %vm1065, %v1119, %v1120
      %v1122 = vrot.slane %v1023, 5
      %v1123 = vrot.slane %v1122, 4
      %v1124 = vrot.slane %v184, 5
      %v1125 = vsel %vm1065, %v1123, %v1124
      %v1126 = vrot.slane %v1124, 4
      %v1127 = vrot.slane %v208, 5
      %v1128 = vsel %vm1065, %v1126, %v1127
      %v1129 = vrot.slane %v1024, 5
      %v1130 = vrot.slane %v1129, 4
      %v1131 = vrot.slane %v186, 5
      %v1132 = vsel %vm1065, %v1130, %v1131
      %v1133 = vrot.slane %v1131, 4
      %v1134 = vrot.slane %v209, 5
      %v1135 = vsel %vm1065, %v1133, %v1134
      %v1136 = vrot.slane %v1025, 5
      %v1137 = vrot.slane %v1136, 4
      %v1138 = vrot.slane %v188, 5
      %v1139 = vsel %vm1065, %v1137, %v1138
      %v1140 = vrot.slane %v1138, 4
      %v1141 = vrot.slane %v210, 5
      %v1142 = vsel %vm1065, %v1140, %v1141
      %v1143 = vrot.slane %v1026, 5
      %v1144 = vrot.slane %v1143, 4
      %v1145 = vrot.slane %v190, 5
      %v1146 = vsel %vm1065, %v1144, %v1145
      %v1147 = vrot.slane %v1145, 4
      %v1148 = vrot.slane %v211, 5
      %v1149 = vsel %vm1065, %v1147, %v1148
      %v1150 = vrot.slane %v1027, 5
      %v1151 = vrot.slane %v1150, 4
      %v1152 = vrot.slane %v192, 5
      %v1153 = vsel %vm1065, %v1151, %v1152
      %v1154 = vrot.slane %v1152, 4
      %v1155 = vrot.slane %v212, 5
      %v1156 = vsel %vm1065, %v1154, %v1155
      %v1157 = vrot.slane %v1028, 5
      %v1158 = vrot.slane %v1157, 4
      %v1159 = vrot.slane %v194, 5
      %v1160 = vsel %vm1065, %v1158, %v1159
      %v1161 = vrot.slane %v1159, 4
      %v1162 = vrot.slane %v213, 5
      %v1163 = vsel %vm1065, %v1161, %v1162
      %v1164 = vrot.slane %v1029, 5
      %v1165 = vrot.slane %v1164, 4
      %v1166 = vrot.slane %v196, 5
      %v1167 = vsel %vm1065, %v1165, %v1166
      %v1168 = vrot.slane %v1166, 4
      %v1169 = vrot.slane %v214, 5
      %v1170 = vsel %vm1065, %v1168, %v1169
      %v1171 = vrot.slane %v1030, 5
      %v1172 = vrot.slane %v1171, 4
      %v1173 = vrot.slane %v198, 5
      %v1174 = vsel %vm1065, %v1172, %v1173
      %v1175 = vrot.slane %v1173, 4
      %v1176 = vrot.slane %v215, 5
      %v1177 = vsel %vm1065, %v1175, %v1176
      %s1178 = scalar_lea.vmem %s1, 8
      %v1179 = vld [vmem:[%s1178] sm:$0xf]
      %v1180 = vunpack.c.l.b16 %v1069
      %v1181 = vunpack.c.l.b16 %v1072
      %v1182 = vunpack.c.l.b16 %v1076
      %v1183 = vunpack.c.l.b16 %v1079
      %v1184 = vunpack.c.l.b16 %v1083
      %v1185 = vunpack.c.l.b16 %v1086
      %v1186 = vunpack.c.l.b16 %v1090
      %v1187 = vunpack.c.l.b16 %v1093
      %v1188 = vunpack.c.l.b16 %v1097
      %v1189 = vunpack.c.l.b16 %v1100
      %v1190 = vunpack.c.l.b16 %v1104
      %v1191 = vunpack.c.l.b16 %v1107
      %v1192 = vunpack.c.l.b16 %v1111
      %v1193 = vunpack.c.l.b16 %v1114
      %v1194 = vunpack.c.l.b16 %v1118
      %v1195 = vunpack.c.l.b16 %v1121
      %v1196 = vunpack.c.l.b16 %v1125
      %v1197 = vunpack.c.l.b16 %v1128
      %v1198 = vunpack.c.l.b16 %v1132
      %v1199 = vunpack.c.l.b16 %v1135
      %v1200 = vunpack.c.l.b16 %v1139
      %v1201 = vunpack.c.l.b16 %v1142
      %v1202 = vunpack.c.l.b16 %v1146
      %v1203 = vunpack.c.l.b16 %v1149
      %v1204 = vunpack.c.l.b16 %v1153
      %v1205 = vunpack.c.l.b16 %v1156
      %v1206 = vunpack.c.l.b16 %v1160
      %v1207 = vunpack.c.l.b16 %v1163
      %v1208 = vunpack.c.l.b16 %v1167
      %v1209 = vunpack.c.l.b16 %v1170
      %v1210 = vunpack.c.l.b16 %v1174
      %v1211 = vunpack.c.l.b16 %v1177
      %v1212 = vpack.c.b16 %v1181, %v1180
      %v1213 = vpack.c.b16 %v1183, %v1182
      %v1214 = vpack.c.b16 %v1185, %v1184
      %v1215 = vpack.c.b16 %v1187, %v1186
      %v1216 = vpack.c.b16 %v1189, %v1188
      %v1217 = vpack.c.b16 %v1191, %v1190
      %v1218 = vpack.c.b16 %v1193, %v1192
      %v1219 = vpack.c.b16 %v1195, %v1194
      %v1220 = vpack.c.b16 %v1197, %v1196
      %v1221 = vpack.c.b16 %v1199, %v1198
      %v1222 = vpack.c.b16 %v1201, %v1200
      %v1223 = vpack.c.b16 %v1203, %v1202
      %v1224 = vpack.c.b16 %v1205, %v1204
      %v1225 = vpack.c.b16 %v1207, %v1206
      %v1226 = vpack.c.b16 %v1209, %v1208
      %v1227 = vpack.c.b16 %v1211, %v1210
      %v1229 = vsel %vm653, %v1212, 0
      %v1232 = vsel %vm653, %v1213, 0
      %v1235 = vsel %vm653, %v1214, 0
      %v1238 = vsel %vm653, %v1215, 0
      %v1241 = vsel %vm653, %v1216, 0
      %v1244 = vsel %vm653, %v1217, 0
      %v1247 = vsel %vm653, %v1218, 0
      %v1250 = vsel %vm653, %v1219, 0
      %v1253 = vsel %vm653, %v1220, 0
      %v1256 = vsel %vm653, %v1221, 0
      %v1259 = vsel %vm653, %v1222, 0
      %v1262 = vsel %vm653, %v1223, 0
      %v1265 = vsel %vm653, %v1224, 0
      %v1268 = vsel %vm653, %v1225, 0
      %v1271 = vsel %vm653, %v1226, 0
      %v1274 = vsel %vm653, %v1227, 0
      %v1277 = vsel %vm702, %v1179, 0
      %1279 = vmatpush.bf16.msra.mxu0 0
      %1280 = vmatpush.bf16.msra.mxu0 0
      %1281 = vmatpush.bf16.msra.mxu0 0
      %1282 = vmatpush.bf16.msra.mxu0 0
      %1283 = vmatpush.bf16.msra.mxu0 0
      %1284 = vmatpush.bf16.msra.mxu0 0
      %1285 = vmatpush.bf16.msra.mxu0 0
      %1286 = vmatpush.bf16.msra.mxu0 %v1277
      %1287 = vmatmul.bf16.gmra.mxu0 %v1229
      %v1288 = vpop.f32.mrf.mxu0
      %v1289 = vadd.f32 0.0, %v1288
      %v1290 = vpop.f32.mrf.mxu0
      %v1291 = vadd.f32 0.0, %v1290
      %1292 = vmatmul.bf16.gmra.mxu0 %v1232
      %v1293 = vpop.f32.mrf.mxu0
      %v1294 = vadd.f32 0.0, %v1293
      %v1295 = vpop.f32.mrf.mxu0
      %v1296 = vadd.f32 0.0, %v1295
      %1297 = vmatmul.bf16.gmra.mxu0 %v1235
      %v1298 = vpop.f32.mrf.mxu0
      %v1299 = vadd.f32 0.0, %v1298
      %v1300 = vpop.f32.mrf.mxu0
      %v1301 = vadd.f32 0.0, %v1300
      %1302 = vmatmul.bf16.gmra.mxu0 %v1238
      %v1303 = vpop.f32.mrf.mxu0
      %v1304 = vadd.f32 0.0, %v1303
      %v1305 = vpop.f32.mrf.mxu0
      %v1306 = vadd.f32 0.0, %v1305
      %1307 = vmatmul.bf16.gmra.mxu0 %v1241
      %v1308 = vpop.f32.mrf.mxu0
      %v1309 = vadd.f32 0.0, %v1308
      %v1310 = vpop.f32.mrf.mxu0
      %v1311 = vadd.f32 0.0, %v1310
      %1312 = vmatmul.bf16.gmra.mxu0 %v1244
      %v1313 = vpop.f32.mrf.mxu0
      %v1314 = vadd.f32 0.0, %v1313
      %v1315 = vpop.f32.mrf.mxu0
      %v1316 = vadd.f32 0.0, %v1315
      %1317 = vmatmul.bf16.gmra.mxu0 %v1247
      %v1318 = vpop.f32.mrf.mxu0
      %v1319 = vadd.f32 0.0, %v1318
      %v1320 = vpop.f32.mrf.mxu0
      %v1321 = vadd.f32 0.0, %v1320
      %1322 = vmatmul.bf16.gmra.mxu0 %v1250
      %v1323 = vpop.f32.mrf.mxu0
      %v1324 = vadd.f32 0.0, %v1323
      %v1325 = vpop.f32.mrf.mxu0
      %v1326 = vadd.f32 0.0, %v1325
      %1327 = vmatmul.bf16.gmra.mxu0 %v1253
      %v1328 = vpop.f32.mrf.mxu0
      %v1329 = vadd.f32 0.0, %v1328
      %v1330 = vpop.f32.mrf.mxu0
      %v1331 = vadd.f32 0.0, %v1330
      %1332 = vmatmul.bf16.gmra.mxu0 %v1256
      %v1333 = vpop.f32.mrf.mxu0
      %v1334 = vadd.f32 0.0, %v1333
      %v1335 = vpop.f32.mrf.mxu0
      %v1336 = vadd.f32 0.0, %v1335
      %1337 = vmatmul.bf16.gmra.mxu0 %v1259
      %v1338 = vpop.f32.mrf.mxu0
      %v1339 = vadd.f32 0.0, %v1338
      %v1340 = vpop.f32.mrf.mxu0
      %v1341 = vadd.f32 0.0, %v1340
      %1342 = vmatmul.bf16.gmra.mxu0 %v1262
      %v1343 = vpop.f32.mrf.mxu0
      %v1344 = vadd.f32 0.0, %v1343
      %v1345 = vpop.f32.mrf.mxu0
      %v1346 = vadd.f32 0.0, %v1345
      %1347 = vmatmul.bf16.gmra.mxu0 %v1265
      %v1348 = vpop.f32.mrf.mxu0
      %v1349 = vadd.f32 0.0, %v1348
      %v1350 = vpop.f32.mrf.mxu0
      %v1351 = vadd.f32 0.0, %v1350
      %1352 = vmatmul.bf16.gmra.mxu0 %v1268
      %v1353 = vpop.f32.mrf.mxu0
      %v1354 = vadd.f32 0.0, %v1353
      %v1355 = vpop.f32.mrf.mxu0
      %v1356 = vadd.f32 0.0, %v1355
      %1357 = vmatmul.bf16.gmra.mxu0 %v1271
      %v1358 = vpop.f32.mrf.mxu0
      %v1359 = vadd.f32 0.0, %v1358
      %v1360 = vpop.f32.mrf.mxu0
      %v1361 = vadd.f32 0.0, %v1360
      %1362 = vmatmul.bf16.gmra.mxu0 %v1274
      %v1363 = vpop.f32.mrf.mxu0
      %v1364 = vadd.f32 0.0, %v1363
      %v1365 = vpop.f32.mrf.mxu0
      %v1366 = vadd.f32 0.0, %v1365
      %1367 = vdwg.mxu0
      %v1368 = vadd.f32 %v936, %v1289
      %v1369 = vadd.f32 %v938, %v1291
      %v1370 = vadd.f32 %v941, %v1294
      %v1371 = vadd.f32 %v943, %v1296
      %v1372 = vadd.f32 %v946, %v1299
      %v1373 = vadd.f32 %v948, %v1301
      %v1374 = vadd.f32 %v951, %v1304
      %v1375 = vadd.f32 %v953, %v1306
      %v1376 = vadd.f32 %v956, %v1309
      %v1377 = vadd.f32 %v958, %v1311
      %v1378 = vadd.f32 %v961, %v1314
      %v1379 = vadd.f32 %v963, %v1316
      %v1380 = vadd.f32 %v966, %v1319
      %v1381 = vadd.f32 %v968, %v1321
      %v1382 = vadd.f32 %v971, %v1324
      %v1383 = vadd.f32 %v973, %v1326
      %v1384 = vadd.f32 %v976, %v1329
      %v1385 = vadd.f32 %v978, %v1331
      %v1386 = vadd.f32 %v981, %v1334
      %v1387 = vadd.f32 %v983, %v1336
      %v1388 = vadd.f32 %v986, %v1339
      %v1389 = vadd.f32 %v988, %v1341
      %v1390 = vadd.f32 %v991, %v1344
      %v1391 = vadd.f32 %v993, %v1346
      %v1392 = vadd.f32 %v996, %v1349
      %v1393 = vadd.f32 %v998, %v1351
      %v1394 = vadd.f32 %v1001, %v1354
      %v1395 = vadd.f32 %v1003, %v1356
      %v1396 = vadd.f32 %v1006, %v1359
      %v1397 = vadd.f32 %v1008, %v1361
      %v1398 = vadd.f32 %v1011, %v1364
      %v1399 = vadd.f32 %v1013, %v1366
      %v1400 = vld [vmem:[%s166 + $0x8] sm:$0x3]
      %v1401 = vld [vmem:[%s166 + $0x14] sm:$0x3]
      %v1402 = vld [vmem:[%s166 + $0x20] sm:$0x3]
      %v1403 = vld [vmem:[%s166 + $0x2c] sm:$0x3]
      %v1404 = vld [vmem:[%s166 + $0x38] sm:$0x3]
      %v1405 = vld [vmem:[%s166 + $0x44] sm:$0x3]
      %v1406 = vld [vmem:[%s166 + $0x50] sm:$0x3]
      %v1407 = vld [vmem:[%s166 + $0x5c] sm:$0x3]
      %v1408 = vld [vmem:[%s166 + $0x68] sm:$0x3]
      %v1409 = vld [vmem:[%s166 + $0x74] sm:$0x3]
      %v1410 = vld [vmem:[%s166 + $0x80] sm:$0x3]
      %v1411 = vld [vmem:[%s166 + $0x8c] sm:$0x3]
      %v1412 = vld [vmem:[%s166 + $0x98] sm:$0x3]
      %v1413 = vld [vmem:[%s166 + $0xa4] sm:$0x3]
      %v1414 = vld [vmem:[%s166 + $0xb0] sm:$0x3]
      %v1415 = vld [vmem:[%s166 + $0xbc] sm:$0x3]
      %vm1416 = vsmask.f32 2304
      %vm1417 = vsmask.f32 6416
      %vm1418 = vmor %vm1416, %vm1417
      %v1420 = vshrl.u32 %v1015, 16
      %v1422 = vrot.slane %v1420, 5
      %v1423 = vshll.u32 %v1015, 16
      %v1425 = vrot.slane %v1423, 6
      %v1426 = vor.u32 %v1422, %v1425
      %v1427 = vrot.slane %v1426, 4
      %v1428 = vrot.slane %v233, 5
      %v1429 = vrot.slane %v229, 6
      %v1430 = vor.u32 %v1428, %v1429
      %v1431 = vsel %vm1418, %v1427, %v1430
      %v1432 = vrot.slane %v1430, 4
      %v1434 = vshrl.u32 %v1400, 16
      %v1436 = vrot.slane %v1434, 5
      %v1437 = vshll.u32 %v1400, 16
      %v1439 = vrot.slane %v1437, 6
      %v1440 = vor.u32 %v1436, %v1439
      %v1441 = vsel %vm1418, %v1432, %v1440
      %v1443 = vshrl.u32 %v1016, 16
      %v1445 = vrot.slane %v1443, 5
      %v1446 = vshll.u32 %v1016, 16
      %v1448 = vrot.slane %v1446, 6
      %v1449 = vor.u32 %v1445, %v1448
      %v1450 = vrot.slane %v1449, 4
      %v1451 = vrot.slane %v257, 5
      %v1452 = vrot.slane %v253, 6
      %v1453 = vor.u32 %v1451, %v1452
      %v1454 = vsel %vm1418, %v1450, %v1453
      %v1455 = vrot.slane %v1453, 4
      %v1457 = vshrl.u32 %v1401, 16
      %v1459 = vrot.slane %v1457, 5
      %v1460 = vshll.u32 %v1401, 16
      %v1462 = vrot.slane %v1460, 6
      %v1463 = vor.u32 %v1459, %v1462
      %v1464 = vsel %vm1418, %v1455, %v1463
      %v1466 = vshrl.u32 %v1017, 16
      %v1468 = vrot.slane %v1466, 5
      %v1469 = vshll.u32 %v1017, 16
      %v1471 = vrot.slane %v1469, 6
      %v1472 = vor.u32 %v1468, %v1471
      %v1473 = vrot.slane %v1472, 4
      %v1474 = vrot.slane %v281, 5
      %v1475 = vrot.slane %v277, 6
      %v1476 = vor.u32 %v1474, %v1475
      %v1477 = vsel %vm1418, %v1473, %v1476
      %v1478 = vrot.slane %v1476, 4
      %v1480 = vshrl.u32 %v1402, 16
      %v1482 = vrot.slane %v1480, 5
      %v1483 = vshll.u32 %v1402, 16
      %v1485 = vrot.slane %v1483, 6
      %v1486 = vor.u32 %v1482, %v1485
      %v1487 = vsel %vm1418, %v1478, %v1486
      %v1489 = vshrl.u32 %v1018, 16
      %v1491 = vrot.slane %v1489, 5
      %v1492 = vshll.u32 %v1018, 16
      %v1494 = vrot.slane %v1492, 6
      %v1495 = vor.u32 %v1491, %v1494
      %v1496 = vrot.slane %v1495, 4
      %v1497 = vrot.slane %v305, 5
      %v1498 = vrot.slane %v301, 6
      %v1499 = vor.u32 %v1497, %v1498
      %v1500 = vsel %vm1418, %v1496, %v1499
      %v1501 = vrot.slane %v1499, 4
      %v1503 = vshrl.u32 %v1403, 16
      %v1505 = vrot.slane %v1503, 5
      %v1506 = vshll.u32 %v1403, 16
      %v1508 = vrot.slane %v1506, 6
      %v1509 = vor.u32 %v1505, %v1508
      %v1510 = vsel %vm1418, %v1501, %v1509
      %v1512 = vshrl.u32 %v1019, 16
      %v1514 = vrot.slane %v1512, 5
      %v1515 = vshll.u32 %v1019, 16
      %v1517 = vrot.slane %v1515, 6
      %v1518 = vor.u32 %v1514, %v1517
      %v1519 = vrot.slane %v1518, 4
      %v1520 = vrot.slane %v329, 5
      %v1521 = vrot.slane %v325, 6
      %v1522 = vor.u32 %v1520, %v1521
      %v1523 = vsel %vm1418, %v1519, %v1522
      %v1524 = vrot.slane %v1522, 4
      %v1526 = vshrl.u32 %v1404, 16
      %v1528 = vrot.slane %v1526, 5
      %v1529 = vshll.u32 %v1404, 16
      %v1531 = vrot.slane %v1529, 6
      %v1532 = vor.u32 %v1528, %v1531
      %v1533 = vsel %vm1418, %v1524, %v1532
      %v1535 = vshrl.u32 %v1020, 16
      %v1537 = vrot.slane %v1535, 5
      %v1538 = vshll.u32 %v1020, 16
      %v1540 = vrot.slane %v1538, 6
      %v1541 = vor.u32 %v1537, %v1540
      %v1542 = vrot.slane %v1541, 4
      %v1543 = vrot.slane %v353, 5
      %v1544 = vrot.slane %v349, 6
      %v1545 = vor.u32 %v1543, %v1544
      %v1546 = vsel %vm1418, %v1542, %v1545
      %v1547 = vrot.slane %v1545, 4
      %v1549 = vshrl.u32 %v1405, 16
      %v1551 = vrot.slane %v1549, 5
      %v1552 = vshll.u32 %v1405, 16
      %v1554 = vrot.slane %v1552, 6
      %v1555 = vor.u32 %v1551, %v1554
      %v1556 = vsel %vm1418, %v1547, %v1555
      %v1558 = vshrl.u32 %v1021, 16
      %v1560 = vrot.slane %v1558, 5
      %v1561 = vshll.u32 %v1021, 16
      %v1563 = vrot.slane %v1561, 6
      %v1564 = vor.u32 %v1560, %v1563
      %v1565 = vrot.slane %v1564, 4
      %v1566 = vrot.slane %v377, 5
      %v1567 = vrot.slane %v373, 6
      %v1568 = vor.u32 %v1566, %v1567
      %v1569 = vsel %vm1418, %v1565, %v1568
      %v1570 = vrot.slane %v1568, 4
      %v1572 = vshrl.u32 %v1406, 16
      %v1574 = vrot.slane %v1572, 5
      %v1575 = vshll.u32 %v1406, 16
      %v1577 = vrot.slane %v1575, 6
      %v1578 = vor.u32 %v1574, %v1577
      %v1579 = vsel %vm1418, %v1570, %v1578
      %v1581 = vshrl.u32 %v1022, 16
      %v1583 = vrot.slane %v1581, 5
      %v1584 = vshll.u32 %v1022, 16
      %v1586 = vrot.slane %v1584, 6
      %v1587 = vor.u32 %v1583, %v1586
      %v1588 = vrot.slane %v1587, 4
      %v1589 = vrot.slane %v401, 5
      %v1590 = vrot.slane %v397, 6
      %v1591 = vor.u32 %v1589, %v1590
      %v1592 = vsel %vm1418, %v1588, %v1591
      %v1593 = vrot.slane %v1591, 4
      %v1595 = vshrl.u32 %v1407, 16
      %v1597 = vrot.slane %v1595, 5
      %v1598 = vshll.u32 %v1407, 16
      %v1600 = vrot.slane %v1598, 6
      %v1601 = vor.u32 %v1597, %v1600
      %v1602 = vsel %vm1418, %v1593, %v1601
      %v1604 = vshrl.u32 %v1023, 16
      %v1606 = vrot.slane %v1604, 5
      %v1607 = vshll.u32 %v1023, 16
      %v1609 = vrot.slane %v1607, 6
      %v1610 = vor.u32 %v1606, %v1609
      %v1611 = vrot.slane %v1610, 4
      %v1612 = vrot.slane %v425, 5
      %v1613 = vrot.slane %v421, 6
      %v1614 = vor.u32 %v1612, %v1613
      %v1615 = vsel %vm1418, %v1611, %v1614
      %v1616 = vrot.slane %v1614, 4
      %v1618 = vshrl.u32 %v1408, 16
      %v1620 = vrot.slane %v1618, 5
      %v1621 = vshll.u32 %v1408, 16
      %v1623 = vrot.slane %v1621, 6
      %v1624 = vor.u32 %v1620, %v1623
      %v1625 = vsel %vm1418, %v1616, %v1624
      %v1627 = vshrl.u32 %v1024, 16
      %v1629 = vrot.slane %v1627, 5
      %v1630 = vshll.u32 %v1024, 16
      %v1632 = vrot.slane %v1630, 6
      %v1633 = vor.u32 %v1629, %v1632
      %v1634 = vrot.slane %v1633, 4
      %v1635 = vrot.slane %v449, 5
      %v1636 = vrot.slane %v445, 6
      %v1637 = vor.u32 %v1635, %v1636
      %v1638 = vsel %vm1418, %v1634, %v1637
      %v1639 = vrot.slane %v1637, 4
      %v1641 = vshrl.u32 %v1409, 16
      %v1643 = vrot.slane %v1641, 5
      %v1644 = vshll.u32 %v1409, 16
      %v1646 = vrot.slane %v1644, 6
      %v1647 = vor.u32 %v1643, %v1646
      %v1648 = vsel %vm1418, %v1639, %v1647
      %v1650 = vshrl.u32 %v1025, 16
      %v1652 = vrot.slane %v1650, 5
      %v1653 = vshll.u32 %v1025, 16
      %v1655 = vrot.slane %v1653, 6
      %v1656 = vor.u32 %v1652, %v1655
      %v1657 = vrot.slane %v1656, 4
      %v1658 = vrot.slane %v473, 5
      %v1659 = vrot.slane %v469, 6
      %v1660 = vor.u32 %v1658, %v1659
      %v1661 = vsel %vm1418, %v1657, %v1660
      %v1662 = vrot.slane %v1660, 4
      %v1664 = vshrl.u32 %v1410, 16
      %v1666 = vrot.slane %v1664, 5
      %v1667 = vshll.u32 %v1410, 16
      %v1669 = vrot.slane %v1667, 6
      %v1670 = vor.u32 %v1666, %v1669
      %v1671 = vsel %vm1418, %v1662, %v1670
      %v1673 = vshrl.u32 %v1026, 16
      %v1675 = vrot.slane %v1673, 5
      %v1676 = vshll.u32 %v1026, 16
      %v1678 = vrot.slane %v1676, 6
      %v1679 = vor.u32 %v1675, %v1678
      %v1680 = vrot.slane %v1679, 4
      %v1681 = vrot.slane %v497, 5
      %v1682 = vrot.slane %v493, 6
      %v1683 = vor.u32 %v1681, %v1682
      %v1684 = vsel %vm1418, %v1680, %v1683
      %v1685 = vrot.slane %v1683, 4
      %v1687 = vshrl.u32 %v1411, 16
      %v1689 = vrot.slane %v1687, 5
      %v1690 = vshll.u32 %v1411, 16
      %v1692 = vrot.slane %v1690, 6
      %v1693 = vor.u32 %v1689, %v1692
      %v1694 = vsel %vm1418, %v1685, %v1693
      %v1696 = vshrl.u32 %v1027, 16
      %v1698 = vrot.slane %v1696, 5
      %v1699 = vshll.u32 %v1027, 16
      %v1701 = vrot.slane %v1699, 6
      %v1702 = vor.u32 %v1698, %v1701
      %v1703 = vrot.slane %v1702, 4
      %v1704 = vrot.slane %v521, 5
      %v1705 = vrot.slane %v517, 6
      %v1706 = vor.u32 %v1704, %v1705
      %v1707 = vsel %vm1418, %v1703, %v1706
      %v1708 = vrot.slane %v1706, 4
      %v1710 = vshrl.u32 %v1412, 16
      %v1712 = vrot.slane %v1710, 5
      %v1713 = vshll.u32 %v1412, 16
      %v1715 = vrot.slane %v1713, 6
      %v1716 = vor.u32 %v1712, %v1715
      %v1717 = vsel %vm1418, %v1708, %v1716
      %v1719 = vshrl.u32 %v1028, 16
      %v1721 = vrot.slane %v1719, 5
      %v1722 = vshll.u32 %v1028, 16
      %v1724 = vrot.slane %v1722, 6
      %v1725 = vor.u32 %v1721, %v1724
      %v1726 = vrot.slane %v1725, 4
      %v1727 = vrot.slane %v545, 5
      %v1728 = vrot.slane %v541, 6
      %v1729 = vor.u32 %v1727, %v1728
      %v1730 = vsel %vm1418, %v1726, %v1729
      %v1731 = vrot.slane %v1729, 4
      %v1733 = vshrl.u32 %v1413, 16
      %v1735 = vrot.slane %v1733, 5
      %v1736 = vshll.u32 %v1413, 16
      %v1738 = vrot.slane %v1736, 6
      %v1739 = vor.u32 %v1735, %v1738
      %v1740 = vsel %vm1418, %v1731, %v1739
      %v1742 = vshrl.u32 %v1029, 16
      %v1744 = vrot.slane %v1742, 5
      %v1745 = vshll.u32 %v1029, 16
      %v1747 = vrot.slane %v1745, 6
      %v1748 = vor.u32 %v1744, %v1747
      %v1749 = vrot.slane %v1748, 4
      %v1750 = vrot.slane %v569, 5
      %v1751 = vrot.slane %v565, 6
      %v1752 = vor.u32 %v1750, %v1751
      %v1753 = vsel %vm1418, %v1749, %v1752
      %v1754 = vrot.slane %v1752, 4
      %v1756 = vshrl.u32 %v1414, 16
      %v1758 = vrot.slane %v1756, 5
      %v1759 = vshll.u32 %v1414, 16
      %v1761 = vrot.slane %v1759, 6
      %v1762 = vor.u32 %v1758, %v1761
      %v1763 = vsel %vm1418, %v1754, %v1762
      %v1765 = vshrl.u32 %v1030, 16
      %v1767 = vrot.slane %v1765, 5
      %v1768 = vshll.u32 %v1030, 16
      %v1770 = vrot.slane %v1768, 6
      %v1771 = vor.u32 %v1767, %v1770
      %v1772 = vrot.slane %v1771, 4
      %v1773 = vrot.slane %v593, 5
      %v1774 = vrot.slane %v589, 6
      %v1775 = vor.u32 %v1773, %v1774
      %v1776 = vsel %vm1418, %v1772, %v1775
      %v1777 = vrot.slane %v1775, 4
      %v1779 = vshrl.u32 %v1415, 16
      %v1781 = vrot.slane %v1779, 5
      %v1782 = vshll.u32 %v1415, 16
      %v1784 = vrot.slane %v1782, 6
      %v1785 = vor.u32 %v1781, %v1784
      %v1786 = vsel %vm1418, %v1777, %v1785
      %s1787 = scalar_lea.vmem %s1, 12
      %v1788 = vld [vmem:[%s1787] sm:$0xf]
      %v1789 = vunpack.c.l.b16 %v1431
      %v1790 = vunpack.c.l.b16 %v1441
      %v1791 = vunpack.c.l.b16 %v1454
      %v1792 = vunpack.c.l.b16 %v1464
      %v1793 = vunpack.c.l.b16 %v1477
      %v1794 = vunpack.c.l.b16 %v1487
      %v1795 = vunpack.c.l.b16 %v1500
      %v1796 = vunpack.c.l.b16 %v1510
      %v1797 = vunpack.c.l.b16 %v1523
      %v1798 = vunpack.c.l.b16 %v1533
      %v1799 = vunpack.c.l.b16 %v1546
      %v1800 = vunpack.c.l.b16 %v1556
      %v1801 = vunpack.c.l.b16 %v1569
      %v1802 = vunpack.c.l.b16 %v1579
      %v1803 = vunpack.c.l.b16 %v1592
      %v1804 = vunpack.c.l.b16 %v1602
      %v1805 = vunpack.c.l.b16 %v1615
      %v1806 = vunpack.c.l.b16 %v1625
      %v1807 = vunpack.c.l.b16 %v1638
      %v1808 = vunpack.c.l.b16 %v1648
      %v1809 = vunpack.c.l.b16 %v1661
      %v1810 = vunpack.c.l.b16 %v1671
      %v1811 = vunpack.c.l.b16 %v1684
      %v1812 = vunpack.c.l.b16 %v1694
      %v1813 = vunpack.c.l.b16 %v1707
      %v1814 = vunpack.c.l.b16 %v1717
      %v1815 = vunpack.c.l.b16 %v1730
      %v1816 = vunpack.c.l.b16 %v1740
      %v1817 = vunpack.c.l.b16 %v1753
      %v1818 = vunpack.c.l.b16 %v1763
      %v1819 = vunpack.c.l.b16 %v1776
      %v1820 = vunpack.c.l.b16 %v1786
      %v1821 = vpack.c.b16 %v1790, %v1789
      %v1822 = vpack.c.b16 %v1792, %v1791
      %v1823 = vpack.c.b16 %v1794, %v1793
      %v1824 = vpack.c.b16 %v1796, %v1795
      %v1825 = vpack.c.b16 %v1798, %v1797
      %v1826 = vpack.c.b16 %v1800, %v1799
      %v1827 = vpack.c.b16 %v1802, %v1801
      %v1828 = vpack.c.b16 %v1804, %v1803
      %v1829 = vpack.c.b16 %v1806, %v1805
      %v1830 = vpack.c.b16 %v1808, %v1807
      %v1831 = vpack.c.b16 %v1810, %v1809
      %v1832 = vpack.c.b16 %v1812, %v1811
      %v1833 = vpack.c.b16 %v1814, %v1813
      %v1834 = vpack.c.b16 %v1816, %v1815
      %v1835 = vpack.c.b16 %v1818, %v1817
      %v1836 = vpack.c.b16 %v1820, %v1819
      %v1838 = vsel %vm653, %v1821, 0
      %v1841 = vsel %vm653, %v1822, 0
      %v1844 = vsel %vm653, %v1823, 0
      %v1847 = vsel %vm653, %v1824, 0
      %v1850 = vsel %vm653, %v1825, 0
      %v1853 = vsel %vm653, %v1826, 0
      %v1856 = vsel %vm653, %v1827, 0
      %v1859 = vsel %vm653, %v1828, 0
      %v1862 = vsel %vm653, %v1829, 0
      %v1865 = vsel %vm653, %v1830, 0
      %v1868 = vsel %vm653, %v1831, 0
      %v1871 = vsel %vm653, %v1832, 0
      %v1874 = vsel %vm653, %v1833, 0
      %v1877 = vsel %vm653, %v1834, 0
      %v1880 = vsel %vm653, %v1835, 0
      %v1883 = vsel %vm653, %v1836, 0
      %v1886 = vsel %vm702, %v1788, 0
      %1888 = vmatpush.bf16.msra.mxu0 0
      %1889 = vmatpush.bf16.msra.mxu0 0
      %1890 = vmatpush.bf16.msra.mxu0 0
      %1891 = vmatpush.bf16.msra.mxu0 0
      %1892 = vmatpush.bf16.msra.mxu0 0
      %1893 = vmatpush.bf16.msra.mxu0 0
      %1894 = vmatpush.bf16.msra.mxu0 0
      %1895 = vmatpush.bf16.msra.mxu0 %v1886
      %1896 = vmatmul.bf16.gmra.mxu0 %v1838
      %v1897 = vpop.f32.mrf.mxu0
      %v1898 = vadd.f32 0.0, %v1897
      %v1899 = vpop.f32.mrf.mxu0
      %v1900 = vadd.f32 0.0, %v1899
      %1901 = vmatmul.bf16.gmra.mxu0 %v1841
      %v1902 = vpop.f32.mrf.mxu0
      %v1903 = vadd.f32 0.0, %v1902
      %v1904 = vpop.f32.mrf.mxu0
      %v1905 = vadd.f32 0.0, %v1904
      %1906 = vmatmul.bf16.gmra.mxu0 %v1844
      %v1907 = vpop.f32.mrf.mxu0
      %v1908 = vadd.f32 0.0, %v1907
      %v1909 = vpop.f32.mrf.mxu0
      %v1910 = vadd.f32 0.0, %v1909
      %1911 = vmatmul.bf16.gmra.mxu0 %v1847
      %v1912 = vpop.f32.mrf.mxu0
      %v1913 = vadd.f32 0.0, %v1912
      %v1914 = vpop.f32.mrf.mxu0
      %v1915 = vadd.f32 0.0, %v1914
      %1916 = vmatmul.bf16.gmra.mxu0 %v1850
      %v1917 = vpop.f32.mrf.mxu0
      %v1918 = vadd.f32 0.0, %v1917
      %v1919 = vpop.f32.mrf.mxu0
      %v1920 = vadd.f32 0.0, %v1919
      %1921 = vmatmul.bf16.gmra.mxu0 %v1853
      %v1922 = vpop.f32.mrf.mxu0
      %v1923 = vadd.f32 0.0, %v1922
      %v1924 = vpop.f32.mrf.mxu0
      %v1925 = vadd.f32 0.0, %v1924
      %1926 = vmatmul.bf16.gmra.mxu0 %v1856
      %v1927 = vpop.f32.mrf.mxu0
      %v1928 = vadd.f32 0.0, %v1927
      %v1929 = vpop.f32.mrf.mxu0
      %v1930 = vadd.f32 0.0, %v1929
      %1931 = vmatmul.bf16.gmra.mxu0 %v1859
      %v1932 = vpop.f32.mrf.mxu0
      %v1933 = vadd.f32 0.0, %v1932
      %v1934 = vpop.f32.mrf.mxu0
      %v1935 = vadd.f32 0.0, %v1934
      %1936 = vmatmul.bf16.gmra.mxu0 %v1862
      %v1937 = vpop.f32.mrf.mxu0
      %v1938 = vadd.f32 0.0, %v1937
      %v1939 = vpop.f32.mrf.mxu0
      %v1940 = vadd.f32 0.0, %v1939
      %1941 = vmatmul.bf16.gmra.mxu0 %v1865
      %v1942 = vpop.f32.mrf.mxu0
      %v1943 = vadd.f32 0.0, %v1942
      %v1944 = vpop.f32.mrf.mxu0
      %v1945 = vadd.f32 0.0, %v1944
      %1946 = vmatmul.bf16.gmra.mxu0 %v1868
      %v1947 = vpop.f32.mrf.mxu0
      %v1948 = vadd.f32 0.0, %v1947
      %v1949 = vpop.f32.mrf.mxu0
      %v1950 = vadd.f32 0.0, %v1949
      %1951 = vmatmul.bf16.gmra.mxu0 %v1871
      %v1952 = vpop.f32.mrf.mxu0
      %v1953 = vadd.f32 0.0, %v1952
      %v1954 = vpop.f32.mrf.mxu0
      %v1955 = vadd.f32 0.0, %v1954
      %1956 = vmatmul.bf16.gmra.mxu0 %v1874
      %v1957 = vpop.f32.mrf.mxu0
      %v1958 = vadd.f32 0.0, %v1957
      %v1959 = vpop.f32.mrf.mxu0
      %v1960 = vadd.f32 0.0, %v1959
      %1961 = vmatmul.bf16.gmra.mxu0 %v1877
      %v1962 = vpop.f32.mrf.mxu0
      %v1963 = vadd.f32 0.0, %v1962
      %v1964 = vpop.f32.mrf.mxu0
      %v1965 = vadd.f32 0.0, %v1964
      %1966 = vmatmul.bf16.gmra.mxu0 %v1880
      %v1967 = vpop.f32.mrf.mxu0
      %v1968 = vadd.f32 0.0, %v1967
      %v1969 = vpop.f32.mrf.mxu0
      %v1970 = vadd.f32 0.0, %v1969
      %1971 = vmatmul.bf16.gmra.mxu0 %v1883
      %v1972 = vpop.f32.mrf.mxu0
      %v1973 = vadd.f32 0.0, %v1972
      %v1974 = vpop.f32.mrf.mxu0
      %v1975 = vadd.f32 0.0, %v1974
      %1976 = vdwg.mxu0
      %v1977 = vadd.f32 %v1368, %v1898
      %v1978 = vadd.f32 %v1369, %v1900
      %v1979 = vadd.f32 %v1370, %v1903
      %v1980 = vadd.f32 %v1371, %v1905
      %v1981 = vadd.f32 %v1372, %v1908
      %v1982 = vadd.f32 %v1373, %v1910
      %v1983 = vadd.f32 %v1374, %v1913
      %v1984 = vadd.f32 %v1375, %v1915
      %v1985 = vadd.f32 %v1376, %v1918
      %v1986 = vadd.f32 %v1377, %v1920
      %v1987 = vadd.f32 %v1378, %v1923
      %v1988 = vadd.f32 %v1379, %v1925
      %v1989 = vadd.f32 %v1380, %v1928
      %v1990 = vadd.f32 %v1381, %v1930
      %v1991 = vadd.f32 %v1382, %v1933
      %v1992 = vadd.f32 %v1383, %v1935
      %v1993 = vadd.f32 %v1384, %v1938
      %v1994 = vadd.f32 %v1385, %v1940
      %v1995 = vadd.f32 %v1386, %v1943
      %v1996 = vadd.f32 %v1387, %v1945
      %v1997 = vadd.f32 %v1388, %v1948
      %v1998 = vadd.f32 %v1389, %v1950
      %v1999 = vadd.f32 %v1390, %v1953
      %v2000 = vadd.f32 %v1391, %v1955
      %v2001 = vadd.f32 %v1392, %v1958
      %v2002 = vadd.f32 %v1393, %v1960
      %v2003 = vadd.f32 %v1394, %v1963
      %v2004 = vadd.f32 %v1395, %v1965
      %v2005 = vadd.f32 %v1396, %v1968
      %v2006 = vadd.f32 %v1397, %v1970
      %v2007 = vadd.f32 %v1398, %v1973
      %v2008 = vadd.f32 %v1399, %v1975
      %s2009 = sadd.s32 %s163, 1
      %s2010 = smul.u32 %s2009, 3
      %s2011 = smul.addr %s2010, 4
      %s2012 = scalar_lea.vmem %s153, %s2011
      %v2013 = vld [vmem:[%s2012] sm:$0xf]
      %v2014 = vld [vmem:[%s2012 + $0x4] sm:$0xf]
      %v2015 = vld [vmem:[%s2012 + $0xc] sm:$0xf]
      %v2016 = vld [vmem:[%s2012 + $0x10] sm:$0xf]
      %v2017 = vld [vmem:[%s2012 + $0x18] sm:$0xf]
      %v2018 = vld [vmem:[%s2012 + $0x1c] sm:$0xf]
      %v2019 = vld [vmem:[%s2012 + $0x24] sm:$0xf]
      %v2020 = vld [vmem:[%s2012 + $0x28] sm:$0xf]
      %v2021 = vld [vmem:[%s2012 + $0x30] sm:$0xf]
      %v2022 = vld [vmem:[%s2012 + $0x34] sm:$0xf]
      %v2023 = vld [vmem:[%s2012 + $0x3c] sm:$0xf]
      %v2024 = vld [vmem:[%s2012 + $0x40] sm:$0xf]
      %v2025 = vld [vmem:[%s2012 + $0x48] sm:$0xf]
      %v2026 = vld [vmem:[%s2012 + $0x4c] sm:$0xf]
      %v2027 = vld [vmem:[%s2012 + $0x54] sm:$0xf]
      %v2028 = vld [vmem:[%s2012 + $0x58] sm:$0xf]
      %v2029 = vld [vmem:[%s2012 + $0x60] sm:$0xf]
      %v2030 = vld [vmem:[%s2012 + $0x64] sm:$0xf]
      %v2031 = vld [vmem:[%s2012 + $0x6c] sm:$0xf]
      %v2032 = vld [vmem:[%s2012 + $0x70] sm:$0xf]
      %v2033 = vld [vmem:[%s2012 + $0x78] sm:$0xf]
      %v2034 = vld [vmem:[%s2012 + $0x7c] sm:$0xf]
      %v2035 = vld [vmem:[%s2012 + $0x84] sm:$0xf]
      %v2036 = vld [vmem:[%s2012 + $0x88] sm:$0xf]
      %v2037 = vld [vmem:[%s2012 + $0x90] sm:$0xf]
      %v2038 = vld [vmem:[%s2012 + $0x94] sm:$0xf]
      %v2039 = vld [vmem:[%s2012 + $0x9c] sm:$0xf]
      %v2040 = vld [vmem:[%s2012 + $0xa0] sm:$0xf]
      %v2041 = vld [vmem:[%s2012 + $0xa8] sm:$0xf]
      %v2042 = vld [vmem:[%s2012 + $0xac] sm:$0xf]
      %v2043 = vld [vmem:[%s2012 + $0xb4] sm:$0xf]
      %v2044 = vld [vmem:[%s2012 + $0xb8] sm:$0xf]
      %s2045 = scalar_lea.vmem %s1, 16
      %v2046 = vld [vmem:[%s2045] sm:$0xf]
      %v2079 = vunpack.c.l.b16 %v2013
      %v2080 = vunpack.c.l.b16 %v2014
      %v2081 = vunpack.c.l.b16 %v2015
      %v2082 = vunpack.c.l.b16 %v2016
      %v2083 = vunpack.c.l.b16 %v2017
      %v2084 = vunpack.c.l.b16 %v2018
      %v2085 = vunpack.c.l.b16 %v2019
      %v2086 = vunpack.c.l.b16 %v2020
      %v2087 = vunpack.c.l.b16 %v2021
      %v2088 = vunpack.c.l.b16 %v2022
      %v2089 = vunpack.c.l.b16 %v2023
      %v2090 = vunpack.c.l.b16 %v2024
      %v2091 = vunpack.c.l.b16 %v2025
      %v2092 = vunpack.c.l.b16 %v2026
      %v2093 = vunpack.c.l.b16 %v2027
      %v2094 = vunpack.c.l.b16 %v2028
      %v2095 = vunpack.c.l.b16 %v2029
      %v2096 = vunpack.c.l.b16 %v2030
      %v2097 = vunpack.c.l.b16 %v2031
      %v2098 = vunpack.c.l.b16 %v2032
      %v2099 = vunpack.c.l.b16 %v2033
      %v2100 = vunpack.c.l.b16 %v2034
      %v2101 = vunpack.c.l.b16 %v2035
      %v2102 = vunpack.c.l.b16 %v2036
      %v2103 = vunpack.c.l.b16 %v2037
      %v2104 = vunpack.c.l.b16 %v2038
      %v2105 = vunpack.c.l.b16 %v2039
      %v2106 = vunpack.c.l.b16 %v2040
      %v2107 = vunpack.c.l.b16 %v2041
      %v2108 = vunpack.c.l.b16 %v2042
      %v2109 = vunpack.c.l.b16 %v2043
      %v2110 = vunpack.c.l.b16 %v2044
      %v2111 = vpack.c.b16 %v2080, %v2079
      %v2112 = vpack.c.b16 %v2082, %v2081
      %v2113 = vpack.c.b16 %v2084, %v2083
      %v2114 = vpack.c.b16 %v2086, %v2085
      %v2115 = vpack.c.b16 %v2088, %v2087
      %v2116 = vpack.c.b16 %v2090, %v2089
      %v2117 = vpack.c.b16 %v2092, %v2091
      %v2118 = vpack.c.b16 %v2094, %v2093
      %v2119 = vpack.c.b16 %v2096, %v2095
      %v2120 = vpack.c.b16 %v2098, %v2097
      %v2121 = vpack.c.b16 %v2100, %v2099
      %v2122 = vpack.c.b16 %v2102, %v2101
      %v2123 = vpack.c.b16 %v2104, %v2103
      %v2124 = vpack.c.b16 %v2106, %v2105
      %v2125 = vpack.c.b16 %v2108, %v2107
      %v2126 = vpack.c.b16 %v2110, %v2109
      %v2128 = vsel %vm653, %v2111, 0
      %v2131 = vsel %vm653, %v2112, 0
      %v2134 = vsel %vm653, %v2113, 0
      %v2137 = vsel %vm653, %v2114, 0
      %v2140 = vsel %vm653, %v2115, 0
      %v2143 = vsel %vm653, %v2116, 0
      %v2146 = vsel %vm653, %v2117, 0
      %v2149 = vsel %vm653, %v2118, 0
      %v2152 = vsel %vm653, %v2119, 0
      %v2155 = vsel %vm653, %v2120, 0
      %v2158 = vsel %vm653, %v2121, 0
      %v2161 = vsel %vm653, %v2122, 0
      %v2164 = vsel %vm653, %v2123, 0
      %v2167 = vsel %vm653, %v2124, 0
      %v2170 = vsel %vm653, %v2125, 0
      %v2173 = vsel %vm653, %v2126, 0
      %v2176 = vsel %vm702, %v2046, 0
      %2178 = vmatpush.bf16.msra.mxu0 0
      %2179 = vmatpush.bf16.msra.mxu0 0
      %2180 = vmatpush.bf16.msra.mxu0 0
      %2181 = vmatpush.bf16.msra.mxu0 0
      %2182 = vmatpush.bf16.msra.mxu0 0
      %2183 = vmatpush.bf16.msra.mxu0 0
      %2184 = vmatpush.bf16.msra.mxu0 0
      %2185 = vmatpush.bf16.msra.mxu0 %v2176
      %2186 = vmatmul.bf16.gmra.mxu0 %v2128
      %v2187 = vpop.f32.mrf.mxu0
      %v2188 = vadd.f32 0.0, %v2187
      %v2189 = vpop.f32.mrf.mxu0
      %v2190 = vadd.f32 0.0, %v2189
      %2191 = vmatmul.bf16.gmra.mxu0 %v2131
      %v2192 = vpop.f32.mrf.mxu0
      %v2193 = vadd.f32 0.0, %v2192
      %v2194 = vpop.f32.mrf.mxu0
      %v2195 = vadd.f32 0.0, %v2194
      %2196 = vmatmul.bf16.gmra.mxu0 %v2134
      %v2197 = vpop.f32.mrf.mxu0
      %v2198 = vadd.f32 0.0, %v2197
      %v2199 = vpop.f32.mrf.mxu0
      %v2200 = vadd.f32 0.0, %v2199
      %2201 = vmatmul.bf16.gmra.mxu0 %v2137
      %v2202 = vpop.f32.mrf.mxu0
      %v2203 = vadd.f32 0.0, %v2202
      %v2204 = vpop.f32.mrf.mxu0
      %v2205 = vadd.f32 0.0, %v2204
      %2206 = vmatmul.bf16.gmra.mxu0 %v2140
      %v2207 = vpop.f32.mrf.mxu0
      %v2208 = vadd.f32 0.0, %v2207
      %v2209 = vpop.f32.mrf.mxu0
      %v2210 = vadd.f32 0.0, %v2209
      %2211 = vmatmul.bf16.gmra.mxu0 %v2143
      %v2212 = vpop.f32.mrf.mxu0
      %v2213 = vadd.f32 0.0, %v2212
      %v2214 = vpop.f32.mrf.mxu0
      %v2215 = vadd.f32 0.0, %v2214
      %2216 = vmatmul.bf16.gmra.mxu0 %v2146
      %v2217 = vpop.f32.mrf.mxu0
      %v2218 = vadd.f32 0.0, %v2217
      %v2219 = vpop.f32.mrf.mxu0
      %v2220 = vadd.f32 0.0, %v2219
      %2221 = vmatmul.bf16.gmra.mxu0 %v2149
      %v2222 = vpop.f32.mrf.mxu0
      %v2223 = vadd.f32 0.0, %v2222
      %v2224 = vpop.f32.mrf.mxu0
      %v2225 = vadd.f32 0.0, %v2224
      %2226 = vmatmul.bf16.gmra.mxu0 %v2152
      %v2227 = vpop.f32.mrf.mxu0
      %v2228 = vadd.f32 0.0, %v2227
      %v2229 = vpop.f32.mrf.mxu0
      %v2230 = vadd.f32 0.0, %v2229
      %2231 = vmatmul.bf16.gmra.mxu0 %v2155
      %v2232 = vpop.f32.mrf.mxu0
      %v2233 = vadd.f32 0.0, %v2232
      %v2234 = vpop.f32.mrf.mxu0
      %v2235 = vadd.f32 0.0, %v2234
      %2236 = vmatmul.bf16.gmra.mxu0 %v2158
      %v2237 = vpop.f32.mrf.mxu0
      %v2238 = vadd.f32 0.0, %v2237
      %v2239 = vpop.f32.mrf.mxu0
      %v2240 = vadd.f32 0.0, %v2239
      %2241 = vmatmul.bf16.gmra.mxu0 %v2161
      %v2242 = vpop.f32.mrf.mxu0
      %v2243 = vadd.f32 0.0, %v2242
      %v2244 = vpop.f32.mrf.mxu0
      %v2245 = vadd.f32 0.0, %v2244
      %2246 = vmatmul.bf16.gmra.mxu0 %v2164
      %v2247 = vpop.f32.mrf.mxu0
      %v2248 = vadd.f32 0.0, %v2247
      %v2249 = vpop.f32.mrf.mxu0
      %v2250 = vadd.f32 0.0, %v2249
      %2251 = vmatmul.bf16.gmra.mxu0 %v2167
      %v2252 = vpop.f32.mrf.mxu0
      %v2253 = vadd.f32 0.0, %v2252
      %v2254 = vpop.f32.mrf.mxu0
      %v2255 = vadd.f32 0.0, %v2254
      %2256 = vmatmul.bf16.gmra.mxu0 %v2170
      %v2257 = vpop.f32.mrf.mxu0
      %v2258 = vadd.f32 0.0, %v2257
      %v2259 = vpop.f32.mrf.mxu0
      %v2260 = vadd.f32 0.0, %v2259
      %2261 = vmatmul.bf16.gmra.mxu0 %v2173
      %v2262 = vpop.f32.mrf.mxu0
      %v2263 = vadd.f32 0.0, %v2262
      %v2264 = vpop.f32.mrf.mxu0
      %v2265 = vadd.f32 0.0, %v2264
      %2266 = vdwg.mxu0
      %v2267 = vadd.f32 %v1977, %v2188
      %v2268 = vadd.f32 %v1978, %v2190
      %v2269 = vadd.f32 %v1979, %v2193
      %v2270 = vadd.f32 %v1980, %v2195
      %v2271 = vadd.f32 %v1981, %v2198
      %v2272 = vadd.f32 %v1982, %v2200
      %v2273 = vadd.f32 %v1983, %v2203
      %v2274 = vadd.f32 %v1984, %v2205
      %v2275 = vadd.f32 %v1985, %v2208
      %v2276 = vadd.f32 %v1986, %v2210
      %v2277 = vadd.f32 %v1987, %v2213
      %v2278 = vadd.f32 %v1988, %v2215
      %v2279 = vadd.f32 %v1989, %v2218
      %v2280 = vadd.f32 %v1990, %v2220
      %v2281 = vadd.f32 %v1991, %v2223
      %v2282 = vadd.f32 %v1992, %v2225
      %v2283 = vadd.f32 %v1993, %v2228
      %v2284 = vadd.f32 %v1994, %v2230
      %v2285 = vadd.f32 %v1995, %v2233
      %v2286 = vadd.f32 %v1996, %v2235
      %v2287 = vadd.f32 %v1997, %v2238
      %v2288 = vadd.f32 %v1998, %v2240
      %v2289 = vadd.f32 %v1999, %v2243
      %v2290 = vadd.f32 %v2000, %v2245
      %v2291 = vadd.f32 %v2001, %v2248
      %v2292 = vadd.f32 %v2002, %v2250
      %v2293 = vadd.f32 %v2003, %v2253
      %v2294 = vadd.f32 %v2004, %v2255
      %v2295 = vadd.f32 %v2005, %v2258
      %v2296 = vadd.f32 %v2006, %v2260
      %v2297 = vadd.f32 %v2007, %v2263
      %v2298 = vadd.f32 %v2008, %v2265
      %v2299 = vld [vmem:[%s2012] sm:$0xf]
      %v2300 = vld [vmem:[%s2012 + $0x4] sm:$0xf]
      %v2301 = vld [vmem:[%s2012 + $0x8] sm:$0x1]
      %v2302 = vld [vmem:[%s2012 + $0xc] sm:$0xf]
      %v2303 = vld [vmem:[%s2012 + $0x10] sm:$0xf]
      %v2304 = vld [vmem:[%s2012 + $0x14] sm:$0x1]
      %v2305 = vld [vmem:[%s2012 + $0x18] sm:$0xf]
      %v2306 = vld [vmem:[%s2012 + $0x1c] sm:$0xf]
      %v2307 = vld [vmem:[%s2012 + $0x20] sm:$0x1]
      %v2308 = vld [vmem:[%s2012 + $0x24] sm:$0xf]
      %v2309 = vld [vmem:[%s2012 + $0x28] sm:$0xf]
      %v2310 = vld [vmem:[%s2012 + $0x2c] sm:$0x1]
      %v2311 = vld [vmem:[%s2012 + $0x30] sm:$0xf]
      %v2312 = vld [vmem:[%s2012 + $0x34] sm:$0xf]
      %v2313 = vld [vmem:[%s2012 + $0x38] sm:$0x1]
      %v2314 = vld [vmem:[%s2012 + $0x3c] sm:$0xf]
      %v2315 = vld [vmem:[%s2012 + $0x40] sm:$0xf]
      %v2316 = vld [vmem:[%s2012 + $0x44] sm:$0x1]
      %v2317 = vld [vmem:[%s2012 + $0x48] sm:$0xf]
      %v2318 = vld [vmem:[%s2012 + $0x4c] sm:$0xf]
      %v2319 = vld [vmem:[%s2012 + $0x50] sm:$0x1]
      %v2320 = vld [vmem:[%s2012 + $0x54] sm:$0xf]
      %v2321 = vld [vmem:[%s2012 + $0x58] sm:$0xf]
      %v2322 = vld [vmem:[%s2012 + $0x5c] sm:$0x1]
      %v2323 = vld [vmem:[%s2012 + $0x60] sm:$0xf]
      %v2324 = vld [vmem:[%s2012 + $0x64] sm:$0xf]
      %v2325 = vld [vmem:[%s2012 + $0x68] sm:$0x1]
      %v2326 = vld [vmem:[%s2012 + $0x6c] sm:$0xf]
      %v2327 = vld [vmem:[%s2012 + $0x70] sm:$0xf]
      %v2328 = vld [vmem:[%s2012 + $0x74] sm:$0x1]
      %v2329 = vld [vmem:[%s2012 + $0x78] sm:$0xf]
      %v2330 = vld [vmem:[%s2012 + $0x7c] sm:$0xf]
      %v2331 = vld [vmem:[%s2012 + $0x80] sm:$0x1]
      %v2332 = vld [vmem:[%s2012 + $0x84] sm:$0xf]
      %v2333 = vld [vmem:[%s2012 + $0x88] sm:$0xf]
      %v2334 = vld [vmem:[%s2012 + $0x8c] sm:$0x1]
      %v2335 = vld [vmem:[%s2012 + $0x90] sm:$0xf]
      %v2336 = vld [vmem:[%s2012 + $0x94] sm:$0xf]
      %v2337 = vld [vmem:[%s2012 + $0x98] sm:$0x1]
      %v2338 = vld [vmem:[%s2012 + $0x9c] sm:$0xf]
      %v2339 = vld [vmem:[%s2012 + $0xa0] sm:$0xf]
      %v2340 = vld [vmem:[%s2012 + $0xa4] sm:$0x1]
      %v2341 = vld [vmem:[%s2012 + $0xa8] sm:$0xf]
      %v2342 = vld [vmem:[%s2012 + $0xac] sm:$0xf]
      %v2343 = vld [vmem:[%s2012 + $0xb0] sm:$0x1]
      %v2344 = vld [vmem:[%s2012 + $0xb4] sm:$0xf]
      %v2345 = vld [vmem:[%s2012 + $0xb8] sm:$0xf]
      %v2346 = vld [vmem:[%s2012 + $0xbc] sm:$0x1]
      %v2348 = vshrl.u32 %v2299, 16
      %v2350 = vrot.slane %v2348, 4
      %v2351 = vshll.u32 %v2299, 16
      %v2353 = vrot.slane %v2351, 5
      %v2354 = vor.u32 %v2350, %v2353
      %v2355 = vrot.slane %v2354, 4
      %v2357 = vshll.u32 %v2300, 16
      %v2359 = vrot.slane %v2357, 5
      %v2360 = vsel %vm218, %v2355, %v2359
      %v2361 = vshrl.u32 %v2300, 16
      %v2363 = vrot.slane %v2361, 4
      %v2364 = vor.u32 %v2363, %v2359
      %v2365 = vrot.slane %v2364, 4
      %v2367 = vshll.u32 %v2301, 16
      %v2369 = vrot.slane %v2367, 5
      %v2370 = vsel %vm218, %v2365, %v2369
      %v2372 = vshrl.u32 %v2302, 16
      %v2374 = vrot.slane %v2372, 4
      %v2375 = vshll.u32 %v2302, 16
      %v2377 = vrot.slane %v2375, 5
      %v2378 = vor.u32 %v2374, %v2377
      %v2379 = vrot.slane %v2378, 4
      %v2381 = vshll.u32 %v2303, 16
      %v2383 = vrot.slane %v2381, 5
      %v2384 = vsel %vm218, %v2379, %v2383
      %v2385 = vshrl.u32 %v2303, 16
      %v2387 = vrot.slane %v2385, 4
      %v2388 = vor.u32 %v2387, %v2383
      %v2389 = vrot.slane %v2388, 4
      %v2391 = vshll.u32 %v2304, 16
      %v2393 = vrot.slane %v2391, 5
      %v2394 = vsel %vm218, %v2389, %v2393
      %v2396 = vshrl.u32 %v2305, 16
      %v2398 = vrot.slane %v2396, 4
      %v2399 = vshll.u32 %v2305, 16
      %v2401 = vrot.slane %v2399, 5
      %v2402 = vor.u32 %v2398, %v2401
      %v2403 = vrot.slane %v2402, 4
      %v2405 = vshll.u32 %v2306, 16
      %v2407 = vrot.slane %v2405, 5
      %v2408 = vsel %vm218, %v2403, %v2407
      %v2409 = vshrl.u32 %v2306, 16
      %v2411 = vrot.slane %v2409, 4
      %v2412 = vor.u32 %v2411, %v2407
      %v2413 = vrot.slane %v2412, 4
      %v2415 = vshll.u32 %v2307, 16
      %v2417 = vrot.slane %v2415, 5
      %v2418 = vsel %vm218, %v2413, %v2417
      %v2420 = vshrl.u32 %v2308, 16
      %v2422 = vrot.slane %v2420, 4
      %v2423 = vshll.u32 %v2308, 16
      %v2425 = vrot.slane %v2423, 5
      %v2426 = vor.u32 %v2422, %v2425
      %v2427 = vrot.slane %v2426, 4
      %v2429 = vshll.u32 %v2309, 16
      %v2431 = vrot.slane %v2429, 5
      %v2432 = vsel %vm218, %v2427, %v2431
      %v2433 = vshrl.u32 %v2309, 16
      %v2435 = vrot.slane %v2433, 4
      %v2436 = vor.u32 %v2435, %v2431
      %v2437 = vrot.slane %v2436, 4
      %v2439 = vshll.u32 %v2310, 16
      %v2441 = vrot.slane %v2439, 5
      %v2442 = vsel %vm218, %v2437, %v2441
      %v2444 = vshrl.u32 %v2311, 16
      %v2446 = vrot.slane %v2444, 4
      %v2447 = vshll.u32 %v2311, 16
      %v2449 = vrot.slane %v2447, 5
      %v2450 = vor.u32 %v2446, %v2449
      %v2451 = vrot.slane %v2450, 4
      %v2453 = vshll.u32 %v2312, 16
      %v2455 = vrot.slane %v2453, 5
      %v2456 = vsel %vm218, %v2451, %v2455
      %v2457 = vshrl.u32 %v2312, 16
      %v2459 = vrot.slane %v2457, 4
      %v2460 = vor.u32 %v2459, %v2455
      %v2461 = vrot.slane %v2460, 4
      %v2463 = vshll.u32 %v2313, 16
      %v2465 = vrot.slane %v2463, 5
      %v2466 = vsel %vm218, %v2461, %v2465
      %v2468 = vshrl.u32 %v2314, 16
      %v2470 = vrot.slane %v2468, 4
      %v2471 = vshll.u32 %v2314, 16
      %v2473 = vrot.slane %v2471, 5
      %v2474 = vor.u32 %v2470, %v2473
      %v2475 = vrot.slane %v2474, 4
      %v2477 = vshll.u32 %v2315, 16
      %v2479 = vrot.slane %v2477, 5
      %v2480 = vsel %vm218, %v2475, %v2479
      %v2481 = vshrl.u32 %v2315, 16
      %v2483 = vrot.slane %v2481, 4
      %v2484 = vor.u32 %v2483, %v2479
      %v2485 = vrot.slane %v2484, 4
      %v2487 = vshll.u32 %v2316, 16
      %v2489 = vrot.slane %v2487, 5
      %v2490 = vsel %vm218, %v2485, %v2489
      %v2492 = vshrl.u32 %v2317, 16
      %v2494 = vrot.slane %v2492, 4
      %v2495 = vshll.u32 %v2317, 16
      %v2497 = vrot.slane %v2495, 5
      %v2498 = vor.u32 %v2494, %v2497
      %v2499 = vrot.slane %v2498, 4
      %v2501 = vshll.u32 %v2318, 16
      %v2503 = vrot.slane %v2501, 5
      %v2504 = vsel %vm218, %v2499, %v2503
      %v2505 = vshrl.u32 %v2318, 16
      %v2507 = vrot.slane %v2505, 4
      %v2508 = vor.u32 %v2507, %v2503
      %v2509 = vrot.slane %v2508, 4
      %v2511 = vshll.u32 %v2319, 16
      %v2513 = vrot.slane %v2511, 5
      %v2514 = vsel %vm218, %v2509, %v2513
      %v2516 = vshrl.u32 %v2320, 16
      %v2518 = vrot.slane %v2516, 4
      %v2519 = vshll.u32 %v2320, 16
      %v2521 = vrot.slane %v2519, 5
      %v2522 = vor.u32 %v2518, %v2521
      %v2523 = vrot.slane %v2522, 4
      %v2525 = vshll.u32 %v2321, 16
      %v2527 = vrot.slane %v2525, 5
      %v2528 = vsel %vm218, %v2523, %v2527
      %v2529 = vshrl.u32 %v2321, 16
      %v2531 = vrot.slane %v2529, 4
      %v2532 = vor.u32 %v2531, %v2527
      %v2533 = vrot.slane %v2532, 4
      %v2535 = vshll.u32 %v2322, 16
      %v2537 = vrot.slane %v2535, 5
      %v2538 = vsel %vm218, %v2533, %v2537
      %v2540 = vshrl.u32 %v2323, 16
      %v2542 = vrot.slane %v2540, 4
      %v2543 = vshll.u32 %v2323, 16
      %v2545 = vrot.slane %v2543, 5
      %v2546 = vor.u32 %v2542, %v2545
      %v2547 = vrot.slane %v2546, 4
      %v2549 = vshll.u32 %v2324, 16
      %v2551 = vrot.slane %v2549, 5
      %v2552 = vsel %vm218, %v2547, %v2551
      %v2553 = vshrl.u32 %v2324, 16
      %v2555 = vrot.slane %v2553, 4
      %v2556 = vor.u32 %v2555, %v2551
      %v2557 = vrot.slane %v2556, 4
      %v2559 = vshll.u32 %v2325, 16
      %v2561 = vrot.slane %v2559, 5
      %v2562 = vsel %vm218, %v2557, %v2561
      %v2564 = vshrl.u32 %v2326, 16
      %v2566 = vrot.slane %v2564, 4
      %v2567 = vshll.u32 %v2326, 16
      %v2569 = vrot.slane %v2567, 5
      %v2570 = vor.u32 %v2566, %v2569
      %v2571 = vrot.slane %v2570, 4
      %v2573 = vshll.u32 %v2327, 16
      %v2575 = vrot.slane %v2573, 5
      %v2576 = vsel %vm218, %v2571, %v2575
      %v2577 = vshrl.u32 %v2327, 16
      %v2579 = vrot.slane %v2577, 4
      %v2580 = vor.u32 %v2579, %v2575
      %v2581 = vrot.slane %v2580, 4
      %v2583 = vshll.u32 %v2328, 16
      %v2585 = vrot.slane %v2583, 5
      %v2586 = vsel %vm218, %v2581, %v2585
      %v2588 = vshrl.u32 %v2329, 16
      %v2590 = vrot.slane %v2588, 4
      %v2591 = vshll.u32 %v2329, 16
      %v2593 = vrot.slane %v2591, 5
      %v2594 = vor.u32 %v2590, %v2593
      %v2595 = vrot.slane %v2594, 4
      %v2597 = vshll.u32 %v2330, 16
      %v2599 = vrot.slane %v2597, 5
      %v2600 = vsel %vm218, %v2595, %v2599
      %v2601 = vshrl.u32 %v2330, 16
      %v2603 = vrot.slane %v2601, 4
      %v2604 = vor.u32 %v2603, %v2599
      %v2605 = vrot.slane %v2604, 4
      %v2607 = vshll.u32 %v2331, 16
      %v2609 = vrot.slane %v2607, 5
      %v2610 = vsel %vm218, %v2605, %v2609
      %v2612 = vshrl.u32 %v2332, 16
      %v2614 = vrot.slane %v2612, 4
      %v2615 = vshll.u32 %v2332, 16
      %v2617 = vrot.slane %v2615, 5
      %v2618 = vor.u32 %v2614, %v2617
      %v2619 = vrot.slane %v2618, 4
      %v2621 = vshll.u32 %v2333, 16
      %v2623 = vrot.slane %v2621, 5
      %v2624 = vsel %vm218, %v2619, %v2623
      %v2625 = vshrl.u32 %v2333, 16
      %v2627 = vrot.slane %v2625, 4
      %v2628 = vor.u32 %v2627, %v2623
      %v2629 = vrot.slane %v2628, 4
      %v2631 = vshll.u32 %v2334, 16
      %v2633 = vrot.slane %v2631, 5
      %v2634 = vsel %vm218, %v2629, %v2633
      %v2636 = vshrl.u32 %v2335, 16
      %v2638 = vrot.slane %v2636, 4
      %v2639 = vshll.u32 %v2335, 16
      %v2641 = vrot.slane %v2639, 5
      %v2642 = vor.u32 %v2638, %v2641
      %v2643 = vrot.slane %v2642, 4
      %v2645 = vshll.u32 %v2336, 16
      %v2647 = vrot.slane %v2645, 5
      %v2648 = vsel %vm218, %v2643, %v2647
      %v2649 = vshrl.u32 %v2336, 16
      %v2651 = vrot.slane %v2649, 4
      %v2652 = vor.u32 %v2651, %v2647
      %v2653 = vrot.slane %v2652, 4
      %v2655 = vshll.u32 %v2337, 16
      %v2657 = vrot.slane %v2655, 5
      %v2658 = vsel %vm218, %v2653, %v2657
      %v2660 = vshrl.u32 %v2338, 16
      %v2662 = vrot.slane %v2660, 4
      %v2663 = vshll.u32 %v2338, 16
      %v2665 = vrot.slane %v2663, 5
      %v2666 = vor.u32 %v2662, %v2665
      %v2667 = vrot.slane %v2666, 4
      %v2669 = vshll.u32 %v2339, 16
      %v2671 = vrot.slane %v2669, 5
      %v2672 = vsel %vm218, %v2667, %v2671
      %v2673 = vshrl.u32 %v2339, 16
      %v2675 = vrot.slane %v2673, 4
      %v2676 = vor.u32 %v2675, %v2671
      %v2677 = vrot.slane %v2676, 4
      %v2679 = vshll.u32 %v2340, 16
      %v2681 = vrot.slane %v2679, 5
      %v2682 = vsel %vm218, %v2677, %v2681
      %v2684 = vshrl.u32 %v2341, 16
      %v2686 = vrot.slane %v2684, 4
      %v2687 = vshll.u32 %v2341, 16
      %v2689 = vrot.slane %v2687, 5
      %v2690 = vor.u32 %v2686, %v2689
      %v2691 = vrot.slane %v2690, 4
      %v2693 = vshll.u32 %v2342, 16
      %v2695 = vrot.slane %v2693, 5
      %v2696 = vsel %vm218, %v2691, %v2695
      %v2697 = vshrl.u32 %v2342, 16
      %v2699 = vrot.slane %v2697, 4
      %v2700 = vor.u32 %v2699, %v2695
      %v2701 = vrot.slane %v2700, 4
      %v2703 = vshll.u32 %v2343, 16
      %v2705 = vrot.slane %v2703, 5
      %v2706 = vsel %vm218, %v2701, %v2705
      %v2708 = vshrl.u32 %v2344, 16
      %v2710 = vrot.slane %v2708, 4
      %v2711 = vshll.u32 %v2344, 16
      %v2713 = vrot.slane %v2711, 5
      %v2714 = vor.u32 %v2710, %v2713
      %v2715 = vrot.slane %v2714, 4
      %v2717 = vshll.u32 %v2345, 16
      %v2719 = vrot.slane %v2717, 5
      %v2720 = vsel %vm218, %v2715, %v2719
      %v2721 = vshrl.u32 %v2345, 16
      %v2723 = vrot.slane %v2721, 4
      %v2724 = vor.u32 %v2723, %v2719
      %v2725 = vrot.slane %v2724, 4
      %v2727 = vshll.u32 %v2346, 16
      %v2729 = vrot.slane %v2727, 5
      %v2730 = vsel %vm218, %v2725, %v2729
      %s2731 = scalar_lea.vmem %s1, 20
      %v2732 = vld [vmem:[%s2731] sm:$0xf]
      %v2733 = vunpack.c.l.b16 %v2360
      %v2734 = vunpack.c.l.b16 %v2370
      %v2735 = vunpack.c.l.b16 %v2384
      %v2736 = vunpack.c.l.b16 %v2394
      %v2737 = vunpack.c.l.b16 %v2408
      %v2738 = vunpack.c.l.b16 %v2418
      %v2739 = vunpack.c.l.b16 %v2432
      %v2740 = vunpack.c.l.b16 %v2442
      %v2741 = vunpack.c.l.b16 %v2456
      %v2742 = vunpack.c.l.b16 %v2466
      %v2743 = vunpack.c.l.b16 %v2480
      %v2744 = vunpack.c.l.b16 %v2490
      %v2745 = vunpack.c.l.b16 %v2504
      %v2746 = vunpack.c.l.b16 %v2514
      %v2747 = vunpack.c.l.b16 %v2528
      %v2748 = vunpack.c.l.b16 %v2538
      %v2749 = vunpack.c.l.b16 %v2552
      %v2750 = vunpack.c.l.b16 %v2562
      %v2751 = vunpack.c.l.b16 %v2576
      %v2752 = vunpack.c.l.b16 %v2586
      %v2753 = vunpack.c.l.b16 %v2600
      %v2754 = vunpack.c.l.b16 %v2610
      %v2755 = vunpack.c.l.b16 %v2624
      %v2756 = vunpack.c.l.b16 %v2634
      %v2757 = vunpack.c.l.b16 %v2648
      %v2758 = vunpack.c.l.b16 %v2658
      %v2759 = vunpack.c.l.b16 %v2672
      %v2760 = vunpack.c.l.b16 %v2682
      %v2761 = vunpack.c.l.b16 %v2696
      %v2762 = vunpack.c.l.b16 %v2706
      %v2763 = vunpack.c.l.b16 %v2720
      %v2764 = vunpack.c.l.b16 %v2730
      %v2765 = vpack.c.b16 %v2734, %v2733
      %v2766 = vpack.c.b16 %v2736, %v2735
      %v2767 = vpack.c.b16 %v2738, %v2737
      %v2768 = vpack.c.b16 %v2740, %v2739
      %v2769 = vpack.c.b16 %v2742, %v2741
      %v2770 = vpack.c.b16 %v2744, %v2743
      %v2771 = vpack.c.b16 %v2746, %v2745
      %v2772 = vpack.c.b16 %v2748, %v2747
      %v2773 = vpack.c.b16 %v2750, %v2749
      %v2774 = vpack.c.b16 %v2752, %v2751
      %v2775 = vpack.c.b16 %v2754, %v2753
      %v2776 = vpack.c.b16 %v2756, %v2755
      %v2777 = vpack.c.b16 %v2758, %v2757
      %v2778 = vpack.c.b16 %v2760, %v2759
      %v2779 = vpack.c.b16 %v2762, %v2761
      %v2780 = vpack.c.b16 %v2764, %v2763
      %v2782 = vsel %vm653, %v2765, 0
      %v2785 = vsel %vm653, %v2766, 0
      %v2788 = vsel %vm653, %v2767, 0
      %v2791 = vsel %vm653, %v2768, 0
      %v2794 = vsel %vm653, %v2769, 0
      %v2797 = vsel %vm653, %v2770, 0
      %v2800 = vsel %vm653, %v2771, 0
      %v2803 = vsel %vm653, %v2772, 0
      %v2806 = vsel %vm653, %v2773, 0
      %v2809 = vsel %vm653, %v2774, 0
      %v2812 = vsel %vm653, %v2775, 0
      %v2815 = vsel %vm653, %v2776, 0
      %v2818 = vsel %vm653, %v2777, 0
      %v2821 = vsel %vm653, %v2778, 0
      %v2824 = vsel %vm653, %v2779, 0
      %v2827 = vsel %vm653, %v2780, 0
      %v2830 = vsel %vm702, %v2732, 0
      %2832 = vmatpush.bf16.msra.mxu0 0
      %2833 = vmatpush.bf16.msra.mxu0 0
      %2834 = vmatpush.bf16.msra.mxu0 0
      %2835 = vmatpush.bf16.msra.mxu0 0
      %2836 = vmatpush.bf16.msra.mxu0 0
      %2837 = vmatpush.bf16.msra.mxu0 0
      %2838 = vmatpush.bf16.msra.mxu0 0
      %2839 = vmatpush.bf16.msra.mxu0 %v2830
      %2840 = vmatmul.bf16.gmra.mxu0 %v2782
      %v2841 = vpop.f32.mrf.mxu0
      %v2842 = vadd.f32 0.0, %v2841
      %v2843 = vpop.f32.mrf.mxu0
      %v2844 = vadd.f32 0.0, %v2843
      %2845 = vmatmul.bf16.gmra.mxu0 %v2785
      %v2846 = vpop.f32.mrf.mxu0
      %v2847 = vadd.f32 0.0, %v2846
      %v2848 = vpop.f32.mrf.mxu0
      %v2849 = vadd.f32 0.0, %v2848
      %2850 = vmatmul.bf16.gmra.mxu0 %v2788
      %v2851 = vpop.f32.mrf.mxu0
      %v2852 = vadd.f32 0.0, %v2851
      %v2853 = vpop.f32.mrf.mxu0
      %v2854 = vadd.f32 0.0, %v2853
      %2855 = vmatmul.bf16.gmra.mxu0 %v2791
      %v2856 = vpop.f32.mrf.mxu0
      %v2857 = vadd.f32 0.0, %v2856
      %v2858 = vpop.f32.mrf.mxu0
      %v2859 = vadd.f32 0.0, %v2858
      %2860 = vmatmul.bf16.gmra.mxu0 %v2794
      %v2861 = vpop.f32.mrf.mxu0
      %v2862 = vadd.f32 0.0, %v2861
      %v2863 = vpop.f32.mrf.mxu0
      %v2864 = vadd.f32 0.0, %v2863
      %2865 = vmatmul.bf16.gmra.mxu0 %v2797
      %v2866 = vpop.f32.mrf.mxu0
      %v2867 = vadd.f32 0.0, %v2866
      %v2868 = vpop.f32.mrf.mxu0
      %v2869 = vadd.f32 0.0, %v2868
      %2870 = vmatmul.bf16.gmra.mxu0 %v2800
      %v2871 = vpop.f32.mrf.mxu0
      %v2872 = vadd.f32 0.0, %v2871
      %v2873 = vpop.f32.mrf.mxu0
      %v2874 = vadd.f32 0.0, %v2873
      %2875 = vmatmul.bf16.gmra.mxu0 %v2803
      %v2876 = vpop.f32.mrf.mxu0
      %v2877 = vadd.f32 0.0, %v2876
      %v2878 = vpop.f32.mrf.mxu0
      %v2879 = vadd.f32 0.0, %v2878
      %2880 = vmatmul.bf16.gmra.mxu0 %v2806
      %v2881 = vpop.f32.mrf.mxu0
      %v2882 = vadd.f32 0.0, %v2881
      %v2883 = vpop.f32.mrf.mxu0
      %v2884 = vadd.f32 0.0, %v2883
      %2885 = vmatmul.bf16.gmra.mxu0 %v2809
      %v2886 = vpop.f32.mrf.mxu0
      %v2887 = vadd.f32 0.0, %v2886
      %v2888 = vpop.f32.mrf.mxu0
      %v2889 = vadd.f32 0.0, %v2888
      %2890 = vmatmul.bf16.gmra.mxu0 %v2812
      %v2891 = vpop.f32.mrf.mxu0
      %v2892 = vadd.f32 0.0, %v2891
      %v2893 = vpop.f32.mrf.mxu0
      %v2894 = vadd.f32 0.0, %v2893
      %2895 = vmatmul.bf16.gmra.mxu0 %v2815
      %v2896 = vpop.f32.mrf.mxu0
      %v2897 = vadd.f32 0.0, %v2896
      %v2898 = vpop.f32.mrf.mxu0
      %v2899 = vadd.f32 0.0, %v2898
      %2900 = vmatmul.bf16.gmra.mxu0 %v2818
      %v2901 = vpop.f32.mrf.mxu0
      %v2902 = vadd.f32 0.0, %v2901
      %v2903 = vpop.f32.mrf.mxu0
      %v2904 = vadd.f32 0.0, %v2903
      %2905 = vmatmul.bf16.gmra.mxu0 %v2821
      %v2906 = vpop.f32.mrf.mxu0
      %v2907 = vadd.f32 0.0, %v2906
      %v2908 = vpop.f32.mrf.mxu0
      %v2909 = vadd.f32 0.0, %v2908
      %2910 = vmatmul.bf16.gmra.mxu0 %v2824
      %v2911 = vpop.f32.mrf.mxu0
      %v2912 = vadd.f32 0.0, %v2911
      %v2913 = vpop.f32.mrf.mxu0
      %v2914 = vadd.f32 0.0, %v2913
      %2915 = vmatmul.bf16.gmra.mxu0 %v2827
      %v2916 = vpop.f32.mrf.mxu0
      %v2917 = vadd.f32 0.0, %v2916
      %v2918 = vpop.f32.mrf.mxu0
      %v2919 = vadd.f32 0.0, %v2918
      %2920 = vdwg.mxu0
      %v2921 = vadd.f32 %v2267, %v2842
      %v2922 = vadd.f32 %v2268, %v2844
      %v2923 = vadd.f32 %v2269, %v2847
      %v2924 = vadd.f32 %v2270, %v2849
      %v2925 = vadd.f32 %v2271, %v2852
      %v2926 = vadd.f32 %v2272, %v2854
      %v2927 = vadd.f32 %v2273, %v2857
      %v2928 = vadd.f32 %v2274, %v2859
      %v2929 = vadd.f32 %v2275, %v2862
      %v2930 = vadd.f32 %v2276, %v2864
      %v2931 = vadd.f32 %v2277, %v2867
      %v2932 = vadd.f32 %v2278, %v2869
      %v2933 = vadd.f32 %v2279, %v2872
      %v2934 = vadd.f32 %v2280, %v2874
      %v2935 = vadd.f32 %v2281, %v2877
      %v2936 = vadd.f32 %v2282, %v2879
      %v2937 = vadd.f32 %v2283, %v2882
      %v2938 = vadd.f32 %v2284, %v2884
      %v2939 = vadd.f32 %v2285, %v2887
      %v2940 = vadd.f32 %v2286, %v2889
      %v2941 = vadd.f32 %v2287, %v2892
      %v2942 = vadd.f32 %v2288, %v2894
      %v2943 = vadd.f32 %v2289, %v2897
      %v2944 = vadd.f32 %v2290, %v2899
      %v2945 = vadd.f32 %v2291, %v2902
      %v2946 = vadd.f32 %v2292, %v2904
      %v2947 = vadd.f32 %v2293, %v2907
      %v2948 = vadd.f32 %v2294, %v2909
      %v2949 = vadd.f32 %v2295, %v2912
      %v2950 = vadd.f32 %v2296, %v2914
      %v2951 = vadd.f32 %v2297, %v2917
      %v2952 = vadd.f32 %v2298, %v2919
      %v2953 = vld [vmem:[%s2012] sm:$0xe]
      %v2954 = vld [vmem:[%s2012 + $0xc] sm:$0xe]
      %v2955 = vld [vmem:[%s2012 + $0x18] sm:$0xe]
      %v2956 = vld [vmem:[%s2012 + $0x24] sm:$0xe]
      %v2957 = vld [vmem:[%s2012 + $0x30] sm:$0xe]
      %v2958 = vld [vmem:[%s2012 + $0x3c] sm:$0xe]
      %v2959 = vld [vmem:[%s2012 + $0x48] sm:$0xe]
      %v2960 = vld [vmem:[%s2012 + $0x54] sm:$0xe]
      %v2961 = vld [vmem:[%s2012 + $0x60] sm:$0xe]
      %v2962 = vld [vmem:[%s2012 + $0x6c] sm:$0xe]
      %v2963 = vld [vmem:[%s2012 + $0x78] sm:$0xe]
      %v2964 = vld [vmem:[%s2012 + $0x84] sm:$0xe]
      %v2965 = vld [vmem:[%s2012 + $0x90] sm:$0xe]
      %v2966 = vld [vmem:[%s2012 + $0x9c] sm:$0xe]
      %v2967 = vld [vmem:[%s2012 + $0xa8] sm:$0xe]
      %v2968 = vld [vmem:[%s2012 + $0xb4] sm:$0xe]
      %v3017 = vrot.slane %v2953, 5
      %v3018 = vrot.slane %v3017, 4
      %v3019 = vrot.slane %v2300, 5
      %v3020 = vsel %vm1065, %v3018, %v3019
      %v3021 = vrot.slane %v3019, 4
      %v3022 = vrot.slane %v2301, 5
      %v3023 = vsel %vm1065, %v3021, %v3022
      %v3024 = vrot.slane %v2954, 5
      %v3025 = vrot.slane %v3024, 4
      %v3026 = vrot.slane %v2303, 5
      %v3027 = vsel %vm1065, %v3025, %v3026
      %v3028 = vrot.slane %v3026, 4
      %v3029 = vrot.slane %v2304, 5
      %v3030 = vsel %vm1065, %v3028, %v3029
      %v3031 = vrot.slane %v2955, 5
      %v3032 = vrot.slane %v3031, 4
      %v3033 = vrot.slane %v2306, 5
      %v3034 = vsel %vm1065, %v3032, %v3033
      %v3035 = vrot.slane %v3033, 4
      %v3036 = vrot.slane %v2307, 5
      %v3037 = vsel %vm1065, %v3035, %v3036
      %v3038 = vrot.slane %v2956, 5
      %v3039 = vrot.slane %v3038, 4
      %v3040 = vrot.slane %v2309, 5
      %v3041 = vsel %vm1065, %v3039, %v3040
      %v3042 = vrot.slane %v3040, 4
      %v3043 = vrot.slane %v2310, 5
      %v3044 = vsel %vm1065, %v3042, %v3043
      %v3045 = vrot.slane %v2957, 5
      %v3046 = vrot.slane %v3045, 4
      %v3047 = vrot.slane %v2312, 5
      %v3048 = vsel %vm1065, %v3046, %v3047
      %v3049 = vrot.slane %v3047, 4
      %v3050 = vrot.slane %v2313, 5
      %v3051 = vsel %vm1065, %v3049, %v3050
      %v3052 = vrot.slane %v2958, 5
      %v3053 = vrot.slane %v3052, 4
      %v3054 = vrot.slane %v2315, 5
      %v3055 = vsel %vm1065, %v3053, %v3054
      %v3056 = vrot.slane %v3054, 4
      %v3057 = vrot.slane %v2316, 5
      %v3058 = vsel %vm1065, %v3056, %v3057
      %v3059 = vrot.slane %v2959, 5
      %v3060 = vrot.slane %v3059, 4
      %v3061 = vrot.slane %v2318, 5
      %v3062 = vsel %vm1065, %v3060, %v3061
      %v3063 = vrot.slane %v3061, 4
      %v3064 = vrot.slane %v2319, 5
      %v3065 = vsel %vm1065, %v3063, %v3064
      %v3066 = vrot.slane %v2960, 5
      %v3067 = vrot.slane %v3066, 4
      %v3068 = vrot.slane %v2321, 5
      %v3069 = vsel %vm1065, %v3067, %v3068
      %v3070 = vrot.slane %v3068, 4
      %v3071 = vrot.slane %v2322, 5
      %v3072 = vsel %vm1065, %v3070, %v3071
      %v3073 = vrot.slane %v2961, 5
      %v3074 = vrot.slane %v3073, 4
      %v3075 = vrot.slane %v2324, 5
      %v3076 = vsel %vm1065, %v3074, %v3075
      %v3077 = vrot.slane %v3075, 4
      %v3078 = vrot.slane %v2325, 5
      %v3079 = vsel %vm1065, %v3077, %v3078
      %v3080 = vrot.slane %v2962, 5
      %v3081 = vrot.slane %v3080, 4
      %v3082 = vrot.slane %v2327, 5
      %v3083 = vsel %vm1065, %v3081, %v3082
      %v3084 = vrot.slane %v3082, 4
      %v3085 = vrot.slane %v2328, 5
      %v3086 = vsel %vm1065, %v3084, %v3085
      %v3087 = vrot.slane %v2963, 5
      %v3088 = vrot.slane %v3087, 4
      %v3089 = vrot.slane %v2330, 5
      %v3090 = vsel %vm1065, %v3088, %v3089
      %v3091 = vrot.slane %v3089, 4
      %v3092 = vrot.slane %v2331, 5
      %v3093 = vsel %vm1065, %v3091, %v3092
      %v3094 = vrot.slane %v2964, 5
      %v3095 = vrot.slane %v3094, 4
      %v3096 = vrot.slane %v2333, 5
      %v3097 = vsel %vm1065, %v3095, %v3096
      %v3098 = vrot.slane %v3096, 4
      %v3099 = vrot.slane %v2334, 5
      %v3100 = vsel %vm1065, %v3098, %v3099
      %v3101 = vrot.slane %v2965, 5
      %v3102 = vrot.slane %v3101, 4
      %v3103 = vrot.slane %v2336, 5
      %v3104 = vsel %vm1065, %v3102, %v3103
      %v3105 = vrot.slane %v3103, 4
      %v3106 = vrot.slane %v2337, 5
      %v3107 = vsel %vm1065, %v3105, %v3106
      %v3108 = vrot.slane %v2966, 5
      %v3109 = vrot.slane %v3108, 4
      %v3110 = vrot.slane %v2339, 5
      %v3111 = vsel %vm1065, %v3109, %v3110
      %v3112 = vrot.slane %v3110, 4
      %v3113 = vrot.slane %v2340, 5
      %v3114 = vsel %vm1065, %v3112, %v3113
      %v3115 = vrot.slane %v2967, 5
      %v3116 = vrot.slane %v3115, 4
      %v3117 = vrot.slane %v2342, 5
      %v3118 = vsel %vm1065, %v3116, %v3117
      %v3119 = vrot.slane %v3117, 4
      %v3120 = vrot.slane %v2343, 5
      %v3121 = vsel %vm1065, %v3119, %v3120
      %v3122 = vrot.slane %v2968, 5
      %v3123 = vrot.slane %v3122, 4
      %v3124 = vrot.slane %v2345, 5
      %v3125 = vsel %vm1065, %v3123, %v3124
      %v3126 = vrot.slane %v3124, 4
      %v3127 = vrot.slane %v2346, 5
      %v3128 = vsel %vm1065, %v3126, %v3127
      %s3129 = scalar_lea.vmem %s1, 24
      %v3130 = vld [vmem:[%s3129] sm:$0xf]
      %v3131 = vunpack.c.l.b16 %v3020
      %v3132 = vunpack.c.l.b16 %v3023
      %v3133 = vunpack.c.l.b16 %v3027
      %v3134 = vunpack.c.l.b16 %v3030
      %v3135 = vunpack.c.l.b16 %v3034
      %v3136 = vunpack.c.l.b16 %v3037
      %v3137 = vunpack.c.l.b16 %v3041
      %v3138 = vunpack.c.l.b16 %v3044
      %v3139 = vunpack.c.l.b16 %v3048
      %v3140 = vunpack.c.l.b16 %v3051
      %v3141 = vunpack.c.l.b16 %v3055
      %v3142 = vunpack.c.l.b16 %v3058
      %v3143 = vunpack.c.l.b16 %v3062
      %v3144 = vunpack.c.l.b16 %v3065
      %v3145 = vunpack.c.l.b16 %v3069
      %v3146 = vunpack.c.l.b16 %v3072
      %v3147 = vunpack.c.l.b16 %v3076
      %v3148 = vunpack.c.l.b16 %v3079
      %v3149 = vunpack.c.l.b16 %v3083
      %v3150 = vunpack.c.l.b16 %v3086
      %v3151 = vunpack.c.l.b16 %v3090
      %v3152 = vunpack.c.l.b16 %v3093
      %v3153 = vunpack.c.l.b16 %v3097
      %v3154 = vunpack.c.l.b16 %v3100
      %v3155 = vunpack.c.l.b16 %v3104
      %v3156 = vunpack.c.l.b16 %v3107
      %v3157 = vunpack.c.l.b16 %v3111
      %v3158 = vunpack.c.l.b16 %v3114
      %v3159 = vunpack.c.l.b16 %v3118
      %v3160 = vunpack.c.l.b16 %v3121
      %v3161 = vunpack.c.l.b16 %v3125
      %v3162 = vunpack.c.l.b16 %v3128
      %v3163 = vpack.c.b16 %v3132, %v3131
      %v3164 = vpack.c.b16 %v3134, %v3133
      %v3165 = vpack.c.b16 %v3136, %v3135
      %v3166 = vpack.c.b16 %v3138, %v3137
      %v3167 = vpack.c.b16 %v3140, %v3139
      %v3168 = vpack.c.b16 %v3142, %v3141
      %v3169 = vpack.c.b16 %v3144, %v3143
      %v3170 = vpack.c.b16 %v3146, %v3145
      %v3171 = vpack.c.b16 %v3148, %v3147
      %v3172 = vpack.c.b16 %v3150, %v3149
      %v3173 = vpack.c.b16 %v3152, %v3151
      %v3174 = vpack.c.b16 %v3154, %v3153
      %v3175 = vpack.c.b16 %v3156, %v3155
      %v3176 = vpack.c.b16 %v3158, %v3157
      %v3177 = vpack.c.b16 %v3160, %v3159
      %v3178 = vpack.c.b16 %v3162, %v3161
      %v3180 = vsel %vm653, %v3163, 0
      %v3183 = vsel %vm653, %v3164, 0
      %v3186 = vsel %vm653, %v3165, 0
      %v3189 = vsel %vm653, %v3166, 0
      %v3192 = vsel %vm653, %v3167, 0
      %v3195 = vsel %vm653, %v3168, 0
      %v3198 = vsel %vm653, %v3169, 0
      %v3201 = vsel %vm653, %v3170, 0
      %v3204 = vsel %vm653, %v3171, 0
      %v3207 = vsel %vm653, %v3172, 0
      %v3210 = vsel %vm653, %v3173, 0
      %v3213 = vsel %vm653, %v3174, 0
      %v3216 = vsel %vm653, %v3175, 0
      %v3219 = vsel %vm653, %v3176, 0
      %v3222 = vsel %vm653, %v3177, 0
      %v3225 = vsel %vm653, %v3178, 0
      %v3228 = vsel %vm702, %v3130, 0
      %3230 = vmatpush.bf16.msra.mxu0 0
      %3231 = vmatpush.bf16.msra.mxu0 0
      %3232 = vmatpush.bf16.msra.mxu0 0
      %3233 = vmatpush.bf16.msra.mxu0 0
      %3234 = vmatpush.bf16.msra.mxu0 0
      %3235 = vmatpush.bf16.msra.mxu0 0
      %3236 = vmatpush.bf16.msra.mxu0 0
      %3237 = vmatpush.bf16.msra.mxu0 %v3228
      %3238 = vmatmul.bf16.gmra.mxu0 %v3180
      %v3239 = vpop.f32.mrf.mxu0
      %v3240 = vadd.f32 0.0, %v3239
      %v3241 = vpop.f32.mrf.mxu0
      %v3242 = vadd.f32 0.0, %v3241
      %3243 = vmatmul.bf16.gmra.mxu0 %v3183
      %v3244 = vpop.f32.mrf.mxu0
      %v3245 = vadd.f32 0.0, %v3244
      %v3246 = vpop.f32.mrf.mxu0
      %v3247 = vadd.f32 0.0, %v3246
      %3248 = vmatmul.bf16.gmra.mxu0 %v3186
      %v3249 = vpop.f32.mrf.mxu0
      %v3250 = vadd.f32 0.0, %v3249
      %v3251 = vpop.f32.mrf.mxu0
      %v3252 = vadd.f32 0.0, %v3251
      %3253 = vmatmul.bf16.gmra.mxu0 %v3189
      %v3254 = vpop.f32.mrf.mxu0
      %v3255 = vadd.f32 0.0, %v3254
      %v3256 = vpop.f32.mrf.mxu0
      %v3257 = vadd.f32 0.0, %v3256
      %3258 = vmatmul.bf16.gmra.mxu0 %v3192
      %v3259 = vpop.f32.mrf.mxu0
      %v3260 = vadd.f32 0.0, %v3259
      %v3261 = vpop.f32.mrf.mxu0
      %v3262 = vadd.f32 0.0, %v3261
      %3263 = vmatmul.bf16.gmra.mxu0 %v3195
      %v3264 = vpop.f32.mrf.mxu0
      %v3265 = vadd.f32 0.0, %v3264
      %v3266 = vpop.f32.mrf.mxu0
      %v3267 = vadd.f32 0.0, %v3266
      %3268 = vmatmul.bf16.gmra.mxu0 %v3198
      %v3269 = vpop.f32.mrf.mxu0
      %v3270 = vadd.f32 0.0, %v3269
      %v3271 = vpop.f32.mrf.mxu0
      %v3272 = vadd.f32 0.0, %v3271
      %3273 = vmatmul.bf16.gmra.mxu0 %v3201
      %v3274 = vpop.f32.mrf.mxu0
      %v3275 = vadd.f32 0.0, %v3274
      %v3276 = vpop.f32.mrf.mxu0
      %v3277 = vadd.f32 0.0, %v3276
      %3278 = vmatmul.bf16.gmra.mxu0 %v3204
      %v3279 = vpop.f32.mrf.mxu0
      %v3280 = vadd.f32 0.0, %v3279
      %v3281 = vpop.f32.mrf.mxu0
      %v3282 = vadd.f32 0.0, %v3281
      %3283 = vmatmul.bf16.gmra.mxu0 %v3207
      %v3284 = vpop.f32.mrf.mxu0
      %v3285 = vadd.f32 0.0, %v3284
      %v3286 = vpop.f32.mrf.mxu0
      %v3287 = vadd.f32 0.0, %v3286
      %3288 = vmatmul.bf16.gmra.mxu0 %v3210
      %v3289 = vpop.f32.mrf.mxu0
      %v3290 = vadd.f32 0.0, %v3289
      %v3291 = vpop.f32.mrf.mxu0
      %v3292 = vadd.f32 0.0, %v3291
      %3293 = vmatmul.bf16.gmra.mxu0 %v3213
      %v3294 = vpop.f32.mrf.mxu0
      %v3295 = vadd.f32 0.0, %v3294
      %v3296 = vpop.f32.mrf.mxu0
      %v3297 = vadd.f32 0.0, %v3296
      %3298 = vmatmul.bf16.gmra.mxu0 %v3216
      %v3299 = vpop.f32.mrf.mxu0
      %v3300 = vadd.f32 0.0, %v3299
      %v3301 = vpop.f32.mrf.mxu0
      %v3302 = vadd.f32 0.0, %v3301
      %3303 = vmatmul.bf16.gmra.mxu0 %v3219
      %v3304 = vpop.f32.mrf.mxu0
      %v3305 = vadd.f32 0.0, %v3304
      %v3306 = vpop.f32.mrf.mxu0
      %v3307 = vadd.f32 0.0, %v3306
      %3308 = vmatmul.bf16.gmra.mxu0 %v3222
      %v3309 = vpop.f32.mrf.mxu0
      %v3310 = vadd.f32 0.0, %v3309
      %v3311 = vpop.f32.mrf.mxu0
      %v3312 = vadd.f32 0.0, %v3311
      %3313 = vmatmul.bf16.gmra.mxu0 %v3225
      %v3314 = vpop.f32.mrf.mxu0
      %v3315 = vadd.f32 0.0, %v3314
      %v3316 = vpop.f32.mrf.mxu0
      %v3317 = vadd.f32 0.0, %v3316
      %3318 = vdwg.mxu0
      %v3319 = vadd.f32 %v2921, %v3240
      %v3320 = vadd.f32 %v2922, %v3242
      %v3321 = vadd.f32 %v2923, %v3245
      %v3322 = vadd.f32 %v2924, %v3247
      %v3323 = vadd.f32 %v2925, %v3250
      %v3324 = vadd.f32 %v2926, %v3252
      %v3325 = vadd.f32 %v2927, %v3255
      %v3326 = vadd.f32 %v2928, %v3257
      %v3327 = vadd.f32 %v2929, %v3260
      %v3328 = vadd.f32 %v2930, %v3262
      %v3329 = vadd.f32 %v2931, %v3265
      %v3330 = vadd.f32 %v2932, %v3267
      %v3331 = vadd.f32 %v2933, %v3270
      %v3332 = vadd.f32 %v2934, %v3272
      %v3333 = vadd.f32 %v2935, %v3275
      %v3334 = vadd.f32 %v2936, %v3277
      %v3335 = vadd.f32 %v2937, %v3280
      %v3336 = vadd.f32 %v2938, %v3282
      %v3337 = vadd.f32 %v2939, %v3285
      %v3338 = vadd.f32 %v2940, %v3287
      %v3339 = vadd.f32 %v2941, %v3290
      %v3340 = vadd.f32 %v2942, %v3292
      %v3341 = vadd.f32 %v2943, %v3295
      %v3342 = vadd.f32 %v2944, %v3297
      %v3343 = vadd.f32 %v2945, %v3300
      %v3344 = vadd.f32 %v2946, %v3302
      %v3345 = vadd.f32 %v2947, %v3305
      %v3346 = vadd.f32 %v2948, %v3307
      %v3347 = vadd.f32 %v2949, %v3310
      %v3348 = vadd.f32 %v2950, %v3312
      %v3349 = vadd.f32 %v2951, %v3315
      %v3350 = vadd.f32 %v2952, %v3317
      %v3351 = vld [vmem:[%s2012 + $0x8] sm:$0x3]
      %v3352 = vld [vmem:[%s2012 + $0x14] sm:$0x3]
      %v3353 = vld [vmem:[%s2012 + $0x20] sm:$0x3]
      %v3354 = vld [vmem:[%s2012 + $0x2c] sm:$0x3]
      %v3355 = vld [vmem:[%s2012 + $0x38] sm:$0x3]
      %v3356 = vld [vmem:[%s2012 + $0x44] sm:$0x3]
      %v3357 = vld [vmem:[%s2012 + $0x50] sm:$0x3]
      %v3358 = vld [vmem:[%s2012 + $0x5c] sm:$0x3]
      %v3359 = vld [vmem:[%s2012 + $0x68] sm:$0x3]
      %v3360 = vld [vmem:[%s2012 + $0x74] sm:$0x3]
      %v3361 = vld [vmem:[%s2012 + $0x80] sm:$0x3]
      %v3362 = vld [vmem:[%s2012 + $0x8c] sm:$0x3]
      %v3363 = vld [vmem:[%s2012 + $0x98] sm:$0x3]
      %v3364 = vld [vmem:[%s2012 + $0xa4] sm:$0x3]
      %v3365 = vld [vmem:[%s2012 + $0xb0] sm:$0x3]
      %v3366 = vld [vmem:[%s2012 + $0xbc] sm:$0x3]
      %v3368 = vshrl.u32 %v2953, 16
      %v3370 = vrot.slane %v3368, 5
      %v3371 = vshll.u32 %v2953, 16
      %v3373 = vrot.slane %v3371, 6
      %v3374 = vor.u32 %v3370, %v3373
      %v3375 = vrot.slane %v3374, 4
      %v3376 = vrot.slane %v2361, 5
      %v3377 = vrot.slane %v2357, 6
      %v3378 = vor.u32 %v3376, %v3377
      %v3379 = vsel %vm1418, %v3375, %v3378
      %v3380 = vrot.slane %v3378, 4
      %v3382 = vshrl.u32 %v3351, 16
      %v3384 = vrot.slane %v3382, 5
      %v3385 = vshll.u32 %v3351, 16
      %v3387 = vrot.slane %v3385, 6
      %v3388 = vor.u32 %v3384, %v3387
      %v3389 = vsel %vm1418, %v3380, %v3388
      %v3391 = vshrl.u32 %v2954, 16
      %v3393 = vrot.slane %v3391, 5
      %v3394 = vshll.u32 %v2954, 16
      %v3396 = vrot.slane %v3394, 6
      %v3397 = vor.u32 %v3393, %v3396
      %v3398 = vrot.slane %v3397, 4
      %v3399 = vrot.slane %v2385, 5
      %v3400 = vrot.slane %v2381, 6
      %v3401 = vor.u32 %v3399, %v3400
      %v3402 = vsel %vm1418, %v3398, %v3401
      %v3403 = vrot.slane %v3401, 4
      %v3405 = vshrl.u32 %v3352, 16
      %v3407 = vrot.slane %v3405, 5
      %v3408 = vshll.u32 %v3352, 16
      %v3410 = vrot.slane %v3408, 6
      %v3411 = vor.u32 %v3407, %v3410
      %v3412 = vsel %vm1418, %v3403, %v3411
      %v3414 = vshrl.u32 %v2955, 16
      %v3416 = vrot.slane %v3414, 5
      %v3417 = vshll.u32 %v2955, 16
      %v3419 = vrot.slane %v3417, 6
      %v3420 = vor.u32 %v3416, %v3419
      %v3421 = vrot.slane %v3420, 4
      %v3422 = vrot.slane %v2409, 5
      %v3423 = vrot.slane %v2405, 6
      %v3424 = vor.u32 %v3422, %v3423
      %v3425 = vsel %vm1418, %v3421, %v3424
      %v3426 = vrot.slane %v3424, 4
      %v3428 = vshrl.u32 %v3353, 16
      %v3430 = vrot.slane %v3428, 5
      %v3431 = vshll.u32 %v3353, 16
      %v3433 = vrot.slane %v3431, 6
      %v3434 = vor.u32 %v3430, %v3433
      %v3435 = vsel %vm1418, %v3426, %v3434
      %v3437 = vshrl.u32 %v2956, 16
      %v3439 = vrot.slane %v3437, 5
      %v3440 = vshll.u32 %v2956, 16
      %v3442 = vrot.slane %v3440, 6
      %v3443 = vor.u32 %v3439, %v3442
      %v3444 = vrot.slane %v3443, 4
      %v3445 = vrot.slane %v2433, 5
      %v3446 = vrot.slane %v2429, 6
      %v3447 = vor.u32 %v3445, %v3446
      %v3448 = vsel %vm1418, %v3444, %v3447
      %v3449 = vrot.slane %v3447, 4
      %v3451 = vshrl.u32 %v3354, 16
      %v3453 = vrot.slane %v3451, 5
      %v3454 = vshll.u32 %v3354, 16
      %v3456 = vrot.slane %v3454, 6
      %v3457 = vor.u32 %v3453, %v3456
      %v3458 = vsel %vm1418, %v3449, %v3457
      %v3460 = vshrl.u32 %v2957, 16
      %v3462 = vrot.slane %v3460, 5
      %v3463 = vshll.u32 %v2957, 16
      %v3465 = vrot.slane %v3463, 6
      %v3466 = vor.u32 %v3462, %v3465
      %v3467 = vrot.slane %v3466, 4
      %v3468 = vrot.slane %v2457, 5
      %v3469 = vrot.slane %v2453, 6
      %v3470 = vor.u32 %v3468, %v3469
      %v3471 = vsel %vm1418, %v3467, %v3470
      %v3472 = vrot.slane %v3470, 4
      %v3474 = vshrl.u32 %v3355, 16
      %v3476 = vrot.slane %v3474, 5
      %v3477 = vshll.u32 %v3355, 16
      %v3479 = vrot.slane %v3477, 6
      %v3480 = vor.u32 %v3476, %v3479
      %v3481 = vsel %vm1418, %v3472, %v3480
      %v3483 = vshrl.u32 %v2958, 16
      %v3485 = vrot.slane %v3483, 5
      %v3486 = vshll.u32 %v2958, 16
      %v3488 = vrot.slane %v3486, 6
      %v3489 = vor.u32 %v3485, %v3488
      %v3490 = vrot.slane %v3489, 4
      %v3491 = vrot.slane %v2481, 5
      %v3492 = vrot.slane %v2477, 6
      %v3493 = vor.u32 %v3491, %v3492
      %v3494 = vsel %vm1418, %v3490, %v3493
      %v3495 = vrot.slane %v3493, 4
      %v3497 = vshrl.u32 %v3356, 16
      %v3499 = vrot.slane %v3497, 5
      %v3500 = vshll.u32 %v3356, 16
      %v3502 = vrot.slane %v3500, 6
      %v3503 = vor.u32 %v3499, %v3502
      %v3504 = vsel %vm1418, %v3495, %v3503
      %v3506 = vshrl.u32 %v2959, 16
      %v3508 = vrot.slane %v3506, 5
      %v3509 = vshll.u32 %v2959, 16
      %v3511 = vrot.slane %v3509, 6
      %v3512 = vor.u32 %v3508, %v3511
      %v3513 = vrot.slane %v3512, 4
      %v3514 = vrot.slane %v2505, 5
      %v3515 = vrot.slane %v2501, 6
      %v3516 = vor.u32 %v3514, %v3515
      %v3517 = vsel %vm1418, %v3513, %v3516
      %v3518 = vrot.slane %v3516, 4
      %v3520 = vshrl.u32 %v3357, 16
      %v3522 = vrot.slane %v3520, 5
      %v3523 = vshll.u32 %v3357, 16
      %v3525 = vrot.slane %v3523, 6
      %v3526 = vor.u32 %v3522, %v3525
      %v3527 = vsel %vm1418, %v3518, %v3526
      %v3529 = vshrl.u32 %v2960, 16
      %v3531 = vrot.slane %v3529, 5
      %v3532 = vshll.u32 %v2960, 16
      %v3534 = vrot.slane %v3532, 6
      %v3535 = vor.u32 %v3531, %v3534
      %v3536 = vrot.slane %v3535, 4
      %v3537 = vrot.slane %v2529, 5
      %v3538 = vrot.slane %v2525, 6
      %v3539 = vor.u32 %v3537, %v3538
      %v3540 = vsel %vm1418, %v3536, %v3539
      %v3541 = vrot.slane %v3539, 4
      %v3543 = vshrl.u32 %v3358, 16
      %v3545 = vrot.slane %v3543, 5
      %v3546 = vshll.u32 %v3358, 16
      %v3548 = vrot.slane %v3546, 6
      %v3549 = vor.u32 %v3545, %v3548
      %v3550 = vsel %vm1418, %v3541, %v3549
      %v3552 = vshrl.u32 %v2961, 16
      %v3554 = vrot.slane %v3552, 5
      %v3555 = vshll.u32 %v2961, 16
      %v3557 = vrot.slane %v3555, 6
      %v3558 = vor.u32 %v3554, %v3557
      %v3559 = vrot.slane %v3558, 4
      %v3560 = vrot.slane %v2553, 5
      %v3561 = vrot.slane %v2549, 6
      %v3562 = vor.u32 %v3560, %v3561
      %v3563 = vsel %vm1418, %v3559, %v3562
      %v3564 = vrot.slane %v3562, 4
      %v3566 = vshrl.u32 %v3359, 16
      %v3568 = vrot.slane %v3566, 5
      %v3569 = vshll.u32 %v3359, 16
      %v3571 = vrot.slane %v3569, 6
      %v3572 = vor.u32 %v3568, %v3571
      %v3573 = vsel %vm1418, %v3564, %v3572
      %v3575 = vshrl.u32 %v2962, 16
      %v3577 = vrot.slane %v3575, 5
      %v3578 = vshll.u32 %v2962, 16
      %v3580 = vrot.slane %v3578, 6
      %v3581 = vor.u32 %v3577, %v3580
      %v3582 = vrot.slane %v3581, 4
      %v3583 = vrot.slane %v2577, 5
      %v3584 = vrot.slane %v2573, 6
      %v3585 = vor.u32 %v3583, %v3584
      %v3586 = vsel %vm1418, %v3582, %v3585
      %v3587 = vrot.slane %v3585, 4
      %v3589 = vshrl.u32 %v3360, 16
      %v3591 = vrot.slane %v3589, 5
      %v3592 = vshll.u32 %v3360, 16
      %v3594 = vrot.slane %v3592, 6
      %v3595 = vor.u32 %v3591, %v3594
      %v3596 = vsel %vm1418, %v3587, %v3595
      %v3598 = vshrl.u32 %v2963, 16
      %v3600 = vrot.slane %v3598, 5
      %v3601 = vshll.u32 %v2963, 16
      %v3603 = vrot.slane %v3601, 6
      %v3604 = vor.u32 %v3600, %v3603
      %v3605 = vrot.slane %v3604, 4
      %v3606 = vrot.slane %v2601, 5
      %v3607 = vrot.slane %v2597, 6
      %v3608 = vor.u32 %v3606, %v3607
      %v3609 = vsel %vm1418, %v3605, %v3608
      %v3610 = vrot.slane %v3608, 4
      %v3612 = vshrl.u32 %v3361, 16
      %v3614 = vrot.slane %v3612, 5
      %v3615 = vshll.u32 %v3361, 16
      %v3617 = vrot.slane %v3615, 6
      %v3618 = vor.u32 %v3614, %v3617
      %v3619 = vsel %vm1418, %v3610, %v3618
      %v3621 = vshrl.u32 %v2964, 16
      %v3623 = vrot.slane %v3621, 5
      %v3624 = vshll.u32 %v2964, 16
      %v3626 = vrot.slane %v3624, 6
      %v3627 = vor.u32 %v3623, %v3626
      %v3628 = vrot.slane %v3627, 4
      %v3629 = vrot.slane %v2625, 5
      %v3630 = vrot.slane %v2621, 6
      %v3631 = vor.u32 %v3629, %v3630
      %v3632 = vsel %vm1418, %v3628, %v3631
      %v3633 = vrot.slane %v3631, 4
      %v3635 = vshrl.u32 %v3362, 16
      %v3637 = vrot.slane %v3635, 5
      %v3638 = vshll.u32 %v3362, 16
      %v3640 = vrot.slane %v3638, 6
      %v3641 = vor.u32 %v3637, %v3640
      %v3642 = vsel %vm1418, %v3633, %v3641
      %v3644 = vshrl.u32 %v2965, 16
      %v3646 = vrot.slane %v3644, 5
      %v3647 = vshll.u32 %v2965, 16
      %v3649 = vrot.slane %v3647, 6
      %v3650 = vor.u32 %v3646, %v3649
      %v3651 = vrot.slane %v3650, 4
      %v3652 = vrot.slane %v2649, 5
      %v3653 = vrot.slane %v2645, 6
      %v3654 = vor.u32 %v3652, %v3653
      %v3655 = vsel %vm1418, %v3651, %v3654
      %v3656 = vrot.slane %v3654, 4
      %v3658 = vshrl.u32 %v3363, 16
      %v3660 = vrot.slane %v3658, 5
      %v3661 = vshll.u32 %v3363, 16
      %v3663 = vrot.slane %v3661, 6
      %v3664 = vor.u32 %v3660, %v3663
      %v3665 = vsel %vm1418, %v3656, %v3664
      %v3667 = vshrl.u32 %v2966, 16
      %v3669 = vrot.slane %v3667, 5
      %v3670 = vshll.u32 %v2966, 16
      %v3672 = vrot.slane %v3670, 6
      %v3673 = vor.u32 %v3669, %v3672
      %v3674 = vrot.slane %v3673, 4
      %v3675 = vrot.slane %v2673, 5
      %v3676 = vrot.slane %v2669, 6
      %v3677 = vor.u32 %v3675, %v3676
      %v3678 = vsel %vm1418, %v3674, %v3677
      %v3679 = vrot.slane %v3677, 4
      %v3681 = vshrl.u32 %v3364, 16
      %v3683 = vrot.slane %v3681, 5
      %v3684 = vshll.u32 %v3364, 16
      %v3686 = vrot.slane %v3684, 6
      %v3687 = vor.u32 %v3683, %v3686
      %v3688 = vsel %vm1418, %v3679, %v3687
      %v3690 = vshrl.u32 %v2967, 16
      %v3692 = vrot.slane %v3690, 5
      %v3693 = vshll.u32 %v2967, 16
      %v3695 = vrot.slane %v3693, 6
      %v3696 = vor.u32 %v3692, %v3695
      %v3697 = vrot.slane %v3696, 4
      %v3698 = vrot.slane %v2697, 5
      %v3699 = vrot.slane %v2693, 6
      %v3700 = vor.u32 %v3698, %v3699
      %v3701 = vsel %vm1418, %v3697, %v3700
      %v3702 = vrot.slane %v3700, 4
      %v3704 = vshrl.u32 %v3365, 16
      %v3706 = vrot.slane %v3704, 5
      %v3707 = vshll.u32 %v3365, 16
      %v3709 = vrot.slane %v3707, 6
      %v3710 = vor.u32 %v3706, %v3709
      %v3711 = vsel %vm1418, %v3702, %v3710
      %v3713 = vshrl.u32 %v2968, 16
      %v3715 = vrot.slane %v3713, 5
      %v3716 = vshll.u32 %v2968, 16
      %v3718 = vrot.slane %v3716, 6
      %v3719 = vor.u32 %v3715, %v3718
      %v3720 = vrot.slane %v3719, 4
      %v3721 = vrot.slane %v2721, 5
      %v3722 = vrot.slane %v2717, 6
      %v3723 = vor.u32 %v3721, %v3722
      %v3724 = vsel %vm1418, %v3720, %v3723
      %v3725 = vrot.slane %v3723, 4
      %v3727 = vshrl.u32 %v3366, 16
      %v3729 = vrot.slane %v3727, 5
      %v3730 = vshll.u32 %v3366, 16
      %v3732 = vrot.slane %v3730, 6
      %v3733 = vor.u32 %v3729, %v3732
      %v3734 = vsel %vm1418, %v3725, %v3733
      %s3735 = scalar_lea.vmem %s1, 28
      %v3736 = vld [vmem:[%s3735] sm:$0xf]
      %v3737 = vunpack.c.l.b16 %v3379
      %v3738 = vunpack.c.l.b16 %v3389
      %v3739 = vunpack.c.l.b16 %v3402
      %v3740 = vunpack.c.l.b16 %v3412
      %v3741 = vunpack.c.l.b16 %v3425
      %v3742 = vunpack.c.l.b16 %v3435
      %v3743 = vunpack.c.l.b16 %v3448
      %v3744 = vunpack.c.l.b16 %v3458
      %v3745 = vunpack.c.l.b16 %v3471
      %v3746 = vunpack.c.l.b16 %v3481
      %v3747 = vunpack.c.l.b16 %v3494
      %v3748 = vunpack.c.l.b16 %v3504
      %v3749 = vunpack.c.l.b16 %v3517
      %v3750 = vunpack.c.l.b16 %v3527
      %v3751 = vunpack.c.l.b16 %v3540
      %v3752 = vunpack.c.l.b16 %v3550
      %v3753 = vunpack.c.l.b16 %v3563
      %v3754 = vunpack.c.l.b16 %v3573
      %v3755 = vunpack.c.l.b16 %v3586
      %v3756 = vunpack.c.l.b16 %v3596
      %v3757 = vunpack.c.l.b16 %v3609
      %v3758 = vunpack.c.l.b16 %v3619
      %v3759 = vunpack.c.l.b16 %v3632
      %v3760 = vunpack.c.l.b16 %v3642
      %v3761 = vunpack.c.l.b16 %v3655
      %v3762 = vunpack.c.l.b16 %v3665
      %v3763 = vunpack.c.l.b16 %v3678
      %v3764 = vunpack.c.l.b16 %v3688
      %v3765 = vunpack.c.l.b16 %v3701
      %v3766 = vunpack.c.l.b16 %v3711
      %v3767 = vunpack.c.l.b16 %v3724
      %v3768 = vunpack.c.l.b16 %v3734
      %v3769 = vpack.c.b16 %v3738, %v3737
      %v3770 = vpack.c.b16 %v3740, %v3739
      %v3771 = vpack.c.b16 %v3742, %v3741
      %v3772 = vpack.c.b16 %v3744, %v3743
      %v3773 = vpack.c.b16 %v3746, %v3745
      %v3774 = vpack.c.b16 %v3748, %v3747
      %v3775 = vpack.c.b16 %v3750, %v3749
      %v3776 = vpack.c.b16 %v3752, %v3751
      %v3777 = vpack.c.b16 %v3754, %v3753
      %v3778 = vpack.c.b16 %v3756, %v3755
      %v3779 = vpack.c.b16 %v3758, %v3757
      %v3780 = vpack.c.b16 %v3760, %v3759
      %v3781 = vpack.c.b16 %v3762, %v3761
      %v3782 = vpack.c.b16 %v3764, %v3763
      %v3783 = vpack.c.b16 %v3766, %v3765
      %v3784 = vpack.c.b16 %v3768, %v3767
      %v3786 = vsel %vm653, %v3769, 0
      %v3789 = vsel %vm653, %v3770, 0
      %v3792 = vsel %vm653, %v3771, 0
      %v3795 = vsel %vm653, %v3772, 0
      %v3798 = vsel %vm653, %v3773, 0
      %v3801 = vsel %vm653, %v3774, 0
      %v3804 = vsel %vm653, %v3775, 0
      %v3807 = vsel %vm653, %v3776, 0
      %v3810 = vsel %vm653, %v3777, 0
      %v3813 = vsel %vm653, %v3778, 0
      %v3816 = vsel %vm653, %v3779, 0
      %v3819 = vsel %vm653, %v3780, 0
      %v3822 = vsel %vm653, %v3781, 0
      %v3825 = vsel %vm653, %v3782, 0
      %v3828 = vsel %vm653, %v3783, 0
      %v3831 = vsel %vm653, %v3784, 0
      %v3834 = vsel %vm702, %v3736, 0
      %3836 = vmatpush.bf16.msra.mxu0 0
      %3837 = vmatpush.bf16.msra.mxu0 0
      %3838 = vmatpush.bf16.msra.mxu0 0
      %3839 = vmatpush.bf16.msra.mxu0 0
      %3840 = vmatpush.bf16.msra.mxu0 0
      %3841 = vmatpush.bf16.msra.mxu0 0
      %3842 = vmatpush.bf16.msra.mxu0 0
      %3843 = vmatpush.bf16.msra.mxu0 %v3834
      %3844 = vmatmul.bf16.gmra.mxu0 %v3786
      %v3845 = vpop.f32.mrf.mxu0
      %v3846 = vadd.f32 0.0, %v3845
      %v3847 = vpop.f32.mrf.mxu0
      %v3848 = vadd.f32 0.0, %v3847
      %3849 = vmatmul.bf16.gmra.mxu0 %v3789
      %v3850 = vpop.f32.mrf.mxu0
      %v3851 = vadd.f32 0.0, %v3850
      %v3852 = vpop.f32.mrf.mxu0
      %v3853 = vadd.f32 0.0, %v3852
      %3854 = vmatmul.bf16.gmra.mxu0 %v3792
      %v3855 = vpop.f32.mrf.mxu0
      %v3856 = vadd.f32 0.0, %v3855
      %v3857 = vpop.f32.mrf.mxu0
      %v3858 = vadd.f32 0.0, %v3857
      %3859 = vmatmul.bf16.gmra.mxu0 %v3795
      %v3860 = vpop.f32.mrf.mxu0
      %v3861 = vadd.f32 0.0, %v3860
      %v3862 = vpop.f32.mrf.mxu0
      %v3863 = vadd.f32 0.0, %v3862
      %3864 = vmatmul.bf16.gmra.mxu0 %v3798
      %v3865 = vpop.f32.mrf.mxu0
      %v3866 = vadd.f32 0.0, %v3865
      %v3867 = vpop.f32.mrf.mxu0
      %v3868 = vadd.f32 0.0, %v3867
      %3869 = vmatmul.bf16.gmra.mxu0 %v3801
      %v3870 = vpop.f32.mrf.mxu0
      %v3871 = vadd.f32 0.0, %v3870
      %v3872 = vpop.f32.mrf.mxu0
      %v3873 = vadd.f32 0.0, %v3872
      %3874 = vmatmul.bf16.gmra.mxu0 %v3804
      %v3875 = vpop.f32.mrf.mxu0
      %v3876 = vadd.f32 0.0, %v3875
      %v3877 = vpop.f32.mrf.mxu0
      %v3878 = vadd.f32 0.0, %v3877
      %3879 = vmatmul.bf16.gmra.mxu0 %v3807
      %v3880 = vpop.f32.mrf.mxu0
      %v3881 = vadd.f32 0.0, %v3880
      %v3882 = vpop.f32.mrf.mxu0
      %v3883 = vadd.f32 0.0, %v3882
      %3884 = vmatmul.bf16.gmra.mxu0 %v3810
      %v3885 = vpop.f32.mrf.mxu0
      %v3886 = vadd.f32 0.0, %v3885
      %v3887 = vpop.f32.mrf.mxu0
      %v3888 = vadd.f32 0.0, %v3887
      %3889 = vmatmul.bf16.gmra.mxu0 %v3813
      %v3890 = vpop.f32.mrf.mxu0
      %v3891 = vadd.f32 0.0, %v3890
      %v3892 = vpop.f32.mrf.mxu0
      %v3893 = vadd.f32 0.0, %v3892
      %3894 = vmatmul.bf16.gmra.mxu0 %v3816
      %v3895 = vpop.f32.mrf.mxu0
      %v3896 = vadd.f32 0.0, %v3895
      %v3897 = vpop.f32.mrf.mxu0
      %v3898 = vadd.f32 0.0, %v3897
      %3899 = vmatmul.bf16.gmra.mxu0 %v3819
      %v3900 = vpop.f32.mrf.mxu0
      %v3901 = vadd.f32 0.0, %v3900
      %v3902 = vpop.f32.mrf.mxu0
      %v3903 = vadd.f32 0.0, %v3902
      %3904 = vmatmul.bf16.gmra.mxu0 %v3822
      %v3905 = vpop.f32.mrf.mxu0
      %v3906 = vadd.f32 0.0, %v3905
      %v3907 = vpop.f32.mrf.mxu0
      %v3908 = vadd.f32 0.0, %v3907
      %3909 = vmatmul.bf16.gmra.mxu0 %v3825
      %v3910 = vpop.f32.mrf.mxu0
      %v3911 = vadd.f32 0.0, %v3910
      %v3912 = vpop.f32.mrf.mxu0
      %v3913 = vadd.f32 0.0, %v3912
      %3914 = vmatmul.bf16.gmra.mxu0 %v3828
      %v3915 = vpop.f32.mrf.mxu0
      %v3916 = vadd.f32 0.0, %v3915
      %v3917 = vpop.f32.mrf.mxu0
      %v3918 = vadd.f32 0.0, %v3917
      %3919 = vmatmul.bf16.gmra.mxu0 %v3831
      %v3920 = vpop.f32.mrf.mxu0
      %v3921 = vadd.f32 0.0, %v3920
      %v3922 = vpop.f32.mrf.mxu0
      %v3923 = vadd.f32 0.0, %v3922
      %3924 = vdwg.mxu0
      %v3925 = vadd.f32 %v3319, %v3846
      %v3926 = vadd.f32 %v3320, %v3848
      %v3927 = vadd.f32 %v3321, %v3851
      %v3928 = vadd.f32 %v3322, %v3853
      %v3929 = vadd.f32 %v3323, %v3856
      %v3930 = vadd.f32 %v3324, %v3858
      %v3931 = vadd.f32 %v3325, %v3861
      %v3932 = vadd.f32 %v3326, %v3863
      %v3933 = vadd.f32 %v3327, %v3866
      %v3934 = vadd.f32 %v3328, %v3868
      %v3935 = vadd.f32 %v3329, %v3871
      %v3936 = vadd.f32 %v3330, %v3873
      %v3937 = vadd.f32 %v3331, %v3876
      %v3938 = vadd.f32 %v3332, %v3878
      %v3939 = vadd.f32 %v3333, %v3881
      %v3940 = vadd.f32 %v3334, %v3883
      %v3941 = vadd.f32 %v3335, %v3886
      %v3942 = vadd.f32 %v3336, %v3888
      %v3943 = vadd.f32 %v3337, %v3891
      %v3944 = vadd.f32 %v3338, %v3893
      %v3945 = vadd.f32 %v3339, %v3896
      %v3946 = vadd.f32 %v3340, %v3898
      %v3947 = vadd.f32 %v3341, %v3901
      %v3948 = vadd.f32 %v3342, %v3903
      %v3949 = vadd.f32 %v3343, %v3906
      %v3950 = vadd.f32 %v3344, %v3908
      %v3951 = vadd.f32 %v3345, %v3911
      %v3952 = vadd.f32 %v3346, %v3913
      %v3953 = vadd.f32 %v3347, %v3916
      %v3954 = vadd.f32 %v3348, %v3918
      %v3955 = vadd.f32 %v3349, %v3921
      %v3956 = vadd.f32 %v3350, %v3923
      %s3957 = sadd.s32 %s163, 2
      %s3958 = smul.u32 %s3957, 3
      %s3959 = smul.addr %s3958, 4
      %s3960 = scalar_lea.vmem %s153, %s3959
      %v3961 = vld [vmem:[%s3960] sm:$0xf]
      %v3962 = vld [vmem:[%s3960 + $0x4] sm:$0xf]
      %v3963 = vld [vmem:[%s3960 + $0xc] sm:$0xf]
      %v3964 = vld [vmem:[%s3960 + $0x10] sm:$0xf]
      %v3965 = vld [vmem:[%s3960 + $0x18] sm:$0xf]
      %v3966 = vld [vmem:[%s3960 + $0x1c] sm:$0xf]
      %v3967 = vld [vmem:[%s3960 + $0x24] sm:$0xf]
      %v3968 = vld [vmem:[%s3960 + $0x28] sm:$0xf]
      %v3969 = vld [vmem:[%s3960 + $0x30] sm:$0xf]
      %v3970 = vld [vmem:[%s3960 + $0x34] sm:$0xf]
      %v3971 = vld [vmem:[%s3960 + $0x3c] sm:$0xf]
      %v3972 = vld [vmem:[%s3960 + $0x40] sm:$0xf]
      %v3973 = vld [vmem:[%s3960 + $0x48] sm:$0xf]
      %v3974 = vld [vmem:[%s3960 + $0x4c] sm:$0xf]
      %v3975 = vld [vmem:[%s3960 + $0x54] sm:$0xf]
      %v3976 = vld [vmem:[%s3960 + $0x58] sm:$0xf]
      %v3977 = vld [vmem:[%s3960 + $0x60] sm:$0xf]
      %v3978 = vld [vmem:[%s3960 + $0x64] sm:$0xf]
      %v3979 = vld [vmem:[%s3960 + $0x6c] sm:$0xf]
      %v3980 = vld [vmem:[%s3960 + $0x70] sm:$0xf]
      %v3981 = vld [vmem:[%s3960 + $0x78] sm:$0xf]
      %v3982 = vld [vmem:[%s3960 + $0x7c] sm:$0xf]
      %v3983 = vld [vmem:[%s3960 + $0x84] sm:$0xf]
      %v3984 = vld [vmem:[%s3960 + $0x88] sm:$0xf]
      %v3985 = vld [vmem:[%s3960 + $0x90] sm:$0xf]
      %v3986 = vld [vmem:[%s3960 + $0x94] sm:$0xf]
      %v3987 = vld [vmem:[%s3960 + $0x9c] sm:$0xf]
      %v3988 = vld [vmem:[%s3960 + $0xa0] sm:$0xf]
      %v3989 = vld [vmem:[%s3960 + $0xa8] sm:$0xf]
      %v3990 = vld [vmem:[%s3960 + $0xac] sm:$0xf]
      %v3991 = vld [vmem:[%s3960 + $0xb4] sm:$0xf]
      %v3992 = vld [vmem:[%s3960 + $0xb8] sm:$0xf]
      %s3993 = scalar_lea.vmem %s1, 32
      %v3994 = vld [vmem:[%s3993] sm:$0xf]
      %v4027 = vunpack.c.l.b16 %v3961
      %v4028 = vunpack.c.l.b16 %v3962
      %v4029 = vunpack.c.l.b16 %v3963
      %v4030 = vunpack.c.l.b16 %v3964
      %v4031 = vunpack.c.l.b16 %v3965
      %v4032 = vunpack.c.l.b16 %v3966
      %v4033 = vunpack.c.l.b16 %v3967
      %v4034 = vunpack.c.l.b16 %v3968
      %v4035 = vunpack.c.l.b16 %v3969
      %v4036 = vunpack.c.l.b16 %v3970
      %v4037 = vunpack.c.l.b16 %v3971
      %v4038 = vunpack.c.l.b16 %v3972
      %v4039 = vunpack.c.l.b16 %v3973
      %v4040 = vunpack.c.l.b16 %v3974
      %v4041 = vunpack.c.l.b16 %v3975
      %v4042 = vunpack.c.l.b16 %v3976
      %v4043 = vunpack.c.l.b16 %v3977
      %v4044 = vunpack.c.l.b16 %v3978
      %v4045 = vunpack.c.l.b16 %v3979
      %v4046 = vunpack.c.l.b16 %v3980
      %v4047 = vunpack.c.l.b16 %v3981
      %v4048 = vunpack.c.l.b16 %v3982
      %v4049 = vunpack.c.l.b16 %v3983
      %v4050 = vunpack.c.l.b16 %v3984
      %v4051 = vunpack.c.l.b16 %v3985
      %v4052 = vunpack.c.l.b16 %v3986
      %v4053 = vunpack.c.l.b16 %v3987
      %v4054 = vunpack.c.l.b16 %v3988
      %v4055 = vunpack.c.l.b16 %v3989
      %v4056 = vunpack.c.l.b16 %v3990
      %v4057 = vunpack.c.l.b16 %v3991
      %v4058 = vunpack.c.l.b16 %v3992
      %v4059 = vpack.c.b16 %v4028, %v4027
      %v4060 = vpack.c.b16 %v4030, %v4029
      %v4061 = vpack.c.b16 %v4032, %v4031
      %v4062 = vpack.c.b16 %v4034, %v4033
      %v4063 = vpack.c.b16 %v4036, %v4035
      %v4064 = vpack.c.b16 %v4038, %v4037
      %v4065 = vpack.c.b16 %v4040, %v4039
      %v4066 = vpack.c.b16 %v4042, %v4041
      %v4067 = vpack.c.b16 %v4044, %v4043
      %v4068 = vpack.c.b16 %v4046, %v4045
      %v4069 = vpack.c.b16 %v4048, %v4047
      %v4070 = vpack.c.b16 %v4050, %v4049
      %v4071 = vpack.c.b16 %v4052, %v4051
      %v4072 = vpack.c.b16 %v4054, %v4053
      %v4073 = vpack.c.b16 %v4056, %v4055
      %v4074 = vpack.c.b16 %v4058, %v4057
      %v4076 = vsel %vm653, %v4059, 0
      %v4079 = vsel %vm653, %v4060, 0
      %v4082 = vsel %vm653, %v4061, 0
      %v4085 = vsel %vm653, %v4062, 0
      %v4088 = vsel %vm653, %v4063, 0
      %v4091 = vsel %vm653, %v4064, 0
      %v4094 = vsel %vm653, %v4065, 0
      %v4097 = vsel %vm653, %v4066, 0
      %v4100 = vsel %vm653, %v4067, 0
      %v4103 = vsel %vm653, %v4068, 0
      %v4106 = vsel %vm653, %v4069, 0
      %v4109 = vsel %vm653, %v4070, 0
      %v4112 = vsel %vm653, %v4071, 0
      %v4115 = vsel %vm653, %v4072, 0
      %v4118 = vsel %vm653, %v4073, 0
      %v4121 = vsel %vm653, %v4074, 0
      %v4124 = vsel %vm702, %v3994, 0
      %4126 = vmatpush.bf16.msra.mxu0 0
      %4127 = vmatpush.bf16.msra.mxu0 0
      %4128 = vmatpush.bf16.msra.mxu0 0
      %4129 = vmatpush.bf16.msra.mxu0 0
      %4130 = vmatpush.bf16.msra.mxu0 0
      %4131 = vmatpush.bf16.msra.mxu0 0
      %4132 = vmatpush.bf16.msra.mxu0 0
      %4133 = vmatpush.bf16.msra.mxu0 %v4124
      %4134 = vmatmul.bf16.gmra.mxu0 %v4076
      %v4135 = vpop.f32.mrf.mxu0
      %v4136 = vadd.f32 0.0, %v4135
      %v4137 = vpop.f32.mrf.mxu0
      %v4138 = vadd.f32 0.0, %v4137
      %4139 = vmatmul.bf16.gmra.mxu0 %v4079
      %v4140 = vpop.f32.mrf.mxu0
      %v4141 = vadd.f32 0.0, %v4140
      %v4142 = vpop.f32.mrf.mxu0
      %v4143 = vadd.f32 0.0, %v4142
      %4144 = vmatmul.bf16.gmra.mxu0 %v4082
      %v4145 = vpop.f32.mrf.mxu0
      %v4146 = vadd.f32 0.0, %v4145
      %v4147 = vpop.f32.mrf.mxu0
      %v4148 = vadd.f32 0.0, %v4147
      %4149 = vmatmul.bf16.gmra.mxu0 %v4085
      %v4150 = vpop.f32.mrf.mxu0
      %v4151 = vadd.f32 0.0, %v4150
      %v4152 = vpop.f32.mrf.mxu0
      %v4153 = vadd.f32 0.0, %v4152
      %4154 = vmatmul.bf16.gmra.mxu0 %v4088
      %v4155 = vpop.f32.mrf.mxu0
      %v4156 = vadd.f32 0.0, %v4155
      %v4157 = vpop.f32.mrf.mxu0
      %v4158 = vadd.f32 0.0, %v4157
      %4159 = vmatmul.bf16.gmra.mxu0 %v4091
      %v4160 = vpop.f32.mrf.mxu0
      %v4161 = vadd.f32 0.0, %v4160
      %v4162 = vpop.f32.mrf.mxu0
      %v4163 = vadd.f32 0.0, %v4162
      %4164 = vmatmul.bf16.gmra.mxu0 %v4094
      %v4165 = vpop.f32.mrf.mxu0
      %v4166 = vadd.f32 0.0, %v4165
      %v4167 = vpop.f32.mrf.mxu0
      %v4168 = vadd.f32 0.0, %v4167
      %4169 = vmatmul.bf16.gmra.mxu0 %v4097
      %v4170 = vpop.f32.mrf.mxu0
      %v4171 = vadd.f32 0.0, %v4170
      %v4172 = vpop.f32.mrf.mxu0
      %v4173 = vadd.f32 0.0, %v4172
      %4174 = vmatmul.bf16.gmra.mxu0 %v4100
      %v4175 = vpop.f32.mrf.mxu0
      %v4176 = vadd.f32 0.0, %v4175
      %v4177 = vpop.f32.mrf.mxu0
      %v4178 = vadd.f32 0.0, %v4177
      %4179 = vmatmul.bf16.gmra.mxu0 %v4103
      %v4180 = vpop.f32.mrf.mxu0
      %v4181 = vadd.f32 0.0, %v4180
      %v4182 = vpop.f32.mrf.mxu0
      %v4183 = vadd.f32 0.0, %v4182
      %4184 = vmatmul.bf16.gmra.mxu0 %v4106
      %v4185 = vpop.f32.mrf.mxu0
      %v4186 = vadd.f32 0.0, %v4185
      %v4187 = vpop.f32.mrf.mxu0
      %v4188 = vadd.f32 0.0, %v4187
      %4189 = vmatmul.bf16.gmra.mxu0 %v4109
      %v4190 = vpop.f32.mrf.mxu0
      %v4191 = vadd.f32 0.0, %v4190
      %v4192 = vpop.f32.mrf.mxu0
      %v4193 = vadd.f32 0.0, %v4192
      %4194 = vmatmul.bf16.gmra.mxu0 %v4112
      %v4195 = vpop.f32.mrf.mxu0
      %v4196 = vadd.f32 0.0, %v4195
      %v4197 = vpop.f32.mrf.mxu0
      %v4198 = vadd.f32 0.0, %v4197
      %4199 = vmatmul.bf16.gmra.mxu0 %v4115
      %v4200 = vpop.f32.mrf.mxu0
      %v4201 = vadd.f32 0.0, %v4200
      %v4202 = vpop.f32.mrf.mxu0
      %v4203 = vadd.f32 0.0, %v4202
      %4204 = vmatmul.bf16.gmra.mxu0 %v4118
      %v4205 = vpop.f32.mrf.mxu0
      %v4206 = vadd.f32 0.0, %v4205
      %v4207 = vpop.f32.mrf.mxu0
      %v4208 = vadd.f32 0.0, %v4207
      %4209 = vmatmul.bf16.gmra.mxu0 %v4121
      %v4210 = vpop.f32.mrf.mxu0
      %v4211 = vadd.f32 0.0, %v4210
      %v4212 = vpop.f32.mrf.mxu0
      %v4213 = vadd.f32 0.0, %v4212
      %4214 = vdwg.mxu0
      %v4215 = vadd.f32 %v3925, %v4136
      %v4216 = vadd.f32 %v3926, %v4138
      %v4217 = vadd.f32 %v3927, %v4141
      %v4218 = vadd.f32 %v3928, %v4143
      %v4219 = vadd.f32 %v3929, %v4146
      %v4220 = vadd.f32 %v3930, %v4148
      %v4221 = vadd.f32 %v3931, %v4151
      %v4222 = vadd.f32 %v3932, %v4153
      %v4223 = vadd.f32 %v3933, %v4156
      %v4224 = vadd.f32 %v3934, %v4158
      %v4225 = vadd.f32 %v3935, %v4161
      %v4226 = vadd.f32 %v3936, %v4163
      %v4227 = vadd.f32 %v3937, %v4166
      %v4228 = vadd.f32 %v3938, %v4168
      %v4229 = vadd.f32 %v3939, %v4171
      %v4230 = vadd.f32 %v3940, %v4173
      %v4231 = vadd.f32 %v3941, %v4176
      %v4232 = vadd.f32 %v3942, %v4178
      %v4233 = vadd.f32 %v3943, %v4181
      %v4234 = vadd.f32 %v3944, %v4183
      %v4235 = vadd.f32 %v3945, %v4186
      %v4236 = vadd.f32 %v3946, %v4188
      %v4237 = vadd.f32 %v3947, %v4191
      %v4238 = vadd.f32 %v3948, %v4193
      %v4239 = vadd.f32 %v3949, %v4196
      %v4240 = vadd.f32 %v3950, %v4198
      %v4241 = vadd.f32 %v3951, %v4201
      %v4242 = vadd.f32 %v3952, %v4203
      %v4243 = vadd.f32 %v3953, %v4206
      %v4244 = vadd.f32 %v3954, %v4208
      %v4245 = vadd.f32 %v3955, %v4211
      %v4246 = vadd.f32 %v3956, %v4213
      %v4247 = vld [vmem:[%s3960] sm:$0xf]
      %v4248 = vld [vmem:[%s3960 + $0x4] sm:$0xf]
      %v4249 = vld [vmem:[%s3960 + $0x8] sm:$0x1]
      %v4250 = vld [vmem:[%s3960 + $0xc] sm:$0xf]
      %v4251 = vld [vmem:[%s3960 + $0x10] sm:$0xf]
      %v4252 = vld [vmem:[%s3960 + $0x14] sm:$0x1]
      %v4253 = vld [vmem:[%s3960 + $0x18] sm:$0xf]
      %v4254 = vld [vmem:[%s3960 + $0x1c] sm:$0xf]
      %v4255 = vld [vmem:[%s3960 + $0x20] sm:$0x1]
      %v4256 = vld [vmem:[%s3960 + $0x24] sm:$0xf]
      %v4257 = vld [vmem:[%s3960 + $0x28] sm:$0xf]
      %v4258 = vld [vmem:[%s3960 + $0x2c] sm:$0x1]
      %v4259 = vld [vmem:[%s3960 + $0x30] sm:$0xf]
      %v4260 = vld [vmem:[%s3960 + $0x34] sm:$0xf]
      %v4261 = vld [vmem:[%s3960 + $0x38] sm:$0x1]
      %v4262 = vld [vmem:[%s3960 + $0x3c] sm:$0xf]
      %v4263 = vld [vmem:[%s3960 + $0x40] sm:$0xf]
      %v4264 = vld [vmem:[%s3960 + $0x44] sm:$0x1]
      %v4265 = vld [vmem:[%s3960 + $0x48] sm:$0xf]
      %v4266 = vld [vmem:[%s3960 + $0x4c] sm:$0xf]
      %v4267 = vld [vmem:[%s3960 + $0x50] sm:$0x1]
      %v4268 = vld [vmem:[%s3960 + $0x54] sm:$0xf]
      %v4269 = vld [vmem:[%s3960 + $0x58] sm:$0xf]
      %v4270 = vld [vmem:[%s3960 + $0x5c] sm:$0x1]
      %v4271 = vld [vmem:[%s3960 + $0x60] sm:$0xf]
      %v4272 = vld [vmem:[%s3960 + $0x64] sm:$0xf]
      %v4273 = vld [vmem:[%s3960 + $0x68] sm:$0x1]
      %v4274 = vld [vmem:[%s3960 + $0x6c] sm:$0xf]
      %v4275 = vld [vmem:[%s3960 + $0x70] sm:$0xf]
      %v4276 = vld [vmem:[%s3960 + $0x74] sm:$0x1]
      %v4277 = vld [vmem:[%s3960 + $0x78] sm:$0xf]
      %v4278 = vld [vmem:[%s3960 + $0x7c] sm:$0xf]
      %v4279 = vld [vmem:[%s3960 + $0x80] sm:$0x1]
      %v4280 = vld [vmem:[%s3960 + $0x84] sm:$0xf]
      %v4281 = vld [vmem:[%s3960 + $0x88] sm:$0xf]
      %v4282 = vld [vmem:[%s3960 + $0x8c] sm:$0x1]
      %v4283 = vld [vmem:[%s3960 + $0x90] sm:$0xf]
      %v4284 = vld [vmem:[%s3960 + $0x94] sm:$0xf]
      %v4285 = vld [vmem:[%s3960 + $0x98] sm:$0x1]
      %v4286 = vld [vmem:[%s3960 + $0x9c] sm:$0xf]
      %v4287 = vld [vmem:[%s3960 + $0xa0] sm:$0xf]
      %v4288 = vld [vmem:[%s3960 + $0xa4] sm:$0x1]
      %v4289 = vld [vmem:[%s3960 + $0xa8] sm:$0xf]
      %v4290 = vld [vmem:[%s3960 + $0xac] sm:$0xf]
      %v4291 = vld [vmem:[%s3960 + $0xb0] sm:$0x1]
      %v4292 = vld [vmem:[%s3960 + $0xb4] sm:$0xf]
      %v4293 = vld [vmem:[%s3960 + $0xb8] sm:$0xf]
      %v4294 = vld [vmem:[%s3960 + $0xbc] sm:$0x1]
      %v4296 = vshrl.u32 %v4247, 16
      %v4298 = vrot.slane %v4296, 4
      %v4299 = vshll.u32 %v4247, 16
      %v4301 = vrot.slane %v4299, 5
      %v4302 = vor.u32 %v4298, %v4301
      %v4303 = vrot.slane %v4302, 4
      %v4305 = vshll.u32 %v4248, 16
      %v4307 = vrot.slane %v4305, 5
      %v4308 = vsel %vm218, %v4303, %v4307
      %v4309 = vshrl.u32 %v4248, 16
      %v4311 = vrot.slane %v4309, 4
      %v4312 = vor.u32 %v4311, %v4307
      %v4313 = vrot.slane %v4312, 4
      %v4315 = vshll.u32 %v4249, 16
      %v4317 = vrot.slane %v4315, 5
      %v4318 = vsel %vm218, %v4313, %v4317
      %v4320 = vshrl.u32 %v4250, 16
      %v4322 = vrot.slane %v4320, 4
      %v4323 = vshll.u32 %v4250, 16
      %v4325 = vrot.slane %v4323, 5
      %v4326 = vor.u32 %v4322, %v4325
      %v4327 = vrot.slane %v4326, 4
      %v4329 = vshll.u32 %v4251, 16
      %v4331 = vrot.slane %v4329, 5
      %v4332 = vsel %vm218, %v4327, %v4331
      %v4333 = vshrl.u32 %v4251, 16
      %v4335 = vrot.slane %v4333, 4
      %v4336 = vor.u32 %v4335, %v4331
      %v4337 = vrot.slane %v4336, 4
      %v4339 = vshll.u32 %v4252, 16
      %v4341 = vrot.slane %v4339, 5
      %v4342 = vsel %vm218, %v4337, %v4341
      %v4344 = vshrl.u32 %v4253, 16
      %v4346 = vrot.slane %v4344, 4
      %v4347 = vshll.u32 %v4253, 16
      %v4349 = vrot.slane %v4347, 5
      %v4350 = vor.u32 %v4346, %v4349
      %v4351 = vrot.slane %v4350, 4
      %v4353 = vshll.u32 %v4254, 16
      %v4355 = vrot.slane %v4353, 5
      %v4356 = vsel %vm218, %v4351, %v4355
      %v4357 = vshrl.u32 %v4254, 16
      %v4359 = vrot.slane %v4357, 4
      %v4360 = vor.u32 %v4359, %v4355
      %v4361 = vrot.slane %v4360, 4
      %v4363 = vshll.u32 %v4255, 16
      %v4365 = vrot.slane %v4363, 5
      %v4366 = vsel %vm218, %v4361, %v4365
      %v4368 = vshrl.u32 %v4256, 16
      %v4370 = vrot.slane %v4368, 4
      %v4371 = vshll.u32 %v4256, 16
      %v4373 = vrot.slane %v4371, 5
      %v4374 = vor.u32 %v4370, %v4373
      %v4375 = vrot.slane %v4374, 4
      %v4377 = vshll.u32 %v4257, 16
      %v4379 = vrot.slane %v4377, 5
      %v4380 = vsel %vm218, %v4375, %v4379
      %v4381 = vshrl.u32 %v4257, 16
      %v4383 = vrot.slane %v4381, 4
      %v4384 = vor.u32 %v4383, %v4379
      %v4385 = vrot.slane %v4384, 4
      %v4387 = vshll.u32 %v4258, 16
      %v4389 = vrot.slane %v4387, 5
      %v4390 = vsel %vm218, %v4385, %v4389
      %v4392 = vshrl.u32 %v4259, 16
      %v4394 = vrot.slane %v4392, 4
      %v4395 = vshll.u32 %v4259, 16
      %v4397 = vrot.slane %v4395, 5
      %v4398 = vor.u32 %v4394, %v4397
      %v4399 = vrot.slane %v4398, 4
      %v4401 = vshll.u32 %v4260, 16
      %v4403 = vrot.slane %v4401, 5
      %v4404 = vsel %vm218, %v4399, %v4403
      %v4405 = vshrl.u32 %v4260, 16
      %v4407 = vrot.slane %v4405, 4
      %v4408 = vor.u32 %v4407, %v4403
      %v4409 = vrot.slane %v4408, 4
      %v4411 = vshll.u32 %v4261, 16
      %v4413 = vrot.slane %v4411, 5
      %v4414 = vsel %vm218, %v4409, %v4413
      %v4416 = vshrl.u32 %v4262, 16
      %v4418 = vrot.slane %v4416, 4
      %v4419 = vshll.u32 %v4262, 16
      %v4421 = vrot.slane %v4419, 5
      %v4422 = vor.u32 %v4418, %v4421
      %v4423 = vrot.slane %v4422, 4
      %v4425 = vshll.u32 %v4263, 16
      %v4427 = vrot.slane %v4425, 5
      %v4428 = vsel %vm218, %v4423, %v4427
      %v4429 = vshrl.u32 %v4263, 16
      %v4431 = vrot.slane %v4429, 4
      %v4432 = vor.u32 %v4431, %v4427
      %v4433 = vrot.slane %v4432, 4
      %v4435 = vshll.u32 %v4264, 16
      %v4437 = vrot.slane %v4435, 5
      %v4438 = vsel %vm218, %v4433, %v4437
      %v4440 = vshrl.u32 %v4265, 16
      %v4442 = vrot.slane %v4440, 4
      %v4443 = vshll.u32 %v4265, 16
      %v4445 = vrot.slane %v4443, 5
      %v4446 = vor.u32 %v4442, %v4445
      %v4447 = vrot.slane %v4446, 4
      %v4449 = vshll.u32 %v4266, 16
      %v4451 = vrot.slane %v4449, 5
      %v4452 = vsel %vm218, %v4447, %v4451
      %v4453 = vshrl.u32 %v4266, 16
      %v4455 = vrot.slane %v4453, 4
      %v4456 = vor.u32 %v4455, %v4451
      %v4457 = vrot.slane %v4456, 4
      %v4459 = vshll.u32 %v4267, 16
      %v4461 = vrot.slane %v4459, 5
      %v4462 = vsel %vm218, %v4457, %v4461
      %v4464 = vshrl.u32 %v4268, 16
      %v4466 = vrot.slane %v4464, 4
      %v4467 = vshll.u32 %v4268, 16
      %v4469 = vrot.slane %v4467, 5
      %v4470 = vor.u32 %v4466, %v4469
      %v4471 = vrot.slane %v4470, 4
      %v4473 = vshll.u32 %v4269, 16
      %v4475 = vrot.slane %v4473, 5
      %v4476 = vsel %vm218, %v4471, %v4475
      %v4477 = vshrl.u32 %v4269, 16
      %v4479 = vrot.slane %v4477, 4
      %v4480 = vor.u32 %v4479, %v4475
      %v4481 = vrot.slane %v4480, 4
      %v4483 = vshll.u32 %v4270, 16
      %v4485 = vrot.slane %v4483, 5
      %v4486 = vsel %vm218, %v4481, %v4485
      %v4488 = vshrl.u32 %v4271, 16
      %v4490 = vrot.slane %v4488, 4
      %v4491 = vshll.u32 %v4271, 16
      %v4493 = vrot.slane %v4491, 5
      %v4494 = vor.u32 %v4490, %v4493
      %v4495 = vrot.slane %v4494, 4
      %v4497 = vshll.u32 %v4272, 16
      %v4499 = vrot.slane %v4497, 5
      %v4500 = vsel %vm218, %v4495, %v4499
      %v4501 = vshrl.u32 %v4272, 16
      %v4503 = vrot.slane %v4501, 4
      %v4504 = vor.u32 %v4503, %v4499
      %v4505 = vrot.slane %v4504, 4
      %v4507 = vshll.u32 %v4273, 16
      %v4509 = vrot.slane %v4507, 5
      %v4510 = vsel %vm218, %v4505, %v4509
      %v4512 = vshrl.u32 %v4274, 16
      %v4514 = vrot.slane %v4512, 4
      %v4515 = vshll.u32 %v4274, 16
      %v4517 = vrot.slane %v4515, 5
      %v4518 = vor.u32 %v4514, %v4517
      %v4519 = vrot.slane %v4518, 4
      %v4521 = vshll.u32 %v4275, 16
      %v4523 = vrot.slane %v4521, 5
      %v4524 = vsel %vm218, %v4519, %v4523
      %v4525 = vshrl.u32 %v4275, 16
      %v4527 = vrot.slane %v4525, 4
      %v4528 = vor.u32 %v4527, %v4523
      %v4529 = vrot.slane %v4528, 4
      %v4531 = vshll.u32 %v4276, 16
      %v4533 = vrot.slane %v4531, 5
      %v4534 = vsel %vm218, %v4529, %v4533
      %v4536 = vshrl.u32 %v4277, 16
      %v4538 = vrot.slane %v4536, 4
      %v4539 = vshll.u32 %v4277, 16
      %v4541 = vrot.slane %v4539, 5
      %v4542 = vor.u32 %v4538, %v4541
      %v4543 = vrot.slane %v4542, 4
      %v4545 = vshll.u32 %v4278, 16
      %v4547 = vrot.slane %v4545, 5
      %v4548 = vsel %vm218, %v4543, %v4547
      %v4549 = vshrl.u32 %v4278, 16
      %v4551 = vrot.slane %v4549, 4
      %v4552 = vor.u32 %v4551, %v4547
      %v4553 = vrot.slane %v4552, 4
      %v4555 = vshll.u32 %v4279, 16
      %v4557 = vrot.slane %v4555, 5
      %v4558 = vsel %vm218, %v4553, %v4557
      %v4560 = vshrl.u32 %v4280, 16
      %v4562 = vrot.slane %v4560, 4
      %v4563 = vshll.u32 %v4280, 16
      %v4565 = vrot.slane %v4563, 5
      %v4566 = vor.u32 %v4562, %v4565
      %v4567 = vrot.slane %v4566, 4
      %v4569 = vshll.u32 %v4281, 16
      %v4571 = vrot.slane %v4569, 5
      %v4572 = vsel %vm218, %v4567, %v4571
      %v4573 = vshrl.u32 %v4281, 16
      %v4575 = vrot.slane %v4573, 4
      %v4576 = vor.u32 %v4575, %v4571
      %v4577 = vrot.slane %v4576, 4
      %v4579 = vshll.u32 %v4282, 16
      %v4581 = vrot.slane %v4579, 5
      %v4582 = vsel %vm218, %v4577, %v4581
      %v4584 = vshrl.u32 %v4283, 16
      %v4586 = vrot.slane %v4584, 4
      %v4587 = vshll.u32 %v4283, 16
      %v4589 = vrot.slane %v4587, 5
      %v4590 = vor.u32 %v4586, %v4589
      %v4591 = vrot.slane %v4590, 4
      %v4593 = vshll.u32 %v4284, 16
      %v4595 = vrot.slane %v4593, 5
      %v4596 = vsel %vm218, %v4591, %v4595
      %v4597 = vshrl.u32 %v4284, 16
      %v4599 = vrot.slane %v4597, 4
      %v4600 = vor.u32 %v4599, %v4595
      %v4601 = vrot.slane %v4600, 4
      %v4603 = vshll.u32 %v4285, 16
      %v4605 = vrot.slane %v4603, 5
      %v4606 = vsel %vm218, %v4601, %v4605
      %v4608 = vshrl.u32 %v4286, 16
      %v4610 = vrot.slane %v4608, 4
      %v4611 = vshll.u32 %v4286, 16
      %v4613 = vrot.slane %v4611, 5
      %v4614 = vor.u32 %v4610, %v4613
      %v4615 = vrot.slane %v4614, 4
      %v4617 = vshll.u32 %v4287, 16
      %v4619 = vrot.slane %v4617, 5
      %v4620 = vsel %vm218, %v4615, %v4619
      %v4621 = vshrl.u32 %v4287, 16
      %v4623 = vrot.slane %v4621, 4
      %v4624 = vor.u32 %v4623, %v4619
      %v4625 = vrot.slane %v4624, 4
      %v4627 = vshll.u32 %v4288, 16
      %v4629 = vrot.slane %v4627, 5
      %v4630 = vsel %vm218, %v4625, %v4629
      %v4632 = vshrl.u32 %v4289, 16
      %v4634 = vrot.slane %v4632, 4
      %v4635 = vshll.u32 %v4289, 16
      %v4637 = vrot.slane %v4635, 5
      %v4638 = vor.u32 %v4634, %v4637
      %v4639 = vrot.slane %v4638, 4
      %v4641 = vshll.u32 %v4290, 16
      %v4643 = vrot.slane %v4641, 5
      %v4644 = vsel %vm218, %v4639, %v4643
      %v4645 = vshrl.u32 %v4290, 16
      %v4647 = vrot.slane %v4645, 4
      %v4648 = vor.u32 %v4647, %v4643
      %v4649 = vrot.slane %v4648, 4
      %v4651 = vshll.u32 %v4291, 16
      %v4653 = vrot.slane %v4651, 5
      %v4654 = vsel %vm218, %v4649, %v4653
      %v4656 = vshrl.u32 %v4292, 16
      %v4658 = vrot.slane %v4656, 4
      %v4659 = vshll.u32 %v4292, 16
      %v4661 = vrot.slane %v4659, 5
      %v4662 = vor.u32 %v4658, %v4661
      %v4663 = vrot.slane %v4662, 4
      %v4665 = vshll.u32 %v4293, 16
      %v4667 = vrot.slane %v4665, 5
      %v4668 = vsel %vm218, %v4663, %v4667
      %v4669 = vshrl.u32 %v4293, 16
      %v4671 = vrot.slane %v4669, 4
      %v4672 = vor.u32 %v4671, %v4667
      %v4673 = vrot.slane %v4672, 4
      %v4675 = vshll.u32 %v4294, 16
      %v4677 = vrot.slane %v4675, 5
      %v4678 = vsel %vm218, %v4673, %v4677
      %s4679 = scalar_lea.vmem %s1, 36
      %v4680 = vld [vmem:[%s4679] sm:$0xf]
      %v4681 = vunpack.c.l.b16 %v4308
      %v4682 = vunpack.c.l.b16 %v4318
      %v4683 = vunpack.c.l.b16 %v4332
      %v4684 = vunpack.c.l.b16 %v4342
      %v4685 = vunpack.c.l.b16 %v4356
      %v4686 = vunpack.c.l.b16 %v4366
      %v4687 = vunpack.c.l.b16 %v4380
      %v4688 = vunpack.c.l.b16 %v4390
      %v4689 = vunpack.c.l.b16 %v4404
      %v4690 = vunpack.c.l.b16 %v4414
      %v4691 = vunpack.c.l.b16 %v4428
      %v4692 = vunpack.c.l.b16 %v4438
      %v4693 = vunpack.c.l.b16 %v4452
      %v4694 = vunpack.c.l.b16 %v4462
      %v4695 = vunpack.c.l.b16 %v4476
      %v4696 = vunpack.c.l.b16 %v4486
      %v4697 = vunpack.c.l.b16 %v4500
      %v4698 = vunpack.c.l.b16 %v4510
      %v4699 = vunpack.c.l.b16 %v4524
      %v4700 = vunpack.c.l.b16 %v4534
      %v4701 = vunpack.c.l.b16 %v4548
      %v4702 = vunpack.c.l.b16 %v4558
      %v4703 = vunpack.c.l.b16 %v4572
      %v4704 = vunpack.c.l.b16 %v4582
      %v4705 = vunpack.c.l.b16 %v4596
      %v4706 = vunpack.c.l.b16 %v4606
      %v4707 = vunpack.c.l.b16 %v4620
      %v4708 = vunpack.c.l.b16 %v4630
      %v4709 = vunpack.c.l.b16 %v4644
      %v4710 = vunpack.c.l.b16 %v4654
      %v4711 = vunpack.c.l.b16 %v4668
      %v4712 = vunpack.c.l.b16 %v4678
      %v4713 = vpack.c.b16 %v4682, %v4681
      %v4714 = vpack.c.b16 %v4684, %v4683
      %v4715 = vpack.c.b16 %v4686, %v4685
      %v4716 = vpack.c.b16 %v4688, %v4687
      %v4717 = vpack.c.b16 %v4690, %v4689
      %v4718 = vpack.c.b16 %v4692, %v4691
      %v4719 = vpack.c.b16 %v4694, %v4693
      %v4720 = vpack.c.b16 %v4696, %v4695
      %v4721 = vpack.c.b16 %v4698, %v4697
      %v4722 = vpack.c.b16 %v4700, %v4699
      %v4723 = vpack.c.b16 %v4702, %v4701
      %v4724 = vpack.c.b16 %v4704, %v4703
      %v4725 = vpack.c.b16 %v4706, %v4705
      %v4726 = vpack.c.b16 %v4708, %v4707
      %v4727 = vpack.c.b16 %v4710, %v4709
      %v4728 = vpack.c.b16 %v4712, %v4711
      %v4730 = vsel %vm653, %v4713, 0
      %v4733 = vsel %vm653, %v4714, 0
      %v4736 = vsel %vm653, %v4715, 0
      %v4739 = vsel %vm653, %v4716, 0
      %v4742 = vsel %vm653, %v4717, 0
      %v4745 = vsel %vm653, %v4718, 0
      %v4748 = vsel %vm653, %v4719, 0
      %v4751 = vsel %vm653, %v4720, 0
      %v4754 = vsel %vm653, %v4721, 0
      %v4757 = vsel %vm653, %v4722, 0
      %v4760 = vsel %vm653, %v4723, 0
      %v4763 = vsel %vm653, %v4724, 0
      %v4766 = vsel %vm653, %v4725, 0
      %v4769 = vsel %vm653, %v4726, 0
      %v4772 = vsel %vm653, %v4727, 0
      %v4775 = vsel %vm653, %v4728, 0
      %v4778 = vsel %vm702, %v4680, 0
      %4780 = vmatpush.bf16.msra.mxu0 0
      %4781 = vmatpush.bf16.msra.mxu0 0
      %4782 = vmatpush.bf16.msra.mxu0 0
      %4783 = vmatpush.bf16.msra.mxu0 0
      %4784 = vmatpush.bf16.msra.mxu0 0
      %4785 = vmatpush.bf16.msra.mxu0 0
      %4786 = vmatpush.bf16.msra.mxu0 0
      %4787 = vmatpush.bf16.msra.mxu0 %v4778
      %4788 = vmatmul.bf16.gmra.mxu0 %v4730
      %v4789 = vpop.f32.mrf.mxu0
      %v4790 = vadd.f32 0.0, %v4789
      %v4791 = vpop.f32.mrf.mxu0
      %v4792 = vadd.f32 0.0, %v4791
      %4793 = vmatmul.bf16.gmra.mxu0 %v4733
      %v4794 = vpop.f32.mrf.mxu0
      %v4795 = vadd.f32 0.0, %v4794
      %v4796 = vpop.f32.mrf.mxu0
      %v4797 = vadd.f32 0.0, %v4796
      %4798 = vmatmul.bf16.gmra.mxu0 %v4736
      %v4799 = vpop.f32.mrf.mxu0
      %v4800 = vadd.f32 0.0, %v4799
      %v4801 = vpop.f32.mrf.mxu0
      %v4802 = vadd.f32 0.0, %v4801
      %4803 = vmatmul.bf16.gmra.mxu0 %v4739
      %v4804 = vpop.f32.mrf.mxu0
      %v4805 = vadd.f32 0.0, %v4804
      %v4806 = vpop.f32.mrf.mxu0
      %v4807 = vadd.f32 0.0, %v4806
      %4808 = vmatmul.bf16.gmra.mxu0 %v4742
      %v4809 = vpop.f32.mrf.mxu0
      %v4810 = vadd.f32 0.0, %v4809
      %v4811 = vpop.f32.mrf.mxu0
      %v4812 = vadd.f32 0.0, %v4811
      %4813 = vmatmul.bf16.gmra.mxu0 %v4745
      %v4814 = vpop.f32.mrf.mxu0
      %v4815 = vadd.f32 0.0, %v4814
      %v4816 = vpop.f32.mrf.mxu0
      %v4817 = vadd.f32 0.0, %v4816
      %4818 = vmatmul.bf16.gmra.mxu0 %v4748
      %v4819 = vpop.f32.mrf.mxu0
      %v4820 = vadd.f32 0.0, %v4819
      %v4821 = vpop.f32.mrf.mxu0
      %v4822 = vadd.f32 0.0, %v4821
      %4823 = vmatmul.bf16.gmra.mxu0 %v4751
      %v4824 = vpop.f32.mrf.mxu0
      %v4825 = vadd.f32 0.0, %v4824
      %v4826 = vpop.f32.mrf.mxu0
      %v4827 = vadd.f32 0.0, %v4826
      %4828 = vmatmul.bf16.gmra.mxu0 %v4754
      %v4829 = vpop.f32.mrf.mxu0
      %v4830 = vadd.f32 0.0, %v4829
      %v4831 = vpop.f32.mrf.mxu0
      %v4832 = vadd.f32 0.0, %v4831
      %4833 = vmatmul.bf16.gmra.mxu0 %v4757
      %v4834 = vpop.f32.mrf.mxu0
      %v4835 = vadd.f32 0.0, %v4834
      %v4836 = vpop.f32.mrf.mxu0
      %v4837 = vadd.f32 0.0, %v4836
      %4838 = vmatmul.bf16.gmra.mxu0 %v4760
      %v4839 = vpop.f32.mrf.mxu0
      %v4840 = vadd.f32 0.0, %v4839
      %v4841 = vpop.f32.mrf.mxu0
      %v4842 = vadd.f32 0.0, %v4841
      %4843 = vmatmul.bf16.gmra.mxu0 %v4763
      %v4844 = vpop.f32.mrf.mxu0
      %v4845 = vadd.f32 0.0, %v4844
      %v4846 = vpop.f32.mrf.mxu0
      %v4847 = vadd.f32 0.0, %v4846
      %4848 = vmatmul.bf16.gmra.mxu0 %v4766
      %v4849 = vpop.f32.mrf.mxu0
      %v4850 = vadd.f32 0.0, %v4849
      %v4851 = vpop.f32.mrf.mxu0
      %v4852 = vadd.f32 0.0, %v4851
      %4853 = vmatmul.bf16.gmra.mxu0 %v4769
      %v4854 = vpop.f32.mrf.mxu0
      %v4855 = vadd.f32 0.0, %v4854
      %v4856 = vpop.f32.mrf.mxu0
      %v4857 = vadd.f32 0.0, %v4856
      %4858 = vmatmul.bf16.gmra.mxu0 %v4772
      %v4859 = vpop.f32.mrf.mxu0
      %v4860 = vadd.f32 0.0, %v4859
      %v4861 = vpop.f32.mrf.mxu0
      %v4862 = vadd.f32 0.0, %v4861
      %4863 = vmatmul.bf16.gmra.mxu0 %v4775
      %v4864 = vpop.f32.mrf.mxu0
      %v4865 = vadd.f32 0.0, %v4864
      %v4866 = vpop.f32.mrf.mxu0
      %v4867 = vadd.f32 0.0, %v4866
      %4868 = vdwg.mxu0
      %v4869 = vadd.f32 %v4215, %v4790
      %v4870 = vadd.f32 %v4216, %v4792
      %v4871 = vadd.f32 %v4217, %v4795
      %v4872 = vadd.f32 %v4218, %v4797
      %v4873 = vadd.f32 %v4219, %v4800
      %v4874 = vadd.f32 %v4220, %v4802
      %v4875 = vadd.f32 %v4221, %v4805
      %v4876 = vadd.f32 %v4222, %v4807
      %v4877 = vadd.f32 %v4223, %v4810
      %v4878 = vadd.f32 %v4224, %v4812
      %v4879 = vadd.f32 %v4225, %v4815
      %v4880 = vadd.f32 %v4226, %v4817
      %v4881 = vadd.f32 %v4227, %v4820
      %v4882 = vadd.f32 %v4228, %v4822
      %v4883 = vadd.f32 %v4229, %v4825
      %v4884 = vadd.f32 %v4230, %v4827
      %v4885 = vadd.f32 %v4231, %v4830
      %v4886 = vadd.f32 %v4232, %v4832
      %v4887 = vadd.f32 %v4233, %v4835
      %v4888 = vadd.f32 %v4234, %v4837
      %v4889 = vadd.f32 %v4235, %v4840
      %v4890 = vadd.f32 %v4236, %v4842
      %v4891 = vadd.f32 %v4237, %v4845
      %v4892 = vadd.f32 %v4238, %v4847
      %v4893 = vadd.f32 %v4239, %v4850
      %v4894 = vadd.f32 %v4240, %v4852
      %v4895 = vadd.f32 %v4241, %v4855
      %v4896 = vadd.f32 %v4242, %v4857
      %v4897 = vadd.f32 %v4243, %v4860
      %v4898 = vadd.f32 %v4244, %v4862
      %v4899 = vadd.f32 %v4245, %v4865
      %v4900 = vadd.f32 %v4246, %v4867
      %v4901 = vld [vmem:[%s3960] sm:$0xe]
      %v4902 = vld [vmem:[%s3960 + $0xc] sm:$0xe]
      %v4903 = vld [vmem:[%s3960 + $0x18] sm:$0xe]
      %v4904 = vld [vmem:[%s3960 + $0x24] sm:$0xe]
      %v4905 = vld [vmem:[%s3960 + $0x30] sm:$0xe]
      %v4906 = vld [vmem:[%s3960 + $0x3c] sm:$0xe]
      %v4907 = vld [vmem:[%s3960 + $0x48] sm:$0xe]
      %v4908 = vld [vmem:[%s3960 + $0x54] sm:$0xe]
      %v4909 = vld [vmem:[%s3960 + $0x60] sm:$0xe]
      %v4910 = vld [vmem:[%s3960 + $0x6c] sm:$0xe]
      %v4911 = vld [vmem:[%s3960 + $0x78] sm:$0xe]
      %v4912 = vld [vmem:[%s3960 + $0x84] sm:$0xe]
      %v4913 = vld [vmem:[%s3960 + $0x90] sm:$0xe]
      %v4914 = vld [vmem:[%s3960 + $0x9c] sm:$0xe]
      %v4915 = vld [vmem:[%s3960 + $0xa8] sm:$0xe]
      %v4916 = vld [vmem:[%s3960 + $0xb4] sm:$0xe]
      %v4965 = vrot.slane %v4901, 5
      %v4966 = vrot.slane %v4965, 4
      %v4967 = vrot.slane %v4248, 5
      %v4968 = vsel %vm1065, %v4966, %v4967
      %v4969 = vrot.slane %v4967, 4
      %v4970 = vrot.slane %v4249, 5
      %v4971 = vsel %vm1065, %v4969, %v4970
      %v4972 = vrot.slane %v4902, 5
      %v4973 = vrot.slane %v4972, 4
      %v4974 = vrot.slane %v4251, 5
      %v4975 = vsel %vm1065, %v4973, %v4974
      %v4976 = vrot.slane %v4974, 4
      %v4977 = vrot.slane %v4252, 5
      %v4978 = vsel %vm1065, %v4976, %v4977
      %v4979 = vrot.slane %v4903, 5
      %v4980 = vrot.slane %v4979, 4
      %v4981 = vrot.slane %v4254, 5
      %v4982 = vsel %vm1065, %v4980, %v4981
      %v4983 = vrot.slane %v4981, 4
      %v4984 = vrot.slane %v4255, 5
      %v4985 = vsel %vm1065, %v4983, %v4984
      %v4986 = vrot.slane %v4904, 5
      %v4987 = vrot.slane %v4986, 4
      %v4988 = vrot.slane %v4257, 5
      %v4989 = vsel %vm1065, %v4987, %v4988
      %v4990 = vrot.slane %v4988, 4
      %v4991 = vrot.slane %v4258, 5
      %v4992 = vsel %vm1065, %v4990, %v4991
      %v4993 = vrot.slane %v4905, 5
      %v4994 = vrot.slane %v4993, 4
      %v4995 = vrot.slane %v4260, 5
      %v4996 = vsel %vm1065, %v4994, %v4995
      %v4997 = vrot.slane %v4995, 4
      %v4998 = vrot.slane %v4261, 5
      %v4999 = vsel %vm1065, %v4997, %v4998
      %v5000 = vrot.slane %v4906, 5
      %v5001 = vrot.slane %v5000, 4
      %v5002 = vrot.slane %v4263, 5
      %v5003 = vsel %vm1065, %v5001, %v5002
      %v5004 = vrot.slane %v5002, 4
      %v5005 = vrot.slane %v4264, 5
      %v5006 = vsel %vm1065, %v5004, %v5005
      %v5007 = vrot.slane %v4907, 5
      %v5008 = vrot.slane %v5007, 4
      %v5009 = vrot.slane %v4266, 5
      %v5010 = vsel %vm1065, %v5008, %v5009
      %v5011 = vrot.slane %v5009, 4
      %v5012 = vrot.slane %v4267, 5
      %v5013 = vsel %vm1065, %v5011, %v5012
      %v5014 = vrot.slane %v4908, 5
      %v5015 = vrot.slane %v5014, 4
      %v5016 = vrot.slane %v4269, 5
      %v5017 = vsel %vm1065, %v5015, %v5016
      %v5018 = vrot.slane %v5016, 4
      %v5019 = vrot.slane %v4270, 5
      %v5020 = vsel %vm1065, %v5018, %v5019
      %v5021 = vrot.slane %v4909, 5
      %v5022 = vrot.slane %v5021, 4
      %v5023 = vrot.slane %v4272, 5
      %v5024 = vsel %vm1065, %v5022, %v5023
      %v5025 = vrot.slane %v5023, 4
      %v5026 = vrot.slane %v4273, 5
      %v5027 = vsel %vm1065, %v5025, %v5026
      %v5028 = vrot.slane %v4910, 5
      %v5029 = vrot.slane %v5028, 4
      %v5030 = vrot.slane %v4275, 5
      %v5031 = vsel %vm1065, %v5029, %v5030
      %v5032 = vrot.slane %v5030, 4
      %v5033 = vrot.slane %v4276, 5
      %v5034 = vsel %vm1065, %v5032, %v5033
      %v5035 = vrot.slane %v4911, 5
      %v5036 = vrot.slane %v5035, 4
      %v5037 = vrot.slane %v4278, 5
      %v5038 = vsel %vm1065, %v5036, %v5037
      %v5039 = vrot.slane %v5037, 4
      %v5040 = vrot.slane %v4279, 5
      %v5041 = vsel %vm1065, %v5039, %v5040
      %v5042 = vrot.slane %v4912, 5
      %v5043 = vrot.slane %v5042, 4
      %v5044 = vrot.slane %v4281, 5
      %v5045 = vsel %vm1065, %v5043, %v5044
      %v5046 = vrot.slane %v5044, 4
      %v5047 = vrot.slane %v4282, 5
      %v5048 = vsel %vm1065, %v5046, %v5047
      %v5049 = vrot.slane %v4913, 5
      %v5050 = vrot.slane %v5049, 4
      %v5051 = vrot.slane %v4284, 5
      %v5052 = vsel %vm1065, %v5050, %v5051
      %v5053 = vrot.slane %v5051, 4
      %v5054 = vrot.slane %v4285, 5
      %v5055 = vsel %vm1065, %v5053, %v5054
      %v5056 = vrot.slane %v4914, 5
      %v5057 = vrot.slane %v5056, 4
      %v5058 = vrot.slane %v4287, 5
      %v5059 = vsel %vm1065, %v5057, %v5058
      %v5060 = vrot.slane %v5058, 4
      %v5061 = vrot.slane %v4288, 5
      %v5062 = vsel %vm1065, %v5060, %v5061
      %v5063 = vrot.slane %v4915, 5
      %v5064 = vrot.slane %v5063, 4
      %v5065 = vrot.slane %v4290, 5
      %v5066 = vsel %vm1065, %v5064, %v5065
      %v5067 = vrot.slane %v5065, 4
      %v5068 = vrot.slane %v4291, 5
      %v5069 = vsel %vm1065, %v5067, %v5068
      %v5070 = vrot.slane %v4916, 5
      %v5071 = vrot.slane %v5070, 4
      %v5072 = vrot.slane %v4293, 5
      %v5073 = vsel %vm1065, %v5071, %v5072
      %v5074 = vrot.slane %v5072, 4
      %v5075 = vrot.slane %v4294, 5
      %v5076 = vsel %vm1065, %v5074, %v5075
      %s5077 = scalar_lea.vmem %s1, 40
      %v5078 = vld [vmem:[%s5077] sm:$0xf]
      %v5079 = vunpack.c.l.b16 %v4968
      %v5080 = vunpack.c.l.b16 %v4971
      %v5081 = vunpack.c.l.b16 %v4975
      %v5082 = vunpack.c.l.b16 %v4978
      %v5083 = vunpack.c.l.b16 %v4982
      %v5084 = vunpack.c.l.b16 %v4985
      %v5085 = vunpack.c.l.b16 %v4989
      %v5086 = vunpack.c.l.b16 %v4992
      %v5087 = vunpack.c.l.b16 %v4996
      %v5088 = vunpack.c.l.b16 %v4999
      %v5089 = vunpack.c.l.b16 %v5003
      %v5090 = vunpack.c.l.b16 %v5006
      %v5091 = vunpack.c.l.b16 %v5010
      %v5092 = vunpack.c.l.b16 %v5013
      %v5093 = vunpack.c.l.b16 %v5017
      %v5094 = vunpack.c.l.b16 %v5020
      %v5095 = vunpack.c.l.b16 %v5024
      %v5096 = vunpack.c.l.b16 %v5027
      %v5097 = vunpack.c.l.b16 %v5031
      %v5098 = vunpack.c.l.b16 %v5034
      %v5099 = vunpack.c.l.b16 %v5038
      %v5100 = vunpack.c.l.b16 %v5041
      %v5101 = vunpack.c.l.b16 %v5045
      %v5102 = vunpack.c.l.b16 %v5048
      %v5103 = vunpack.c.l.b16 %v5052
      %v5104 = vunpack.c.l.b16 %v5055
      %v5105 = vunpack.c.l.b16 %v5059
      %v5106 = vunpack.c.l.b16 %v5062
      %v5107 = vunpack.c.l.b16 %v5066
      %v5108 = vunpack.c.l.b16 %v5069
      %v5109 = vunpack.c.l.b16 %v5073
      %v5110 = vunpack.c.l.b16 %v5076
      %v5111 = vpack.c.b16 %v5080, %v5079
      %v5112 = vpack.c.b16 %v5082, %v5081
      %v5113 = vpack.c.b16 %v5084, %v5083
      %v5114 = vpack.c.b16 %v5086, %v5085
      %v5115 = vpack.c.b16 %v5088, %v5087
      %v5116 = vpack.c.b16 %v5090, %v5089
      %v5117 = vpack.c.b16 %v5092, %v5091
      %v5118 = vpack.c.b16 %v5094, %v5093
      %v5119 = vpack.c.b16 %v5096, %v5095
      %v5120 = vpack.c.b16 %v5098, %v5097
      %v5121 = vpack.c.b16 %v5100, %v5099
      %v5122 = vpack.c.b16 %v5102, %v5101
      %v5123 = vpack.c.b16 %v5104, %v5103
      %v5124 = vpack.c.b16 %v5106, %v5105
      %v5125 = vpack.c.b16 %v5108, %v5107
      %v5126 = vpack.c.b16 %v5110, %v5109
      %v5128 = vsel %vm653, %v5111, 0
      %v5131 = vsel %vm653, %v5112, 0
      %v5134 = vsel %vm653, %v5113, 0
      %v5137 = vsel %vm653, %v5114, 0
      %v5140 = vsel %vm653, %v5115, 0
      %v5143 = vsel %vm653, %v5116, 0
      %v5146 = vsel %vm653, %v5117, 0
      %v5149 = vsel %vm653, %v5118, 0
      %v5152 = vsel %vm653, %v5119, 0
      %v5155 = vsel %vm653, %v5120, 0
      %v5158 = vsel %vm653, %v5121, 0
      %v5161 = vsel %vm653, %v5122, 0
      %v5164 = vsel %vm653, %v5123, 0
      %v5167 = vsel %vm653, %v5124, 0
      %v5170 = vsel %vm653, %v5125, 0
      %v5173 = vsel %vm653, %v5126, 0
      %v5176 = vsel %vm702, %v5078, 0
      %5178 = vmatpush.bf16.msra.mxu0 0
      %5179 = vmatpush.bf16.msra.mxu0 0
      %5180 = vmatpush.bf16.msra.mxu0 0
      %5181 = vmatpush.bf16.msra.mxu0 0
      %5182 = vmatpush.bf16.msra.mxu0 0
      %5183 = vmatpush.bf16.msra.mxu0 0
      %5184 = vmatpush.bf16.msra.mxu0 0
      %5185 = vmatpush.bf16.msra.mxu0 %v5176
      %5186 = vmatmul.bf16.gmra.mxu0 %v5128
      %v5187 = vpop.f32.mrf.mxu0
      %v5188 = vadd.f32 0.0, %v5187
      %v5189 = vpop.f32.mrf.mxu0
      %v5190 = vadd.f32 0.0, %v5189
      %5191 = vmatmul.bf16.gmra.mxu0 %v5131
      %v5192 = vpop.f32.mrf.mxu0
      %v5193 = vadd.f32 0.0, %v5192
      %v5194 = vpop.f32.mrf.mxu0
      %v5195 = vadd.f32 0.0, %v5194
      %5196 = vmatmul.bf16.gmra.mxu0 %v5134
      %v5197 = vpop.f32.mrf.mxu0
      %v5198 = vadd.f32 0.0, %v5197
      %v5199 = vpop.f32.mrf.mxu0
      %v5200 = vadd.f32 0.0, %v5199
      %5201 = vmatmul.bf16.gmra.mxu0 %v5137
      %v5202 = vpop.f32.mrf.mxu0
      %v5203 = vadd.f32 0.0, %v5202
      %v5204 = vpop.f32.mrf.mxu0
      %v5205 = vadd.f32 0.0, %v5204
      %5206 = vmatmul.bf16.gmra.mxu0 %v5140
      %v5207 = vpop.f32.mrf.mxu0
      %v5208 = vadd.f32 0.0, %v5207
      %v5209 = vpop.f32.mrf.mxu0
      %v5210 = vadd.f32 0.0, %v5209
      %5211 = vmatmul.bf16.gmra.mxu0 %v5143
      %v5212 = vpop.f32.mrf.mxu0
      %v5213 = vadd.f32 0.0, %v5212
      %v5214 = vpop.f32.mrf.mxu0
      %v5215 = vadd.f32 0.0, %v5214
      %5216 = vmatmul.bf16.gmra.mxu0 %v5146
      %v5217 = vpop.f32.mrf.mxu0
      %v5218 = vadd.f32 0.0, %v5217
      %v5219 = vpop.f32.mrf.mxu0
      %v5220 = vadd.f32 0.0, %v5219
      %5221 = vmatmul.bf16.gmra.mxu0 %v5149
      %v5222 = vpop.f32.mrf.mxu0
      %v5223 = vadd.f32 0.0, %v5222
      %v5224 = vpop.f32.mrf.mxu0
      %v5225 = vadd.f32 0.0, %v5224
      %5226 = vmatmul.bf16.gmra.mxu0 %v5152
      %v5227 = vpop.f32.mrf.mxu0
      %v5228 = vadd.f32 0.0, %v5227
      %v5229 = vpop.f32.mrf.mxu0
      %v5230 = vadd.f32 0.0, %v5229
      %5231 = vmatmul.bf16.gmra.mxu0 %v5155
      %v5232 = vpop.f32.mrf.mxu0
      %v5233 = vadd.f32 0.0, %v5232
      %v5234 = vpop.f32.mrf.mxu0
      %v5235 = vadd.f32 0.0, %v5234
      %5236 = vmatmul.bf16.gmra.mxu0 %v5158
      %v5237 = vpop.f32.mrf.mxu0
      %v5238 = vadd.f32 0.0, %v5237
      %v5239 = vpop.f32.mrf.mxu0
      %v5240 = vadd.f32 0.0, %v5239
      %5241 = vmatmul.bf16.gmra.mxu0 %v5161
      %v5242 = vpop.f32.mrf.mxu0
      %v5243 = vadd.f32 0.0, %v5242
      %v5244 = vpop.f32.mrf.mxu0
      %v5245 = vadd.f32 0.0, %v5244
      %5246 = vmatmul.bf16.gmra.mxu0 %v5164
      %v5247 = vpop.f32.mrf.mxu0
      %v5248 = vadd.f32 0.0, %v5247
      %v5249 = vpop.f32.mrf.mxu0
      %v5250 = vadd.f32 0.0, %v5249
      %5251 = vmatmul.bf16.gmra.mxu0 %v5167
      %v5252 = vpop.f32.mrf.mxu0
      %v5253 = vadd.f32 0.0, %v5252
      %v5254 = vpop.f32.mrf.mxu0
      %v5255 = vadd.f32 0.0, %v5254
      %5256 = vmatmul.bf16.gmra.mxu0 %v5170
      %v5257 = vpop.f32.mrf.mxu0
      %v5258 = vadd.f32 0.0, %v5257
      %v5259 = vpop.f32.mrf.mxu0
      %v5260 = vadd.f32 0.0, %v5259
      %5261 = vmatmul.bf16.gmra.mxu0 %v5173
      %v5262 = vpop.f32.mrf.mxu0
      %v5263 = vadd.f32 0.0, %v5262
      %v5264 = vpop.f32.mrf.mxu0
      %v5265 = vadd.f32 0.0, %v5264
      %5266 = vdwg.mxu0
      %v5267 = vadd.f32 %v4869, %v5188
      %v5268 = vadd.f32 %v4870, %v5190
      %v5269 = vadd.f32 %v4871, %v5193
      %v5270 = vadd.f32 %v4872, %v5195
      %v5271 = vadd.f32 %v4873, %v5198
      %v5272 = vadd.f32 %v4874, %v5200
      %v5273 = vadd.f32 %v4875, %v5203
      %v5274 = vadd.f32 %v4876, %v5205
      %v5275 = vadd.f32 %v4877, %v5208
      %v5276 = vadd.f32 %v4878, %v5210
      %v5277 = vadd.f32 %v4879, %v5213
      %v5278 = vadd.f32 %v4880, %v5215
      %v5279 = vadd.f32 %v4881, %v5218
      %v5280 = vadd.f32 %v4882, %v5220
      %v5281 = vadd.f32 %v4883, %v5223
      %v5282 = vadd.f32 %v4884, %v5225
      %v5283 = vadd.f32 %v4885, %v5228
      %v5284 = vadd.f32 %v4886, %v5230
      %v5285 = vadd.f32 %v4887, %v5233
      %v5286 = vadd.f32 %v4888, %v5235
      %v5287 = vadd.f32 %v4889, %v5238
      %v5288 = vadd.f32 %v4890, %v5240
      %v5289 = vadd.f32 %v4891, %v5243
      %v5290 = vadd.f32 %v4892, %v5245
      %v5291 = vadd.f32 %v4893, %v5248
      %v5292 = vadd.f32 %v4894, %v5250
      %v5293 = vadd.f32 %v4895, %v5253
      %v5294 = vadd.f32 %v4896, %v5255
      %v5295 = vadd.f32 %v4897, %v5258
      %v5296 = vadd.f32 %v4898, %v5260
      %v5297 = vadd.f32 %v4899, %v5263
      %v5298 = vadd.f32 %v4900, %v5265
      %v5299 = vld [vmem:[%s3960 + $0x8] sm:$0x3]
      %v5300 = vld [vmem:[%s3960 + $0x14] sm:$0x3]
      %v5301 = vld [vmem:[%s3960 + $0x20] sm:$0x3]
      %v5302 = vld [vmem:[%s3960 + $0x2c] sm:$0x3]
      %v5303 = vld [vmem:[%s3960 + $0x38] sm:$0x3]
      %v5304 = vld [vmem:[%s3960 + $0x44] sm:$0x3]
      %v5305 = vld [vmem:[%s3960 + $0x50] sm:$0x3]
      %v5306 = vld [vmem:[%s3960 + $0x5c] sm:$0x3]
      %v5307 = vld [vmem:[%s3960 + $0x68] sm:$0x3]
      %v5308 = vld [vmem:[%s3960 + $0x74] sm:$0x3]
      %v5309 = vld [vmem:[%s3960 + $0x80] sm:$0x3]
      %v5310 = vld [vmem:[%s3960 + $0x8c] sm:$0x3]
      %v5311 = vld [vmem:[%s3960 + $0x98] sm:$0x3]
      %v5312 = vld [vmem:[%s3960 + $0xa4] sm:$0x3]
      %v5313 = vld [vmem:[%s3960 + $0xb0] sm:$0x3]
      %v5314 = vld [vmem:[%s3960 + $0xbc] sm:$0x3]
      %v5316 = vshrl.u32 %v4901, 16
      %v5318 = vrot.slane %v5316, 5
      %v5319 = vshll.u32 %v4901, 16
      %v5321 = vrot.slane %v5319, 6
      %v5322 = vor.u32 %v5318, %v5321
      %v5323 = vrot.slane %v5322, 4
      %v5324 = vrot.slane %v4309, 5
      %v5325 = vrot.slane %v4305, 6
      %v5326 = vor.u32 %v5324, %v5325
      %v5327 = vsel %vm1418, %v5323, %v5326
      %v5328 = vrot.slane %v5326, 4
      %v5330 = vshrl.u32 %v5299, 16
      %v5332 = vrot.slane %v5330, 5
      %v5333 = vshll.u32 %v5299, 16
      %v5335 = vrot.slane %v5333, 6
      %v5336 = vor.u32 %v5332, %v5335
      %v5337 = vsel %vm1418, %v5328, %v5336
      %v5339 = vshrl.u32 %v4902, 16
      %v5341 = vrot.slane %v5339, 5
      %v5342 = vshll.u32 %v4902, 16
      %v5344 = vrot.slane %v5342, 6
      %v5345 = vor.u32 %v5341, %v5344
      %v5346 = vrot.slane %v5345, 4
      %v5347 = vrot.slane %v4333, 5
      %v5348 = vrot.slane %v4329, 6
      %v5349 = vor.u32 %v5347, %v5348
      %v5350 = vsel %vm1418, %v5346, %v5349
      %v5351 = vrot.slane %v5349, 4
      %v5353 = vshrl.u32 %v5300, 16
      %v5355 = vrot.slane %v5353, 5
      %v5356 = vshll.u32 %v5300, 16
      %v5358 = vrot.slane %v5356, 6
      %v5359 = vor.u32 %v5355, %v5358
      %v5360 = vsel %vm1418, %v5351, %v5359
      %v5362 = vshrl.u32 %v4903, 16
      %v5364 = vrot.slane %v5362, 5
      %v5365 = vshll.u32 %v4903, 16
      %v5367 = vrot.slane %v5365, 6
      %v5368 = vor.u32 %v5364, %v5367
      %v5369 = vrot.slane %v5368, 4
      %v5370 = vrot.slane %v4357, 5
      %v5371 = vrot.slane %v4353, 6
      %v5372 = vor.u32 %v5370, %v5371
      %v5373 = vsel %vm1418, %v5369, %v5372
      %v5374 = vrot.slane %v5372, 4
      %v5376 = vshrl.u32 %v5301, 16
      %v5378 = vrot.slane %v5376, 5
      %v5379 = vshll.u32 %v5301, 16
      %v5381 = vrot.slane %v5379, 6
      %v5382 = vor.u32 %v5378, %v5381
      %v5383 = vsel %vm1418, %v5374, %v5382
      %v5385 = vshrl.u32 %v4904, 16
      %v5387 = vrot.slane %v5385, 5
      %v5388 = vshll.u32 %v4904, 16
      %v5390 = vrot.slane %v5388, 6
      %v5391 = vor.u32 %v5387, %v5390
      %v5392 = vrot.slane %v5391, 4
      %v5393 = vrot.slane %v4381, 5
      %v5394 = vrot.slane %v4377, 6
      %v5395 = vor.u32 %v5393, %v5394
      %v5396 = vsel %vm1418, %v5392, %v5395
      %v5397 = vrot.slane %v5395, 4
      %v5399 = vshrl.u32 %v5302, 16
      %v5401 = vrot.slane %v5399, 5
      %v5402 = vshll.u32 %v5302, 16
      %v5404 = vrot.slane %v5402, 6
      %v5405 = vor.u32 %v5401, %v5404
      %v5406 = vsel %vm1418, %v5397, %v5405
      %v5408 = vshrl.u32 %v4905, 16
      %v5410 = vrot.slane %v5408, 5
      %v5411 = vshll.u32 %v4905, 16
      %v5413 = vrot.slane %v5411, 6
      %v5414 = vor.u32 %v5410, %v5413
      %v5415 = vrot.slane %v5414, 4
      %v5416 = vrot.slane %v4405, 5
      %v5417 = vrot.slane %v4401, 6
      %v5418 = vor.u32 %v5416, %v5417
      %v5419 = vsel %vm1418, %v5415, %v5418
      %v5420 = vrot.slane %v5418, 4
      %v5422 = vshrl.u32 %v5303, 16
      %v5424 = vrot.slane %v5422, 5
      %v5425 = vshll.u32 %v5303, 16
      %v5427 = vrot.slane %v5425, 6
      %v5428 = vor.u32 %v5424, %v5427
      %v5429 = vsel %vm1418, %v5420, %v5428
      %v5431 = vshrl.u32 %v4906, 16
      %v5433 = vrot.slane %v5431, 5
      %v5434 = vshll.u32 %v4906, 16
      %v5436 = vrot.slane %v5434, 6
      %v5437 = vor.u32 %v5433, %v5436
      %v5438 = vrot.slane %v5437, 4
      %v5439 = vrot.slane %v4429, 5
      %v5440 = vrot.slane %v4425, 6
      %v5441 = vor.u32 %v5439, %v5440
      %v5442 = vsel %vm1418, %v5438, %v5441
      %v5443 = vrot.slane %v5441, 4
      %v5445 = vshrl.u32 %v5304, 16
      %v5447 = vrot.slane %v5445, 5
      %v5448 = vshll.u32 %v5304, 16
      %v5450 = vrot.slane %v5448, 6
      %v5451 = vor.u32 %v5447, %v5450
      %v5452 = vsel %vm1418, %v5443, %v5451
      %v5454 = vshrl.u32 %v4907, 16
      %v5456 = vrot.slane %v5454, 5
      %v5457 = vshll.u32 %v4907, 16
      %v5459 = vrot.slane %v5457, 6
      %v5460 = vor.u32 %v5456, %v5459
      %v5461 = vrot.slane %v5460, 4
      %v5462 = vrot.slane %v4453, 5
      %v5463 = vrot.slane %v4449, 6
      %v5464 = vor.u32 %v5462, %v5463
      %v5465 = vsel %vm1418, %v5461, %v5464
      %v5466 = vrot.slane %v5464, 4
      %v5468 = vshrl.u32 %v5305, 16
      %v5470 = vrot.slane %v5468, 5
      %v5471 = vshll.u32 %v5305, 16
      %v5473 = vrot.slane %v5471, 6
      %v5474 = vor.u32 %v5470, %v5473
      %v5475 = vsel %vm1418, %v5466, %v5474
      %v5477 = vshrl.u32 %v4908, 16
      %v5479 = vrot.slane %v5477, 5
      %v5480 = vshll.u32 %v4908, 16
      %v5482 = vrot.slane %v5480, 6
      %v5483 = vor.u32 %v5479, %v5482
      %v5484 = vrot.slane %v5483, 4
      %v5485 = vrot.slane %v4477, 5
      %v5486 = vrot.slane %v4473, 6
      %v5487 = vor.u32 %v5485, %v5486
      %v5488 = vsel %vm1418, %v5484, %v5487
      %v5489 = vrot.slane %v5487, 4
      %v5491 = vshrl.u32 %v5306, 16
      %v5493 = vrot.slane %v5491, 5
      %v5494 = vshll.u32 %v5306, 16
      %v5496 = vrot.slane %v5494, 6
      %v5497 = vor.u32 %v5493, %v5496
      %v5498 = vsel %vm1418, %v5489, %v5497
      %v5500 = vshrl.u32 %v4909, 16
      %v5502 = vrot.slane %v5500, 5
      %v5503 = vshll.u32 %v4909, 16
      %v5505 = vrot.slane %v5503, 6
      %v5506 = vor.u32 %v5502, %v5505
      %v5507 = vrot.slane %v5506, 4
      %v5508 = vrot.slane %v4501, 5
      %v5509 = vrot.slane %v4497, 6
      %v5510 = vor.u32 %v5508, %v5509
      %v5511 = vsel %vm1418, %v5507, %v5510
      %v5512 = vrot.slane %v5510, 4
      %v5514 = vshrl.u32 %v5307, 16
      %v5516 = vrot.slane %v5514, 5
      %v5517 = vshll.u32 %v5307, 16
      %v5519 = vrot.slane %v5517, 6
      %v5520 = vor.u32 %v5516, %v5519
      %v5521 = vsel %vm1418, %v5512, %v5520
      %v5523 = vshrl.u32 %v4910, 16
      %v5525 = vrot.slane %v5523, 5
      %v5526 = vshll.u32 %v4910, 16
      %v5528 = vrot.slane %v5526, 6
      %v5529 = vor.u32 %v5525, %v5528
      %v5530 = vrot.slane %v5529, 4
      %v5531 = vrot.slane %v4525, 5
      %v5532 = vrot.slane %v4521, 6
      %v5533 = vor.u32 %v5531, %v5532
      %v5534 = vsel %vm1418, %v5530, %v5533
      %v5535 = vrot.slane %v5533, 4
      %v5537 = vshrl.u32 %v5308, 16
      %v5539 = vrot.slane %v5537, 5
      %v5540 = vshll.u32 %v5308, 16
      %v5542 = vrot.slane %v5540, 6
      %v5543 = vor.u32 %v5539, %v5542
      %v5544 = vsel %vm1418, %v5535, %v5543
      %v5546 = vshrl.u32 %v4911, 16
      %v5548 = vrot.slane %v5546, 5
      %v5549 = vshll.u32 %v4911, 16
      %v5551 = vrot.slane %v5549, 6
      %v5552 = vor.u32 %v5548, %v5551
      %v5553 = vrot.slane %v5552, 4
      %v5554 = vrot.slane %v4549, 5
      %v5555 = vrot.slane %v4545, 6
      %v5556 = vor.u32 %v5554, %v5555
      %v5557 = vsel %vm1418, %v5553, %v5556
      %v5558 = vrot.slane %v5556, 4
      %v5560 = vshrl.u32 %v5309, 16
      %v5562 = vrot.slane %v5560, 5
      %v5563 = vshll.u32 %v5309, 16
      %v5565 = vrot.slane %v5563, 6
      %v5566 = vor.u32 %v5562, %v5565
      %v5567 = vsel %vm1418, %v5558, %v5566
      %v5569 = vshrl.u32 %v4912, 16
      %v5571 = vrot.slane %v5569, 5
      %v5572 = vshll.u32 %v4912, 16
      %v5574 = vrot.slane %v5572, 6
      %v5575 = vor.u32 %v5571, %v5574
      %v5576 = vrot.slane %v5575, 4
      %v5577 = vrot.slane %v4573, 5
      %v5578 = vrot.slane %v4569, 6
      %v5579 = vor.u32 %v5577, %v5578
      %v5580 = vsel %vm1418, %v5576, %v5579
      %v5581 = vrot.slane %v5579, 4
      %v5583 = vshrl.u32 %v5310, 16
      %v5585 = vrot.slane %v5583, 5
      %v5586 = vshll.u32 %v5310, 16
      %v5588 = vrot.slane %v5586, 6
      %v5589 = vor.u32 %v5585, %v5588
      %v5590 = vsel %vm1418, %v5581, %v5589
      %v5592 = vshrl.u32 %v4913, 16
      %v5594 = vrot.slane %v5592, 5
      %v5595 = vshll.u32 %v4913, 16
      %v5597 = vrot.slane %v5595, 6
      %v5598 = vor.u32 %v5594, %v5597
      %v5599 = vrot.slane %v5598, 4
      %v5600 = vrot.slane %v4597, 5
      %v5601 = vrot.slane %v4593, 6
      %v5602 = vor.u32 %v5600, %v5601
      %v5603 = vsel %vm1418, %v5599, %v5602
      %v5604 = vrot.slane %v5602, 4
      %v5606 = vshrl.u32 %v5311, 16
      %v5608 = vrot.slane %v5606, 5
      %v5609 = vshll.u32 %v5311, 16
      %v5611 = vrot.slane %v5609, 6
      %v5612 = vor.u32 %v5608, %v5611
      %v5613 = vsel %vm1418, %v5604, %v5612
      %v5615 = vshrl.u32 %v4914, 16
      %v5617 = vrot.slane %v5615, 5
      %v5618 = vshll.u32 %v4914, 16
      %v5620 = vrot.slane %v5618, 6
      %v5621 = vor.u32 %v5617, %v5620
      %v5622 = vrot.slane %v5621, 4
      %v5623 = vrot.slane %v4621, 5
      %v5624 = vrot.slane %v4617, 6
      %v5625 = vor.u32 %v5623, %v5624
      %v5626 = vsel %vm1418, %v5622, %v5625
      %v5627 = vrot.slane %v5625, 4
      %v5629 = vshrl.u32 %v5312, 16
      %v5631 = vrot.slane %v5629, 5
      %v5632 = vshll.u32 %v5312, 16
      %v5634 = vrot.slane %v5632, 6
      %v5635 = vor.u32 %v5631, %v5634
      %v5636 = vsel %vm1418, %v5627, %v5635
      %v5638 = vshrl.u32 %v4915, 16
      %v5640 = vrot.slane %v5638, 5
      %v5641 = vshll.u32 %v4915, 16
      %v5643 = vrot.slane %v5641, 6
      %v5644 = vor.u32 %v5640, %v5643
      %v5645 = vrot.slane %v5644, 4
      %v5646 = vrot.slane %v4645, 5
      %v5647 = vrot.slane %v4641, 6
      %v5648 = vor.u32 %v5646, %v5647
      %v5649 = vsel %vm1418, %v5645, %v5648
      %v5650 = vrot.slane %v5648, 4
      %v5652 = vshrl.u32 %v5313, 16
      %v5654 = vrot.slane %v5652, 5
      %v5655 = vshll.u32 %v5313, 16
      %v5657 = vrot.slane %v5655, 6
      %v5658 = vor.u32 %v5654, %v5657
      %v5659 = vsel %vm1418, %v5650, %v5658
      %v5661 = vshrl.u32 %v4916, 16
      %v5663 = vrot.slane %v5661, 5
      %v5664 = vshll.u32 %v4916, 16
      %v5666 = vrot.slane %v5664, 6
      %v5667 = vor.u32 %v5663, %v5666
      %v5668 = vrot.slane %v5667, 4
      %v5669 = vrot.slane %v4669, 5
      %v5670 = vrot.slane %v4665, 6
      %v5671 = vor.u32 %v5669, %v5670
      %v5672 = vsel %vm1418, %v5668, %v5671
      %v5673 = vrot.slane %v5671, 4
      %v5675 = vshrl.u32 %v5314, 16
      %v5677 = vrot.slane %v5675, 5
      %v5678 = vshll.u32 %v5314, 16
      %v5680 = vrot.slane %v5678, 6
      %v5681 = vor.u32 %v5677, %v5680
      %v5682 = vsel %vm1418, %v5673, %v5681
      %s5683 = scalar_lea.vmem %s1, 44
      %v5684 = vld [vmem:[%s5683] sm:$0xf]
      %v5685 = vunpack.c.l.b16 %v5327
      %v5686 = vunpack.c.l.b16 %v5337
      %v5687 = vunpack.c.l.b16 %v5350
      %v5688 = vunpack.c.l.b16 %v5360
      %v5689 = vunpack.c.l.b16 %v5373
      %v5690 = vunpack.c.l.b16 %v5383
      %v5691 = vunpack.c.l.b16 %v5396
      %v5692 = vunpack.c.l.b16 %v5406
      %v5693 = vunpack.c.l.b16 %v5419
      %v5694 = vunpack.c.l.b16 %v5429
      %v5695 = vunpack.c.l.b16 %v5442
      %v5696 = vunpack.c.l.b16 %v5452
      %v5697 = vunpack.c.l.b16 %v5465
      %v5698 = vunpack.c.l.b16 %v5475
      %v5699 = vunpack.c.l.b16 %v5488
      %v5700 = vunpack.c.l.b16 %v5498
      %v5701 = vunpack.c.l.b16 %v5511
      %v5702 = vunpack.c.l.b16 %v5521
      %v5703 = vunpack.c.l.b16 %v5534
      %v5704 = vunpack.c.l.b16 %v5544
      %v5705 = vunpack.c.l.b16 %v5557
      %v5706 = vunpack.c.l.b16 %v5567
      %v5707 = vunpack.c.l.b16 %v5580
      %v5708 = vunpack.c.l.b16 %v5590
      %v5709 = vunpack.c.l.b16 %v5603
      %v5710 = vunpack.c.l.b16 %v5613
      %v5711 = vunpack.c.l.b16 %v5626
      %v5712 = vunpack.c.l.b16 %v5636
      %v5713 = vunpack.c.l.b16 %v5649
      %v5714 = vunpack.c.l.b16 %v5659
      %v5715 = vunpack.c.l.b16 %v5672
      %v5716 = vunpack.c.l.b16 %v5682
      %v5717 = vpack.c.b16 %v5686, %v5685
      %v5718 = vpack.c.b16 %v5688, %v5687
      %v5719 = vpack.c.b16 %v5690, %v5689
      %v5720 = vpack.c.b16 %v5692, %v5691
      %v5721 = vpack.c.b16 %v5694, %v5693
      %v5722 = vpack.c.b16 %v5696, %v5695
      %v5723 = vpack.c.b16 %v5698, %v5697
      %v5724 = vpack.c.b16 %v5700, %v5699
      %v5725 = vpack.c.b16 %v5702, %v5701
      %v5726 = vpack.c.b16 %v5704, %v5703
      %v5727 = vpack.c.b16 %v5706, %v5705
      %v5728 = vpack.c.b16 %v5708, %v5707
      %v5729 = vpack.c.b16 %v5710, %v5709
      %v5730 = vpack.c.b16 %v5712, %v5711
      %v5731 = vpack.c.b16 %v5714, %v5713
      %v5732 = vpack.c.b16 %v5716, %v5715
      %v5734 = vsel %vm653, %v5717, 0
      %v5737 = vsel %vm653, %v5718, 0
      %v5740 = vsel %vm653, %v5719, 0
      %v5743 = vsel %vm653, %v5720, 0
      %v5746 = vsel %vm653, %v5721, 0
      %v5749 = vsel %vm653, %v5722, 0
      %v5752 = vsel %vm653, %v5723, 0
      %v5755 = vsel %vm653, %v5724, 0
      %v5758 = vsel %vm653, %v5725, 0
      %v5761 = vsel %vm653, %v5726, 0
      %v5764 = vsel %vm653, %v5727, 0
      %v5767 = vsel %vm653, %v5728, 0
      %v5770 = vsel %vm653, %v5729, 0
      %v5773 = vsel %vm653, %v5730, 0
      %v5776 = vsel %vm653, %v5731, 0
      %v5779 = vsel %vm653, %v5732, 0
      %v5782 = vsel %vm702, %v5684, 0
      %5784 = vmatpush.bf16.msra.mxu0 0
      %5785 = vmatpush.bf16.msra.mxu0 0
      %5786 = vmatpush.bf16.msra.mxu0 0
      %5787 = vmatpush.bf16.msra.mxu0 0
      %5788 = vmatpush.bf16.msra.mxu0 0
      %5789 = vmatpush.bf16.msra.mxu0 0
      %5790 = vmatpush.bf16.msra.mxu0 0
      %5791 = vmatpush.bf16.msra.mxu0 %v5782
      %5792 = vmatmul.bf16.gmra.mxu0 %v5734
      %v5793 = vpop.f32.mrf.mxu0
      %v5794 = vadd.f32 0.0, %v5793
      %v5795 = vpop.f32.mrf.mxu0
      %v5796 = vadd.f32 0.0, %v5795
      %5797 = vmatmul.bf16.gmra.mxu0 %v5737
      %v5798 = vpop.f32.mrf.mxu0
      %v5799 = vadd.f32 0.0, %v5798
      %v5800 = vpop.f32.mrf.mxu0
      %v5801 = vadd.f32 0.0, %v5800
      %5802 = vmatmul.bf16.gmra.mxu0 %v5740
      %v5803 = vpop.f32.mrf.mxu0
      %v5804 = vadd.f32 0.0, %v5803
      %v5805 = vpop.f32.mrf.mxu0
      %v5806 = vadd.f32 0.0, %v5805
      %5807 = vmatmul.bf16.gmra.mxu0 %v5743
      %v5808 = vpop.f32.mrf.mxu0
      %v5809 = vadd.f32 0.0, %v5808
      %v5810 = vpop.f32.mrf.mxu0
      %v5811 = vadd.f32 0.0, %v5810
      %5812 = vmatmul.bf16.gmra.mxu0 %v5746
      %v5813 = vpop.f32.mrf.mxu0
      %v5814 = vadd.f32 0.0, %v5813
      %v5815 = vpop.f32.mrf.mxu0
      %v5816 = vadd.f32 0.0, %v5815
      %5817 = vmatmul.bf16.gmra.mxu0 %v5749
      %v5818 = vpop.f32.mrf.mxu0
      %v5819 = vadd.f32 0.0, %v5818
      %v5820 = vpop.f32.mrf.mxu0
      %v5821 = vadd.f32 0.0, %v5820
      %5822 = vmatmul.bf16.gmra.mxu0 %v5752
      %v5823 = vpop.f32.mrf.mxu0
      %v5824 = vadd.f32 0.0, %v5823
      %v5825 = vpop.f32.mrf.mxu0
      %v5826 = vadd.f32 0.0, %v5825
      %5827 = vmatmul.bf16.gmra.mxu0 %v5755
      %v5828 = vpop.f32.mrf.mxu0
      %v5829 = vadd.f32 0.0, %v5828
      %v5830 = vpop.f32.mrf.mxu0
      %v5831 = vadd.f32 0.0, %v5830
      %5832 = vmatmul.bf16.gmra.mxu0 %v5758
      %v5833 = vpop.f32.mrf.mxu0
      %v5834 = vadd.f32 0.0, %v5833
      %v5835 = vpop.f32.mrf.mxu0
      %v5836 = vadd.f32 0.0, %v5835
      %5837 = vmatmul.bf16.gmra.mxu0 %v5761
      %v5838 = vpop.f32.mrf.mxu0
      %v5839 = vadd.f32 0.0, %v5838
      %v5840 = vpop.f32.mrf.mxu0
      %v5841 = vadd.f32 0.0, %v5840
      %5842 = vmatmul.bf16.gmra.mxu0 %v5764
      %v5843 = vpop.f32.mrf.mxu0
      %v5844 = vadd.f32 0.0, %v5843
      %v5845 = vpop.f32.mrf.mxu0
      %v5846 = vadd.f32 0.0, %v5845
      %5847 = vmatmul.bf16.gmra.mxu0 %v5767
      %v5848 = vpop.f32.mrf.mxu0
      %v5849 = vadd.f32 0.0, %v5848
      %v5850 = vpop.f32.mrf.mxu0
      %v5851 = vadd.f32 0.0, %v5850
      %5852 = vmatmul.bf16.gmra.mxu0 %v5770
      %v5853 = vpop.f32.mrf.mxu0
      %v5854 = vadd.f32 0.0, %v5853
      %v5855 = vpop.f32.mrf.mxu0
      %v5856 = vadd.f32 0.0, %v5855
      %5857 = vmatmul.bf16.gmra.mxu0 %v5773
      %v5858 = vpop.f32.mrf.mxu0
      %v5859 = vadd.f32 0.0, %v5858
      %v5860 = vpop.f32.mrf.mxu0
      %v5861 = vadd.f32 0.0, %v5860
      %5862 = vmatmul.bf16.gmra.mxu0 %v5776
      %v5863 = vpop.f32.mrf.mxu0
      %v5864 = vadd.f32 0.0, %v5863
      %v5865 = vpop.f32.mrf.mxu0
      %v5866 = vadd.f32 0.0, %v5865
      %5867 = vmatmul.bf16.gmra.mxu0 %v5779
      %v5868 = vpop.f32.mrf.mxu0
      %v5869 = vadd.f32 0.0, %v5868
      %v5870 = vpop.f32.mrf.mxu0
      %v5871 = vadd.f32 0.0, %v5870
      %5872 = vdwg.mxu0
      %v5873 = vadd.f32 %v5267, %v5794
      %v5874 = vadd.f32 %v5268, %v5796
      %v5875 = vadd.f32 %v5269, %v5799
      %v5876 = vadd.f32 %v5270, %v5801
      %v5877 = vadd.f32 %v5271, %v5804
      %v5878 = vadd.f32 %v5272, %v5806
      %v5879 = vadd.f32 %v5273, %v5809
      %v5880 = vadd.f32 %v5274, %v5811
      %v5881 = vadd.f32 %v5275, %v5814
      %v5882 = vadd.f32 %v5276, %v5816
      %v5883 = vadd.f32 %v5277, %v5819
      %v5884 = vadd.f32 %v5278, %v5821
      %v5885 = vadd.f32 %v5279, %v5824
      %v5886 = vadd.f32 %v5280, %v5826
      %v5887 = vadd.f32 %v5281, %v5829
      %v5888 = vadd.f32 %v5282, %v5831
      %v5889 = vadd.f32 %v5283, %v5834
      %v5890 = vadd.f32 %v5284, %v5836
      %v5891 = vadd.f32 %v5285, %v5839
      %v5892 = vadd.f32 %v5286, %v5841
      %v5893 = vadd.f32 %v5287, %v5844
      %v5894 = vadd.f32 %v5288, %v5846
      %v5895 = vadd.f32 %v5289, %v5849
      %v5896 = vadd.f32 %v5290, %v5851
      %v5897 = vadd.f32 %v5291, %v5854
      %v5898 = vadd.f32 %v5292, %v5856
      %v5899 = vadd.f32 %v5293, %v5859
      %v5900 = vadd.f32 %v5294, %v5861
      %v5901 = vadd.f32 %v5295, %v5864
      %v5902 = vadd.f32 %v5296, %v5866
      %v5903 = vadd.f32 %v5297, %v5869
      %v5904 = vadd.f32 %v5298, %v5871
      %s5905 = sadd.s32 %s163, 3
      %s5906 = smul.u32 %s5905, 3
      %s5907 = smul.addr %s5906, 4
      %s5908 = scalar_lea.vmem %s153, %s5907
      %v5909 = vld [vmem:[%s5908] sm:$0xf]
      %v5910 = vld [vmem:[%s5908 + $0x4] sm:$0xf]
      %v5911 = vld [vmem:[%s5908 + $0xc] sm:$0xf]
      %v5912 = vld [vmem:[%s5908 + $0x10] sm:$0xf]
      %v5913 = vld [vmem:[%s5908 + $0x18] sm:$0xf]
      %v5914 = vld [vmem:[%s5908 + $0x1c] sm:$0xf]
      %v5915 = vld [vmem:[%s5908 + $0x24] sm:$0xf]
      %v5916 = vld [vmem:[%s5908 + $0x28] sm:$0xf]
      %v5917 = vld [vmem:[%s5908 + $0x30] sm:$0xf]
      %v5918 = vld [vmem:[%s5908 + $0x34] sm:$0xf]
      %v5919 = vld [vmem:[%s5908 + $0x3c] sm:$0xf]
      %v5920 = vld [vmem:[%s5908 + $0x40] sm:$0xf]
      %v5921 = vld [vmem:[%s5908 + $0x48] sm:$0xf]
      %v5922 = vld [vmem:[%s5908 + $0x4c] sm:$0xf]
      %v5923 = vld [vmem:[%s5908 + $0x54] sm:$0xf]
      %v5924 = vld [vmem:[%s5908 + $0x58] sm:$0xf]
      %v5925 = vld [vmem:[%s5908 + $0x60] sm:$0xf]
      %v5926 = vld [vmem:[%s5908 + $0x64] sm:$0xf]
      %v5927 = vld [vmem:[%s5908 + $0x6c] sm:$0xf]
      %v5928 = vld [vmem:[%s5908 + $0x70] sm:$0xf]
      %v5929 = vld [vmem:[%s5908 + $0x78] sm:$0xf]
      %v5930 = vld [vmem:[%s5908 + $0x7c] sm:$0xf]
      %v5931 = vld [vmem:[%s5908 + $0x84] sm:$0xf]
      %v5932 = vld [vmem:[%s5908 + $0x88] sm:$0xf]
      %v5933 = vld [vmem:[%s5908 + $0x90] sm:$0xf]
      %v5934 = vld [vmem:[%s5908 + $0x94] sm:$0xf]
      %v5935 = vld [vmem:[%s5908 + $0x9c] sm:$0xf]
      %v5936 = vld [vmem:[%s5908 + $0xa0] sm:$0xf]
      %v5937 = vld [vmem:[%s5908 + $0xa8] sm:$0xf]
      %v5938 = vld [vmem:[%s5908 + $0xac] sm:$0xf]
      %v5939 = vld [vmem:[%s5908 + $0xb4] sm:$0xf]
      %v5940 = vld [vmem:[%s5908 + $0xb8] sm:$0xf]
      %s5941 = scalar_lea.vmem %s1, 48
      %v5942 = vld [vmem:[%s5941] sm:$0xf]
      %v5975 = vunpack.c.l.b16 %v5909
      %v5976 = vunpack.c.l.b16 %v5910
      %v5977 = vunpack.c.l.b16 %v5911
      %v5978 = vunpack.c.l.b16 %v5912
      %v5979 = vunpack.c.l.b16 %v5913
      %v5980 = vunpack.c.l.b16 %v5914
      %v5981 = vunpack.c.l.b16 %v5915
      %v5982 = vunpack.c.l.b16 %v5916
      %v5983 = vunpack.c.l.b16 %v5917
      %v5984 = vunpack.c.l.b16 %v5918
      %v5985 = vunpack.c.l.b16 %v5919
      %v5986 = vunpack.c.l.b16 %v5920
      %v5987 = vunpack.c.l.b16 %v5921
      %v5988 = vunpack.c.l.b16 %v5922
      %v5989 = vunpack.c.l.b16 %v5923
      %v5990 = vunpack.c.l.b16 %v5924
      %v5991 = vunpack.c.l.b16 %v5925
      %v5992 = vunpack.c.l.b16 %v5926
      %v5993 = vunpack.c.l.b16 %v5927
      %v5994 = vunpack.c.l.b16 %v5928
      %v5995 = vunpack.c.l.b16 %v5929
      %v5996 = vunpack.c.l.b16 %v5930
      %v5997 = vunpack.c.l.b16 %v5931
      %v5998 = vunpack.c.l.b16 %v5932
      %v5999 = vunpack.c.l.b16 %v5933
      %v6000 = vunpack.c.l.b16 %v5934
      %v6001 = vunpack.c.l.b16 %v5935
      %v6002 = vunpack.c.l.b16 %v5936
      %v6003 = vunpack.c.l.b16 %v5937
      %v6004 = vunpack.c.l.b16 %v5938
      %v6005 = vunpack.c.l.b16 %v5939
      %v6006 = vunpack.c.l.b16 %v5940
      %v6007 = vpack.c.b16 %v5976, %v5975
      %v6008 = vpack.c.b16 %v5978, %v5977
      %v6009 = vpack.c.b16 %v5980, %v5979
      %v6010 = vpack.c.b16 %v5982, %v5981
      %v6011 = vpack.c.b16 %v5984, %v5983
      %v6012 = vpack.c.b16 %v5986, %v5985
      %v6013 = vpack.c.b16 %v5988, %v5987
      %v6014 = vpack.c.b16 %v5990, %v5989
      %v6015 = vpack.c.b16 %v5992, %v5991
      %v6016 = vpack.c.b16 %v5994, %v5993
      %v6017 = vpack.c.b16 %v5996, %v5995
      %v6018 = vpack.c.b16 %v5998, %v5997
      %v6019 = vpack.c.b16 %v6000, %v5999
      %v6020 = vpack.c.b16 %v6002, %v6001
      %v6021 = vpack.c.b16 %v6004, %v6003
      %v6022 = vpack.c.b16 %v6006, %v6005
      %v6024 = vsel %vm653, %v6007, 0
      %v6027 = vsel %vm653, %v6008, 0
      %v6030 = vsel %vm653, %v6009, 0
      %v6033 = vsel %vm653, %v6010, 0
      %v6036 = vsel %vm653, %v6011, 0
      %v6039 = vsel %vm653, %v6012, 0
      %v6042 = vsel %vm653, %v6013, 0
      %v6045 = vsel %vm653, %v6014, 0
      %v6048 = vsel %vm653, %v6015, 0
      %v6051 = vsel %vm653, %v6016, 0
      %v6054 = vsel %vm653, %v6017, 0
      %v6057 = vsel %vm653, %v6018, 0
      %v6060 = vsel %vm653, %v6019, 0
      %v6063 = vsel %vm653, %v6020, 0
      %v6066 = vsel %vm653, %v6021, 0
      %v6069 = vsel %vm653, %v6022, 0
      %v6072 = vsel %vm702, %v5942, 0
      %6074 = vmatpush.bf16.msra.mxu0 0
      %6075 = vmatpush.bf16.msra.mxu0 0
      %6076 = vmatpush.bf16.msra.mxu0 0
      %6077 = vmatpush.bf16.msra.mxu0 0
      %6078 = vmatpush.bf16.msra.mxu0 0
      %6079 = vmatpush.bf16.msra.mxu0 0
      %6080 = vmatpush.bf16.msra.mxu0 0
      %6081 = vmatpush.bf16.msra.mxu0 %v6072
      %6082 = vmatmul.bf16.gmra.mxu0 %v6024
      %v6083 = vpop.f32.mrf.mxu0
      %v6084 = vadd.f32 0.0, %v6083
      %v6085 = vpop.f32.mrf.mxu0
      %v6086 = vadd.f32 0.0, %v6085
      %6087 = vmatmul.bf16.gmra.mxu0 %v6027
      %v6088 = vpop.f32.mrf.mxu0
      %v6089 = vadd.f32 0.0, %v6088
      %v6090 = vpop.f32.mrf.mxu0
      %v6091 = vadd.f32 0.0, %v6090
      %6092 = vmatmul.bf16.gmra.mxu0 %v6030
      %v6093 = vpop.f32.mrf.mxu0
      %v6094 = vadd.f32 0.0, %v6093
      %v6095 = vpop.f32.mrf.mxu0
      %v6096 = vadd.f32 0.0, %v6095
      %6097 = vmatmul.bf16.gmra.mxu0 %v6033
      %v6098 = vpop.f32.mrf.mxu0
      %v6099 = vadd.f32 0.0, %v6098
      %v6100 = vpop.f32.mrf.mxu0
      %v6101 = vadd.f32 0.0, %v6100
      %6102 = vmatmul.bf16.gmra.mxu0 %v6036
      %v6103 = vpop.f32.mrf.mxu0
      %v6104 = vadd.f32 0.0, %v6103
      %v6105 = vpop.f32.mrf.mxu0
      %v6106 = vadd.f32 0.0, %v6105
      %6107 = vmatmul.bf16.gmra.mxu0 %v6039
      %v6108 = vpop.f32.mrf.mxu0
      %v6109 = vadd.f32 0.0, %v6108
      %v6110 = vpop.f32.mrf.mxu0
      %v6111 = vadd.f32 0.0, %v6110
      %6112 = vmatmul.bf16.gmra.mxu0 %v6042
      %v6113 = vpop.f32.mrf.mxu0
      %v6114 = vadd.f32 0.0, %v6113
      %v6115 = vpop.f32.mrf.mxu0
      %v6116 = vadd.f32 0.0, %v6115
      %6117 = vmatmul.bf16.gmra.mxu0 %v6045
      %v6118 = vpop.f32.mrf.mxu0
      %v6119 = vadd.f32 0.0, %v6118
      %v6120 = vpop.f32.mrf.mxu0
      %v6121 = vadd.f32 0.0, %v6120
      %6122 = vmatmul.bf16.gmra.mxu0 %v6048
      %v6123 = vpop.f32.mrf.mxu0
      %v6124 = vadd.f32 0.0, %v6123
      %v6125 = vpop.f32.mrf.mxu0
      %v6126 = vadd.f32 0.0, %v6125
      %6127 = vmatmul.bf16.gmra.mxu0 %v6051
      %v6128 = vpop.f32.mrf.mxu0
      %v6129 = vadd.f32 0.0, %v6128
      %v6130 = vpop.f32.mrf.mxu0
      %v6131 = vadd.f32 0.0, %v6130
      %6132 = vmatmul.bf16.gmra.mxu0 %v6054
      %v6133 = vpop.f32.mrf.mxu0
      %v6134 = vadd.f32 0.0, %v6133
      %v6135 = vpop.f32.mrf.mxu0
      %v6136 = vadd.f32 0.0, %v6135
      %6137 = vmatmul.bf16.gmra.mxu0 %v6057
      %v6138 = vpop.f32.mrf.mxu0
      %v6139 = vadd.f32 0.0, %v6138
      %v6140 = vpop.f32.mrf.mxu0
      %v6141 = vadd.f32 0.0, %v6140
      %6142 = vmatmul.bf16.gmra.mxu0 %v6060
      %v6143 = vpop.f32.mrf.mxu0
      %v6144 = vadd.f32 0.0, %v6143
      %v6145 = vpop.f32.mrf.mxu0
      %v6146 = vadd.f32 0.0, %v6145
      %6147 = vmatmul.bf16.gmra.mxu0 %v6063
      %v6148 = vpop.f32.mrf.mxu0
      %v6149 = vadd.f32 0.0, %v6148
      %v6150 = vpop.f32.mrf.mxu0
      %v6151 = vadd.f32 0.0, %v6150
      %6152 = vmatmul.bf16.gmra.mxu0 %v6066
      %v6153 = vpop.f32.mrf.mxu0
      %v6154 = vadd.f32 0.0, %v6153
      %v6155 = vpop.f32.mrf.mxu0
      %v6156 = vadd.f32 0.0, %v6155
      %6157 = vmatmul.bf16.gmra.mxu0 %v6069
      %v6158 = vpop.f32.mrf.mxu0
      %v6159 = vadd.f32 0.0, %v6158
      %v6160 = vpop.f32.mrf.mxu0
      %v6161 = vadd.f32 0.0, %v6160
      %6162 = vdwg.mxu0
      %v6163 = vadd.f32 %v5873, %v6084
      %v6164 = vadd.f32 %v5874, %v6086
      %v6165 = vadd.f32 %v5875, %v6089
      %v6166 = vadd.f32 %v5876, %v6091
      %v6167 = vadd.f32 %v5877, %v6094
      %v6168 = vadd.f32 %v5878, %v6096
      %v6169 = vadd.f32 %v5879, %v6099
      %v6170 = vadd.f32 %v5880, %v6101
      %v6171 = vadd.f32 %v5881, %v6104
      %v6172 = vadd.f32 %v5882, %v6106
      %v6173 = vadd.f32 %v5883, %v6109
      %v6174 = vadd.f32 %v5884, %v6111
      %v6175 = vadd.f32 %v5885, %v6114
      %v6176 = vadd.f32 %v5886, %v6116
      %v6177 = vadd.f32 %v5887, %v6119
      %v6178 = vadd.f32 %v5888, %v6121
      %v6179 = vadd.f32 %v5889, %v6124
      %v6180 = vadd.f32 %v5890, %v6126
      %v6181 = vadd.f32 %v5891, %v6129
      %v6182 = vadd.f32 %v5892, %v6131
      %v6183 = vadd.f32 %v5893, %v6134
      %v6184 = vadd.f32 %v5894, %v6136
      %v6185 = vadd.f32 %v5895, %v6139
      %v6186 = vadd.f32 %v5896, %v6141
      %v6187 = vadd.f32 %v5897, %v6144
      %v6188 = vadd.f32 %v5898, %v6146
      %v6189 = vadd.f32 %v5899, %v6149
      %v6190 = vadd.f32 %v5900, %v6151
      %v6191 = vadd.f32 %v5901, %v6154
      %v6192 = vadd.f32 %v5902, %v6156
      %v6193 = vadd.f32 %v5903, %v6159
      %v6194 = vadd.f32 %v5904, %v6161
      %v6195 = vld [vmem:[%s5908] sm:$0xf]
      %v6196 = vld [vmem:[%s5908 + $0x4] sm:$0xf]
      %v6197 = vld [vmem:[%s5908 + $0x8] sm:$0x1]
      %v6198 = vld [vmem:[%s5908 + $0xc] sm:$0xf]
      %v6199 = vld [vmem:[%s5908 + $0x10] sm:$0xf]
      %v6200 = vld [vmem:[%s5908 + $0x14] sm:$0x1]
      %v6201 = vld [vmem:[%s5908 + $0x18] sm:$0xf]
      %v6202 = vld [vmem:[%s5908 + $0x1c] sm:$0xf]
      %v6203 = vld [vmem:[%s5908 + $0x20] sm:$0x1]
      %v6204 = vld [vmem:[%s5908 + $0x24] sm:$0xf]
      %v6205 = vld [vmem:[%s5908 + $0x28] sm:$0xf]
      %v6206 = vld [vmem:[%s5908 + $0x2c] sm:$0x1]
      %v6207 = vld [vmem:[%s5908 + $0x30] sm:$0xf]
      %v6208 = vld [vmem:[%s5908 + $0x34] sm:$0xf]
      %v6209 = vld [vmem:[%s5908 + $0x38] sm:$0x1]
      %v6210 = vld [vmem:[%s5908 + $0x3c] sm:$0xf]
      %v6211 = vld [vmem:[%s5908 + $0x40] sm:$0xf]
      %v6212 = vld [vmem:[%s5908 + $0x44] sm:$0x1]
      %v6213 = vld [vmem:[%s5908 + $0x48] sm:$0xf]
      %v6214 = vld [vmem:[%s5908 + $0x4c] sm:$0xf]
      %v6215 = vld [vmem:[%s5908 + $0x50] sm:$0x1]
      %v6216 = vld [vmem:[%s5908 + $0x54] sm:$0xf]
      %v6217 = vld [vmem:[%s5908 + $0x58] sm:$0xf]
      %v6218 = vld [vmem:[%s5908 + $0x5c] sm:$0x1]
      %v6219 = vld [vmem:[%s5908 + $0x60] sm:$0xf]
      %v6220 = vld [vmem:[%s5908 + $0x64] sm:$0xf]
      %v6221 = vld [vmem:[%s5908 + $0x68] sm:$0x1]
      %v6222 = vld [vmem:[%s5908 + $0x6c] sm:$0xf]
      %v6223 = vld [vmem:[%s5908 + $0x70] sm:$0xf]
      %v6224 = vld [vmem:[%s5908 + $0x74] sm:$0x1]
      %v6225 = vld [vmem:[%s5908 + $0x78] sm:$0xf]
      %v6226 = vld [vmem:[%s5908 + $0x7c] sm:$0xf]
      %v6227 = vld [vmem:[%s5908 + $0x80] sm:$0x1]
      %v6228 = vld [vmem:[%s5908 + $0x84] sm:$0xf]
      %v6229 = vld [vmem:[%s5908 + $0x88] sm:$0xf]
      %v6230 = vld [vmem:[%s5908 + $0x8c] sm:$0x1]
      %v6231 = vld [vmem:[%s5908 + $0x90] sm:$0xf]
      %v6232 = vld [vmem:[%s5908 + $0x94] sm:$0xf]
      %v6233 = vld [vmem:[%s5908 + $0x98] sm:$0x1]
      %v6234 = vld [vmem:[%s5908 + $0x9c] sm:$0xf]
      %v6235 = vld [vmem:[%s5908 + $0xa0] sm:$0xf]
      %v6236 = vld [vmem:[%s5908 + $0xa4] sm:$0x1]
      %v6237 = vld [vmem:[%s5908 + $0xa8] sm:$0xf]
      %v6238 = vld [vmem:[%s5908 + $0xac] sm:$0xf]
      %v6239 = vld [vmem:[%s5908 + $0xb0] sm:$0x1]
      %v6240 = vld [vmem:[%s5908 + $0xb4] sm:$0xf]
      %v6241 = vld [vmem:[%s5908 + $0xb8] sm:$0xf]
      %v6242 = vld [vmem:[%s5908 + $0xbc] sm:$0x1]
      %v6244 = vshrl.u32 %v6195, 16
      %v6246 = vrot.slane %v6244, 4
      %v6247 = vshll.u32 %v6195, 16
      %v6249 = vrot.slane %v6247, 5
      %v6250 = vor.u32 %v6246, %v6249
      %v6251 = vrot.slane %v6250, 4
      %v6253 = vshll.u32 %v6196, 16
      %v6255 = vrot.slane %v6253, 5
      %v6256 = vsel %vm218, %v6251, %v6255
      %v6257 = vshrl.u32 %v6196, 16
      %v6259 = vrot.slane %v6257, 4
      %v6260 = vor.u32 %v6259, %v6255
      %v6261 = vrot.slane %v6260, 4
      %v6263 = vshll.u32 %v6197, 16
      %v6265 = vrot.slane %v6263, 5
      %v6266 = vsel %vm218, %v6261, %v6265
      %v6268 = vshrl.u32 %v6198, 16
      %v6270 = vrot.slane %v6268, 4
      %v6271 = vshll.u32 %v6198, 16
      %v6273 = vrot.slane %v6271, 5
      %v6274 = vor.u32 %v6270, %v6273
      %v6275 = vrot.slane %v6274, 4
      %v6277 = vshll.u32 %v6199, 16
      %v6279 = vrot.slane %v6277, 5
      %v6280 = vsel %vm218, %v6275, %v6279
      %v6281 = vshrl.u32 %v6199, 16
      %v6283 = vrot.slane %v6281, 4
      %v6284 = vor.u32 %v6283, %v6279
      %v6285 = vrot.slane %v6284, 4
      %v6287 = vshll.u32 %v6200, 16
      %v6289 = vrot.slane %v6287, 5
      %v6290 = vsel %vm218, %v6285, %v6289
      %v6292 = vshrl.u32 %v6201, 16
      %v6294 = vrot.slane %v6292, 4
      %v6295 = vshll.u32 %v6201, 16
      %v6297 = vrot.slane %v6295, 5
      %v6298 = vor.u32 %v6294, %v6297
      %v6299 = vrot.slane %v6298, 4
      %v6301 = vshll.u32 %v6202, 16
      %v6303 = vrot.slane %v6301, 5
      %v6304 = vsel %vm218, %v6299, %v6303
      %v6305 = vshrl.u32 %v6202, 16
      %v6307 = vrot.slane %v6305, 4
      %v6308 = vor.u32 %v6307, %v6303
      %v6309 = vrot.slane %v6308, 4
      %v6311 = vshll.u32 %v6203, 16
      %v6313 = vrot.slane %v6311, 5
      %v6314 = vsel %vm218, %v6309, %v6313
      %v6316 = vshrl.u32 %v6204, 16
      %v6318 = vrot.slane %v6316, 4
      %v6319 = vshll.u32 %v6204, 16
      %v6321 = vrot.slane %v6319, 5
      %v6322 = vor.u32 %v6318, %v6321
      %v6323 = vrot.slane %v6322, 4
      %v6325 = vshll.u32 %v6205, 16
      %v6327 = vrot.slane %v6325, 5
      %v6328 = vsel %vm218, %v6323, %v6327
      %v6329 = vshrl.u32 %v6205, 16
      %v6331 = vrot.slane %v6329, 4
      %v6332 = vor.u32 %v6331, %v6327
      %v6333 = vrot.slane %v6332, 4
      %v6335 = vshll.u32 %v6206, 16
      %v6337 = vrot.slane %v6335, 5
      %v6338 = vsel %vm218, %v6333, %v6337
      %v6340 = vshrl.u32 %v6207, 16
      %v6342 = vrot.slane %v6340, 4
      %v6343 = vshll.u32 %v6207, 16
      %v6345 = vrot.slane %v6343, 5
      %v6346 = vor.u32 %v6342, %v6345
      %v6347 = vrot.slane %v6346, 4
      %v6349 = vshll.u32 %v6208, 16
      %v6351 = vrot.slane %v6349, 5
      %v6352 = vsel %vm218, %v6347, %v6351
      %v6353 = vshrl.u32 %v6208, 16
      %v6355 = vrot.slane %v6353, 4
      %v6356 = vor.u32 %v6355, %v6351
      %v6357 = vrot.slane %v6356, 4
      %v6359 = vshll.u32 %v6209, 16
      %v6361 = vrot.slane %v6359, 5
      %v6362 = vsel %vm218, %v6357, %v6361
      %v6364 = vshrl.u32 %v6210, 16
      %v6366 = vrot.slane %v6364, 4
      %v6367 = vshll.u32 %v6210, 16
      %v6369 = vrot.slane %v6367, 5
      %v6370 = vor.u32 %v6366, %v6369
      %v6371 = vrot.slane %v6370, 4
      %v6373 = vshll.u32 %v6211, 16
      %v6375 = vrot.slane %v6373, 5
      %v6376 = vsel %vm218, %v6371, %v6375
      %v6377 = vshrl.u32 %v6211, 16
      %v6379 = vrot.slane %v6377, 4
      %v6380 = vor.u32 %v6379, %v6375
      %v6381 = vrot.slane %v6380, 4
      %v6383 = vshll.u32 %v6212, 16
      %v6385 = vrot.slane %v6383, 5
      %v6386 = vsel %vm218, %v6381, %v6385
      %v6388 = vshrl.u32 %v6213, 16
      %v6390 = vrot.slane %v6388, 4
      %v6391 = vshll.u32 %v6213, 16
      %v6393 = vrot.slane %v6391, 5
      %v6394 = vor.u32 %v6390, %v6393
      %v6395 = vrot.slane %v6394, 4
      %v6397 = vshll.u32 %v6214, 16
      %v6399 = vrot.slane %v6397, 5
      %v6400 = vsel %vm218, %v6395, %v6399
      %v6401 = vshrl.u32 %v6214, 16
      %v6403 = vrot.slane %v6401, 4
      %v6404 = vor.u32 %v6403, %v6399
      %v6405 = vrot.slane %v6404, 4
      %v6407 = vshll.u32 %v6215, 16
      %v6409 = vrot.slane %v6407, 5
      %v6410 = vsel %vm218, %v6405, %v6409
      %v6412 = vshrl.u32 %v6216, 16
      %v6414 = vrot.slane %v6412, 4
      %v6415 = vshll.u32 %v6216, 16
      %v6417 = vrot.slane %v6415, 5
      %v6418 = vor.u32 %v6414, %v6417
      %v6419 = vrot.slane %v6418, 4
      %v6421 = vshll.u32 %v6217, 16
      %v6423 = vrot.slane %v6421, 5
      %v6424 = vsel %vm218, %v6419, %v6423
      %v6425 = vshrl.u32 %v6217, 16
      %v6427 = vrot.slane %v6425, 4
      %v6428 = vor.u32 %v6427, %v6423
      %v6429 = vrot.slane %v6428, 4
      %v6431 = vshll.u32 %v6218, 16
      %v6433 = vrot.slane %v6431, 5
      %v6434 = vsel %vm218, %v6429, %v6433
      %v6436 = vshrl.u32 %v6219, 16
      %v6438 = vrot.slane %v6436, 4
      %v6439 = vshll.u32 %v6219, 16
      %v6441 = vrot.slane %v6439, 5
      %v6442 = vor.u32 %v6438, %v6441
      %v6443 = vrot.slane %v6442, 4
      %v6445 = vshll.u32 %v6220, 16
      %v6447 = vrot.slane %v6445, 5
      %v6448 = vsel %vm218, %v6443, %v6447
      %v6449 = vshrl.u32 %v6220, 16
      %v6451 = vrot.slane %v6449, 4
      %v6452 = vor.u32 %v6451, %v6447
      %v6453 = vrot.slane %v6452, 4
      %v6455 = vshll.u32 %v6221, 16
      %v6457 = vrot.slane %v6455, 5
      %v6458 = vsel %vm218, %v6453, %v6457
      %v6460 = vshrl.u32 %v6222, 16
      %v6462 = vrot.slane %v6460, 4
      %v6463 = vshll.u32 %v6222, 16
      %v6465 = vrot.slane %v6463, 5
      %v6466 = vor.u32 %v6462, %v6465
      %v6467 = vrot.slane %v6466, 4
      %v6469 = vshll.u32 %v6223, 16
      %v6471 = vrot.slane %v6469, 5
      %v6472 = vsel %vm218, %v6467, %v6471
      %v6473 = vshrl.u32 %v6223, 16
      %v6475 = vrot.slane %v6473, 4
      %v6476 = vor.u32 %v6475, %v6471
      %v6477 = vrot.slane %v6476, 4
      %v6479 = vshll.u32 %v6224, 16
      %v6481 = vrot.slane %v6479, 5
      %v6482 = vsel %vm218, %v6477, %v6481
      %v6484 = vshrl.u32 %v6225, 16
      %v6486 = vrot.slane %v6484, 4
      %v6487 = vshll.u32 %v6225, 16
      %v6489 = vrot.slane %v6487, 5
      %v6490 = vor.u32 %v6486, %v6489
      %v6491 = vrot.slane %v6490, 4
      %v6493 = vshll.u32 %v6226, 16
      %v6495 = vrot.slane %v6493, 5
      %v6496 = vsel %vm218, %v6491, %v6495
      %v6497 = vshrl.u32 %v6226, 16
      %v6499 = vrot.slane %v6497, 4
      %v6500 = vor.u32 %v6499, %v6495
      %v6501 = vrot.slane %v6500, 4
      %v6503 = vshll.u32 %v6227, 16
      %v6505 = vrot.slane %v6503, 5
      %v6506 = vsel %vm218, %v6501, %v6505
      %v6508 = vshrl.u32 %v6228, 16
      %v6510 = vrot.slane %v6508, 4
      %v6511 = vshll.u32 %v6228, 16
      %v6513 = vrot.slane %v6511, 5
      %v6514 = vor.u32 %v6510, %v6513
      %v6515 = vrot.slane %v6514, 4
      %v6517 = vshll.u32 %v6229, 16
      %v6519 = vrot.slane %v6517, 5
      %v6520 = vsel %vm218, %v6515, %v6519
      %v6521 = vshrl.u32 %v6229, 16
      %v6523 = vrot.slane %v6521, 4
      %v6524 = vor.u32 %v6523, %v6519
      %v6525 = vrot.slane %v6524, 4
      %v6527 = vshll.u32 %v6230, 16
      %v6529 = vrot.slane %v6527, 5
      %v6530 = vsel %vm218, %v6525, %v6529
      %v6532 = vshrl.u32 %v6231, 16
      %v6534 = vrot.slane %v6532, 4
      %v6535 = vshll.u32 %v6231, 16
      %v6537 = vrot.slane %v6535, 5
      %v6538 = vor.u32 %v6534, %v6537
      %v6539 = vrot.slane %v6538, 4
      %v6541 = vshll.u32 %v6232, 16
      %v6543 = vrot.slane %v6541, 5
      %v6544 = vsel %vm218, %v6539, %v6543
      %v6545 = vshrl.u32 %v6232, 16
      %v6547 = vrot.slane %v6545, 4
      %v6548 = vor.u32 %v6547, %v6543
      %v6549 = vrot.slane %v6548, 4
      %v6551 = vshll.u32 %v6233, 16
      %v6553 = vrot.slane %v6551, 5
      %v6554 = vsel %vm218, %v6549, %v6553
      %v6556 = vshrl.u32 %v6234, 16
      %v6558 = vrot.slane %v6556, 4
      %v6559 = vshll.u32 %v6234, 16
      %v6561 = vrot.slane %v6559, 5
      %v6562 = vor.u32 %v6558, %v6561
      %v6563 = vrot.slane %v6562, 4
      %v6565 = vshll.u32 %v6235, 16
      %v6567 = vrot.slane %v6565, 5
      %v6568 = vsel %vm218, %v6563, %v6567
      %v6569 = vshrl.u32 %v6235, 16
      %v6571 = vrot.slane %v6569, 4
      %v6572 = vor.u32 %v6571, %v6567
      %v6573 = vrot.slane %v6572, 4
      %v6575 = vshll.u32 %v6236, 16
      %v6577 = vrot.slane %v6575, 5
      %v6578 = vsel %vm218, %v6573, %v6577
      %v6580 = vshrl.u32 %v6237, 16
      %v6582 = vrot.slane %v6580, 4
      %v6583 = vshll.u32 %v6237, 16
      %v6585 = vrot.slane %v6583, 5
      %v6586 = vor.u32 %v6582, %v6585
      %v6587 = vrot.slane %v6586, 4
      %v6589 = vshll.u32 %v6238, 16
      %v6591 = vrot.slane %v6589, 5
      %v6592 = vsel %vm218, %v6587, %v6591
      %v6593 = vshrl.u32 %v6238, 16
      %v6595 = vrot.slane %v6593, 4
      %v6596 = vor.u32 %v6595, %v6591
      %v6597 = vrot.slane %v6596, 4
      %v6599 = vshll.u32 %v6239, 16
      %v6601 = vrot.slane %v6599, 5
      %v6602 = vsel %vm218, %v6597, %v6601
      %v6604 = vshrl.u32 %v6240, 16
      %v6606 = vrot.slane %v6604, 4
      %v6607 = vshll.u32 %v6240, 16
      %v6609 = vrot.slane %v6607, 5
      %v6610 = vor.u32 %v6606, %v6609
      %v6611 = vrot.slane %v6610, 4
      %v6613 = vshll.u32 %v6241, 16
      %v6615 = vrot.slane %v6613, 5
      %v6616 = vsel %vm218, %v6611, %v6615
      %v6617 = vshrl.u32 %v6241, 16
      %v6619 = vrot.slane %v6617, 4
      %v6620 = vor.u32 %v6619, %v6615
      %v6621 = vrot.slane %v6620, 4
      %v6623 = vshll.u32 %v6242, 16
      %v6625 = vrot.slane %v6623, 5
      %v6626 = vsel %vm218, %v6621, %v6625
      %s6627 = scalar_lea.vmem %s1, 52
      %v6628 = vld [vmem:[%s6627] sm:$0xf]
      %v6629 = vunpack.c.l.b16 %v6256
      %v6630 = vunpack.c.l.b16 %v6266
      %v6631 = vunpack.c.l.b16 %v6280
      %v6632 = vunpack.c.l.b16 %v6290
      %v6633 = vunpack.c.l.b16 %v6304
      %v6634 = vunpack.c.l.b16 %v6314
      %v6635 = vunpack.c.l.b16 %v6328
      %v6636 = vunpack.c.l.b16 %v6338
      %v6637 = vunpack.c.l.b16 %v6352
      %v6638 = vunpack.c.l.b16 %v6362
      %v6639 = vunpack.c.l.b16 %v6376
      %v6640 = vunpack.c.l.b16 %v6386
      %v6641 = vunpack.c.l.b16 %v6400
      %v6642 = vunpack.c.l.b16 %v6410
      %v6643 = vunpack.c.l.b16 %v6424
      %v6644 = vunpack.c.l.b16 %v6434
      %v6645 = vunpack.c.l.b16 %v6448
      %v6646 = vunpack.c.l.b16 %v6458
      %v6647 = vunpack.c.l.b16 %v6472
      %v6648 = vunpack.c.l.b16 %v6482
      %v6649 = vunpack.c.l.b16 %v6496
      %v6650 = vunpack.c.l.b16 %v6506
      %v6651 = vunpack.c.l.b16 %v6520
      %v6652 = vunpack.c.l.b16 %v6530
      %v6653 = vunpack.c.l.b16 %v6544
      %v6654 = vunpack.c.l.b16 %v6554
      %v6655 = vunpack.c.l.b16 %v6568
      %v6656 = vunpack.c.l.b16 %v6578
      %v6657 = vunpack.c.l.b16 %v6592
      %v6658 = vunpack.c.l.b16 %v6602
      %v6659 = vunpack.c.l.b16 %v6616
      %v6660 = vunpack.c.l.b16 %v6626
      %v6661 = vpack.c.b16 %v6630, %v6629
      %v6662 = vpack.c.b16 %v6632, %v6631
      %v6663 = vpack.c.b16 %v6634, %v6633
      %v6664 = vpack.c.b16 %v6636, %v6635
      %v6665 = vpack.c.b16 %v6638, %v6637
      %v6666 = vpack.c.b16 %v6640, %v6639
      %v6667 = vpack.c.b16 %v6642, %v6641
      %v6668 = vpack.c.b16 %v6644, %v6643
      %v6669 = vpack.c.b16 %v6646, %v6645
      %v6670 = vpack.c.b16 %v6648, %v6647
      %v6671 = vpack.c.b16 %v6650, %v6649
      %v6672 = vpack.c.b16 %v6652, %v6651
      %v6673 = vpack.c.b16 %v6654, %v6653
      %v6674 = vpack.c.b16 %v6656, %v6655
      %v6675 = vpack.c.b16 %v6658, %v6657
      %v6676 = vpack.c.b16 %v6660, %v6659
      %v6678 = vsel %vm653, %v6661, 0
      %v6681 = vsel %vm653, %v6662, 0
      %v6684 = vsel %vm653, %v6663, 0
      %v6687 = vsel %vm653, %v6664, 0
      %v6690 = vsel %vm653, %v6665, 0
      %v6693 = vsel %vm653, %v6666, 0
      %v6696 = vsel %vm653, %v6667, 0
      %v6699 = vsel %vm653, %v6668, 0
      %v6702 = vsel %vm653, %v6669, 0
      %v6705 = vsel %vm653, %v6670, 0
      %v6708 = vsel %vm653, %v6671, 0
      %v6711 = vsel %vm653, %v6672, 0
      %v6714 = vsel %vm653, %v6673, 0
      %v6717 = vsel %vm653, %v6674, 0
      %v6720 = vsel %vm653, %v6675, 0
      %v6723 = vsel %vm653, %v6676, 0
      %v6726 = vsel %vm702, %v6628, 0
      %6728 = vmatpush.bf16.msra.mxu0 0
      %6729 = vmatpush.bf16.msra.mxu0 0
      %6730 = vmatpush.bf16.msra.mxu0 0
      %6731 = vmatpush.bf16.msra.mxu0 0
      %6732 = vmatpush.bf16.msra.mxu0 0
      %6733 = vmatpush.bf16.msra.mxu0 0
      %6734 = vmatpush.bf16.msra.mxu0 0
      %6735 = vmatpush.bf16.msra.mxu0 %v6726
      %6736 = vmatmul.bf16.gmra.mxu0 %v6678
      %v6737 = vpop.f32.mrf.mxu0
      %v6738 = vadd.f32 0.0, %v6737
      %v6739 = vpop.f32.mrf.mxu0
      %v6740 = vadd.f32 0.0, %v6739
      %6741 = vmatmul.bf16.gmra.mxu0 %v6681
      %v6742 = vpop.f32.mrf.mxu0
      %v6743 = vadd.f32 0.0, %v6742
      %v6744 = vpop.f32.mrf.mxu0
      %v6745 = vadd.f32 0.0, %v6744
      %6746 = vmatmul.bf16.gmra.mxu0 %v6684
      %v6747 = vpop.f32.mrf.mxu0
      %v6748 = vadd.f32 0.0, %v6747
      %v6749 = vpop.f32.mrf.mxu0
      %v6750 = vadd.f32 0.0, %v6749
      %6751 = vmatmul.bf16.gmra.mxu0 %v6687
      %v6752 = vpop.f32.mrf.mxu0
      %v6753 = vadd.f32 0.0, %v6752
      %v6754 = vpop.f32.mrf.mxu0
      %v6755 = vadd.f32 0.0, %v6754
      %6756 = vmatmul.bf16.gmra.mxu0 %v6690
      %v6757 = vpop.f32.mrf.mxu0
      %v6758 = vadd.f32 0.0, %v6757
      %v6759 = vpop.f32.mrf.mxu0
      %v6760 = vadd.f32 0.0, %v6759
      %6761 = vmatmul.bf16.gmra.mxu0 %v6693
      %v6762 = vpop.f32.mrf.mxu0
      %v6763 = vadd.f32 0.0, %v6762
      %v6764 = vpop.f32.mrf.mxu0
      %v6765 = vadd.f32 0.0, %v6764
      %6766 = vmatmul.bf16.gmra.mxu0 %v6696
      %v6767 = vpop.f32.mrf.mxu0
      %v6768 = vadd.f32 0.0, %v6767
      %v6769 = vpop.f32.mrf.mxu0
      %v6770 = vadd.f32 0.0, %v6769
      %6771 = vmatmul.bf16.gmra.mxu0 %v6699
      %v6772 = vpop.f32.mrf.mxu0
      %v6773 = vadd.f32 0.0, %v6772
      %v6774 = vpop.f32.mrf.mxu0
      %v6775 = vadd.f32 0.0, %v6774
      %6776 = vmatmul.bf16.gmra.mxu0 %v6702
      %v6777 = vpop.f32.mrf.mxu0
      %v6778 = vadd.f32 0.0, %v6777
      %v6779 = vpop.f32.mrf.mxu0
      %v6780 = vadd.f32 0.0, %v6779
      %6781 = vmatmul.bf16.gmra.mxu0 %v6705
      %v6782 = vpop.f32.mrf.mxu0
      %v6783 = vadd.f32 0.0, %v6782
      %v6784 = vpop.f32.mrf.mxu0
      %v6785 = vadd.f32 0.0, %v6784
      %6786 = vmatmul.bf16.gmra.mxu0 %v6708
      %v6787 = vpop.f32.mrf.mxu0
      %v6788 = vadd.f32 0.0, %v6787
      %v6789 = vpop.f32.mrf.mxu0
      %v6790 = vadd.f32 0.0, %v6789
      %6791 = vmatmul.bf16.gmra.mxu0 %v6711
      %v6792 = vpop.f32.mrf.mxu0
      %v6793 = vadd.f32 0.0, %v6792
      %v6794 = vpop.f32.mrf.mxu0
      %v6795 = vadd.f32 0.0, %v6794
      %6796 = vmatmul.bf16.gmra.mxu0 %v6714
      %v6797 = vpop.f32.mrf.mxu0
      %v6798 = vadd.f32 0.0, %v6797
      %v6799 = vpop.f32.mrf.mxu0
      %v6800 = vadd.f32 0.0, %v6799
      %6801 = vmatmul.bf16.gmra.mxu0 %v6717
      %v6802 = vpop.f32.mrf.mxu0
      %v6803 = vadd.f32 0.0, %v6802
      %v6804 = vpop.f32.mrf.mxu0
      %v6805 = vadd.f32 0.0, %v6804
      %6806 = vmatmul.bf16.gmra.mxu0 %v6720
      %v6807 = vpop.f32.mrf.mxu0
      %v6808 = vadd.f32 0.0, %v6807
      %v6809 = vpop.f32.mrf.mxu0
      %v6810 = vadd.f32 0.0, %v6809
      %6811 = vmatmul.bf16.gmra.mxu0 %v6723
      %v6812 = vpop.f32.mrf.mxu0
      %v6813 = vadd.f32 0.0, %v6812
      %v6814 = vpop.f32.mrf.mxu0
      %v6815 = vadd.f32 0.0, %v6814
      %6816 = vdwg.mxu0
      %v6817 = vadd.f32 %v6163, %v6738
      %v6818 = vadd.f32 %v6164, %v6740
      %v6819 = vadd.f32 %v6165, %v6743
      %v6820 = vadd.f32 %v6166, %v6745
      %v6821 = vadd.f32 %v6167, %v6748
      %v6822 = vadd.f32 %v6168, %v6750
      %v6823 = vadd.f32 %v6169, %v6753
      %v6824 = vadd.f32 %v6170, %v6755
      %v6825 = vadd.f32 %v6171, %v6758
      %v6826 = vadd.f32 %v6172, %v6760
      %v6827 = vadd.f32 %v6173, %v6763
      %v6828 = vadd.f32 %v6174, %v6765
      %v6829 = vadd.f32 %v6175, %v6768
      %v6830 = vadd.f32 %v6176, %v6770
      %v6831 = vadd.f32 %v6177, %v6773
      %v6832 = vadd.f32 %v6178, %v6775
      %v6833 = vadd.f32 %v6179, %v6778
      %v6834 = vadd.f32 %v6180, %v6780
      %v6835 = vadd.f32 %v6181, %v6783
      %v6836 = vadd.f32 %v6182, %v6785
      %v6837 = vadd.f32 %v6183, %v6788
      %v6838 = vadd.f32 %v6184, %v6790
      %v6839 = vadd.f32 %v6185, %v6793
      %v6840 = vadd.f32 %v6186, %v6795
      %v6841 = vadd.f32 %v6187, %v6798
      %v6842 = vadd.f32 %v6188, %v6800
      %v6843 = vadd.f32 %v6189, %v6803
      %v6844 = vadd.f32 %v6190, %v6805
      %v6845 = vadd.f32 %v6191, %v6808
      %v6846 = vadd.f32 %v6192, %v6810
      %v6847 = vadd.f32 %v6193, %v6813
      %v6848 = vadd.f32 %v6194, %v6815
      %v6849 = vld [vmem:[%s5908] sm:$0xe]
      %v6850 = vld [vmem:[%s5908 + $0xc] sm:$0xe]
      %v6851 = vld [vmem:[%s5908 + $0x18] sm:$0xe]
      %v6852 = vld [vmem:[%s5908 + $0x24] sm:$0xe]
      %v6853 = vld [vmem:[%s5908 + $0x30] sm:$0xe]
      %v6854 = vld [vmem:[%s5908 + $0x3c] sm:$0xe]
      %v6855 = vld [vmem:[%s5908 + $0x48] sm:$0xe]
      %v6856 = vld [vmem:[%s5908 + $0x54] sm:$0xe]
      %v6857 = vld [vmem:[%s5908 + $0x60] sm:$0xe]
      %v6858 = vld [vmem:[%s5908 + $0x6c] sm:$0xe]
      %v6859 = vld [vmem:[%s5908 + $0x78] sm:$0xe]
      %v6860 = vld [vmem:[%s5908 + $0x84] sm:$0xe]
      %v6861 = vld [vmem:[%s5908 + $0x90] sm:$0xe]
      %v6862 = vld [vmem:[%s5908 + $0x9c] sm:$0xe]
      %v6863 = vld [vmem:[%s5908 + $0xa8] sm:$0xe]
      %v6864 = vld [vmem:[%s5908 + $0xb4] sm:$0xe]
      %v6913 = vrot.slane %v6849, 5
      %v6914 = vrot.slane %v6913, 4
      %v6915 = vrot.slane %v6196, 5
      %v6916 = vsel %vm1065, %v6914, %v6915
      %v6917 = vrot.slane %v6915, 4
      %v6918 = vrot.slane %v6197, 5
      %v6919 = vsel %vm1065, %v6917, %v6918
      %v6920 = vrot.slane %v6850, 5
      %v6921 = vrot.slane %v6920, 4
      %v6922 = vrot.slane %v6199, 5
      %v6923 = vsel %vm1065, %v6921, %v6922
      %v6924 = vrot.slane %v6922, 4
      %v6925 = vrot.slane %v6200, 5
      %v6926 = vsel %vm1065, %v6924, %v6925
      %v6927 = vrot.slane %v6851, 5
      %v6928 = vrot.slane %v6927, 4
      %v6929 = vrot.slane %v6202, 5
      %v6930 = vsel %vm1065, %v6928, %v6929
      %v6931 = vrot.slane %v6929, 4
      %v6932 = vrot.slane %v6203, 5
      %v6933 = vsel %vm1065, %v6931, %v6932
      %v6934 = vrot.slane %v6852, 5
      %v6935 = vrot.slane %v6934, 4
      %v6936 = vrot.slane %v6205, 5
      %v6937 = vsel %vm1065, %v6935, %v6936
      %v6938 = vrot.slane %v6936, 4
      %v6939 = vrot.slane %v6206, 5
      %v6940 = vsel %vm1065, %v6938, %v6939
      %v6941 = vrot.slane %v6853, 5
      %v6942 = vrot.slane %v6941, 4
      %v6943 = vrot.slane %v6208, 5
      %v6944 = vsel %vm1065, %v6942, %v6943
      %v6945 = vrot.slane %v6943, 4
      %v6946 = vrot.slane %v6209, 5
      %v6947 = vsel %vm1065, %v6945, %v6946
      %v6948 = vrot.slane %v6854, 5
      %v6949 = vrot.slane %v6948, 4
      %v6950 = vrot.slane %v6211, 5
      %v6951 = vsel %vm1065, %v6949, %v6950
      %v6952 = vrot.slane %v6950, 4
      %v6953 = vrot.slane %v6212, 5
      %v6954 = vsel %vm1065, %v6952, %v6953
      %v6955 = vrot.slane %v6855, 5
      %v6956 = vrot.slane %v6955, 4
      %v6957 = vrot.slane %v6214, 5
      %v6958 = vsel %vm1065, %v6956, %v6957
      %v6959 = vrot.slane %v6957, 4
      %v6960 = vrot.slane %v6215, 5
      %v6961 = vsel %vm1065, %v6959, %v6960
      %v6962 = vrot.slane %v6856, 5
      %v6963 = vrot.slane %v6962, 4
      %v6964 = vrot.slane %v6217, 5
      %v6965 = vsel %vm1065, %v6963, %v6964
      %v6966 = vrot.slane %v6964, 4
      %v6967 = vrot.slane %v6218, 5
      %v6968 = vsel %vm1065, %v6966, %v6967
      %v6969 = vrot.slane %v6857, 5
      %v6970 = vrot.slane %v6969, 4
      %v6971 = vrot.slane %v6220, 5
      %v6972 = vsel %vm1065, %v6970, %v6971
      %v6973 = vrot.slane %v6971, 4
      %v6974 = vrot.slane %v6221, 5
      %v6975 = vsel %vm1065, %v6973, %v6974
      %v6976 = vrot.slane %v6858, 5
      %v6977 = vrot.slane %v6976, 4
      %v6978 = vrot.slane %v6223, 5
      %v6979 = vsel %vm1065, %v6977, %v6978
      %v6980 = vrot.slane %v6978, 4
      %v6981 = vrot.slane %v6224, 5
      %v6982 = vsel %vm1065, %v6980, %v6981
      %v6983 = vrot.slane %v6859, 5
      %v6984 = vrot.slane %v6983, 4
      %v6985 = vrot.slane %v6226, 5
      %v6986 = vsel %vm1065, %v6984, %v6985
      %v6987 = vrot.slane %v6985, 4
      %v6988 = vrot.slane %v6227, 5
      %v6989 = vsel %vm1065, %v6987, %v6988
      %v6990 = vrot.slane %v6860, 5
      %v6991 = vrot.slane %v6990, 4
      %v6992 = vrot.slane %v6229, 5
      %v6993 = vsel %vm1065, %v6991, %v6992
      %v6994 = vrot.slane %v6992, 4
      %v6995 = vrot.slane %v6230, 5
      %v6996 = vsel %vm1065, %v6994, %v6995
      %v6997 = vrot.slane %v6861, 5
      %v6998 = vrot.slane %v6997, 4
      %v6999 = vrot.slane %v6232, 5
      %v7000 = vsel %vm1065, %v6998, %v6999
      %v7001 = vrot.slane %v6999, 4
      %v7002 = vrot.slane %v6233, 5
      %v7003 = vsel %vm1065, %v7001, %v7002
      %v7004 = vrot.slane %v6862, 5
      %v7005 = vrot.slane %v7004, 4
      %v7006 = vrot.slane %v6235, 5
      %v7007 = vsel %vm1065, %v7005, %v7006
      %v7008 = vrot.slane %v7006, 4
      %v7009 = vrot.slane %v6236, 5
      %v7010 = vsel %vm1065, %v7008, %v7009
      %v7011 = vrot.slane %v6863, 5
      %v7012 = vrot.slane %v7011, 4
      %v7013 = vrot.slane %v6238, 5
      %v7014 = vsel %vm1065, %v7012, %v7013
      %v7015 = vrot.slane %v7013, 4
      %v7016 = vrot.slane %v6239, 5
      %v7017 = vsel %vm1065, %v7015, %v7016
      %v7018 = vrot.slane %v6864, 5
      %v7019 = vrot.slane %v7018, 4
      %v7020 = vrot.slane %v6241, 5
      %v7021 = vsel %vm1065, %v7019, %v7020
      %v7022 = vrot.slane %v7020, 4
      %v7023 = vrot.slane %v6242, 5
      %v7024 = vsel %vm1065, %v7022, %v7023
      %s7025 = scalar_lea.vmem %s1, 56
      %v7026 = vld [vmem:[%s7025] sm:$0xf]
      %v7027 = vunpack.c.l.b16 %v6916
      %v7028 = vunpack.c.l.b16 %v6919
      %v7029 = vunpack.c.l.b16 %v6923
      %v7030 = vunpack.c.l.b16 %v6926
      %v7031 = vunpack.c.l.b16 %v6930
      %v7032 = vunpack.c.l.b16 %v6933
      %v7033 = vunpack.c.l.b16 %v6937
      %v7034 = vunpack.c.l.b16 %v6940
      %v7035 = vunpack.c.l.b16 %v6944
      %v7036 = vunpack.c.l.b16 %v6947
      %v7037 = vunpack.c.l.b16 %v6951
      %v7038 = vunpack.c.l.b16 %v6954
      %v7039 = vunpack.c.l.b16 %v6958
      %v7040 = vunpack.c.l.b16 %v6961
      %v7041 = vunpack.c.l.b16 %v6965
      %v7042 = vunpack.c.l.b16 %v6968
      %v7043 = vunpack.c.l.b16 %v6972
      %v7044 = vunpack.c.l.b16 %v6975
      %v7045 = vunpack.c.l.b16 %v6979
      %v7046 = vunpack.c.l.b16 %v6982
      %v7047 = vunpack.c.l.b16 %v6986
      %v7048 = vunpack.c.l.b16 %v6989
      %v7049 = vunpack.c.l.b16 %v6993
      %v7050 = vunpack.c.l.b16 %v6996
      %v7051 = vunpack.c.l.b16 %v7000
      %v7052 = vunpack.c.l.b16 %v7003
      %v7053 = vunpack.c.l.b16 %v7007
      %v7054 = vunpack.c.l.b16 %v7010
      %v7055 = vunpack.c.l.b16 %v7014
      %v7056 = vunpack.c.l.b16 %v7017
      %v7057 = vunpack.c.l.b16 %v7021
      %v7058 = vunpack.c.l.b16 %v7024
      %v7059 = vpack.c.b16 %v7028, %v7027
      %v7060 = vpack.c.b16 %v7030, %v7029
      %v7061 = vpack.c.b16 %v7032, %v7031
      %v7062 = vpack.c.b16 %v7034, %v7033
      %v7063 = vpack.c.b16 %v7036, %v7035
      %v7064 = vpack.c.b16 %v7038, %v7037
      %v7065 = vpack.c.b16 %v7040, %v7039
      %v7066 = vpack.c.b16 %v7042, %v7041
      %v7067 = vpack.c.b16 %v7044, %v7043
      %v7068 = vpack.c.b16 %v7046, %v7045
      %v7069 = vpack.c.b16 %v7048, %v7047
      %v7070 = vpack.c.b16 %v7050, %v7049
      %v7071 = vpack.c.b16 %v7052, %v7051
      %v7072 = vpack.c.b16 %v7054, %v7053
      %v7073 = vpack.c.b16 %v7056, %v7055
      %v7074 = vpack.c.b16 %v7058, %v7057
      %v7076 = vsel %vm653, %v7059, 0
      %v7079 = vsel %vm653, %v7060, 0
      %v7082 = vsel %vm653, %v7061, 0
      %v7085 = vsel %vm653, %v7062, 0
      %v7088 = vsel %vm653, %v7063, 0
      %v7091 = vsel %vm653, %v7064, 0
      %v7094 = vsel %vm653, %v7065, 0
      %v7097 = vsel %vm653, %v7066, 0
      %v7100 = vsel %vm653, %v7067, 0
      %v7103 = vsel %vm653, %v7068, 0
      %v7106 = vsel %vm653, %v7069, 0
      %v7109 = vsel %vm653, %v7070, 0
      %v7112 = vsel %vm653, %v7071, 0
      %v7115 = vsel %vm653, %v7072, 0
      %v7118 = vsel %vm653, %v7073, 0
      %v7121 = vsel %vm653, %v7074, 0
      %v7124 = vsel %vm702, %v7026, 0
      %7126 = vmatpush.bf16.msra.mxu0 0
      %7127 = vmatpush.bf16.msra.mxu0 0
      %7128 = vmatpush.bf16.msra.mxu0 0
      %7129 = vmatpush.bf16.msra.mxu0 0
      %7130 = vmatpush.bf16.msra.mxu0 0
      %7131 = vmatpush.bf16.msra.mxu0 0
      %7132 = vmatpush.bf16.msra.mxu0 0
      %7133 = vmatpush.bf16.msra.mxu0 %v7124
      %7134 = vmatmul.bf16.gmra.mxu0 %v7076
      %v7135 = vpop.f32.mrf.mxu0
      %v7136 = vadd.f32 0.0, %v7135
      %v7137 = vpop.f32.mrf.mxu0
      %v7138 = vadd.f32 0.0, %v7137
      %7139 = vmatmul.bf16.gmra.mxu0 %v7079
      %v7140 = vpop.f32.mrf.mxu0
      %v7141 = vadd.f32 0.0, %v7140
      %v7142 = vpop.f32.mrf.mxu0
      %v7143 = vadd.f32 0.0, %v7142
      %7144 = vmatmul.bf16.gmra.mxu0 %v7082
      %v7145 = vpop.f32.mrf.mxu0
      %v7146 = vadd.f32 0.0, %v7145
      %v7147 = vpop.f32.mrf.mxu0
      %v7148 = vadd.f32 0.0, %v7147
      %7149 = vmatmul.bf16.gmra.mxu0 %v7085
      %v7150 = vpop.f32.mrf.mxu0
      %v7151 = vadd.f32 0.0, %v7150
      %v7152 = vpop.f32.mrf.mxu0
      %v7153 = vadd.f32 0.0, %v7152
      %7154 = vmatmul.bf16.gmra.mxu0 %v7088
      %v7155 = vpop.f32.mrf.mxu0
      %v7156 = vadd.f32 0.0, %v7155
      %v7157 = vpop.f32.mrf.mxu0
      %v7158 = vadd.f32 0.0, %v7157
      %7159 = vmatmul.bf16.gmra.mxu0 %v7091
      %v7160 = vpop.f32.mrf.mxu0
      %v7161 = vadd.f32 0.0, %v7160
      %v7162 = vpop.f32.mrf.mxu0
      %v7163 = vadd.f32 0.0, %v7162
      %7164 = vmatmul.bf16.gmra.mxu0 %v7094
      %v7165 = vpop.f32.mrf.mxu0
      %v7166 = vadd.f32 0.0, %v7165
      %v7167 = vpop.f32.mrf.mxu0
      %v7168 = vadd.f32 0.0, %v7167
      %7169 = vmatmul.bf16.gmra.mxu0 %v7097
      %v7170 = vpop.f32.mrf.mxu0
      %v7171 = vadd.f32 0.0, %v7170
      %v7172 = vpop.f32.mrf.mxu0
      %v7173 = vadd.f32 0.0, %v7172
      %7174 = vmatmul.bf16.gmra.mxu0 %v7100
      %v7175 = vpop.f32.mrf.mxu0
      %v7176 = vadd.f32 0.0, %v7175
      %v7177 = vpop.f32.mrf.mxu0
      %v7178 = vadd.f32 0.0, %v7177
      %7179 = vmatmul.bf16.gmra.mxu0 %v7103
      %v7180 = vpop.f32.mrf.mxu0
      %v7181 = vadd.f32 0.0, %v7180
      %v7182 = vpop.f32.mrf.mxu0
      %v7183 = vadd.f32 0.0, %v7182
      %7184 = vmatmul.bf16.gmra.mxu0 %v7106
      %v7185 = vpop.f32.mrf.mxu0
      %v7186 = vadd.f32 0.0, %v7185
      %v7187 = vpop.f32.mrf.mxu0
      %v7188 = vadd.f32 0.0, %v7187
      %7189 = vmatmul.bf16.gmra.mxu0 %v7109
      %v7190 = vpop.f32.mrf.mxu0
      %v7191 = vadd.f32 0.0, %v7190
      %v7192 = vpop.f32.mrf.mxu0
      %v7193 = vadd.f32 0.0, %v7192
      %7194 = vmatmul.bf16.gmra.mxu0 %v7112
      %v7195 = vpop.f32.mrf.mxu0
      %v7196 = vadd.f32 0.0, %v7195
      %v7197 = vpop.f32.mrf.mxu0
      %v7198 = vadd.f32 0.0, %v7197
      %7199 = vmatmul.bf16.gmra.mxu0 %v7115
      %v7200 = vpop.f32.mrf.mxu0
      %v7201 = vadd.f32 0.0, %v7200
      %v7202 = vpop.f32.mrf.mxu0
      %v7203 = vadd.f32 0.0, %v7202
      %7204 = vmatmul.bf16.gmra.mxu0 %v7118
      %v7205 = vpop.f32.mrf.mxu0
      %v7206 = vadd.f32 0.0, %v7205
      %v7207 = vpop.f32.mrf.mxu0
      %v7208 = vadd.f32 0.0, %v7207
      %7209 = vmatmul.bf16.gmra.mxu0 %v7121
      %v7210 = vpop.f32.mrf.mxu0
      %v7211 = vadd.f32 0.0, %v7210
      %v7212 = vpop.f32.mrf.mxu0
      %v7213 = vadd.f32 0.0, %v7212
      %7214 = vdwg.mxu0
      %v7215 = vadd.f32 %v6817, %v7136
      %v7216 = vadd.f32 %v6818, %v7138
      %v7217 = vadd.f32 %v6819, %v7141
      %v7218 = vadd.f32 %v6820, %v7143
      %v7219 = vadd.f32 %v6821, %v7146
      %v7220 = vadd.f32 %v6822, %v7148
      %v7221 = vadd.f32 %v6823, %v7151
      %v7222 = vadd.f32 %v6824, %v7153
      %v7223 = vadd.f32 %v6825, %v7156
      %v7224 = vadd.f32 %v6826, %v7158
      %v7225 = vadd.f32 %v6827, %v7161
      %v7226 = vadd.f32 %v6828, %v7163
      %v7227 = vadd.f32 %v6829, %v7166
      %v7228 = vadd.f32 %v6830, %v7168
      %v7229 = vadd.f32 %v6831, %v7171
      %v7230 = vadd.f32 %v6832, %v7173
      %v7231 = vadd.f32 %v6833, %v7176
      %v7232 = vadd.f32 %v6834, %v7178
      %v7233 = vadd.f32 %v6835, %v7181
      %v7234 = vadd.f32 %v6836, %v7183
      %v7235 = vadd.f32 %v6837, %v7186
      %v7236 = vadd.f32 %v6838, %v7188
      %v7237 = vadd.f32 %v6839, %v7191
      %v7238 = vadd.f32 %v6840, %v7193
      %v7239 = vadd.f32 %v6841, %v7196
      %v7240 = vadd.f32 %v6842, %v7198
      %v7241 = vadd.f32 %v6843, %v7201
      %v7242 = vadd.f32 %v6844, %v7203
      %v7243 = vadd.f32 %v6845, %v7206
      %v7244 = vadd.f32 %v6846, %v7208
      %v7245 = vadd.f32 %v6847, %v7211
      %v7246 = vadd.f32 %v6848, %v7213
      %v7247 = vld [vmem:[%s5908 + $0x8] sm:$0x3]
      %v7248 = vld [vmem:[%s5908 + $0x14] sm:$0x3]
      %v7249 = vld [vmem:[%s5908 + $0x20] sm:$0x3]
      %v7250 = vld [vmem:[%s5908 + $0x2c] sm:$0x3]
      %v7251 = vld [vmem:[%s5908 + $0x38] sm:$0x3]
      %v7252 = vld [vmem:[%s5908 + $0x44] sm:$0x3]
      %v7253 = vld [vmem:[%s5908 + $0x50] sm:$0x3]
      %v7254 = vld [vmem:[%s5908 + $0x5c] sm:$0x3]
      %v7255 = vld [vmem:[%s5908 + $0x68] sm:$0x3]
      %v7256 = vld [vmem:[%s5908 + $0x74] sm:$0x3]
      %v7257 = vld [vmem:[%s5908 + $0x80] sm:$0x3]
      %v7258 = vld [vmem:[%s5908 + $0x8c] sm:$0x3]
      %v7259 = vld [vmem:[%s5908 + $0x98] sm:$0x3]
      %v7260 = vld [vmem:[%s5908 + $0xa4] sm:$0x3]
      %v7261 = vld [vmem:[%s5908 + $0xb0] sm:$0x3]
      %v7262 = vld [vmem:[%s5908 + $0xbc] sm:$0x3]
      %v7264 = vshrl.u32 %v6849, 16
      %v7266 = vrot.slane %v7264, 5
      %v7267 = vshll.u32 %v6849, 16
      %v7269 = vrot.slane %v7267, 6
      %v7270 = vor.u32 %v7266, %v7269
      %v7271 = vrot.slane %v7270, 4
      %v7272 = vrot.slane %v6257, 5
      %v7273 = vrot.slane %v6253, 6
      %v7274 = vor.u32 %v7272, %v7273
      %v7275 = vsel %vm1418, %v7271, %v7274
      %v7276 = vrot.slane %v7274, 4
      %v7278 = vshrl.u32 %v7247, 16
      %v7280 = vrot.slane %v7278, 5
      %v7281 = vshll.u32 %v7247, 16
      %v7283 = vrot.slane %v7281, 6
      %v7284 = vor.u32 %v7280, %v7283
      %v7285 = vsel %vm1418, %v7276, %v7284
      %v7287 = vshrl.u32 %v6850, 16
      %v7289 = vrot.slane %v7287, 5
      %v7290 = vshll.u32 %v6850, 16
      %v7292 = vrot.slane %v7290, 6
      %v7293 = vor.u32 %v7289, %v7292
      %v7294 = vrot.slane %v7293, 4
      %v7295 = vrot.slane %v6281, 5
      %v7296 = vrot.slane %v6277, 6
      %v7297 = vor.u32 %v7295, %v7296
      %v7298 = vsel %vm1418, %v7294, %v7297
      %v7299 = vrot.slane %v7297, 4
      %v7301 = vshrl.u32 %v7248, 16
      %v7303 = vrot.slane %v7301, 5
      %v7304 = vshll.u32 %v7248, 16
      %v7306 = vrot.slane %v7304, 6
      %v7307 = vor.u32 %v7303, %v7306
      %v7308 = vsel %vm1418, %v7299, %v7307
      %v7310 = vshrl.u32 %v6851, 16
      %v7312 = vrot.slane %v7310, 5
      %v7313 = vshll.u32 %v6851, 16
      %v7315 = vrot.slane %v7313, 6
      %v7316 = vor.u32 %v7312, %v7315
      %v7317 = vrot.slane %v7316, 4
      %v7318 = vrot.slane %v6305, 5
      %v7319 = vrot.slane %v6301, 6
      %v7320 = vor.u32 %v7318, %v7319
      %v7321 = vsel %vm1418, %v7317, %v7320
      %v7322 = vrot.slane %v7320, 4
      %v7324 = vshrl.u32 %v7249, 16
      %v7326 = vrot.slane %v7324, 5
      %v7327 = vshll.u32 %v7249, 16
      %v7329 = vrot.slane %v7327, 6
      %v7330 = vor.u32 %v7326, %v7329
      %v7331 = vsel %vm1418, %v7322, %v7330
      %v7333 = vshrl.u32 %v6852, 16
      %v7335 = vrot.slane %v7333, 5
      %v7336 = vshll.u32 %v6852, 16
      %v7338 = vrot.slane %v7336, 6
      %v7339 = vor.u32 %v7335, %v7338
      %v7340 = vrot.slane %v7339, 4
      %v7341 = vrot.slane %v6329, 5
      %v7342 = vrot.slane %v6325, 6
      %v7343 = vor.u32 %v7341, %v7342
      %v7344 = vsel %vm1418, %v7340, %v7343
      %v7345 = vrot.slane %v7343, 4
      %v7347 = vshrl.u32 %v7250, 16
      %v7349 = vrot.slane %v7347, 5
      %v7350 = vshll.u32 %v7250, 16
      %v7352 = vrot.slane %v7350, 6
      %v7353 = vor.u32 %v7349, %v7352
      %v7354 = vsel %vm1418, %v7345, %v7353
      %v7356 = vshrl.u32 %v6853, 16
      %v7358 = vrot.slane %v7356, 5
      %v7359 = vshll.u32 %v6853, 16
      %v7361 = vrot.slane %v7359, 6
      %v7362 = vor.u32 %v7358, %v7361
      %v7363 = vrot.slane %v7362, 4
      %v7364 = vrot.slane %v6353, 5
      %v7365 = vrot.slane %v6349, 6
      %v7366 = vor.u32 %v7364, %v7365
      %v7367 = vsel %vm1418, %v7363, %v7366
      %v7368 = vrot.slane %v7366, 4
      %v7370 = vshrl.u32 %v7251, 16
      %v7372 = vrot.slane %v7370, 5
      %v7373 = vshll.u32 %v7251, 16
      %v7375 = vrot.slane %v7373, 6
      %v7376 = vor.u32 %v7372, %v7375
      %v7377 = vsel %vm1418, %v7368, %v7376
      %v7379 = vshrl.u32 %v6854, 16
      %v7381 = vrot.slane %v7379, 5
      %v7382 = vshll.u32 %v6854, 16
      %v7384 = vrot.slane %v7382, 6
      %v7385 = vor.u32 %v7381, %v7384
      %v7386 = vrot.slane %v7385, 4
      %v7387 = vrot.slane %v6377, 5
      %v7388 = vrot.slane %v6373, 6
      %v7389 = vor.u32 %v7387, %v7388
      %v7390 = vsel %vm1418, %v7386, %v7389
      %v7391 = vrot.slane %v7389, 4
      %v7393 = vshrl.u32 %v7252, 16
      %v7395 = vrot.slane %v7393, 5
      %v7396 = vshll.u32 %v7252, 16
      %v7398 = vrot.slane %v7396, 6
      %v7399 = vor.u32 %v7395, %v7398
      %v7400 = vsel %vm1418, %v7391, %v7399
      %v7402 = vshrl.u32 %v6855, 16
      %v7404 = vrot.slane %v7402, 5
      %v7405 = vshll.u32 %v6855, 16
      %v7407 = vrot.slane %v7405, 6
      %v7408 = vor.u32 %v7404, %v7407
      %v7409 = vrot.slane %v7408, 4
      %v7410 = vrot.slane %v6401, 5
      %v7411 = vrot.slane %v6397, 6
      %v7412 = vor.u32 %v7410, %v7411
      %v7413 = vsel %vm1418, %v7409, %v7412
      %v7414 = vrot.slane %v7412, 4
      %v7416 = vshrl.u32 %v7253, 16
      %v7418 = vrot.slane %v7416, 5
      %v7419 = vshll.u32 %v7253, 16
      %v7421 = vrot.slane %v7419, 6
      %v7422 = vor.u32 %v7418, %v7421
      %v7423 = vsel %vm1418, %v7414, %v7422
      %v7425 = vshrl.u32 %v6856, 16
      %v7427 = vrot.slane %v7425, 5
      %v7428 = vshll.u32 %v6856, 16
      %v7430 = vrot.slane %v7428, 6
      %v7431 = vor.u32 %v7427, %v7430
      %v7432 = vrot.slane %v7431, 4
      %v7433 = vrot.slane %v6425, 5
      %v7434 = vrot.slane %v6421, 6
      %v7435 = vor.u32 %v7433, %v7434
      %v7436 = vsel %vm1418, %v7432, %v7435
      %v7437 = vrot.slane %v7435, 4
      %v7439 = vshrl.u32 %v7254, 16
      %v7441 = vrot.slane %v7439, 5
      %v7442 = vshll.u32 %v7254, 16
      %v7444 = vrot.slane %v7442, 6
      %v7445 = vor.u32 %v7441, %v7444
      %v7446 = vsel %vm1418, %v7437, %v7445
      %v7448 = vshrl.u32 %v6857, 16
      %v7450 = vrot.slane %v7448, 5
      %v7451 = vshll.u32 %v6857, 16
      %v7453 = vrot.slane %v7451, 6
      %v7454 = vor.u32 %v7450, %v7453
      %v7455 = vrot.slane %v7454, 4
      %v7456 = vrot.slane %v6449, 5
      %v7457 = vrot.slane %v6445, 6
      %v7458 = vor.u32 %v7456, %v7457
      %v7459 = vsel %vm1418, %v7455, %v7458
      %v7460 = vrot.slane %v7458, 4
      %v7462 = vshrl.u32 %v7255, 16
      %v7464 = vrot.slane %v7462, 5
      %v7465 = vshll.u32 %v7255, 16
      %v7467 = vrot.slane %v7465, 6
      %v7468 = vor.u32 %v7464, %v7467
      %v7469 = vsel %vm1418, %v7460, %v7468
      %v7471 = vshrl.u32 %v6858, 16
      %v7473 = vrot.slane %v7471, 5
      %v7474 = vshll.u32 %v6858, 16
      %v7476 = vrot.slane %v7474, 6
      %v7477 = vor.u32 %v7473, %v7476
      %v7478 = vrot.slane %v7477, 4
      %v7479 = vrot.slane %v6473, 5
      %v7480 = vrot.slane %v6469, 6
      %v7481 = vor.u32 %v7479, %v7480
      %v7482 = vsel %vm1418, %v7478, %v7481
      %v7483 = vrot.slane %v7481, 4
      %v7485 = vshrl.u32 %v7256, 16
      %v7487 = vrot.slane %v7485, 5
      %v7488 = vshll.u32 %v7256, 16
      %v7490 = vrot.slane %v7488, 6
      %v7491 = vor.u32 %v7487, %v7490
      %v7492 = vsel %vm1418, %v7483, %v7491
      %v7494 = vshrl.u32 %v6859, 16
      %v7496 = vrot.slane %v7494, 5
      %v7497 = vshll.u32 %v6859, 16
      %v7499 = vrot.slane %v7497, 6
      %v7500 = vor.u32 %v7496, %v7499
      %v7501 = vrot.slane %v7500, 4
      %v7502 = vrot.slane %v6497, 5
      %v7503 = vrot.slane %v6493, 6
      %v7504 = vor.u32 %v7502, %v7503
      %v7505 = vsel %vm1418, %v7501, %v7504
      %v7506 = vrot.slane %v7504, 4
      %v7508 = vshrl.u32 %v7257, 16
      %v7510 = vrot.slane %v7508, 5
      %v7511 = vshll.u32 %v7257, 16
      %v7513 = vrot.slane %v7511, 6
      %v7514 = vor.u32 %v7510, %v7513
      %v7515 = vsel %vm1418, %v7506, %v7514
      %v7517 = vshrl.u32 %v6860, 16
      %v7519 = vrot.slane %v7517, 5
      %v7520 = vshll.u32 %v6860, 16
      %v7522 = vrot.slane %v7520, 6
      %v7523 = vor.u32 %v7519, %v7522
      %v7524 = vrot.slane %v7523, 4
      %v7525 = vrot.slane %v6521, 5
      %v7526 = vrot.slane %v6517, 6
      %v7527 = vor.u32 %v7525, %v7526
      %v7528 = vsel %vm1418, %v7524, %v7527
      %v7529 = vrot.slane %v7527, 4
      %v7531 = vshrl.u32 %v7258, 16
      %v7533 = vrot.slane %v7531, 5
      %v7534 = vshll.u32 %v7258, 16
      %v7536 = vrot.slane %v7534, 6
      %v7537 = vor.u32 %v7533, %v7536
      %v7538 = vsel %vm1418, %v7529, %v7537
      %v7540 = vshrl.u32 %v6861, 16
      %v7542 = vrot.slane %v7540, 5
      %v7543 = vshll.u32 %v6861, 16
      %v7545 = vrot.slane %v7543, 6
      %v7546 = vor.u32 %v7542, %v7545
      %v7547 = vrot.slane %v7546, 4
      %v7548 = vrot.slane %v6545, 5
      %v7549 = vrot.slane %v6541, 6
      %v7550 = vor.u32 %v7548, %v7549
      %v7551 = vsel %vm1418, %v7547, %v7550
      %v7552 = vrot.slane %v7550, 4
      %v7554 = vshrl.u32 %v7259, 16
      %v7556 = vrot.slane %v7554, 5
      %v7557 = vshll.u32 %v7259, 16
      %v7559 = vrot.slane %v7557, 6
      %v7560 = vor.u32 %v7556, %v7559
      %v7561 = vsel %vm1418, %v7552, %v7560
      %v7563 = vshrl.u32 %v6862, 16
      %v7565 = vrot.slane %v7563, 5
      %v7566 = vshll.u32 %v6862, 16
      %v7568 = vrot.slane %v7566, 6
      %v7569 = vor.u32 %v7565, %v7568
      %v7570 = vrot.slane %v7569, 4
      %v7571 = vrot.slane %v6569, 5
      %v7572 = vrot.slane %v6565, 6
      %v7573 = vor.u32 %v7571, %v7572
      %v7574 = vsel %vm1418, %v7570, %v7573
      %v7575 = vrot.slane %v7573, 4
      %v7577 = vshrl.u32 %v7260, 16
      %v7579 = vrot.slane %v7577, 5
      %v7580 = vshll.u32 %v7260, 16
      %v7582 = vrot.slane %v7580, 6
      %v7583 = vor.u32 %v7579, %v7582
      %v7584 = vsel %vm1418, %v7575, %v7583
      %v7586 = vshrl.u32 %v6863, 16
      %v7588 = vrot.slane %v7586, 5
      %v7589 = vshll.u32 %v6863, 16
      %v7591 = vrot.slane %v7589, 6
      %v7592 = vor.u32 %v7588, %v7591
      %v7593 = vrot.slane %v7592, 4
      %v7594 = vrot.slane %v6593, 5
      %v7595 = vrot.slane %v6589, 6
      %v7596 = vor.u32 %v7594, %v7595
      %v7597 = vsel %vm1418, %v7593, %v7596
      %v7598 = vrot.slane %v7596, 4
      %v7600 = vshrl.u32 %v7261, 16
      %v7602 = vrot.slane %v7600, 5
      %v7603 = vshll.u32 %v7261, 16
      %v7605 = vrot.slane %v7603, 6
      %v7606 = vor.u32 %v7602, %v7605
      %v7607 = vsel %vm1418, %v7598, %v7606
      %v7609 = vshrl.u32 %v6864, 16
      %v7611 = vrot.slane %v7609, 5
      %v7612 = vshll.u32 %v6864, 16
      %v7614 = vrot.slane %v7612, 6
      %v7615 = vor.u32 %v7611, %v7614
      %v7616 = vrot.slane %v7615, 4
      %v7617 = vrot.slane %v6617, 5
      %v7618 = vrot.slane %v6613, 6
      %v7619 = vor.u32 %v7617, %v7618
      %v7620 = vsel %vm1418, %v7616, %v7619
      %v7621 = vrot.slane %v7619, 4
      %v7623 = vshrl.u32 %v7262, 16
      %v7625 = vrot.slane %v7623, 5
      %v7626 = vshll.u32 %v7262, 16
      %v7628 = vrot.slane %v7626, 6
      %v7629 = vor.u32 %v7625, %v7628
      %v7630 = vsel %vm1418, %v7621, %v7629
      %s7631 = scalar_lea.vmem %s1, 60
      %v7632 = vld [vmem:[%s7631] sm:$0xf]
      %v7633 = vunpack.c.l.b16 %v7275
      %v7634 = vunpack.c.l.b16 %v7285
      %v7635 = vunpack.c.l.b16 %v7298
      %v7636 = vunpack.c.l.b16 %v7308
      %v7637 = vunpack.c.l.b16 %v7321
      %v7638 = vunpack.c.l.b16 %v7331
      %v7639 = vunpack.c.l.b16 %v7344
      %v7640 = vunpack.c.l.b16 %v7354
      %v7641 = vunpack.c.l.b16 %v7367
      %v7642 = vunpack.c.l.b16 %v7377
      %v7643 = vunpack.c.l.b16 %v7390
      %v7644 = vunpack.c.l.b16 %v7400
      %v7645 = vunpack.c.l.b16 %v7413
      %v7646 = vunpack.c.l.b16 %v7423
      %v7647 = vunpack.c.l.b16 %v7436
      %v7648 = vunpack.c.l.b16 %v7446
      %v7649 = vunpack.c.l.b16 %v7459
      %v7650 = vunpack.c.l.b16 %v7469
      %v7651 = vunpack.c.l.b16 %v7482
      %v7652 = vunpack.c.l.b16 %v7492
      %v7653 = vunpack.c.l.b16 %v7505
      %v7654 = vunpack.c.l.b16 %v7515
      %v7655 = vunpack.c.l.b16 %v7528
      %v7656 = vunpack.c.l.b16 %v7538
      %v7657 = vunpack.c.l.b16 %v7551
      %v7658 = vunpack.c.l.b16 %v7561
      %v7659 = vunpack.c.l.b16 %v7574
      %v7660 = vunpack.c.l.b16 %v7584
      %v7661 = vunpack.c.l.b16 %v7597
      %v7662 = vunpack.c.l.b16 %v7607
      %v7663 = vunpack.c.l.b16 %v7620
      %v7664 = vunpack.c.l.b16 %v7630
      %v7665 = vpack.c.b16 %v7634, %v7633
      %v7666 = vpack.c.b16 %v7636, %v7635
      %v7667 = vpack.c.b16 %v7638, %v7637
      %v7668 = vpack.c.b16 %v7640, %v7639
      %v7669 = vpack.c.b16 %v7642, %v7641
      %v7670 = vpack.c.b16 %v7644, %v7643
      %v7671 = vpack.c.b16 %v7646, %v7645
      %v7672 = vpack.c.b16 %v7648, %v7647
      %v7673 = vpack.c.b16 %v7650, %v7649
      %v7674 = vpack.c.b16 %v7652, %v7651
      %v7675 = vpack.c.b16 %v7654, %v7653
      %v7676 = vpack.c.b16 %v7656, %v7655
      %v7677 = vpack.c.b16 %v7658, %v7657
      %v7678 = vpack.c.b16 %v7660, %v7659
      %v7679 = vpack.c.b16 %v7662, %v7661
      %v7680 = vpack.c.b16 %v7664, %v7663
      %v7682 = vsel %vm653, %v7665, 0
      %v7685 = vsel %vm653, %v7666, 0
      %v7688 = vsel %vm653, %v7667, 0
      %v7691 = vsel %vm653, %v7668, 0
      %v7694 = vsel %vm653, %v7669, 0
      %v7697 = vsel %vm653, %v7670, 0
      %v7700 = vsel %vm653, %v7671, 0
      %v7703 = vsel %vm653, %v7672, 0
      %v7706 = vsel %vm653, %v7673, 0
      %v7709 = vsel %vm653, %v7674, 0
      %v7712 = vsel %vm653, %v7675, 0
      %v7715 = vsel %vm653, %v7676, 0
      %v7718 = vsel %vm653, %v7677, 0
      %v7721 = vsel %vm653, %v7678, 0
      %v7724 = vsel %vm653, %v7679, 0
      %v7727 = vsel %vm653, %v7680, 0
      %v7730 = vsel %vm702, %v7632, 0
      %7732 = vmatpush.bf16.msra.mxu0 0
      %7733 = vmatpush.bf16.msra.mxu0 0
      %7734 = vmatpush.bf16.msra.mxu0 0
      %7735 = vmatpush.bf16.msra.mxu0 0
      %7736 = vmatpush.bf16.msra.mxu0 0
      %7737 = vmatpush.bf16.msra.mxu0 0
      %7738 = vmatpush.bf16.msra.mxu0 0
      %7739 = vmatpush.bf16.msra.mxu0 %v7730
      %7740 = vmatmul.bf16.gmra.mxu0 %v7682
      %v7741 = vpop.f32.mrf.mxu0
      %v7742 = vadd.f32 0.0, %v7741
      %v7743 = vpop.f32.mrf.mxu0
      %v7744 = vadd.f32 0.0, %v7743
      %7745 = vmatmul.bf16.gmra.mxu0 %v7685
      %v7746 = vpop.f32.mrf.mxu0
      %v7747 = vadd.f32 0.0, %v7746
      %v7748 = vpop.f32.mrf.mxu0
      %v7749 = vadd.f32 0.0, %v7748
      %7750 = vmatmul.bf16.gmra.mxu0 %v7688
      %v7751 = vpop.f32.mrf.mxu0
      %v7752 = vadd.f32 0.0, %v7751
      %v7753 = vpop.f32.mrf.mxu0
      %v7754 = vadd.f32 0.0, %v7753
      %7755 = vmatmul.bf16.gmra.mxu0 %v7691
      %v7756 = vpop.f32.mrf.mxu0
      %v7757 = vadd.f32 0.0, %v7756
      %v7758 = vpop.f32.mrf.mxu0
      %v7759 = vadd.f32 0.0, %v7758
      %7760 = vmatmul.bf16.gmra.mxu0 %v7694
      %v7761 = vpop.f32.mrf.mxu0
      %v7762 = vadd.f32 0.0, %v7761
      %v7763 = vpop.f32.mrf.mxu0
      %v7764 = vadd.f32 0.0, %v7763
      %7765 = vmatmul.bf16.gmra.mxu0 %v7697
      %v7766 = vpop.f32.mrf.mxu0
      %v7767 = vadd.f32 0.0, %v7766
      %v7768 = vpop.f32.mrf.mxu0
      %v7769 = vadd.f32 0.0, %v7768
      %7770 = vmatmul.bf16.gmra.mxu0 %v7700
      %v7771 = vpop.f32.mrf.mxu0
      %v7772 = vadd.f32 0.0, %v7771
      %v7773 = vpop.f32.mrf.mxu0
      %v7774 = vadd.f32 0.0, %v7773
      %7775 = vmatmul.bf16.gmra.mxu0 %v7703
      %v7776 = vpop.f32.mrf.mxu0
      %v7777 = vadd.f32 0.0, %v7776
      %v7778 = vpop.f32.mrf.mxu0
      %v7779 = vadd.f32 0.0, %v7778
      %7780 = vmatmul.bf16.gmra.mxu0 %v7706
      %v7781 = vpop.f32.mrf.mxu0
      %v7782 = vadd.f32 0.0, %v7781
      %v7783 = vpop.f32.mrf.mxu0
      %v7784 = vadd.f32 0.0, %v7783
      %7785 = vmatmul.bf16.gmra.mxu0 %v7709
      %v7786 = vpop.f32.mrf.mxu0
      %v7787 = vadd.f32 0.0, %v7786
      %v7788 = vpop.f32.mrf.mxu0
      %v7789 = vadd.f32 0.0, %v7788
      %7790 = vmatmul.bf16.gmra.mxu0 %v7712
      %v7791 = vpop.f32.mrf.mxu0
      %v7792 = vadd.f32 0.0, %v7791
      %v7793 = vpop.f32.mrf.mxu0
      %v7794 = vadd.f32 0.0, %v7793
      %7795 = vmatmul.bf16.gmra.mxu0 %v7715
      %v7796 = vpop.f32.mrf.mxu0
      %v7797 = vadd.f32 0.0, %v7796
      %v7798 = vpop.f32.mrf.mxu0
      %v7799 = vadd.f32 0.0, %v7798
      %7800 = vmatmul.bf16.gmra.mxu0 %v7718
      %v7801 = vpop.f32.mrf.mxu0
      %v7802 = vadd.f32 0.0, %v7801
      %v7803 = vpop.f32.mrf.mxu0
      %v7804 = vadd.f32 0.0, %v7803
      %7805 = vmatmul.bf16.gmra.mxu0 %v7721
      %v7806 = vpop.f32.mrf.mxu0
      %v7807 = vadd.f32 0.0, %v7806
      %v7808 = vpop.f32.mrf.mxu0
      %v7809 = vadd.f32 0.0, %v7808
      %7810 = vmatmul.bf16.gmra.mxu0 %v7724
      %v7811 = vpop.f32.mrf.mxu0
      %v7812 = vadd.f32 0.0, %v7811
      %v7813 = vpop.f32.mrf.mxu0
      %v7814 = vadd.f32 0.0, %v7813
      %7815 = vmatmul.bf16.gmra.mxu0 %v7727
      %v7816 = vpop.f32.mrf.mxu0
      %v7817 = vadd.f32 0.0, %v7816
      %v7818 = vpop.f32.mrf.mxu0
      %v7819 = vadd.f32 0.0, %v7818
      %7820 = vdwg.mxu0
      %v7821 = vadd.f32 %v7215, %v7742
      %v7822 = vadd.f32 %v7216, %v7744
      %v7823 = vadd.f32 %v7217, %v7747
      %v7824 = vadd.f32 %v7218, %v7749
      %v7825 = vadd.f32 %v7219, %v7752
      %v7826 = vadd.f32 %v7220, %v7754
      %v7827 = vadd.f32 %v7221, %v7757
      %v7828 = vadd.f32 %v7222, %v7759
      %v7829 = vadd.f32 %v7223, %v7762
      %v7830 = vadd.f32 %v7224, %v7764
      %v7831 = vadd.f32 %v7225, %v7767
      %v7832 = vadd.f32 %v7226, %v7769
      %v7833 = vadd.f32 %v7227, %v7772
      %v7834 = vadd.f32 %v7228, %v7774
      %v7835 = vadd.f32 %v7229, %v7777
      %v7836 = vadd.f32 %v7230, %v7779
      %v7837 = vadd.f32 %v7231, %v7782
      %v7838 = vadd.f32 %v7232, %v7784
      %v7839 = vadd.f32 %v7233, %v7787
      %v7840 = vadd.f32 %v7234, %v7789
      %v7841 = vadd.f32 %v7235, %v7792
      %v7842 = vadd.f32 %v7236, %v7794
      %v7843 = vadd.f32 %v7237, %v7797
      %v7844 = vadd.f32 %v7238, %v7799
      %v7845 = vadd.f32 %v7239, %v7802
      %v7846 = vadd.f32 %v7240, %v7804
      %v7847 = vadd.f32 %v7241, %v7807
      %v7848 = vadd.f32 %v7242, %v7809
      %v7849 = vadd.f32 %v7243, %v7812
      %v7850 = vadd.f32 %v7244, %v7814
      %v7851 = vadd.f32 %v7245, %v7817
      %v7852 = vadd.f32 %v7246, %v7819
      %v7853 = vtanh.pop %v7821
      %v7854 = vtanh.pop %v7822
      %v7855 = vtanh.pop %v7823
      %v7856 = vtanh.pop %v7824
      %v7857 = vtanh.pop %v7825
      %v7858 = vtanh.pop %v7826
      %v7859 = vtanh.pop %v7827
      %v7860 = vtanh.pop %v7828
      %v7861 = vtanh.pop %v7829
      %v7862 = vtanh.pop %v7830
      %v7863 = vtanh.pop %v7831
      %v7864 = vtanh.pop %v7832
      %v7865 = vtanh.pop %v7833
      %v7866 = vtanh.pop %v7834
      %v7867 = vtanh.pop %v7835
      %v7868 = vtanh.pop %v7836
      %v7869 = vtanh.pop %v7837
      %v7870 = vtanh.pop %v7838
      %v7871 = vtanh.pop %v7839
      %v7872 = vtanh.pop %v7840
      %v7873 = vtanh.pop %v7841
      %v7874 = vtanh.pop %v7842
      %v7875 = vtanh.pop %v7843
      %v7876 = vtanh.pop %v7844
      %v7877 = vtanh.pop %v7845
      %v7878 = vtanh.pop %v7846
      %v7879 = vtanh.pop %v7847
      %v7880 = vtanh.pop %v7848
      %v7881 = vtanh.pop %v7849
      %v7882 = vtanh.pop %v7850
      %v7883 = vtanh.pop %v7851
      %v7884 = vtanh.pop %v7852
      %7885 = vst [vmem:[%s159] sm:$0xff] %v7853
      %7886 = vst [vmem:[%s159 + $0x8] sm:$0xff] %v7854
      %7887 = vst [vmem:[%s159 + $0x10] sm:$0xff] %v7855
      %7888 = vst [vmem:[%s159 + $0x18] sm:$0xff] %v7856
      %7889 = vst [vmem:[%s159 + $0x20] sm:$0xff] %v7857
      %7890 = vst [vmem:[%s159 + $0x28] sm:$0xff] %v7858
      %7891 = vst [vmem:[%s159 + $0x30] sm:$0xff] %v7859
      %7892 = vst [vmem:[%s159 + $0x38] sm:$0xff] %v7860
      %7893 = vst [vmem:[%s159 + $0x40] sm:$0xff] %v7861
      %7894 = vst [vmem:[%s159 + $0x48] sm:$0xff] %v7862
      %7895 = vst [vmem:[%s159 + $0x50] sm:$0xff] %v7863
      %7896 = vst [vmem:[%s159 + $0x58] sm:$0xff] %v7864
      %7897 = vst [vmem:[%s159 + $0x60] sm:$0xff] %v7865
      %7898 = vst [vmem:[%s159 + $0x68] sm:$0xff] %v7866
      %7899 = vst [vmem:[%s159 + $0x70] sm:$0xff] %v7867
      %7900 = vst [vmem:[%s159 + $0x78] sm:$0xff] %v7868
      %7901 = vst [vmem:[%s159 + $0x80] sm:$0xff] %v7869
      %7902 = vst [vmem:[%s159 + $0x88] sm:$0xff] %v7870
      %7903 = vst [vmem:[%s159 + $0x90] sm:$0xff] %v7871
      %7904 = vst [vmem:[%s159 + $0x98] sm:$0xff] %v7872
      %7905 = vst [vmem:[%s159 + $0xa0] sm:$0xff] %v7873
      %7906 = vst [vmem:[%s159 + $0xa8] sm:$0xff] %v7874
      %7907 = vst [vmem:[%s159 + $0xb0] sm:$0xff] %v7875
      %7908 = vst [vmem:[%s159 + $0xb8] sm:$0xff] %v7876
      %7909 = vst [vmem:[%s159 + $0xc0] sm:$0xff] %v7877
      %7910 = vst [vmem:[%s159 + $0xc8] sm:$0xff] %v7878
      %7911 = vst [vmem:[%s159 + $0xd0] sm:$0xff] %v7879
      %7912 = vst [vmem:[%s159 + $0xd8] sm:$0xff] %v7880
      %7913 = vst [vmem:[%s159 + $0xe0] sm:$0xff] %v7881
      %7914 = vst [vmem:[%s159 + $0xe8] sm:$0xff] %v7882
      %7915 = vst [vmem:[%s159 + $0xf0] sm:$0xff] %v7883
      %7916 = vst [vmem:[%s159 + $0xf8] sm:$0xff] %v7884
      %s7917 = sadd.s32 %s17, %s18
      %s7918 = smul.u32 32, %s7917
      %p7919 = scmp.lt.s32.totalorder %s7918, 63
      %s7920 = scalar_select %p7919, %s7918, 63
      %s7921 = smul.addr %s7920, 8
      %s7922 = scalar_lea.vmem %s2, %s7921
      // Predicated region
      $region29: #{_lambda_.9} parent=27 // pred_check
        %p7923 = pneg %p92
      $region30: #{_lambda_.9} parent=27 // pred_check_branch
        %7925 = sbr.rel (%p7923) target = $region32
      $region31: #{_lambda_.9} parent=27 // pred_region
        %s7926 = sadd.s32 %s17, %s18
        %s7927 = smul.u32 32, %s7926
      $region32: #{_lambda_.9} parent=27 // pred_fallthru
        _
    $region28: #{_lambda_.9} parent=5 // pred_fallthru
      _
    %p7928 = scmp.le.s32.totalorder 2, %s8
    // Predicated region
    $region33: #{_lambda_.9} parent=5 // pred_check
      %p7929 = pneg %p7928
    $region34: #{_lambda_.9} parent=5 // pred_check_branch
      %7931 = sbr.rel (%p7929) target = $region36
    $region35: #{_lambda_.9} parent=5 // pred_region
      %s7932 = ssub.s32 %s8, 2
      // Predicated region
      $region37: #{_lambda_.9} parent=35 // pred_check
        %p7933 = pneg %p98
      $region38: #{_lambda_.9} parent=35 // pred_check_branch
        %7935 = sbr.rel (%p7933) target = $region40
      $region39: #{_lambda_.9} parent=35 // pred_region
        %s7936 = sadd.s32 %s19, %s20
        %s7937 = smul.u32 32, %s7936
        %p7938 = scmp.lt.s32.totalorder %s7937, 63
        %s7939 = scalar_select %p7938, %s7937, 63
        %s7940 = smul.addr %s7939, 8
        %s7941 = scalar_lea.vmem %s2, %s7940
      $region40: #{_lambda_.9} parent=35 // pred_fallthru
        _
    $region36: #{_lambda_.9} parent=5 // pred_fallthru
      _
  $region6: #{_lambda_.9} parent=0 // loop_footer
    %s12 = sadd.s32 1, %s8
  $region7: #{_lambda_.9} parent=0 // loop_footer_branch
    %7 = sbr.rel target = $region3
  $region8: #{_lambda_.9} parent=0 // loop_exit
    _

</llo_original>
